<compile_context>
chip_gen: v6e
topology: v6e:2x2x1
jax: 0.10.0
libtpu: 0.0.40
codegen_flags: <defaults>
</compile_context>

<pallas_src>
import math
from functools import partial

import jax
import jax.numpy as jnp
from jax.experimental import pallas as pl
from jax.experimental.pallas import tpu as pltpu

# Gate for bf16 MXU inputs (f32 accumulation).  Off by default to preserve
# numerics vs. the f32 torch reference; flip on v6e/v7x for ~2-3x MXU throughput.
USE_BF16_MATMUL = False


# --------------------------------------------------------------------------- helpers
def _mm(a, b):
    if USE_BF16_MATMUL:
        a = a.astype(jnp.bfloat16)
        b = b.astype(jnp.bfloat16)
    return jnp.dot(a, b, preferred_element_type=jnp.float32)


def _erf(z):
    # Abramowitz-Stegun 7.1.26 (|err| < 1.5e-7); closest-to-torch exact-GELU that is
    # guaranteed to lower in Mosaic (lax.erf lowering support is uncertain).
    a1, a2, a3, a4, a5 = 0.254829592, -0.284496736, 1.421413741, -1.453152027, 1.061405429
    p = 0.3275911
    s = jnp.where(z < 0.0, -1.0, 1.0)
    za = jnp.abs(z)
    t = 1.0 / (1.0 + p * za)
    poly = ((((a5 * t + a4) * t + a3) * t + a2) * t + a1) * t
    return s * (1.0 - poly * jnp.exp(-za * za))


def _gelu(x):
    # torch nn.GELU() default (exact, erf-based)
    return 0.5 * x * (1.0 + _erf(x * (1.0 / math.sqrt(2.0))))


def _cparams(*dims):
    return pltpu.CompilerParams(
        dimension_semantics=dims,
        vmem_limit_bytes=32 * 1024 * 1024,
    )


def _pick_rows(total, max_rows=512):
    """Largest divisor of `total` that is <= max_rows and a multiple of 8 (else total)."""
    if total <= max_rows:
        return total
    for t in range(max_rows, 0, -1):
        if total % t == 0 and t % 8 == 0:
            return t
    return total


def _pick_group(bh, n, tkv, budget_bytes=8 << 20):
    """Heads-per-step for attention, bounded by a VMEM budget for the sim tile."""
    g = 1
    for cand in range(1, bh + 1):
        if bh % cand == 0 and cand * n * max(tkv, 128) * 4 <= budget_bytes:
            g = cand
    return g


# --------------------------------------------------------------------------- kernels
def _ln_qkv_kernel(x_ref, g_ref, b_ref, w_ref, o_ref):
    # ChanLayerNorm (over channels, unbiased=False, eps=1e-5) fused as the prologue
    # of the bias-free qkv 1x1 conv (per-pixel matmul).
    x = x_ref[...]                                            # (tm, C)
    mean = jnp.mean(x, axis=-1, keepdims=True)
    var = jnp.mean(jnp.square(x - mean), axis=-1, keepdims=True)
    xn = (x - mean) * jax.lax.rsqrt(var + 1e-5) * g_ref[...] + b_ref[...]
    o_ref[...] = _mm(xn, w_ref[...])                          # (tm, 3*inner)


def _l2norm_qk_kernel(x_ref, o_ref, *, n_qk):
    # F.normalize(dim=-1) of the reference is over the *width* axis of the
    # (b, heads, d, h, w) view; here x is (rows=B*H tile, W, 3*inner) and we
    # normalize over W for the q/k channels (< n_qk), identity for v.
    x = x_ref[...]
    ssq = jnp.sum(x * x, axis=1, keepdims=True)
    nrm = jnp.maximum(jnp.sqrt(ssq), 1e-12)
    y = x / nrm
    ch = jax.lax.broadcasted_iota(jnp.int32, x.shape, dimension=2)
    o_ref[...] = jnp.where(ch < n_qk, y, x)


def _attn_kernel(q_ref, k_ref, v_ref, o_ref, m_sc, l_sc, acc_sc):
    # Online-softmax attention over KV tiles; G (batch*head) slices per grid step.
    # The reference forward never applies self.scale; dropout p=0.0 -> identity.
    kv = pl.program_id(1)

    @pl.when(kv == 0)
    def _():
        m_sc[...] = jnp.full_like(m_sc, -jnp.inf)
        l_sc[...] = jnp.zeros_like(l_sc)
        acc_sc[...] = jnp.zeros_like(acc_sc)

    q = q_ref[...]                                            # (G, n, d)
    k = k_ref[...]                                            # (G, tkv, d)
    v = v_ref[...]
    s = jnp.einsum("gqd,gkd->gqk", q, k, preferred_element_type=jnp.float32)
    m_prev = m_sc[...]
    m_new = jnp.maximum(m_prev, s.max(axis=-1, keepdims=True))
    alpha = jnp.exp(m_prev - m_new)
    p = jnp.exp(s - m_new)
    l_sc[...] = alpha * l_sc[...] + p.sum(axis=-1, keepdims=True)
    acc_sc[...] = alpha * acc_sc[...] + jnp.einsum(
        "gqk,gkd->gqd", p, v, preferred_element_type=jnp.float32)
    m_sc[...] = m_new

    @pl.when(kv == pl.num_programs(1) - 1)
    def _():
        o_ref[...] = (acc_sc[...] * pl.reciprocal(l_sc[...], approx=True)
                      ).astype(o_ref.dtype)


def _to_out_comb_kernel(a_ref, conv_ref, x_ref, wo_ref, bo_ref, w0_ref, w1_ref,
                        bc_ref, o_ref):
    # Fused: to_out 1x1 conv, then the combine 1x1 conv split into its attn/conv
    # halves (no concatenate), plus the "+ x" residual.
    attn = _mm(a_ref[...], wo_ref[...]) + bo_ref[...]         # (tm, C)
    o_ref[...] = (_mm(attn, w0_ref[...]) + _mm(conv_ref[...], w1_ref[...])
                  + bc_ref[...] + x_ref[...])


def _dwconv_kernel(xp_ref, w_ref, b_ref, o_ref):
    # Depthwise 3x3 conv (padding=1, groups=C), NHWC, per-batch grid step,
    # input pre-padded to (H+2, W+2).
    _, h, wd, c = o_ref.shape
    wk = w_ref[...]                                           # (9, C)
    acc = jnp.zeros(o_ref.shape, jnp.float32)
    for i in range(3):
        for j in range(3):
            tap = xp_ref[:, i:i + h, j:j + wd, :]
            acc = acc + tap * wk[i * 3 + j:i * 3 + j + 1, :].reshape(1, 1, 1, c)
    o_ref[...] = acc + b_ref[...].reshape(1, 1, 1, c)


def _instnorm_cols(z, eps=1e-5):
    # InstanceNorm2d(affine=False): per-channel (columns) stats over spatial (rows).
    mean = jnp.mean(z, axis=0, keepdims=True)
    var = jnp.mean(jnp.square(z - mean), axis=0, keepdims=True)
    return (z - mean) * jax.lax.rsqrt(var + eps)


def _ff1_map_kernel(x_ref, w1_ref, b1_ref, wm_ref, bm_ref, y_ref, map_ref):
    # Per-batch tile: ff1 1x1 conv + bias + InstanceNorm + GELU, and the
    # attn_map 1x1 conv sharing the same attn_out read.
    x = x_ref[0]                                              # (HW, C)
    z = _mm(x, w1_ref[...]) + b1_ref[...]
    y_ref[0] = _gelu(_instnorm_cols(z))
    map_ref[0] = _mm(x, wm_ref[...]) + bm_ref[...]


def _ffdw_kernel(xp_ref, y_ref, w_ref, b_ref, o_ref):
    # Per-batch tile: depthwise 3x3 + bias + InstanceNorm + GELU + residual (+y).
    _, h, wd, cc = o_ref.shape
    wk = w_ref[...]                                           # (9, CC)
    acc = jnp.zeros(o_ref.shape, jnp.float32)
    for i in range(3):
        for j in range(3):
            tap = xp_ref[:, i:i + h, j:j + wd, :]
            acc = acc + tap * wk[i * 3 + j:i * 3 + j + 1, :].reshape(1, 1, 1, cc)
    z = acc + b_ref[...].reshape(1, 1, 1, cc)
    # InstanceNorm over spatial (axes 1,2) as two single-axis reductions.
    mean = jnp.mean(jnp.mean(z, axis=2, keepdims=True), axis=1, keepdims=True)
    d0 = z - mean
    var = jnp.mean(jnp.mean(d0 * d0, axis=2, keepdims=True), axis=1, keepdims=True)
    zn = d0 * jax.lax.rsqrt(var + 1e-5)
    o_ref[...] = _gelu(zn) + y_ref[...]


def _ff2_kernel(x_ref, w_ref, b_ref, o_ref):
    # Per-batch tile: ff2 1x1 conv + bias + trailing InstanceNorm (no GELU).
    x = x_ref[0]                                              # (HW, CC)
    z = _mm(x, w_ref[...]) + b_ref[...]
    o_ref[0] = _instnorm_cols(z)


# --------------------------------------------------------------------------- wrappers
def ln_qkv(x2d, g, b, w):
    m, c = x2d.shape
    n = w.shape[1]
    tm = _pick_rows(m)
    row = lambda i: (i, 0)
    full = lambda i: (0, 0)
    return pl.pallas_call(
        _ln_qkv_kernel,
        out_shape=jax.ShapeDtypeStruct((m, n), jnp.float32),
        grid=(m // tm,),
        in_specs=[pl.BlockSpec((tm, c), row),
                  pl.BlockSpec((1, c), full),
                  pl.BlockSpec((1, c), full),
                  pl.BlockSpec((c, n), full)],
        out_specs=pl.BlockSpec((tm, n), row),
        compiler_params=_cparams("parallel"),
    )(x2d, g, b, w)


def l2norm_qk(qkv2d, bsz, h, w, n_qk):
    cc = qkv2d.shape[-1]
    x3 = qkv2d.reshape(bsz * h, w, cc)
    rows = bsz * h
    tr = _pick_rows(rows, 256)
    blk = lambda i: (i, 0, 0)
    y = pl.pallas_call(
        partial(_l2norm_qk_kernel, n_qk=n_qk),
        out_shape=jax.ShapeDtypeStruct(x3.shape, jnp.float32),
        grid=(rows // tr,),
        in_specs=[pl.BlockSpec((tr, w, cc), blk)],
        out_specs=pl.BlockSpec((tr, w, cc), blk),
        compiler_params=_cparams("parallel"),
    )(x3)
    return y.reshape(bsz * h * w, cc)


def attention(q, k, v):
    bh, n, d = q.shape
    tkv = n if n <= 512 else _pick_rows(n, 512)
    g = _pick_group(bh, n, tkv)
    q_spec = pl.BlockSpec((g, n, d), lambda i, j: (i, 0, 0))
    kv_spec = pl.BlockSpec((g, tkv, d), lambda i, j: (i, j, 0))
    return pl.pallas_call(
        _attn_kernel,
        out_shape=jax.ShapeDtypeStruct((bh, n, d), jnp.float32),
        grid=(bh // g, n // tkv),
        in_specs=[q_spec, kv_spec, kv_spec],
        out_specs=q_spec,
        scratch_shapes=[pltpu.VMEM((g, n, 1), jnp.float32),
                        pltpu.VMEM((g, n, 1), jnp.float32),
                        pltpu.VMEM((g, n, d), jnp.float32)],
        compiler_params=_cparams("parallel", "arbitrary"),
    )(q, k, v)


def to_out_comb(out_cl, conv_cl, x_cl, wo, bo, w0, w1, bc):
    m, inner = out_cl.shape
    c = x_cl.shape[1]
    tm = _pick_rows(m)
    row = lambda i: (i, 0)
    full = lambda i: (0, 0)
    return pl.pallas_call(
        _to_out_comb_kernel,
        out_shape=jax.ShapeDtypeStruct((m, c), jnp.float32),
        grid=(m // tm,),
        in_specs=[pl.BlockSpec((tm, inner), row),
                  pl.BlockSpec((tm, c), row),
                  pl.BlockSpec((tm, c), row),
                  pl.BlockSpec((inner, c), full),
                  pl.BlockSpec((1, c), full),
                  pl.BlockSpec((c, c), full),
                  pl.BlockSpec((c, c), full),
                  pl.BlockSpec((1, c), full)],
        out_specs=pl.BlockSpec((tm, c), row),
        compiler_params=_cparams("parallel"),
    )(out_cl, conv_cl, x_cl, wo, bo, w0, w1, bc)


def dwconv3x3(x_nhwc, w9, b):
    bsz, h, wd, c = x_nhwc.shape
    # TODO(synk): supply the 1-pixel halo via overlapping blocks / in-kernel DMA
    # instead of this wrapper-side full-tensor pad.
    xp = jnp.pad(x_nhwc, ((0, 0), (1, 1), (1, 1), (0, 0)))
    return pl.pallas_call(
        _dwconv_kernel,
        out_shape=jax.ShapeDtypeStruct((bsz, h, wd, c), jnp.float32),
        grid=(bsz,),
        in_specs=[pl.BlockSpec((1, h + 2, wd + 2, c), lambda i: (i, 0, 0, 0)),
                  pl.BlockSpec((9, c), lambda i: (0, 0)),
                  pl.BlockSpec((1, c), lambda i: (0, 0))],
        out_specs=pl.BlockSpec((1, h, wd, c), lambda i: (i, 0, 0, 0)),
        compiler_params=_cparams("parallel"),
    )(xp, w9, b)


def ff1_and_map(attn_out3, w1, b1, wm, bm):
    bsz, hw, c = attn_out3.shape
    ffi = w1.shape[1]
    nmap = wm.shape[1]
    blk = lambda i: (i, 0, 0)
    full = lambda i: (0, 0)
    return pl.pallas_call(
        _ff1_map_kernel,
        out_shape=(jax.ShapeDtypeStruct((bsz, hw, ffi), jnp.float32),
                   jax.ShapeDtypeStruct((bsz, hw, nmap), jnp.float32)),
        grid=(bsz,),
        in_specs=[pl.BlockSpec((1, hw, c), blk),
                  pl.BlockSpec((c, ffi), full),
                  pl.BlockSpec((1, ffi), full),
                  pl.BlockSpec((c, nmap), full),
                  pl.BlockSpec((1, nmap), full)],
        out_specs=(pl.BlockSpec((1, hw, ffi), blk),
                   pl.BlockSpec((1, hw, nmap), blk)),
        compiler_params=_cparams("parallel"),
    )(attn_out3, w1, b1, wm, bm)


def ffdw_block(y_nhwc, w9, b):
    bsz, h, wd, cc = y_nhwc.shape
    yp = jnp.pad(y_nhwc, ((0, 0), (1, 1), (1, 1), (0, 0)))
    return pl.pallas_call(
        _ffdw_kernel,
        out_shape=jax.ShapeDtypeStruct((bsz, h, wd, cc), jnp.float32),
        grid=(bsz,),
        in_specs=[pl.BlockSpec((1, h + 2, wd + 2, cc), lambda i: (i, 0, 0, 0)),
                  pl.BlockSpec((1, h, wd, cc), lambda i: (i, 0, 0, 0)),
                  pl.BlockSpec((9, cc), lambda i: (0, 0)),
                  pl.BlockSpec((1, cc), lambda i: (0, 0))],
        out_specs=pl.BlockSpec((1, h, wd, cc), lambda i: (i, 0, 0, 0)),
        compiler_params=_cparams("parallel"),
    )(yp, y_nhwc, w9, b)


def ff2_block(y3, w, b):
    bsz, hw, cc = y3.shape
    c = w.shape[1]
    blk = lambda i: (i, 0, 0)
    full = lambda i: (0, 0)
    return pl.pallas_call(
        _ff2_kernel,
        out_shape=jax.ShapeDtypeStruct((bsz, hw, c), jnp.float32),
        grid=(bsz,),
        in_specs=[pl.BlockSpec((1, hw, cc), blk),
                  pl.BlockSpec((cc, c), full),
                  pl.BlockSpec((1, c), full)],
        out_specs=pl.BlockSpec((1, hw, c), blk),
        compiler_params=_cparams("parallel"),
    )(y3, w, b)


# --------------------------------------------------------------------------- HPB forward
def hpb_forward(x, params, *, heads, dim_head, height_top_k=16, width_top_k=16):
    bsz, c, h, wd = x.shape
    inner = heads * dim_head
    if height_top_k < h or width_top_k < wd:
        # TODO(synk): DPSA top-k height/width pruning (torch.topk + gather) not
        # implemented; the default top_k=16 >= H,W skips that branch in the reference.
        raise NotImplementedError("DPSA top-k pruning path not implemented")

    m = bsz * h * wd
    hw = h * wd
    x_cl = jnp.transpose(x, (0, 2, 3, 1)).reshape(m, c)       # single entry transpose

    # ----- DPSA (attention) branch -----
    qkv_cl = ln_qkv(x_cl, params["cln_g"], params["cln_b"], params["qkv_w"])
    qkv_cl = l2norm_qk(qkv_cl, bsz, h, wd, 2 * inner)         # l2norm over W for q,k

    # raw NCHW reshapes, exactly as torch `.view(...).reshape(b*heads, h*w, d)`
    qkv_nchw = jnp.transpose(qkv_cl.reshape(bsz, h, wd, 3 * inner), (0, 3, 1, 2))
    q2 = qkv_nchw[:, :inner].reshape(bsz * heads, hw, dim_head)
    k2 = qkv_nchw[:, inner:2 * inner].reshape(bsz * heads, hw, dim_head)
    v2 = qkv_nchw[:, 2 * inner:].reshape(bsz * heads, hw, dim_head)
    o2 = attention(q2, k2, v2)                                # no scale, dropout p=0

    out = o2.reshape(bsz, heads, dim_head, h, wd)
    out = jnp.transpose(out, (0, 1, 3, 4, 2)).reshape(bsz, inner, h, wd)
    out_cl = jnp.transpose(out, (0, 2, 3, 1)).reshape(m, inner)

    # ----- depthwise conv branch (channels-last) -----
    conv_cl = dwconv3x3(x_cl.reshape(bsz, h, wd, c),
                        params["dw_w"], params["dw_b"]).reshape(m, c)

    # ----- fused to_out + combine + residual -----
    attn_out_cl = to_out_comb(out_cl, conv_cl, x_cl,
                              params["to_out_w"], params["to_out_b"],
                              params["comb_w0"], params["comb_w1"], params["comb_b"])

    # ----- feed-forward (fused bias/InstanceNorm/GELU epilogues) + attn map -----
    attn_out3 = attn_out_cl.reshape(bsz, hw, c)
    y3, amap3 = ff1_and_map(attn_out3, params["ff1_w"], params["ff1_b"],
                            params["map_w"], params["map_b"])
    y_nhwc = y3.reshape(bsz, h, wd, -1)
    r3 = ffdw_block(y_nhwc, params["ffdw_w"], params["ffdw_b"]).reshape(bsz, hw, -1)
    ff3 = ff2_block(r3, params["ff2_w"], params["ff2_b"])

    ff_out = jnp.transpose(ff3.reshape(bsz, h, wd, c), (0, 3, 1, 2))
    attn_map = jnp.transpose(amap3.reshape(bsz, h, wd, -1), (0, 3, 1, 2))
    return ff_out, attn_map


# --------------------------------------------------------------------------- params
def init_params(key, c, heads, dim_head, ff_mult):
    inner = heads * dim_head
    ffi = c * ff_mult
    ks = jax.random.split(key, 16)

    def w(k, shape, scale=0.1):
        return (scale * jax.random.normal(k, shape)).astype(jnp.float32)

    return dict(
        cln_g=jnp.ones((1, c), jnp.float32),
        cln_b=jnp.zeros((1, c), jnp.float32),
        qkv_w=w(ks[0], (c, inner * 3)),         # Conv2d(bias=False)
        to_out_w=w(ks[1], (inner, c)),
        to_out_b=w(ks[2], (1, c)),
        dw_w=w(ks[3], (9, c)),                  # tap-major (ky*3+kx, C) depthwise weights
        dw_b=w(ks[4], (1, c)),
        comb_w0=w(ks[5], (c, c)),               # combine-conv weight, attn half
        comb_w1=w(ks[6], (c, c)),               # combine-conv weight, conv half
        comb_b=w(ks[7], (1, c)),
        ff1_w=w(ks[8], (c, ffi)),
        ff1_b=w(ks[9], (1, ffi)),
        ffdw_w=w(ks[10], (9, ffi)),
        ffdw_b=w(ks[11], (1, ffi)),
        ff2_w=w(ks[12], (ffi, c)),
        ff2_b=w(ks[13], (1, c)),
        map_w=w(ks[14], (c, 8)),
        map_b=w(ks[15], (1, 8)),
    )


if __name__ == "__main__":
    key = jax.random.PRNGKey(0)
    kx, kp = jax.random.split(key)

    B, C, H, W = 2, 8, 8, 8
    heads, dim_head, ff_mult = 4, 8, 2          # inner_dim = 32, ff_inner = 16
    x = jax.random.normal(kx, (B, C, H, W), jnp.float32)
    params = init_params(kp, C, heads, dim_head, ff_mult)

    fwd = jax.jit(partial(hpb_forward, heads=heads, dim_head=dim_head,
                          height_top_k=16, width_top_k=16))
    ff_out, attn_map = fwd(x, params)
    jax.block_until_ready((ff_out, attn_map))

    assert ff_out.shape == (B, C, H, W)
    assert attn_map.shape == (B, 8, H, W)
    assert bool(jnp.all(jnp.isfinite(ff_out))) and bool(jnp.all(jnp.isfinite(attn_map)))
    print("KERNEL_OK")
</pallas_src>

<mosaic_0001>
module attributes {stable_mosaic.version = 11 : i64} {
  func.func @_ln_qkv_kernel(%arg0: i32, %arg1: memref<128x8xf32, #tpu.memory_space<vmem>>, %arg2: memref<1x8xf32, #tpu.memory_space<vmem>>, %arg3: memref<1x8xf32, #tpu.memory_space<vmem>>, %arg4: memref<8x96xf32, #tpu.memory_space<vmem>>, %arg5: memref<128x96xf32, #tpu.memory_space<vmem>>) attributes {dimension_semantics = [#tpu.dimension_semantics<parallel>], iteration_bounds = array<i64: 1>, scalar_prefetch = 0 : i64, scratch_operands = 0 : i64, tpu.core_type = #tpu.core_type<tc>, window_params = [{transform_indices = @transform_0, window_bounds = array<i64: 128, 8>}, {pipeline_mode = #tpu.pipeline_mode<synchronous>, transform_indices = @transform_1, window_bounds = array<i64: 1, 8>}, {pipeline_mode = #tpu.pipeline_mode<synchronous>, transform_indices = @transform_2, window_bounds = array<i64: 1, 8>}, {pipeline_mode = #tpu.pipeline_mode<synchronous>, transform_indices = @transform_3, window_bounds = array<i64: 8, 96>}, {transform_indices = @transform_4, window_bounds = array<i64: 128, 96>}]} {
    %c0 = arith.constant 0 : index
    %c0_0 = arith.constant 0 : index
    %0 = vector.load %arg1[%c0, %c0_0] : memref<128x8xf32, #tpu.memory_space<vmem>>, vector<128x8xf32>
    %cst = arith.constant dense<0.000000e+00> : vector<128xf32>
    %1 = vector.multi_reduction <add>, %0, %cst [1] : vector<128x8xf32> to vector<128xf32>
    %2 = vector.shape_cast %1 : vector<128xf32> to vector<128x1xf32>
    %cst_1 = arith.constant 8.000000e+00 : f32
    %3 = vector.broadcast %cst_1 : f32 to vector<128x1xf32>
    %4 = arith.divf %2, %3 : vector<128x1xf32>
    %5 = vector.broadcast %4 : vector<128x1xf32> to vector<128x8xf32>
    %6 = arith.subf %0, %5 : vector<128x8xf32>
    %7 = arith.mulf %6, %6 : vector<128x8xf32>
    %cst_2 = arith.constant dense<0.000000e+00> : vector<128xf32>
    %8 = vector.multi_reduction <add>, %7, %cst_2 [1] : vector<128x8xf32> to vector<128xf32>
    %9 = vector.shape_cast %8 : vector<128xf32> to vector<128x1xf32>
    %cst_3 = arith.constant 8.000000e+00 : f32
    %10 = vector.broadcast %cst_3 : f32 to vector<128x1xf32>
    %11 = arith.divf %9, %10 : vector<128x1xf32>
    %12 = vector.broadcast %4 : vector<128x1xf32> to vector<128x8xf32>
    %13 = arith.subf %0, %12 : vector<128x8xf32>
    %cst_4 = arith.constant 9.99999974E-6 : f32
    %14 = vector.broadcast %cst_4 : f32 to vector<128x1xf32>
    %15 = arith.addf %11, %14 : vector<128x1xf32>
    %16 = math.rsqrt %15 : vector<128x1xf32>
    %17 = vector.broadcast %16 : vector<128x1xf32> to vector<128x8xf32>
    %18 = arith.mulf %13, %17 : vector<128x8xf32>
    %c0_5 = arith.constant 0 : index
    %c0_6 = arith.constant 0 : index
    %19 = vector.load %arg2[%c0_5, %c0_6] : memref<1x8xf32, #tpu.memory_space<vmem>>, vector<1x8xf32>
    %20 = vector.broadcast %19 : vector<1x8xf32> to vector<128x8xf32>
    %21 = arith.mulf %18, %20 : vector<128x8xf32>
    %c0_7 = arith.constant 0 : index
    %c0_8 = arith.constant 0 : index
    %22 = vector.load %arg3[%c0_7, %c0_8] : memref<1x8xf32, #tpu.memory_space<vmem>>, vector<1x8xf32>
    %23 = vector.broadcast %22 : vector<1x8xf32> to vector<128x8xf32>
    %24 = arith.addf %21, %23 : vector<128x8xf32>
    %c0_9 = arith.constant 0 : index
    %c0_10 = arith.constant 0 : index
    %25 = vector.load %arg4[%c0_9, %c0_10] : memref<8x96xf32, #tpu.memory_space<vmem>>, vector<8x96xf32>
    %cst_11 = arith.constant dense<0.000000e+00> : vector<128x96xf32>
    %26 = tpu.matmul %24, %25, %cst_11 {dimension_numbers = #tpu.dot_dimension_numbers<[1], [0], [0], [1], [0, 0, 1, 1], [], []>} : vector<128x8xf32>, vector<8x96xf32>, vector<128x96xf32> -> vector<128x96xf32>
    %c0_12 = arith.constant 0 : index
    %c0_13 = arith.constant 0 : index
    %27 = vector.load %arg5[%c0_12, %c0_13] : memref<128x96xf32, #tpu.memory_space<vmem>>, vector<128x96xf32>
    tpu.vector_store %arg5[%c0_12, %c0_13], %26 {strides = array<i32>} : memref<128x96xf32, #tpu.memory_space<vmem>>, vector<128x96xf32>,
    return
  }
  func.func @transform_0(%arg0: i32) -> (i32, i32) {
    %c0_i32 = arith.constant 0 : i32
    %c0_i32_0 = arith.constant 0 : i32
    return %arg0, %c0_i32 : i32, i32
  }
  func.func @transform_1(%arg0: i32) -> (i32, i32) {
    %c0_i32 = arith.constant 0 : i32
    %c0_i32_0 = arith.constant 0 : i32
    %c0_i32_1 = arith.constant 0 : i32
    return %c0_i32, %c0_i32_0 : i32, i32
  }
  func.func @transform_2(%arg0: i32) -> (i32, i32) {
    %c0_i32 = arith.constant 0 : i32
    %c0_i32_0 = arith.constant 0 : i32
    %c0_i32_1 = arith.constant 0 : i32
    return %c0_i32, %c0_i32_0 : i32, i32
  }
  func.func @transform_3(%arg0: i32) -> (i32, i32) {
    %c0_i32 = arith.constant 0 : i32
    %c0_i32_0 = arith.constant 0 : i32
    %c0_i32_1 = arith.constant 0 : i32
    return %c0_i32, %c0_i32_0 : i32, i32
  }
  func.func @transform_4(%arg0: i32) -> (i32, i32) {
    %c0_i32 = arith.constant 0 : i32
    %c0_i32_0 = arith.constant 0 : i32
    return %arg0, %c0_i32 : i32, i32
  }
}

module attributes {stable_mosaic.version = 11 : i64} {
  func.func @_l2norm_qk_kernel(%arg0: i32, %arg1: memref<16x8x96xf32, #tpu.memory_space<vmem>>, %arg2: memref<16x8x96xf32, #tpu.memory_space<vmem>>) attributes {dimension_semantics = [#tpu.dimension_semantics<parallel>], iteration_bounds = array<i64: 1>, scalar_prefetch = 0 : i64, scratch_operands = 0 : i64, tpu.core_type = #tpu.core_type<tc>, window_params = [{transform_indices = @transform_0, window_bounds = array<i64: 16, 8, 96>}, {transform_indices = @transform_1, window_bounds = array<i64: 16, 8, 96>}]} {
    %c0 = arith.constant 0 : index
    %c0_0 = arith.constant 0 : index
    %c0_1 = arith.constant 0 : index
    %0 = vector.load %arg1[%c0, %c0_0, %c0_1] : memref<16x8x96xf32, #tpu.memory_space<vmem>>, vector<16x8x96xf32>
    %1 = arith.mulf %0, %0 : vector<16x8x96xf32>
    %cst = arith.constant dense<0.000000e+00> : vector<16x96xf32>
    %2 = vector.multi_reduction <add>, %1, %cst [1] : vector<16x8x96xf32> to vector<16x96xf32>
    %3 = vector.shape_cast %2 : vector<16x96xf32> to vector<16x1x96xf32>
    %4 = math.sqrt %3 : vector<16x1x96xf32>
    %cst_2 = arith.constant 9.99999996E-13 : f32
    %5 = vector.broadcast %cst_2 : f32 to vector<16x1x96xf32>
    %6 = arith.maximumf %4, %5 : vector<16x1x96xf32>
    %7 = vector.broadcast %6 : vector<16x1x96xf32> to vector<16x8x96xf32>
    %8 = arith.divf %0, %7 : vector<16x8x96xf32>
    %9 = tpu.iota {dimensions = array<i32: 2>} : vector<16x8x96xi32>
    %c64_i32 = arith.constant 64 : i32
    %10 = vector.broadcast %c64_i32 : i32 to vector<16x8x96xi32>
    %11 = arith.cmpi slt, %9, %10 : vector<16x8x96xi32>
    %12 = arith.select %11, %8, %0 : vector<16x8x96xi1>, vector<16x8x96xf32>
    %c0_3 = arith.constant 0 : index
    %c0_4 = arith.constant 0 : index
    %c0_5 = arith.constant 0 : index
    %13 = vector.load %arg2[%c0_3, %c0_4, %c0_5] : memref<16x8x96xf32, #tpu.memory_space<vmem>>, vector<16x8x96xf32>
    tpu.vector_store %arg2[%c0_3, %c0_4, %c0_5], %12 {strides = array<i32>} : memref<16x8x96xf32, #tpu.memory_space<vmem>>, vector<16x8x96xf32>,
    return
  }
  func.func @transform_0(%arg0: i32) -> (i32, i32, i32) {
    %c0_i32 = arith.constant 0 : i32
    %c0_i32_0 = arith.constant 0 : i32
    %c0_i32_1 = arith.constant 0 : i32
    return %arg0, %c0_i32, %c0_i32_0 : i32, i32, i32
  }
  func.func @transform_1(%arg0: i32) -> (i32, i32, i32) {
    %c0_i32 = arith.constant 0 : i32
    %c0_i32_0 = arith.constant 0 : i32
    %c0_i32_1 = arith.constant 0 : i32
    return %arg0, %c0_i32, %c0_i32_0 : i32, i32, i32
  }
}

module attributes {stable_mosaic.version = 11 : i64} {
  func.func @_attn_kernel(%arg0: i32, %arg1: i32, %arg2: memref<8x64x8xf32, #tpu.memory_space<vmem>>, %arg3: memref<8x64x8xf32, #tpu.memory_space<vmem>>, %arg4: memref<8x64x8xf32, #tpu.memory_space<vmem>>, %arg5: memref<8x64x8xf32, #tpu.memory_space<vmem>>, %arg6: memref<8x64x1xf32, #tpu.memory_space<vmem>>, %arg7: memref<8x64x1xf32, #tpu.memory_space<vmem>>, %arg8: memref<8x64x8xf32, #tpu.memory_space<vmem>>) attributes {dimension_semantics = [#tpu.dimension_semantics<parallel>, #tpu.dimension_semantics<arbitrary>], iteration_bounds = array<i64: 1, 1>, scalar_prefetch = 0 : i64, scratch_operands = 3 : i64, tpu.core_type = #tpu.core_type<tc>, window_params = [{transform_indices = @transform_0, window_bounds = array<i64: 8, 64, 8>}, {transform_indices = @transform_1, window_bounds = array<i64: 8, 64, 8>}, {transform_indices = @transform_2, window_bounds = array<i64: 8, 64, 8>}, {transform_indices = @transform_3, window_bounds = array<i64: 8, 64, 8>}]} {
    %c0_i32 = arith.constant 0 : i32
    %0 = arith.cmpi eq, %arg1, %c0_i32 : i32
    %1 = arith.extui %0 : i1 to i32
    %c0_i32_0 = arith.constant 0 : i32
    %2 = arith.cmpi ne, %1, %c0_i32_0 : i32
    scf.if %2 {
      %cst_32 = arith.constant 0xFF800000 : f32
      %32 = vector.broadcast %cst_32 : f32 to vector<8x64x1xf32>
      %c0_33 = arith.constant 0 : index
      %c0_34 = arith.constant 0 : index
      %c0_35 = arith.constant 0 : index
      %33 = vector.load %arg6[%c0_33, %c0_34, %c0_35] : memref<8x64x1xf32, #tpu.memory_space<vmem>>, vector<8x64x1xf32>
      tpu.vector_store %arg6[%c0_33, %c0_34, %c0_35], %32 {strides = array<i32>} : memref<8x64x1xf32, #tpu.memory_space<vmem>>, vector<8x64x1xf32>,
      %cst_36 = arith.constant 0.000000e+00 : f32
      %34 = vector.broadcast %cst_36 : f32 to vector<8x64x1xf32>
      %c0_37 = arith.constant 0 : index
      %c0_38 = arith.constant 0 : index
      %c0_39 = arith.constant 0 : index
      %35 = vector.load %arg7[%c0_37, %c0_38, %c0_39] : memref<8x64x1xf32, #tpu.memory_space<vmem>>, vector<8x64x1xf32>
      tpu.vector_store %arg7[%c0_37, %c0_38, %c0_39], %34 {strides = array<i32>} : memref<8x64x1xf32, #tpu.memory_space<vmem>>, vector<8x64x1xf32>,
      %cst_40 = arith.constant 0.000000e+00 : f32
      %36 = vector.broadcast %cst_40 : f32 to vector<8x64x8xf32>
      %c0_41 = arith.constant 0 : index
      %c0_42 = arith.constant 0 : index
      %c0_43 = arith.constant 0 : index
      %37 = vector.load %arg8[%c0_41, %c0_42, %c0_43] : memref<8x64x8xf32, #tpu.memory_space<vmem>>, vector<8x64x8xf32>
      tpu.vector_store %arg8[%c0_41, %c0_42, %c0_43], %36 {strides = array<i32>} : memref<8x64x8xf32, #tpu.memory_space<vmem>>, vector<8x64x8xf32>,
    } else {
    }
    %c0 = arith.constant 0 : index
    %c0_1 = arith.constant 0 : index
    %c0_2 = arith.constant 0 : index
    %3 = vector.load %arg2[%c0, %c0_1, %c0_2] : memref<8x64x8xf32, #tpu.memory_space<vmem>>, vector<8x64x8xf32>
    %c0_3 = arith.constant 0 : index
    %c0_4 = arith.constant 0 : index
    %c0_5 = arith.constant 0 : index
    %4 = vector.load %arg3[%c0_3, %c0_4, %c0_5] : memref<8x64x8xf32, #tpu.memory_space<vmem>>, vector<8x64x8xf32>
    %c0_6 = arith.constant 0 : index
    %c0_7 = arith.constant 0 : index
    %c0_8 = arith.constant 0 : index
    %5 = vector.load %arg4[%c0_6, %c0_7, %c0_8] : memref<8x64x8xf32, #tpu.memory_space<vmem>>, vector<8x64x8xf32>
    "tpu.trace_start"() <{level = 10 : i32, message = "gqd,gkd->gqk"}> : () -> ()
    %cst = arith.constant dense<0.000000e+00> : vector<8x64x64xf32>
    %6 = tpu.matmul %3, %4, %cst {dimension_numbers = #tpu.dot_dimension_numbers<[2], [2], [1], [1], [0, 0, 0, 1, 1, 1], [0], [0]>} : vector<8x64x8xf32>, vector<8x64x8xf32>, vector<8x64x64xf32> -> vector<8x64x64xf32>
    "tpu.trace_stop"() : () -> ()
    %c0_9 = arith.constant 0 : index
    %c0_10 = arith.constant 0 : index
    %c0_11 = arith.constant 0 : index
    %7 = vector.load %arg6[%c0_9, %c0_10, %c0_11] : memref<8x64x1xf32, #tpu.memory_space<vmem>>, vector<8x64x1xf32>
    %cst_12 = arith.constant dense<0xFF800000> : vector<8x64xf32>
    %8 = vector.multi_reduction <maximumf>, %6, %cst_12 [2] : vector<8x64x64xf32> to vector<8x64xf32>
    %9 = vector.shape_cast %8 : vector<8x64xf32> to vector<8x64x1xf32>
    %10 = arith.maximumf %7, %9 : vector<8x64x1xf32>
    %11 = arith.subf %7, %10 : vector<8x64x1xf32>
    %12 = math.exp %11 : vector<8x64x1xf32>
    %13 = vector.broadcast %10 : vector<8x64x1xf32> to vector<8x64x64xf32>
    %14 = arith.subf %6, %13 : vector<8x64x64xf32>
    %15 = math.exp %14 : vector<8x64x64xf32>
    %c0_13 = arith.constant 0 : index
    %c0_14 = arith.constant 0 : index
    %c0_15 = arith.constant 0 : index
    %16 = vector.load %arg7[%c0_13, %c0_14, %c0_15] : memref<8x64x1xf32, #tpu.memory_space<vmem>>, vector<8x64x1xf32>
    %17 = arith.mulf %12, %16 : vector<8x64x1xf32>
    %cst_16 = arith.constant dense<0.000000e+00> : vector<8x64xf32>
    %18 = vector.multi_reduction <add>, %15, %cst_16 [2] : vector<8x64x64xf32> to vector<8x64xf32>
    %19 = vector.shape_cast %18 : vector<8x64xf32> to vector<8x64x1xf32>
    %20 = arith.addf %17, %19 : vector<8x64x1xf32>
    %c0_17 = arith.constant 0 : index
    %c0_18 = arith.constant 0 : index
    %c0_19 = arith.constant 0 : index
    %21 = vector.load %arg7[%c0_17, %c0_18, %c0_19] : memref<8x64x1xf32, #tpu.memory_space<vmem>>, vector<8x64x1xf32>
    tpu.vector_store %arg7[%c0_17, %c0_18, %c0_19], %20 {strides = array<i32>} : memref<8x64x1xf32, #tpu.memory_space<vmem>>, vector<8x64x1xf32>,
    %c0_20 = arith.constant 0 : index
    %c0_21 = arith.constant 0 : index
    %c0_22 = arith.constant 0 : index
    %22 = vector.load %arg8[%c0_20, %c0_21, %c0_22] : memref<8x64x8xf32, #tpu.memory_space<vmem>>, vector<8x64x8xf32>
    %23 = vector.broadcast %12 : vector<8x64x1xf32> to vector<8x64x8xf32>
    %24 = arith.mulf %23, %22 : vector<8x64x8xf32>
    "tpu.trace_start"() <{level = 10 : i32, message = "gqk,gkd->gqd"}> : () -> ()
    %cst_23 = arith.constant dense<0.000000e+00> : vector<8x64x8xf32>
    %25 = tpu.matmul %15, %5, %cst_23 {dimension_numbers = #tpu.dot_dimension_numbers<[2], [1], [1], [2], [0, 0, 0, 1, 1, 2], [0], [0]>} : vector<8x64x64xf32>, vector<8x64x8xf32>, vector<8x64x8xf32> -> vector<8x64x8xf32>
    "tpu.trace_stop"() : () -> ()
    %26 = arith.addf %24, %25 : vector<8x64x8xf32>
    %c0_24 = arith.constant 0 : index
    %c0_25 = arith.constant 0 : index
    %c0_26 = arith.constant 0 : index
    %27 = vector.load %arg8[%c0_24, %c0_25, %c0_26] : memref<8x64x8xf32, #tpu.memory_space<vmem>>, vector<8x64x8xf32>
    tpu.vector_store %arg8[%c0_24, %c0_25, %c0_26], %26 {strides = array<i32>} : memref<8x64x8xf32, #tpu.memory_space<vmem>>, vector<8x64x8xf32>,
    %c0_27 = arith.constant 0 : index
    %c0_28 = arith.constant 0 : index
    %c0_29 = arith.constant 0 : index
    %28 = vector.load %arg6[%c0_27, %c0_28, %c0_29] : memref<8x64x1xf32, #tpu.memory_space<vmem>>, vector<8x64x1xf32>
    tpu.vector_store %arg6[%c0_27, %c0_28, %c0_29], %10 {strides = array<i32>} : memref<8x64x1xf32, #tpu.memory_space<vmem>>, vector<8x64x1xf32>,
    %c0_i32_30 = arith.constant 0 : i32
    %29 = arith.cmpi eq, %arg1, %c0_i32_30 : i32
    %30 = arith.extui %29 : i1 to i32
    %c0_i32_31 = arith.constant 0 : i32
    %31 = arith.cmpi ne, %30, %c0_i32_31 : i32
    scf.if %31 {
      %c0_32 = arith.constant 0 : index
      %c0_33 = arith.constant 0 : index
      %c0_34 = arith.constant 0 : index
      %32 = vector.load %arg8[%c0_32, %c0_33, %c0_34] : memref<8x64x8xf32, #tpu.memory_space<vmem>>, vector<8x64x8xf32>
      %c0_35 = arith.constant 0 : index
      %c0_36 = arith.constant 0 : index
      %c0_37 = arith.constant 0 : index
      %33 = vector.load %arg7[%c0_35, %c0_36, %c0_37] : memref<8x64x1xf32, #tpu.memory_space<vmem>>, vector<8x64x1xf32>
      %34 = tpu.reciprocal %33 {approx = true} : vector<8x64x1xf32> -> vector<8x64x1xf32>
      %35 = vector.broadcast %34 : vector<8x64x1xf32> to vector<8x64x8xf32>
      %36 = arith.mulf %32, %35 : vector<8x64x8xf32>
      %c0_38 = arith.constant 0 : index
      %c0_39 = arith.constant 0 : index
      %c0_40 = arith.constant 0 : index
      %37 = vector.load %arg5[%c0_38, %c0_39, %c0_40] : memref<8x64x8xf32, #tpu.memory_space<vmem>>, vector<8x64x8xf32>
      tpu.vector_store %arg5[%c0_38, %c0_39, %c0_40], %36 {strides = array<i32>} : memref<8x64x8xf32, #tpu.memory_space<vmem>>, vector<8x64x8xf32>,
    } else {
    }
    return
  }
  func.func @transform_0(%arg0: i32, %arg1: i32) -> (i32, i32, i32) {
    %c0_i32 = arith.constant 0 : i32
    %c0_i32_0 = arith.constant 0 : i32
    %c0_i32_1 = arith.constant 0 : i32
    return %arg0, %c0_i32, %c0_i32_0 : i32, i32, i32
  }
  func.func @transform_1(%arg0: i32, %arg1: i32) -> (i32, i32, i32) {
    %c0_i32 = arith.constant 0 : i32
    %c0_i32_0 = arith.constant 0 : i32
    return %arg0, %arg1, %c0_i32 : i32, i32, i32
  }
  func.func @transform_2(%arg0: i32, %arg1: i32) -> (i32, i32, i32) {
    %c0_i32 = arith.constant 0 : i32
    %c0_i32_0 = arith.constant 0 : i32
    return %arg0, %arg1, %c0_i32 : i32, i32, i32
  }
  func.func @transform_3(%arg0: i32, %arg1: i32) -> (i32, i32, i32) {
    %c0_i32 = arith.constant 0 : i32
    %c0_i32_0 = arith.constant 0 : i32
    %c0_i32_1 = arith.constant 0 : i32
    return %arg0, %c0_i32, %c0_i32_0 : i32, i32, i32
  }
}

module attributes {stable_mosaic.version = 11 : i64} {
  func.func @_dwconv_kernel(%arg0: i32, %arg1: memref<1x10x10x8xf32, #tpu.memory_space<vmem>>, %arg2: memref<9x8xf32, #tpu.memory_space<vmem>>, %arg3: memref<1x8xf32, #tpu.memory_space<vmem>>, %arg4: memref<1x8x8x8xf32, #tpu.memory_space<vmem>>) attributes {dimension_semantics = [#tpu.dimension_semantics<parallel>], iteration_bounds = array<i64: 2>, scalar_prefetch = 0 : i64, scratch_operands = 0 : i64, tpu.core_type = #tpu.core_type<tc>, window_params = [{transform_indices = @transform_0, window_bounds = array<i64: 1, 10, 10, 8>}, {pipeline_mode = #tpu.pipeline_mode<synchronous>, transform_indices = @transform_1, window_bounds = array<i64: 9, 8>}, {pipeline_mode = #tpu.pipeline_mode<synchronous>, transform_indices = @transform_2, window_bounds = array<i64: 1, 8>}, {transform_indices = @transform_3, window_bounds = array<i64: 1, 8, 8, 8>}]} {
    %c0 = arith.constant 0 : index
    %c0_0 = arith.constant 0 : index
    %0 = vector.load %arg2[%c0, %c0_0] : memref<9x8xf32, #tpu.memory_space<vmem>>, vector<9x8xf32>
    %cst = arith.constant 0.000000e+00 : f32
    %1 = vector.broadcast %cst : f32 to vector<1x8x8x8xf32>
    %c0_1 = arith.constant 0 : index
    %c0_2 = arith.constant 0 : index
    %c0_3 = arith.constant 0 : index
    %c0_4 = arith.constant 0 : index
    %2 = vector.load %arg1[%c0_1, %c0_2, %c0_3, %c0_4] : memref<1x10x10x8xf32, #tpu.memory_space<vmem>>, vector<1x8x8x8xf32>
    %3 = vector.extract_strided_slice %0 {offsets = [0, 0], sizes = [1, 8], strides = [1, 1]} : vector<9x8xf32> to vector<1x8xf32>
    %4 = vector.shape_cast %3 : vector<1x8xf32> to vector<1x1x1x8xf32>
    %5 = vector.broadcast %4 : vector<1x1x1x8xf32> to vector<1x8x8x8xf32>
    %6 = arith.mulf %2, %5 : vector<1x8x8x8xf32>
    %7 = arith.addf %1, %6 : vector<1x8x8x8xf32>
    %c0_5 = arith.constant 0 : index
    %c0_6 = arith.constant 0 : index
    %c1 = arith.constant 1 : index
    %c0_7 = arith.constant 0 : index
    %8 = vector.load %arg1[%c0_5, %c0_6, %c1, %c0_7] : memref<1x10x10x8xf32, #tpu.memory_space<vmem>>, vector<1x8x8x8xf32>
    %9 = vector.extract_strided_slice %0 {offsets = [1, 0], sizes = [1, 8], strides = [1, 1]} : vector<9x8xf32> to vector<1x8xf32>
    %10 = vector.shape_cast %9 : vector<1x8xf32> to vector<1x1x1x8xf32>
    %11 = vector.broadcast %10 : vector<1x1x1x8xf32> to vector<1x8x8x8xf32>
    %12 = arith.mulf %8, %11 : vector<1x8x8x8xf32>
    %13 = arith.addf %7, %12 : vector<1x8x8x8xf32>
    %c0_8 = arith.constant 0 : index
    %c0_9 = arith.constant 0 : index
    %c2 = arith.constant 2 : index
    %c0_10 = arith.constant 0 : index
    %14 = vector.load %arg1[%c0_8, %c0_9, %c2, %c0_10] : memref<1x10x10x8xf32, #tpu.memory_space<vmem>>, vector<1x8x8x8xf32>
    %15 = vector.extract_strided_slice %0 {offsets = [2, 0], sizes = [1, 8], strides = [1, 1]} : vector<9x8xf32> to vector<1x8xf32>
    %16 = vector.shape_cast %15 : vector<1x8xf32> to vector<1x1x1x8xf32>
    %17 = vector.broadcast %16 : vector<1x1x1x8xf32> to vector<1x8x8x8xf32>
    %18 = arith.mulf %14, %17 : vector<1x8x8x8xf32>
    %19 = arith.addf %13, %18 : vector<1x8x8x8xf32>
    %c0_11 = arith.constant 0 : index
    %c1_12 = arith.constant 1 : index
    %c0_13 = arith.constant 0 : index
    %c0_14 = arith.constant 0 : index
    %20 = vector.load %arg1[%c0_11, %c1_12, %c0_13, %c0_14] : memref<1x10x10x8xf32, #tpu.memory_space<vmem>>, vector<1x8x8x8xf32>
    %21 = vector.extract_strided_slice %0 {offsets = [3, 0], sizes = [1, 8], strides = [1, 1]} : vector<9x8xf32> to vector<1x8xf32>
    %22 = vector.shape_cast %21 : vector<1x8xf32> to vector<1x1x1x8xf32>
    %23 = vector.broadcast %22 : vector<1x1x1x8xf32> to vector<1x8x8x8xf32>
    %24 = arith.mulf %20, %23 : vector<1x8x8x8xf32>
    %25 = arith.addf %19, %24 : vector<1x8x8x8xf32>
    %c0_15 = arith.constant 0 : index
    %c1_16 = arith.constant 1 : index
    %c1_17 = arith.constant 1 : index
    %c0_18 = arith.constant 0 : index
    %26 = vector.load %arg1[%c0_15, %c1_16, %c1_17, %c0_18] : memref<1x10x10x8xf32, #tpu.memory_space<vmem>>, vector<1x8x8x8xf32>
    %27 = vector.extract_strided_slice %0 {offsets = [4, 0], sizes = [1, 8], strides = [1, 1]} : vector<9x8xf32> to vector<1x8xf32>
    %28 = vector.shape_cast %27 : vector<1x8xf32> to vector<1x1x1x8xf32>
    %29 = vector.broadcast %28 : vector<1x1x1x8xf32> to vector<1x8x8x8xf32>
    %30 = arith.mulf %26, %29 : vector<1x8x8x8xf32>
    %31 = arith.addf %25, %30 : vector<1x8x8x8xf32>
    %c0_19 = arith.constant 0 : index
    %c1_20 = arith.constant 1 : index
    %c2_21 = arith.constant 2 : index
    %c0_22 = arith.constant 0 : index
    %32 = vector.load %arg1[%c0_19, %c1_20, %c2_21, %c0_22] : memref<1x10x10x8xf32, #tpu.memory_space<vmem>>, vector<1x8x8x8xf32>
    %33 = vector.extract_strided_slice %0 {offsets = [5, 0], sizes = [1, 8], strides = [1, 1]} : vector<9x8xf32> to vector<1x8xf32>
    %34 = vector.shape_cast %33 : vector<1x8xf32> to vector<1x1x1x8xf32>
    %35 = vector.broadcast %34 : vector<1x1x1x8xf32> to vector<1x8x8x8xf32>
    %36 = arith.mulf %32, %35 : vector<1x8x8x8xf32>
    %37 = arith.addf %31, %36 : vector<1x8x8x8xf32>
    %c0_23 = arith.constant 0 : index
    %c2_24 = arith.constant 2 : index
    %c0_25 = arith.constant 0 : index
    %c0_26 = arith.constant 0 : index
    %38 = vector.load %arg1[%c0_23, %c2_24, %c0_25, %c0_26] : memref<1x10x10x8xf32, #tpu.memory_space<vmem>>, vector<1x8x8x8xf32>
    %39 = vector.extract_strided_slice %0 {offsets = [6, 0], sizes = [1, 8], strides = [1, 1]} : vector<9x8xf32> to vector<1x8xf32>
    %40 = vector.shape_cast %39 : vector<1x8xf32> to vector<1x1x1x8xf32>
    %41 = vector.broadcast %40 : vector<1x1x1x8xf32> to vector<1x8x8x8xf32>
    %42 = arith.mulf %38, %41 : vector<1x8x8x8xf32>
    %43 = arith.addf %37, %42 : vector<1x8x8x8xf32>
    %c0_27 = arith.constant 0 : index
    %c2_28 = arith.constant 2 : index
    %c1_29 = arith.constant 1 : index
    %c0_30 = arith.constant 0 : index
    %44 = vector.load %arg1[%c0_27, %c2_28, %c1_29, %c0_30] : memref<1x10x10x8xf32, #tpu.memory_space<vmem>>, vector<1x8x8x8xf32>
    %45 = vector.extract_strided_slice %0 {offsets = [7, 0], sizes = [1, 8], strides = [1, 1]} : vector<9x8xf32> to vector<1x8xf32>
    %46 = vector.shape_cast %45 : vector<1x8xf32> to vector<1x1x1x8xf32>
    %47 = vector.broadcast %46 : vector<1x1x1x8xf32> to vector<1x8x8x8xf32>
    %48 = arith.mulf %44, %47 : vector<1x8x8x8xf32>
    %49 = arith.addf %43, %48 : vector<1x8x8x8xf32>
    %c0_31 = arith.constant 0 : index
    %c2_32 = arith.constant 2 : index
    %c2_33 = arith.constant 2 : index
    %c0_34 = arith.constant 0 : index
    %50 = vector.load %arg1[%c0_31, %c2_32, %c2_33, %c0_34] : memref<1x10x10x8xf32, #tpu.memory_space<vmem>>, vector<1x8x8x8xf32>
    %51 = vector.extract_strided_slice %0 {offsets = [8, 0], sizes = [1, 8], strides = [1, 1]} : vector<9x8xf32> to vector<1x8xf32>
    %52 = vector.shape_cast %51 : vector<1x8xf32> to vector<1x1x1x8xf32>
    %53 = vector.broadcast %52 : vector<1x1x1x8xf32> to vector<1x8x8x8xf32>
    %54 = arith.mulf %50, %53 : vector<1x8x8x8xf32>
    %55 = arith.addf %49, %54 : vector<1x8x8x8xf32>
    %c0_35 = arith.constant 0 : index
    %c0_36 = arith.constant 0 : index
    %56 = vector.load %arg3[%c0_35, %c0_36] : memref<1x8xf32, #tpu.memory_space<vmem>>, vector<1x8xf32>
    %57 = vector.shape_cast %56 : vector<1x8xf32> to vector<1x1x1x8xf32>
    %58 = vector.broadcast %57 : vector<1x1x1x8xf32> to vector<1x8x8x8xf32>
    %59 = arith.addf %55, %58 : vector<1x8x8x8xf32>
    %c0_37 = arith.constant 0 : index
    %c0_38 = arith.constant 0 : index
    %c0_39 = arith.constant 0 : index
    %c0_40 = arith.constant 0 : index
    %60 = vector.load %arg4[%c0_37, %c0_38, %c0_39, %c0_40] : memref<1x8x8x8xf32, #tpu.memory_space<vmem>>, vector<1x8x8x8xf32>
    tpu.vector_store %arg4[%c0_37, %c0_38, %c0_39, %c0_40], %59 {strides = array<i32>} : memref<1x8x8x8xf32, #tpu.memory_space<vmem>>, vector<1x8x8x8xf32>,
    return
  }
  func.func @transform_0(%arg0: i32) -> (i32, i32, i32, i32) {
    %c0_i32 = arith.constant 0 : i32
    %c0_i32_0 = arith.constant 0 : i32
    %c0_i32_1 = arith.constant 0 : i32
    %c0_i32_2 = arith.constant 0 : i32
    return %arg0, %c0_i32, %c0_i32_0, %c0_i32_1 : i32, i32, i32, i32
  }
  func.func @transform_1(%arg0: i32) -> (i32, i32) {
    %c0_i32 = arith.constant 0 : i32
    %c0_i32_0 = arith.constant 0 : i32
    %c0_i32_1 = arith.constant 0 : i32
    return %c0_i32, %c0_i32_0 : i32, i32
  }
  func.func @transform_2(%arg0: i32) -> (i32, i32) {
    %c0_i32 = arith.constant 0 : i32
    %c0_i32_0 = arith.constant 0 : i32
    %c0_i32_1 = arith.constant 0 : i32
    return %c0_i32, %c0_i32_0 : i32, i32
  }
  func.func @transform_3(%arg0: i32) -> (i32, i32, i32, i32) {
    %c0_i32 = arith.constant 0 : i32
    %c0_i32_0 = arith.constant 0 : i32
    %c0_i32_1 = arith.constant 0 : i32
    %c0_i32_2 = arith.constant 0 : i32
    return %arg0, %c0_i32, %c0_i32_0, %c0_i32_1 : i32, i32, i32, i32
  }
}

module attributes {stable_mosaic.version = 11 : i64} {
  func.func @_to_out_comb_kernel(%arg0: i32, %arg1: memref<128x32xf32, #tpu.memory_space<vmem>>, %arg2: memref<128x8xf32, #tpu.memory_space<vmem>>, %arg3: memref<128x8xf32, #tpu.memory_space<vmem>>, %arg4: memref<32x8xf32, #tpu.memory_space<vmem>>, %arg5: memref<1x8xf32, #tpu.memory_space<vmem>>, %arg6: memref<8x8xf32, #tpu.memory_space<vmem>>, %arg7: memref<8x8xf32, #tpu.memory_space<vmem>>, %arg8: memref<1x8xf32, #tpu.memory_space<vmem>>, %arg9: memref<128x8xf32, #tpu.memory_space<vmem>>) attributes {dimension_semantics = [#tpu.dimension_semantics<parallel>], iteration_bounds = array<i64: 1>, scalar_prefetch = 0 : i64, scratch_operands = 0 : i64, tpu.core_type = #tpu.core_type<tc>, window_params = [{transform_indices = @transform_0, window_bounds = array<i64: 128, 32>}, {transform_indices = @transform_1, window_bounds = array<i64: 128, 8>}, {transform_indices = @transform_2, window_bounds = array<i64: 128, 8>}, {pipeline_mode = #tpu.pipeline_mode<synchronous>, transform_indices = @transform_3, window_bounds = array<i64: 32, 8>}, {pipeline_mode = #tpu.pipeline_mode<synchronous>, transform_indices = @transform_4, window_bounds = array<i64: 1, 8>}, {pipeline_mode = #tpu.pipeline_mode<synchronous>, transform_indices = @transform_5, window_bounds = array<i64: 8, 8>}, {pipeline_mode = #tpu.pipeline_mode<synchronous>, transform_indices = @transform_6, window_bounds = array<i64: 8, 8>}, {pipeline_mode = #tpu.pipeline_mode<synchronous>, transform_indices = @transform_7, window_bounds = array<i64: 1, 8>}, {transform_indices = @transform_8, window_bounds = array<i64: 128, 8>}]} {
    %c0 = arith.constant 0 : index
    %c0_0 = arith.constant 0 : index
    %0 = vector.load %arg1[%c0, %c0_0] : memref<128x32xf32, #tpu.memory_space<vmem>>, vector<128x32xf32>
    %c0_1 = arith.constant 0 : index
    %c0_2 = arith.constant 0 : index
    %1 = vector.load %arg4[%c0_1, %c0_2] : memref<32x8xf32, #tpu.memory_space<vmem>>, vector<32x8xf32>
    %cst = arith.constant dense<0.000000e+00> : vector<128x8xf32>
    %2 = tpu.matmul %0, %1, %cst {dimension_numbers = #tpu.dot_dimension_numbers<[1], [0], [0], [1], [0, 0, 1, 1], [], []>} : vector<128x32xf32>, vector<32x8xf32>, vector<128x8xf32> -> vector<128x8xf32>
    %c0_3 = arith.constant 0 : index
    %c0_4 = arith.constant 0 : index
    %3 = vector.load %arg5[%c0_3, %c0_4] : memref<1x8xf32, #tpu.memory_space<vmem>>, vector<1x8xf32>
    %4 = vector.broadcast %3 : vector<1x8xf32> to vector<128x8xf32>
    %5 = arith.addf %2, %4 : vector<128x8xf32>
    %c0_5 = arith.constant 0 : index
    %c0_6 = arith.constant 0 : index
    %6 = vector.load %arg6[%c0_5, %c0_6] : memref<8x8xf32, #tpu.memory_space<vmem>>, vector<8x8xf32>
    %cst_7 = arith.constant dense<0.000000e+00> : vector<128x8xf32>
    %7 = tpu.matmul %5, %6, %cst_7 {dimension_numbers = #tpu.dot_dimension_numbers<[1], [0], [0], [1], [0, 0, 1, 1], [], []>} : vector<128x8xf32>, vector<8x8xf32>, vector<128x8xf32> -> vector<128x8xf32>
    %c0_8 = arith.constant 0 : index
    %c0_9 = arith.constant 0 : index
    %8 = vector.load %arg2[%c0_8, %c0_9] : memref<128x8xf32, #tpu.memory_space<vmem>>, vector<128x8xf32>
    %c0_10 = arith.constant 0 : index
    %c0_11 = arith.constant 0 : index
    %9 = vector.load %arg7[%c0_10, %c0_11] : memref<8x8xf32, #tpu.memory_space<vmem>>, vector<8x8xf32>
    %cst_12 = arith.constant dense<0.000000e+00> : vector<128x8xf32>
    %10 = tpu.matmul %8, %9, %cst_12 {dimension_numbers = #tpu.dot_dimension_numbers<[1], [0], [0], [1], [0, 0, 1, 1], [], []>} : vector<128x8xf32>, vector<8x8xf32>, vector<128x8xf32> -> vector<128x8xf32>
    %11 = arith.addf %7, %10 : vector<128x8xf32>
    %c0_13 = arith.constant 0 : index
    %c0_14 = arith.constant 0 : index
    %12 = vector.load %arg8[%c0_13, %c0_14] : memref<1x8xf32, #tpu.memory_space<vmem>>, vector<1x8xf32>
    %13 = vector.broadcast %12 : vector<1x8xf32> to vector<128x8xf32>
    %14 = arith.addf %11, %13 : vector<128x8xf32>
    %c0_15 = arith.constant 0 : index
    %c0_16 = arith.constant 0 : index
    %15 = vector.load %arg3[%c0_15, %c0_16] : memref<128x8xf32, #tpu.memory_space<vmem>>, vector<128x8xf32>
    %16 = arith.addf %14, %15 : vector<128x8xf32>
    %c0_17 = arith.constant 0 : index
    %c0_18 = arith.constant 0 : index
    %17 = vector.load %arg9[%c0_17, %c0_18] : memref<128x8xf32, #tpu.memory_space<vmem>>, vector<128x8xf32>
    tpu.vector_store %arg9[%c0_17, %c0_18], %16 {strides = array<i32>} : memref<128x8xf32, #tpu.memory_space<vmem>>, vector<128x8xf32>,
    return
  }
  func.func @transform_0(%arg0: i32) -> (i32, i32) {
    %c0_i32 = arith.constant 0 : i32
    %c0_i32_0 = arith.constant 0 : i32
    return %arg0, %c0_i32 : i32, i32
  }
  func.func @transform_1(%arg0: i32) -> (i32, i32) {
    %c0_i32 = arith.constant 0 : i32
    %c0_i32_0 = arith.constant 0 : i32
    return %arg0, %c0_i32 : i32, i32
  }
  func.func @transform_2(%arg0: i32) -> (i32, i32) {
    %c0_i32 = arith.constant 0 : i32
    %c0_i32_0 = arith.constant 0 : i32
    return %arg0, %c0_i32 : i32, i32
  }
  func.func @transform_3(%arg0: i32) -> (i32, i32) {
    %c0_i32 = arith.constant 0 : i32
    %c0_i32_0 = arith.constant 0 : i32
    %c0_i32_1 = arith.constant 0 : i32
    return %c0_i32, %c0_i32_0 : i32, i32
  }
  func.func @transform_4(%arg0: i32) -> (i32, i32) {
    %c0_i32 = arith.constant 0 : i32
    %c0_i32_0 = arith.constant 0 : i32
    %c0_i32_1 = arith.constant 0 : i32
    return %c0_i32, %c0_i32_0 : i32, i32
  }
  func.func @transform_5(%arg0: i32) -> (i32, i32) {
    %c0_i32 = arith.constant 0 : i32
    %c0_i32_0 = arith.constant 0 : i32
    %c0_i32_1 = arith.constant 0 : i32
    return %c0_i32, %c0_i32_0 : i32, i32
  }
  func.func @transform_6(%arg0: i32) -> (i32, i32) {
    %c0_i32 = arith.constant 0 : i32
    %c0_i32_0 = arith.constant 0 : i32
    %c0_i32_1 = arith.constant 0 : i32
    return %c0_i32, %c0_i32_0 : i32, i32
  }
  func.func @transform_7(%arg0: i32) -> (i32, i32) {
    %c0_i32 = arith.constant 0 : i32
    %c0_i32_0 = arith.constant 0 : i32
    %c0_i32_1 = arith.constant 0 : i32
    return %c0_i32, %c0_i32_0 : i32, i32
  }
  func.func @transform_8(%arg0: i32) -> (i32, i32) {
    %c0_i32 = arith.constant 0 : i32
    %c0_i32_0 = arith.constant 0 : i32
    return %arg0, %c0_i32 : i32, i32
  }
}

module attributes {stable_mosaic.version = 11 : i64} {
  func.func @_ff1_map_kernel(%arg0: i32, %arg1: memref<1x64x8xf32, #tpu.memory_space<vmem>>, %arg2: memref<8x16xf32, #tpu.memory_space<vmem>>, %arg3: memref<1x16xf32, #tpu.memory_space<vmem>>, %arg4: memref<8x8xf32, #tpu.memory_space<vmem>>, %arg5: memref<1x8xf32, #tpu.memory_space<vmem>>, %arg6: memref<1x64x16xf32, #tpu.memory_space<vmem>>, %arg7: memref<1x64x8xf32, #tpu.memory_space<vmem>>) attributes {dimension_semantics = [#tpu.dimension_semantics<parallel>], iteration_bounds = array<i64: 2>, scalar_prefetch = 0 : i64, scratch_operands = 0 : i64, tpu.core_type = #tpu.core_type<tc>, window_params = [{transform_indices = @transform_0, window_bounds = array<i64: 1, 64, 8>}, {pipeline_mode = #tpu.pipeline_mode<synchronous>, transform_indices = @transform_1, window_bounds = array<i64: 8, 16>}, {pipeline_mode = #tpu.pipeline_mode<synchronous>, transform_indices = @transform_2, window_bounds = array<i64: 1, 16>}, {pipeline_mode = #tpu.pipeline_mode<synchronous>, transform_indices = @transform_3, window_bounds = array<i64: 8, 8>}, {pipeline_mode = #tpu.pipeline_mode<synchronous>, transform_indices = @transform_4, window_bounds = array<i64: 1, 8>}, {transform_indices = @transform_5, window_bounds = array<i64: 1, 64, 16>}, {transform_indices = @transform_6, window_bounds = array<i64: 1, 64, 8>}]} {
    %c0 = arith.constant 0 : index
    %c0_0 = arith.constant 0 : index
    %c0_1 = arith.constant 0 : index
    %0 = vector.load %arg1[%c0, %c0_0, %c0_1] : memref<1x64x8xf32, #tpu.memory_space<vmem>>, vector<1x64x8xf32>
    %1 = vector.shape_cast %0 : vector<1x64x8xf32> to vector<64x8xf32>
    %c0_2 = arith.constant 0 : index
    %c0_3 = arith.constant 0 : index
    %2 = vector.load %arg2[%c0_2, %c0_3] : memref<8x16xf32, #tpu.memory_space<vmem>>, vector<8x16xf32>
    %cst = arith.constant dense<0.000000e+00> : vector<64x16xf32>
    %3 = tpu.matmul %1, %2, %cst {dimension_numbers = #tpu.dot_dimension_numbers<[1], [0], [0], [1], [0, 0, 1, 1], [], []>} : vector<64x8xf32>, vector<8x16xf32>, vector<64x16xf32> -> vector<64x16xf32>
    %c0_4 = arith.constant 0 : index
    %c0_5 = arith.constant 0 : index
    %4 = vector.load %arg3[%c0_4, %c0_5] : memref<1x16xf32, #tpu.memory_space<vmem>>, vector<1x16xf32>
    %5 = vector.broadcast %4 : vector<1x16xf32> to vector<64x16xf32>
    %6 = arith.addf %3, %5 : vector<64x16xf32>
    %cst_6 = arith.constant dense<0.000000e+00> : vector<16xf32>
    %7 = vector.multi_reduction <add>, %6, %cst_6 [0] : vector<64x16xf32> to vector<16xf32>
    %8 = vector.shape_cast %7 : vector<16xf32> to vector<1x16xf32>
    %cst_7 = arith.constant 6.400000e+01 : f32
    %9 = vector.broadcast %cst_7 : f32 to vector<1x16xf32>
    %10 = arith.divf %8, %9 : vector<1x16xf32>
    %11 = vector.broadcast %10 : vector<1x16xf32> to vector<64x16xf32>
    %12 = arith.subf %6, %11 : vector<64x16xf32>
    %13 = arith.mulf %12, %12 : vector<64x16xf32>
    %cst_8 = arith.constant dense<0.000000e+00> : vector<16xf32>
    %14 = vector.multi_reduction <add>, %13, %cst_8 [0] : vector<64x16xf32> to vector<16xf32>
    %15 = vector.shape_cast %14 : vector<16xf32> to vector<1x16xf32>
    %cst_9 = arith.constant 6.400000e+01 : f32
    %16 = vector.broadcast %cst_9 : f32 to vector<1x16xf32>
    %17 = arith.divf %15, %16 : vector<1x16xf32>
    %18 = vector.broadcast %10 : vector<1x16xf32> to vector<64x16xf32>
    %19 = arith.subf %6, %18 : vector<64x16xf32>
    %cst_10 = arith.constant 9.99999974E-6 : f32
    %20 = vector.broadcast %cst_10 : f32 to vector<1x16xf32>
    %21 = arith.addf %17, %20 : vector<1x16xf32>
    %22 = math.rsqrt %21 : vector<1x16xf32>
    %23 = vector.broadcast %22 : vector<1x16xf32> to vector<64x16xf32>
    %24 = arith.mulf %19, %23 : vector<64x16xf32>
    %cst_11 = arith.constant 5.000000e-01 : f32
    %25 = vector.broadcast %cst_11 : f32 to vector<64x16xf32>
    %26 = arith.mulf %25, %24 : vector<64x16xf32>
    %cst_12 = arith.constant 0.707106769 : f32
    %27 = vector.broadcast %cst_12 : f32 to vector<64x16xf32>
    %28 = arith.mulf %24, %27 : vector<64x16xf32>
    %cst_13 = arith.constant 0.000000e+00 : f32
    %29 = vector.broadcast %cst_13 : f32 to vector<64x16xf32>
    %30 = arith.cmpf olt, %28, %29 : vector<64x16xf32>
    %cst_14 = arith.constant -1.000000e+00 : f32
    %cst_15 = arith.constant 1.000000e+00 : f32
    %31 = vector.broadcast %cst_14 : f32 to vector<64x16xf32>
    %32 = vector.broadcast %cst_15 : f32 to vector<64x16xf32>
    %33 = arith.select %30, %31, %32 : vector<64x16xi1>, vector<64x16xf32>
    %34 = math.absf %28 : vector<64x16xf32>
    %cst_16 = arith.constant 0.327591091 : f32
    %35 = vector.broadcast %cst_16 : f32 to vector<64x16xf32>
    %36 = arith.mulf %35, %34 : vector<64x16xf32>
    %cst_17 = arith.constant 1.000000e+00 : f32
    %37 = vector.broadcast %cst_17 : f32 to vector<64x16xf32>
    %38 = arith.addf %37, %36 : vector<64x16xf32>
    %cst_18 = arith.constant 1.000000e+00 : f32
    %39 = vector.broadcast %cst_18 : f32 to vector<64x16xf32>
    %40 = arith.divf %39, %38 : vector<64x16xf32>
    %cst_19 = arith.constant 1.06140542 : f32
    %41 = vector.broadcast %cst_19 : f32 to vector<64x16xf32>
    %42 = arith.mulf %41, %40 : vector<64x16xf32>
    %cst_20 = arith.constant -1.45315206 : f32
    %43 = vector.broadcast %cst_20 : f32 to vector<64x16xf32>
    %44 = arith.addf %42, %43 : vector<64x16xf32>
    %45 = arith.mulf %44, %40 : vector<64x16xf32>
    %cst_21 = arith.constant 1.42141378 : f32
    %46 = vector.broadcast %cst_21 : f32 to vector<64x16xf32>
    %47 = arith.addf %45, %46 : vector<64x16xf32>
    %48 = arith.mulf %47, %40 : vector<64x16xf32>
    %cst_22 = arith.constant -0.284496725 : f32
    %49 = vector.broadcast %cst_22 : f32 to vector<64x16xf32>
    %50 = arith.addf %48, %49 : vector<64x16xf32>
    %51 = arith.mulf %50, %40 : vector<64x16xf32>
    %cst_23 = arith.constant 0.254829586 : f32
    %52 = vector.broadcast %cst_23 : f32 to vector<64x16xf32>
    %53 = arith.addf %51, %52 : vector<64x16xf32>
    %54 = arith.mulf %53, %40 : vector<64x16xf32>
    %cst_24 = arith.constant 0.000000e+00 : f32
    %55 = vector.broadcast %cst_24 : f32 to vector<64x16xf32>
    %56 = arith.subf %55, %34 : vector<64x16xf32>
    %57 = arith.mulf %56, %34 : vector<64x16xf32>
    %58 = math.exp %57 : vector<64x16xf32>
    %59 = arith.mulf %54, %58 : vector<64x16xf32>
    %cst_25 = arith.constant 1.000000e+00 : f32
    %60 = vector.broadcast %cst_25 : f32 to vector<64x16xf32>
    %61 = arith.subf %60, %59 : vector<64x16xf32>
    %62 = arith.mulf %33, %61 : vector<64x16xf32>
    %cst_26 = arith.constant 1.000000e+00 : f32
    %63 = vector.broadcast %cst_26 : f32 to vector<64x16xf32>
    %64 = arith.addf %63, %62 : vector<64x16xf32>
    %65 = arith.mulf %26, %64 : vector<64x16xf32>
    %c0_27 = arith.constant 0 : index
    %c0_28 = arith.constant 0 : index
    %c0_29 = arith.constant 0 : index
    %66 = vector.load %arg6[%c0_27, %c0_28, %c0_29] : memref<1x64x16xf32, #tpu.memory_space<vmem>>, vector<1x64x16xf32>
    %67 = vector.shape_cast %66 : vector<1x64x16xf32> to vector<64x16xf32>
    %68 = vector.shape_cast %65 : vector<64x16xf32> to vector<1x64x16xf32>
    tpu.vector_store %arg6[%c0_27, %c0_28, %c0_29], %68 {strides = array<i32>} : memref<1x64x16xf32, #tpu.memory_space<vmem>>, vector<1x64x16xf32>,
    %c0_30 = arith.constant 0 : index
    %c0_31 = arith.constant 0 : index
    %69 = vector.load %arg4[%c0_30, %c0_31] : memref<8x8xf32, #tpu.memory_space<vmem>>, vector<8x8xf32>
    %cst_32 = arith.constant dense<0.000000e+00> : vector<64x8xf32>
    %70 = tpu.matmul %1, %69, %cst_32 {dimension_numbers = #tpu.dot_dimension_numbers<[1], [0], [0], [1], [0, 0, 1, 1], [], []>} : vector<64x8xf32>, vector<8x8xf32>, vector<64x8xf32> -> vector<64x8xf32>
    %c0_33 = arith.constant 0 : index
    %c0_34 = arith.constant 0 : index
    %71 = vector.load %arg5[%c0_33, %c0_34] : memref<1x8xf32, #tpu.memory_space<vmem>>, vector<1x8xf32>
    %72 = vector.broadcast %71 : vector<1x8xf32> to vector<64x8xf32>
    %73 = arith.addf %70, %72 : vector<64x8xf32>
    %c0_35 = arith.constant 0 : index
    %c0_36 = arith.constant 0 : index
    %c0_37 = arith.constant 0 : index
    %74 = vector.load %arg7[%c0_35, %c0_36, %c0_37] : memref<1x64x8xf32, #tpu.memory_space<vmem>>, vector<1x64x8xf32>
    %75 = vector.shape_cast %74 : vector<1x64x8xf32> to vector<64x8xf32>
    %76 = vector.shape_cast %73 : vector<64x8xf32> to vector<1x64x8xf32>
    tpu.vector_store %arg7[%c0_35, %c0_36, %c0_37], %76 {strides = array<i32>} : memref<1x64x8xf32, #tpu.memory_space<vmem>>, vector<1x64x8xf32>,
    return
  }
  func.func @transform_0(%arg0: i32) -> (i32, i32, i32) {
    %c0_i32 = arith.constant 0 : i32
    %c0_i32_0 = arith.constant 0 : i32
    %c0_i32_1 = arith.constant 0 : i32
    return %arg0, %c0_i32, %c0_i32_0 : i32, i32, i32
  }
  func.func @transform_1(%arg0: i32) -> (i32, i32) {
    %c0_i32 = arith.constant 0 : i32
    %c0_i32_0 = arith.constant 0 : i32
    %c0_i32_1 = arith.constant 0 : i32
    return %c0_i32, %c0_i32_0 : i32, i32
  }
  func.func @transform_2(%arg0: i32) -> (i32, i32) {
    %c0_i32 = arith.constant 0 : i32
    %c0_i32_0 = arith.constant 0 : i32
    %c0_i32_1 = arith.constant 0 : i32
    return %c0_i32, %c0_i32_0 : i32, i32
  }
  func.func @transform_3(%arg0: i32) -> (i32, i32) {
    %c0_i32 = arith.constant 0 : i32
    %c0_i32_0 = arith.constant 0 : i32
    %c0_i32_1 = arith.constant 0 : i32
    return %c0_i32, %c0_i32_0 : i32, i32
  }
  func.func @transform_4(%arg0: i32) -> (i32, i32) {
    %c0_i32 = arith.constant 0 : i32
    %c0_i32_0 = arith.constant 0 : i32
    %c0_i32_1 = arith.constant 0 : i32
    return %c0_i32, %c0_i32_0 : i32, i32
  }
  func.func @transform_5(%arg0: i32) -> (i32, i32, i32) {
    %c0_i32 = arith.constant 0 : i32
    %c0_i32_0 = arith.constant 0 : i32
    %c0_i32_1 = arith.constant 0 : i32
    return %arg0, %c0_i32, %c0_i32_0 : i32, i32, i32
  }
  func.func @transform_6(%arg0: i32) -> (i32, i32, i32) {
    %c0_i32 = arith.constant 0 : i32
    %c0_i32_0 = arith.constant 0 : i32
    %c0_i32_1 = arith.constant 0 : i32
    return %arg0, %c0_i32, %c0_i32_0 : i32, i32, i32
  }
}

module attributes {stable_mosaic.version = 11 : i64} {
  func.func @_ffdw_kernel(%arg0: i32, %arg1: memref<1x10x10x16xf32, #tpu.memory_space<vmem>>, %arg2: memref<1x8x8x16xf32, #tpu.memory_space<vmem>>, %arg3: memref<9x16xf32, #tpu.memory_space<vmem>>, %arg4: memref<1x16xf32, #tpu.memory_space<vmem>>, %arg5: memref<1x8x8x16xf32, #tpu.memory_space<vmem>>) attributes {dimension_semantics = [#tpu.dimension_semantics<parallel>], iteration_bounds = array<i64: 2>, scalar_prefetch = 0 : i64, scratch_operands = 0 : i64, tpu.core_type = #tpu.core_type<tc>, window_params = [{transform_indices = @transform_0, window_bounds = array<i64: 1, 10, 10, 16>}, {transform_indices = @transform_1, window_bounds = array<i64: 1, 8, 8, 16>}, {pipeline_mode = #tpu.pipeline_mode<synchronous>, transform_indices = @transform_2, window_bounds = array<i64: 9, 16>}, {pipeline_mode = #tpu.pipeline_mode<synchronous>, transform_indices = @transform_3, window_bounds = array<i64: 1, 16>}, {transform_indices = @transform_4, window_bounds = array<i64: 1, 8, 8, 16>}]} {
    %c0 = arith.constant 0 : index
    %c0_0 = arith.constant 0 : index
    %0 = vector.load %arg3[%c0, %c0_0] : memref<9x16xf32, #tpu.memory_space<vmem>>, vector<9x16xf32>
    %cst = arith.constant 0.000000e+00 : f32
    %1 = vector.broadcast %cst : f32 to vector<1x8x8x16xf32>
    %c0_1 = arith.constant 0 : index
    %c0_2 = arith.constant 0 : index
    %c0_3 = arith.constant 0 : index
    %c0_4 = arith.constant 0 : index
    %2 = vector.load %arg1[%c0_1, %c0_2, %c0_3, %c0_4] : memref<1x10x10x16xf32, #tpu.memory_space<vmem>>, vector<1x8x8x16xf32>
    %3 = vector.extract_strided_slice %0 {offsets = [0, 0], sizes = [1, 16], strides = [1, 1]} : vector<9x16xf32> to vector<1x16xf32>
    %4 = vector.shape_cast %3 : vector<1x16xf32> to vector<1x1x1x16xf32>
    %5 = vector.broadcast %4 : vector<1x1x1x16xf32> to vector<1x8x8x16xf32>
    %6 = arith.mulf %2, %5 : vector<1x8x8x16xf32>
    %7 = arith.addf %1, %6 : vector<1x8x8x16xf32>
    %c0_5 = arith.constant 0 : index
    %c0_6 = arith.constant 0 : index
    %c1 = arith.constant 1 : index
    %c0_7 = arith.constant 0 : index
    %8 = vector.load %arg1[%c0_5, %c0_6, %c1, %c0_7] : memref<1x10x10x16xf32, #tpu.memory_space<vmem>>, vector<1x8x8x16xf32>
    %9 = vector.extract_strided_slice %0 {offsets = [1, 0], sizes = [1, 16], strides = [1, 1]} : vector<9x16xf32> to vector<1x16xf32>
    %10 = vector.shape_cast %9 : vector<1x16xf32> to vector<1x1x1x16xf32>
    %11 = vector.broadcast %10 : vector<1x1x1x16xf32> to vector<1x8x8x16xf32>
    %12 = arith.mulf %8, %11 : vector<1x8x8x16xf32>
    %13 = arith.addf %7, %12 : vector<1x8x8x16xf32>
    %c0_8 = arith.constant 0 : index
    %c0_9 = arith.constant 0 : index
    %c2 = arith.constant 2 : index
    %c0_10 = arith.constant 0 : index
    %14 = vector.load %arg1[%c0_8, %c0_9, %c2, %c0_10] : memref<1x10x10x16xf32, #tpu.memory_space<vmem>>, vector<1x8x8x16xf32>
    %15 = vector.extract_strided_slice %0 {offsets = [2, 0], sizes = [1, 16], strides = [1, 1]} : vector<9x16xf32> to vector<1x16xf32>
    %16 = vector.shape_cast %15 : vector<1x16xf32> to vector<1x1x1x16xf32>
    %17 = vector.broadcast %16 : vector<1x1x1x16xf32> to vector<1x8x8x16xf32>
    %18 = arith.mulf %14, %17 : vector<1x8x8x16xf32>
    %19 = arith.addf %13, %18 : vector<1x8x8x16xf32>
    %c0_11 = arith.constant 0 : index
    %c1_12 = arith.constant 1 : index
    %c0_13 = arith.constant 0 : index
    %c0_14 = arith.constant 0 : index
    %20 = vector.load %arg1[%c0_11, %c1_12, %c0_13, %c0_14] : memref<1x10x10x16xf32, #tpu.memory_space<vmem>>, vector<1x8x8x16xf32>
    %21 = vector.extract_strided_slice %0 {offsets = [3, 0], sizes = [1, 16], strides = [1, 1]} : vector<9x16xf32> to vector<1x16xf32>
    %22 = vector.shape_cast %21 : vector<1x16xf32> to vector<1x1x1x16xf32>
    %23 = vector.broadcast %22 : vector<1x1x1x16xf32> to vector<1x8x8x16xf32>
    %24 = arith.mulf %20, %23 : vector<1x8x8x16xf32>
    %25 = arith.addf %19, %24 : vector<1x8x8x16xf32>
    %c0_15 = arith.constant 0 : index
    %c1_16 = arith.constant 1 : index
    %c1_17 = arith.constant 1 : index
    %c0_18 = arith.constant 0 : index
    %26 = vector.load %arg1[%c0_15, %c1_16, %c1_17, %c0_18] : memref<1x10x10x16xf32, #tpu.memory_space<vmem>>, vector<1x8x8x16xf32>
    %27 = vector.extract_strided_slice %0 {offsets = [4, 0], sizes = [1, 16], strides = [1, 1]} : vector<9x16xf32> to vector<1x16xf32>
    %28 = vector.shape_cast %27 : vector<1x16xf32> to vector<1x1x1x16xf32>
    %29 = vector.broadcast %28 : vector<1x1x1x16xf32> to vector<1x8x8x16xf32>
    %30 = arith.mulf %26, %29 : vector<1x8x8x16xf32>
    %31 = arith.addf %25, %30 : vector<1x8x8x16xf32>
    %c0_19 = arith.constant 0 : index
    %c1_20 = arith.constant 1 : index
    %c2_21 = arith.constant 2 : index
    %c0_22 = arith.constant 0 : index
    %32 = vector.load %arg1[%c0_19, %c1_20, %c2_21, %c0_22] : memref<1x10x10x16xf32, #tpu.memory_space<vmem>>, vector<1x8x8x16xf32>
    %33 = vector.extract_strided_slice %0 {offsets = [5, 0], sizes = [1, 16], strides = [1, 1]} : vector<9x16xf32> to vector<1x16xf32>
    %34 = vector.shape_cast %33 : vector<1x16xf32> to vector<1x1x1x16xf32>
    %35 = vector.broadcast %34 : vector<1x1x1x16xf32> to vector<1x8x8x16xf32>
    %36 = arith.mulf %32, %35 : vector<1x8x8x16xf32>
    %37 = arith.addf %31, %36 : vector<1x8x8x16xf32>
    %c0_23 = arith.constant 0 : index
    %c2_24 = arith.constant 2 : index
    %c0_25 = arith.constant 0 : index
    %c0_26 = arith.constant 0 : index
    %38 = vector.load %arg1[%c0_23, %c2_24, %c0_25, %c0_26] : memref<1x10x10x16xf32, #tpu.memory_space<vmem>>, vector<1x8x8x16xf32>
    %39 = vector.extract_strided_slice %0 {offsets = [6, 0], sizes = [1, 16], strides = [1, 1]} : vector<9x16xf32> to vector<1x16xf32>
    %40 = vector.shape_cast %39 : vector<1x16xf32> to vector<1x1x1x16xf32>
    %41 = vector.broadcast %40 : vector<1x1x1x16xf32> to vector<1x8x8x16xf32>
    %42 = arith.mulf %38, %41 : vector<1x8x8x16xf32>
    %43 = arith.addf %37, %42 : vector<1x8x8x16xf32>
    %c0_27 = arith.constant 0 : index
    %c2_28 = arith.constant 2 : index
    %c1_29 = arith.constant 1 : index
    %c0_30 = arith.constant 0 : index
    %44 = vector.load %arg1[%c0_27, %c2_28, %c1_29, %c0_30] : memref<1x10x10x16xf32, #tpu.memory_space<vmem>>, vector<1x8x8x16xf32>
    %45 = vector.extract_strided_slice %0 {offsets = [7, 0], sizes = [1, 16], strides = [1, 1]} : vector<9x16xf32> to vector<1x16xf32>
    %46 = vector.shape_cast %45 : vector<1x16xf32> to vector<1x1x1x16xf32>
    %47 = vector.broadcast %46 : vector<1x1x1x16xf32> to vector<1x8x8x16xf32>
    %48 = arith.mulf %44, %47 : vector<1x8x8x16xf32>
    %49 = arith.addf %43, %48 : vector<1x8x8x16xf32>
    %c0_31 = arith.constant 0 : index
    %c2_32 = arith.constant 2 : index
    %c2_33 = arith.constant 2 : index
    %c0_34 = arith.constant 0 : index
    %50 = vector.load %arg1[%c0_31, %c2_32, %c2_33, %c0_34] : memref<1x10x10x16xf32, #tpu.memory_space<vmem>>, vector<1x8x8x16xf32>
    %51 = vector.extract_strided_slice %0 {offsets = [8, 0], sizes = [1, 16], strides = [1, 1]} : vector<9x16xf32> to vector<1x16xf32>
    %52 = vector.shape_cast %51 : vector<1x16xf32> to vector<1x1x1x16xf32>
    %53 = vector.broadcast %52 : vector<1x1x1x16xf32> to vector<1x8x8x16xf32>
    %54 = arith.mulf %50, %53 : vector<1x8x8x16xf32>
    %55 = arith.addf %49, %54 : vector<1x8x8x16xf32>
    %c0_35 = arith.constant 0 : index
    %c0_36 = arith.constant 0 : index
    %56 = vector.load %arg4[%c0_35, %c0_36] : memref<1x16xf32, #tpu.memory_space<vmem>>, vector<1x16xf32>
    %57 = vector.shape_cast %56 : vector<1x16xf32> to vector<1x1x1x16xf32>
    %58 = vector.broadcast %57 : vector<1x1x1x16xf32> to vector<1x8x8x16xf32>
    %59 = arith.addf %55, %58 : vector<1x8x8x16xf32>
    %cst_37 = arith.constant dense<0.000000e+00> : vector<1x8x16xf32>
    %60 = vector.multi_reduction <add>, %59, %cst_37 [2] : vector<1x8x8x16xf32> to vector<1x8x16xf32>
    %61 = vector.shape_cast %60 : vector<1x8x16xf32> to vector<1x8x1x16xf32>
    %cst_38 = arith.constant 8.000000e+00 : f32
    %62 = vector.broadcast %cst_38 : f32 to vector<1x8x1x16xf32>
    %63 = arith.divf %61, %62 : vector<1x8x1x16xf32>
    %cst_39 = arith.constant dense<0.000000e+00> : vector<1x1x16xf32>
    %64 = vector.multi_reduction <add>, %63, %cst_39 [1] : vector<1x8x1x16xf32> to vector<1x1x16xf32>
    %65 = vector.shape_cast %64 : vector<1x1x16xf32> to vector<1x1x1x16xf32>
    %cst_40 = arith.constant 8.000000e+00 : f32
    %66 = vector.broadcast %cst_40 : f32 to vector<1x1x1x16xf32>
    %67 = arith.divf %65, %66 : vector<1x1x1x16xf32>
    %68 = vector.broadcast %67 : vector<1x1x1x16xf32> to vector<1x8x8x16xf32>
    %69 = arith.subf %59, %68 : vector<1x8x8x16xf32>
    %70 = arith.mulf %69, %69 : vector<1x8x8x16xf32>
    %cst_41 = arith.constant dense<0.000000e+00> : vector<1x8x16xf32>
    %71 = vector.multi_reduction <add>, %70, %cst_41 [2] : vector<1x8x8x16xf32> to vector<1x8x16xf32>
    %72 = vector.shape_cast %71 : vector<1x8x16xf32> to vector<1x8x1x16xf32>
    %cst_42 = arith.constant 8.000000e+00 : f32
    %73 = vector.broadcast %cst_42 : f32 to vector<1x8x1x16xf32>
    %74 = arith.divf %72, %73 : vector<1x8x1x16xf32>
    %cst_43 = arith.constant dense<0.000000e+00> : vector<1x1x16xf32>
    %75 = vector.multi_reduction <add>, %74, %cst_43 [1] : vector<1x8x1x16xf32> to vector<1x1x16xf32>
    %76 = vector.shape_cast %75 : vector<1x1x16xf32> to vector<1x1x1x16xf32>
    %cst_44 = arith.constant 8.000000e+00 : f32
    %77 = vector.broadcast %cst_44 : f32 to vector<1x1x1x16xf32>
    %78 = arith.divf %76, %77 : vector<1x1x1x16xf32>
    %cst_45 = arith.constant 9.99999974E-6 : f32
    %79 = vector.broadcast %cst_45 : f32 to vector<1x1x1x16xf32>
    %80 = arith.addf %78, %79 : vector<1x1x1x16xf32>
    %81 = math.rsqrt %80 : vector<1x1x1x16xf32>
    %82 = vector.broadcast %81 : vector<1x1x1x16xf32> to vector<1x8x8x16xf32>
    %83 = arith.mulf %69, %82 : vector<1x8x8x16xf32>
    %cst_46 = arith.constant 5.000000e-01 : f32
    %84 = vector.broadcast %cst_46 : f32 to vector<1x8x8x16xf32>
    %85 = arith.mulf %84, %83 : vector<1x8x8x16xf32>
    %cst_47 = arith.constant 0.707106769 : f32
    %86 = vector.broadcast %cst_47 : f32 to vector<1x8x8x16xf32>
    %87 = arith.mulf %83, %86 : vector<1x8x8x16xf32>
    %cst_48 = arith.constant 0.000000e+00 : f32
    %88 = vector.broadcast %cst_48 : f32 to vector<1x8x8x16xf32>
    %89 = arith.cmpf olt, %87, %88 : vector<1x8x8x16xf32>
    %cst_49 = arith.constant -1.000000e+00 : f32
    %cst_50 = arith.constant 1.000000e+00 : f32
    %90 = vector.broadcast %cst_49 : f32 to vector<1x8x8x16xf32>
    %91 = vector.broadcast %cst_50 : f32 to vector<1x8x8x16xf32>
    %92 = arith.select %89, %90, %91 : vector<1x8x8x16xi1>, vector<1x8x8x16xf32>
    %93 = math.absf %87 : vector<1x8x8x16xf32>
    %cst_51 = arith.constant 0.327591091 : f32
    %94 = vector.broadcast %cst_51 : f32 to vector<1x8x8x16xf32>
    %95 = arith.mulf %94, %93 : vector<1x8x8x16xf32>
    %cst_52 = arith.constant 1.000000e+00 : f32
    %96 = vector.broadcast %cst_52 : f32 to vector<1x8x8x16xf32>
    %97 = arith.addf %96, %95 : vector<1x8x8x16xf32>
    %cst_53 = arith.constant 1.000000e+00 : f32
    %98 = vector.broadcast %cst_53 : f32 to vector<1x8x8x16xf32>
    %99 = arith.divf %98, %97 : vector<1x8x8x16xf32>
    %cst_54 = arith.constant 1.06140542 : f32
    %100 = vector.broadcast %cst_54 : f32 to vector<1x8x8x16xf32>
    %101 = arith.mulf %100, %99 : vector<1x8x8x16xf32>
    %cst_55 = arith.constant -1.45315206 : f32
    %102 = vector.broadcast %cst_55 : f32 to vector<1x8x8x16xf32>
    %103 = arith.addf %101, %102 : vector<1x8x8x16xf32>
    %104 = arith.mulf %103, %99 : vector<1x8x8x16xf32>
    %cst_56 = arith.constant 1.42141378 : f32
    %105 = vector.broadcast %cst_56 : f32 to vector<1x8x8x16xf32>
    %106 = arith.addf %104, %105 : vector<1x8x8x16xf32>
    %107 = arith.mulf %106, %99 : vector<1x8x8x16xf32>
    %cst_57 = arith.constant -0.284496725 : f32
    %108 = vector.broadcast %cst_57 : f32 to vector<1x8x8x16xf32>
    %109 = arith.addf %107, %108 : vector<1x8x8x16xf32>
    %110 = arith.mulf %109, %99 : vector<1x8x8x16xf32>
    %cst_58 = arith.constant 0.254829586 : f32
    %111 = vector.broadcast %cst_58 : f32 to vector<1x8x8x16xf32>
    %112 = arith.addf %110, %111 : vector<1x8x8x16xf32>
    %113 = arith.mulf %112, %99 : vector<1x8x8x16xf32>
    %cst_59 = arith.constant 0.000000e+00 : f32
    %114 = vector.broadcast %cst_59 : f32 to vector<1x8x8x16xf32>
    %115 = arith.subf %114, %93 : vector<1x8x8x16xf32>
    %116 = arith.mulf %115, %93 : vector<1x8x8x16xf32>
    %117 = math.exp %116 : vector<1x8x8x16xf32>
    %118 = arith.mulf %113, %117 : vector<1x8x8x16xf32>
    %cst_60 = arith.constant 1.000000e+00 : f32
    %119 = vector.broadcast %cst_60 : f32 to vector<1x8x8x16xf32>
    %120 = arith.subf %119, %118 : vector<1x8x8x16xf32>
    %121 = arith.mulf %92, %120 : vector<1x8x8x16xf32>
    %cst_61 = arith.constant 1.000000e+00 : f32
    %122 = vector.broadcast %cst_61 : f32 to vector<1x8x8x16xf32>
    %123 = arith.addf %122, %121 : vector<1x8x8x16xf32>
    %124 = arith.mulf %85, %123 : vector<1x8x8x16xf32>
    %c0_62 = arith.constant 0 : index
    %c0_63 = arith.constant 0 : index
    %c0_64 = arith.constant 0 : index
    %c0_65 = arith.constant 0 : index
    %125 = vector.load %arg2[%c0_62, %c0_63, %c0_64, %c0_65] : memref<1x8x8x16xf32, #tpu.memory_space<vmem>>, vector<1x8x8x16xf32>
    %126 = arith.addf %124, %125 : vector<1x8x8x16xf32>
    %c0_66 = arith.constant 0 : index
    %c0_67 = arith.constant 0 : index
    %c0_68 = arith.constant 0 : index
    %c0_69 = arith.constant 0 : index
    %127 = vector.load %arg5[%c0_66, %c0_67, %c0_68, %c0_69] : memref<1x8x8x16xf32, #tpu.memory_space<vmem>>, vector<1x8x8x16xf32>
    tpu.vector_store %arg5[%c0_66, %c0_67, %c0_68, %c0_69], %126 {strides = array<i32>} : memref<1x8x8x16xf32, #tpu.memory_space<vmem>>, vector<1x8x8x16xf32>,
    return
  }
  func.func @transform_0(%arg0: i32) -> (i32, i32, i32, i32) {
    %c0_i32 = arith.constant 0 : i32
    %c0_i32_0 = arith.constant 0 : i32
    %c0_i32_1 = arith.constant 0 : i32
    %c0_i32_2 = arith.constant 0 : i32
    return %arg0, %c0_i32, %c0_i32_0, %c0_i32_1 : i32, i32, i32, i32
  }
  func.func @transform_1(%arg0: i32) -> (i32, i32, i32, i32) {
    %c0_i32 = arith.constant 0 : i32
    %c0_i32_0 = arith.constant 0 : i32
    %c0_i32_1 = arith.constant 0 : i32
    %c0_i32_2 = arith.constant 0 : i32
    return %arg0, %c0_i32, %c0_i32_0, %c0_i32_1 : i32, i32, i32, i32
  }
  func.func @transform_2(%arg0: i32) -> (i32, i32) {
    %c0_i32 = arith.constant 0 : i32
    %c0_i32_0 = arith.constant 0 : i32
    %c0_i32_1 = arith.constant 0 : i32
    return %c0_i32, %c0_i32_0 : i32, i32
  }
  func.func @transform_3(%arg0: i32) -> (i32, i32) {
    %c0_i32 = arith.constant 0 : i32
    %c0_i32_0 = arith.constant 0 : i32
    %c0_i32_1 = arith.constant 0 : i32
    return %c0_i32, %c0_i32_0 : i32, i32
  }
  func.func @transform_4(%arg0: i32) -> (i32, i32, i32, i32) {
    %c0_i32 = arith.constant 0 : i32
    %c0_i32_0 = arith.constant 0 : i32
    %c0_i32_1 = arith.constant 0 : i32
    %c0_i32_2 = arith.constant 0 : i32
    return %arg0, %c0_i32, %c0_i32_0, %c0_i32_1 : i32, i32, i32, i32
  }
}

module attributes {stable_mosaic.version = 11 : i64} {
  func.func @_ff2_kernel(%arg0: i32, %arg1: memref<1x64x16xf32, #tpu.memory_space<vmem>>, %arg2: memref<16x8xf32, #tpu.memory_space<vmem>>, %arg3: memref<1x8xf32, #tpu.memory_space<vmem>>, %arg4: memref<1x64x8xf32, #tpu.memory_space<vmem>>) attributes {dimension_semantics = [#tpu.dimension_semantics<parallel>], iteration_bounds = array<i64: 2>, scalar_prefetch = 0 : i64, scratch_operands = 0 : i64, tpu.core_type = #tpu.core_type<tc>, window_params = [{transform_indices = @transform_0, window_bounds = array<i64: 1, 64, 16>}, {pipeline_mode = #tpu.pipeline_mode<synchronous>, transform_indices = @transform_1, window_bounds = array<i64: 16, 8>}, {pipeline_mode = #tpu.pipeline_mode<synchronous>, transform_indices = @transform_2, window_bounds = array<i64: 1, 8>}, {transform_indices = @transform_3, window_bounds = array<i64: 1, 64, 8>}]} {
    %c0 = arith.constant 0 : index
    %c0_0 = arith.constant 0 : index
    %c0_1 = arith.constant 0 : index
    %0 = vector.load %arg1[%c0, %c0_0, %c0_1] : memref<1x64x16xf32, #tpu.memory_space<vmem>>, vector<1x64x16xf32>
    %1 = vector.shape_cast %0 : vector<1x64x16xf32> to vector<64x16xf32>
    %c0_2 = arith.constant 0 : index
    %c0_3 = arith.constant 0 : index
    %2 = vector.load %arg2[%c0_2, %c0_3] : memref<16x8xf32, #tpu.memory_space<vmem>>, vector<16x8xf32>
    %cst = arith.constant dense<0.000000e+00> : vector<64x8xf32>
    %3 = tpu.matmul %1, %2, %cst {dimension_numbers = #tpu.dot_dimension_numbers<[1], [0], [0], [1], [0, 0, 1, 1], [], []>} : vector<64x16xf32>, vector<16x8xf32>, vector<64x8xf32> -> vector<64x8xf32>
    %c0_4 = arith.constant 0 : index
    %c0_5 = arith.constant 0 : index
    %4 = vector.load %arg3[%c0_4, %c0_5] : memref<1x8xf32, #tpu.memory_space<vmem>>, vector<1x8xf32>
    %5 = vector.broadcast %4 : vector<1x8xf32> to vector<64x8xf32>
    %6 = arith.addf %3, %5 : vector<64x8xf32>
    %cst_6 = arith.constant dense<0.000000e+00> : vector<8xf32>
    %7 = vector.multi_reduction <add>, %6, %cst_6 [0] : vector<64x8xf32> to vector<8xf32>
    %8 = vector.shape_cast %7 : vector<8xf32> to vector<1x8xf32>
    %cst_7 = arith.constant 6.400000e+01 : f32
    %9 = vector.broadcast %cst_7 : f32 to vector<1x8xf32>
    %10 = arith.divf %8, %9 : vector<1x8xf32>
    %11 = vector.broadcast %10 : vector<1x8xf32> to vector<64x8xf32>
    %12 = arith.subf %6, %11 : vector<64x8xf32>
    %13 = arith.mulf %12, %12 : vector<64x8xf32>
    %cst_8 = arith.constant dense<0.000000e+00> : vector<8xf32>
    %14 = vector.multi_reduction <add>, %13, %cst_8 [0] : vector<64x8xf32> to vector<8xf32>
    %15 = vector.shape_cast %14 : vector<8xf32> to vector<1x8xf32>
    %cst_9 = arith.constant 6.400000e+01 : f32
    %16 = vector.broadcast %cst_9 : f32 to vector<1x8xf32>
    %17 = arith.divf %15, %16 : vector<1x8xf32>
    %18 = vector.broadcast %10 : vector<1x8xf32> to vector<64x8xf32>
    %19 = arith.subf %6, %18 : vector<64x8xf32>
    %cst_10 = arith.constant 9.99999974E-6 : f32
    %20 = vector.broadcast %cst_10 : f32 to vector<1x8xf32>
    %21 = arith.addf %17, %20 : vector<1x8xf32>
    %22 = math.rsqrt %21 : vector<1x8xf32>
    %23 = vector.broadcast %22 : vector<1x8xf32> to vector<64x8xf32>
    %24 = arith.mulf %19, %23 : vector<64x8xf32>
    %c0_11 = arith.constant 0 : index
    %c0_12 = arith.constant 0 : index
    %c0_13 = arith.constant 0 : index
    %25 = vector.load %arg4[%c0_11, %c0_12, %c0_13] : memref<1x64x8xf32, #tpu.memory_space<vmem>>, vector<1x64x8xf32>
    %26 = vector.shape_cast %25 : vector<1x64x8xf32> to vector<64x8xf32>
    %27 = vector.shape_cast %24 : vector<64x8xf32> to vector<1x64x8xf32>
    tpu.vector_store %arg4[%c0_11, %c0_12, %c0_13], %27 {strides = array<i32>} : memref<1x64x8xf32, #tpu.memory_space<vmem>>, vector<1x64x8xf32>,
    return
  }
  func.func @transform_0(%arg0: i32) -> (i32, i32, i32) {
    %c0_i32 = arith.constant 0 : i32
    %c0_i32_0 = arith.constant 0 : i32
    %c0_i32_1 = arith.constant 0 : i32
    return %arg0, %c0_i32, %c0_i32_0 : i32, i32, i32
  }
  func.func @transform_1(%arg0: i32) -> (i32, i32) {
    %c0_i32 = arith.constant 0 : i32
    %c0_i32_0 = arith.constant 0 : i32
    %c0_i32_1 = arith.constant 0 : i32
    return %c0_i32, %c0_i32_0 : i32, i32
  }
  func.func @transform_2(%arg0: i32) -> (i32, i32) {
    %c0_i32 = arith.constant 0 : i32
    %c0_i32_0 = arith.constant 0 : i32
    %c0_i32_1 = arith.constant 0 : i32
    return %c0_i32, %c0_i32_0 : i32, i32
  }
  func.func @transform_3(%arg0: i32) -> (i32, i32, i32) {
    %c0_i32 = arith.constant 0 : i32
    %c0_i32_0 = arith.constant 0 : i32
    %c0_i32_1 = arith.constant 0 : i32
    return %arg0, %c0_i32, %c0_i32_0 : i32, i32, i32
  }
}

</mosaic_0001>

<llo_original>
// kernel: hpb_forward.9
$region0: #{hpb_forward.9}
  #allocation0 [shape = 'u32[]', space=smem, size = 0x4, offset = 0x4, fixed_abs, tag = 'smem constant byte address 0x4 - core index']
  #allocation1 [shape = 'u32[144,128]{1,0:T(1,128)}', space=vmem, size = 0x12000, scoped, tag = 'internal scratch']
  %s0 = inlined_call_operand.vmem [shape: f32[16,8,96], index: 0, kind: input, shape index: {}]
  %s1 = inlined_call_operand.vmem [shape: f32[16,8,96], index: 1, kind: output, shape index: {}]
  %s2 = sld [smem:[#allocation0]]
  $region14: #{hpb_forward.9} parent=0
    _
  %s4 = ssub.s32 1, %s2
  %s5 = scalar_select 0, %s4, %s2
  // Predicated region
  $region2: #{hpb_forward.9} parent=0 // pred_check
    _
  $region3: #{hpb_forward.9} parent=0 // pred_check_branch
    %7 = sbr.rel (0) target = $region5
  $region4: #{hpb_forward.9} parent=0 // pred_region
    _
  $region5: #{hpb_forward.9} parent=0 // pred_fallthru
    _
  %v8 = vld [vmem:[%s0] sm:$0xff]
  %v9 = vld [vmem:[%s0 + $0x8] sm:$0xff]
  %v10 = vld [vmem:[%s0 + $0x10] sm:$0xff]
  %v11 = vld [vmem:[%s0 + $0x18] sm:$0xff]
  %v12 = vld [vmem:[%s0 + $0x20] sm:$0xff]
  %v13 = vld [vmem:[%s0 + $0x28] sm:$0xff]
  %v14 = vld [vmem:[%s0 + $0x30] sm:$0xff]
  %v15 = vld [vmem:[%s0 + $0x38] sm:$0xff]
  %v16 = vld [vmem:[%s0 + $0x40] sm:$0xff]
  %v17 = vld [vmem:[%s0 + $0x48] sm:$0xff]
  %v18 = vld [vmem:[%s0 + $0x50] sm:$0xff]
  %v19 = vld [vmem:[%s0 + $0x58] sm:$0xff]
  %v20 = vld [vmem:[%s0 + $0x60] sm:$0xff]
  %v21 = vld [vmem:[%s0 + $0x68] sm:$0xff]
  %v22 = vld [vmem:[%s0 + $0x70] sm:$0xff]
  %v23 = vld [vmem:[%s0 + $0x78] sm:$0xff]
  %v24 = vmul.f32 %v8, %v8
  %v25 = vmul.f32 %v9, %v9
  %v26 = vmul.f32 %v10, %v10
  %v27 = vmul.f32 %v11, %v11
  %v28 = vmul.f32 %v12, %v12
  %v29 = vmul.f32 %v13, %v13
  %v30 = vmul.f32 %v14, %v14
  %v31 = vmul.f32 %v15, %v15
  %v32 = vmul.f32 %v16, %v16
  %v33 = vmul.f32 %v17, %v17
  %v34 = vmul.f32 %v18, %v18
  %v35 = vmul.f32 %v19, %v19
  %v36 = vmul.f32 %v20, %v20
  %v37 = vmul.f32 %v21, %v21
  %v38 = vmul.f32 %v22, %v22
  %v39 = vmul.f32 %v23, %v23
  %vm40 = vcmask 785408
  %v41 = vsel %vm40, %v24, 0.0
  %v42 = vrot.slane %v41, 4
  %v43 = vadd.f32 %v41, %v42
  %v44 = vrot.slane %v43, 2
  %v45 = vadd.f32 %v43, %v44
  %v46 = vrot.slane %v45, 1
  %v47 = vadd.f32 %v45, %v46
  %v48 = vsel %vm40, %v25, 0.0
  %v49 = vrot.slane %v48, 4
  %v50 = vadd.f32 %v48, %v49
  %v51 = vrot.slane %v50, 2
  %v52 = vadd.f32 %v50, %v51
  %v53 = vrot.slane %v52, 1
  %v54 = vadd.f32 %v52, %v53
  %v55 = vsel %vm40, %v26, 0.0
  %v56 = vrot.slane %v55, 4
  %v57 = vadd.f32 %v55, %v56
  %v58 = vrot.slane %v57, 2
  %v59 = vadd.f32 %v57, %v58
  %v60 = vrot.slane %v59, 1
  %v61 = vadd.f32 %v59, %v60
  %v62 = vsel %vm40, %v27, 0.0
  %v63 = vrot.slane %v62, 4
  %v64 = vadd.f32 %v62, %v63
  %v65 = vrot.slane %v64, 2
  %v66 = vadd.f32 %v64, %v65
  %v67 = vrot.slane %v66, 1
  %v68 = vadd.f32 %v66, %v67
  %v69 = vsel %vm40, %v28, 0.0
  %v70 = vrot.slane %v69, 4
  %v71 = vadd.f32 %v69, %v70
  %v72 = vrot.slane %v71, 2
  %v73 = vadd.f32 %v71, %v72
  %v74 = vrot.slane %v73, 1
  %v75 = vadd.f32 %v73, %v74
  %v76 = vsel %vm40, %v29, 0.0
  %v77 = vrot.slane %v76, 4
  %v78 = vadd.f32 %v76, %v77
  %v79 = vrot.slane %v78, 2
  %v80 = vadd.f32 %v78, %v79
  %v81 = vrot.slane %v80, 1
  %v82 = vadd.f32 %v80, %v81
  %v83 = vsel %vm40, %v30, 0.0
  %v84 = vrot.slane %v83, 4
  %v85 = vadd.f32 %v83, %v84
  %v86 = vrot.slane %v85, 2
  %v87 = vadd.f32 %v85, %v86
  %v88 = vrot.slane %v87, 1
  %v89 = vadd.f32 %v87, %v88
  %v90 = vsel %vm40, %v31, 0.0
  %v91 = vrot.slane %v90, 4
  %v92 = vadd.f32 %v90, %v91
  %v93 = vrot.slane %v92, 2
  %v94 = vadd.f32 %v92, %v93
  %v95 = vrot.slane %v94, 1
  %v96 = vadd.f32 %v94, %v95
  %v97 = vsel %vm40, %v32, 0.0
  %v98 = vrot.slane %v97, 4
  %v99 = vadd.f32 %v97, %v98
  %v100 = vrot.slane %v99, 2
  %v101 = vadd.f32 %v99, %v100
  %v102 = vrot.slane %v101, 1
  %v103 = vadd.f32 %v101, %v102
  %v104 = vsel %vm40, %v33, 0.0
  %v105 = vrot.slane %v104, 4
  %v106 = vadd.f32 %v104, %v105
  %v107 = vrot.slane %v106, 2
  %v108 = vadd.f32 %v106, %v107
  %v109 = vrot.slane %v108, 1
  %v110 = vadd.f32 %v108, %v109
  %v111 = vsel %vm40, %v34, 0.0
  %v112 = vrot.slane %v111, 4
  %v113 = vadd.f32 %v111, %v112
  %v114 = vrot.slane %v113, 2
  %v115 = vadd.f32 %v113, %v114
  %v116 = vrot.slane %v115, 1
  %v117 = vadd.f32 %v115, %v116
  %v118 = vsel %vm40, %v35, 0.0
  %v119 = vrot.slane %v118, 4
  %v120 = vadd.f32 %v118, %v119
  %v121 = vrot.slane %v120, 2
  %v122 = vadd.f32 %v120, %v121
  %v123 = vrot.slane %v122, 1
  %v124 = vadd.f32 %v122, %v123
  %v125 = vsel %vm40, %v36, 0.0
  %v126 = vrot.slane %v125, 4
  %v127 = vadd.f32 %v125, %v126
  %v128 = vrot.slane %v127, 2
  %v129 = vadd.f32 %v127, %v128
  %v130 = vrot.slane %v129, 1
  %v131 = vadd.f32 %v129, %v130
  %v132 = vsel %vm40, %v37, 0.0
  %v133 = vrot.slane %v132, 4
  %v134 = vadd.f32 %v132, %v133
  %v135 = vrot.slane %v134, 2
  %v136 = vadd.f32 %v134, %v135
  %v137 = vrot.slane %v136, 1
  %v138 = vadd.f32 %v136, %v137
  %v139 = vsel %vm40, %v38, 0.0
  %v140 = vrot.slane %v139, 4
  %v141 = vadd.f32 %v139, %v140
  %v142 = vrot.slane %v141, 2
  %v143 = vadd.f32 %v141, %v142
  %v144 = vrot.slane %v143, 1
  %v145 = vadd.f32 %v143, %v144
  %v146 = vsel %vm40, %v39, 0.0
  %v147 = vrot.slane %v146, 4
  %v148 = vadd.f32 %v146, %v147
  %v149 = vrot.slane %v148, 2
  %v150 = vadd.f32 %v148, %v149
  %v151 = vrot.slane %v150, 1
  %v152 = vadd.f32 %v150, %v151
  %v153 = vrsqrt.pop %v47
  %v154 = vmul.f32 %v47, %v153
  %vm155 = vcmp.eq.f32.partialorder %v47, inf
  %v156 = vsel %vm155, %v47, %v154
  %vm157 = vcmp.eq.f32.partialorder %v47, 0.0
  %v158 = vand.u32 %v47, 2147483648
  %v159 = vsel %vm157, %v158, %v156
  %v160 = vrsqrt.pop %v54
  %v161 = vmul.f32 %v54, %v160
  %vm162 = vcmp.eq.f32.partialorder %v54, inf
  %v163 = vsel %vm162, %v54, %v161
  %vm164 = vcmp.eq.f32.partialorder %v54, 0.0
  %v165 = vand.u32 %v54, 2147483648
  %v166 = vsel %vm164, %v165, %v163
  %v167 = vrsqrt.pop %v61
  %v168 = vmul.f32 %v61, %v167
  %vm169 = vcmp.eq.f32.partialorder %v61, inf
  %v170 = vsel %vm169, %v61, %v168
  %vm171 = vcmp.eq.f32.partialorder %v61, 0.0
  %v172 = vand.u32 %v61, 2147483648
  %v173 = vsel %vm171, %v172, %v170
  %v174 = vrsqrt.pop %v68
  %v175 = vmul.f32 %v68, %v174
  %vm176 = vcmp.eq.f32.partialorder %v68, inf
  %v177 = vsel %vm176, %v68, %v175
  %vm178 = vcmp.eq.f32.partialorder %v68, 0.0
  %v179 = vand.u32 %v68, 2147483648
  %v180 = vsel %vm178, %v179, %v177
  %v181 = vrsqrt.pop %v75
  %v182 = vmul.f32 %v75, %v181
  %vm183 = vcmp.eq.f32.partialorder %v75, inf
  %v184 = vsel %vm183, %v75, %v182
  %vm185 = vcmp.eq.f32.partialorder %v75, 0.0
  %v186 = vand.u32 %v75, 2147483648
  %v187 = vsel %vm185, %v186, %v184
  %v188 = vrsqrt.pop %v82
  %v189 = vmul.f32 %v82, %v188
  %vm190 = vcmp.eq.f32.partialorder %v82, inf
  %v191 = vsel %vm190, %v82, %v189
  %vm192 = vcmp.eq.f32.partialorder %v82, 0.0
  %v193 = vand.u32 %v82, 2147483648
  %v194 = vsel %vm192, %v193, %v191
  %v195 = vrsqrt.pop %v89
  %v196 = vmul.f32 %v89, %v195
  %vm197 = vcmp.eq.f32.partialorder %v89, inf
  %v198 = vsel %vm197, %v89, %v196
  %vm199 = vcmp.eq.f32.partialorder %v89, 0.0
  %v200 = vand.u32 %v89, 2147483648
  %v201 = vsel %vm199, %v200, %v198
  %v202 = vrsqrt.pop %v96
  %v203 = vmul.f32 %v96, %v202
  %vm204 = vcmp.eq.f32.partialorder %v96, inf
  %v205 = vsel %vm204, %v96, %v203
  %vm206 = vcmp.eq.f32.partialorder %v96, 0.0
  %v207 = vand.u32 %v96, 2147483648
  %v208 = vsel %vm206, %v207, %v205
  %v209 = vrsqrt.pop %v103
  %v210 = vmul.f32 %v103, %v209
  %vm211 = vcmp.eq.f32.partialorder %v103, inf
  %v212 = vsel %vm211, %v103, %v210
  %vm213 = vcmp.eq.f32.partialorder %v103, 0.0
  %v214 = vand.u32 %v103, 2147483648
  %v215 = vsel %vm213, %v214, %v212
  %v216 = vrsqrt.pop %v110
  %v217 = vmul.f32 %v110, %v216
  %vm218 = vcmp.eq.f32.partialorder %v110, inf
  %v219 = vsel %vm218, %v110, %v217
  %vm220 = vcmp.eq.f32.partialorder %v110, 0.0
  %v221 = vand.u32 %v110, 2147483648
  %v222 = vsel %vm220, %v221, %v219
  %v223 = vrsqrt.pop %v117
  %v224 = vmul.f32 %v117, %v223
  %vm225 = vcmp.eq.f32.partialorder %v117, inf
  %v226 = vsel %vm225, %v117, %v224
  %vm227 = vcmp.eq.f32.partialorder %v117, 0.0
  %v228 = vand.u32 %v117, 2147483648
  %v229 = vsel %vm227, %v228, %v226
  %v230 = vrsqrt.pop %v124
  %v231 = vmul.f32 %v124, %v230
  %vm232 = vcmp.eq.f32.partialorder %v124, inf
  %v233 = vsel %vm232, %v124, %v231
  %vm234 = vcmp.eq.f32.partialorder %v124, 0.0
  %v235 = vand.u32 %v124, 2147483648
  %v236 = vsel %vm234, %v235, %v233
  %v237 = vrsqrt.pop %v131
  %v238 = vmul.f32 %v131, %v237
  %vm239 = vcmp.eq.f32.partialorder %v131, inf
  %v240 = vsel %vm239, %v131, %v238
  %vm241 = vcmp.eq.f32.partialorder %v131, 0.0
  %v242 = vand.u32 %v131, 2147483648
  %v243 = vsel %vm241, %v242, %v240
  %v244 = vrsqrt.pop %v138
  %v245 = vmul.f32 %v138, %v244
  %vm246 = vcmp.eq.f32.partialorder %v138, inf
  %v247 = vsel %vm246, %v138, %v245
  %vm248 = vcmp.eq.f32.partialorder %v138, 0.0
  %v249 = vand.u32 %v138, 2147483648
  %v250 = vsel %vm248, %v249, %v247
  %v251 = vrsqrt.pop %v145
  %v252 = vmul.f32 %v145, %v251
  %vm253 = vcmp.eq.f32.partialorder %v145, inf
  %v254 = vsel %vm253, %v145, %v252
  %vm255 = vcmp.eq.f32.partialorder %v145, 0.0
  %v256 = vand.u32 %v145, 2147483648
  %v257 = vsel %vm255, %v256, %v254
  %v258 = vrsqrt.pop %v152
  %v259 = vmul.f32 %v152, %v258
  %vm260 = vcmp.eq.f32.partialorder %v152, inf
  %v261 = vsel %vm260, %v152, %v259
  %vm262 = vcmp.eq.f32.partialorder %v152, 0.0
  %v263 = vand.u32 %v152, 2147483648
  %v264 = vsel %vm262, %v263, %v261
  %v265 = vmax.f32 %v159, 1e-12
  %v266 = vmax.f32 %v166, 1e-12
  %v267 = vmax.f32 %v173, 1e-12
  %v268 = vmax.f32 %v180, 1e-12
  %v269 = vmax.f32 %v187, 1e-12
  %v270 = vmax.f32 %v194, 1e-12
  %v271 = vmax.f32 %v201, 1e-12
  %v272 = vmax.f32 %v208, 1e-12
  %v273 = vmax.f32 %v215, 1e-12
  %v274 = vmax.f32 %v222, 1e-12
  %v275 = vmax.f32 %v229, 1e-12
  %v276 = vmax.f32 %v236, 1e-12
  %v277 = vmax.f32 %v243, 1e-12
  %v278 = vmax.f32 %v250, 1e-12
  %v279 = vmax.f32 %v257, 1e-12
  %v280 = vmax.f32 %v264, 1e-12
  %v281 = vrcp.pop %v265
  %v282 = vmul.f32 %v8, %v281
  %v283 = vrcp.pop %v266
  %v284 = vmul.f32 %v9, %v283
  %v285 = vrcp.pop %v267
  %v286 = vmul.f32 %v10, %v285
  %v287 = vrcp.pop %v268
  %v288 = vmul.f32 %v11, %v287
  %v289 = vrcp.pop %v269
  %v290 = vmul.f32 %v12, %v289
  %v291 = vrcp.pop %v270
  %v292 = vmul.f32 %v13, %v291
  %v293 = vrcp.pop %v271
  %v294 = vmul.f32 %v14, %v293
  %v295 = vrcp.pop %v272
  %v296 = vmul.f32 %v15, %v295
  %v297 = vrcp.pop %v273
  %v298 = vmul.f32 %v16, %v297
  %v299 = vrcp.pop %v274
  %v300 = vmul.f32 %v17, %v299
  %v301 = vrcp.pop %v275
  %v302 = vmul.f32 %v18, %v301
  %v303 = vrcp.pop %v276
  %v304 = vmul.f32 %v19, %v303
  %v305 = vrcp.pop %v277
  %v306 = vmul.f32 %v20, %v305
  %v307 = vrcp.pop %v278
  %v308 = vmul.f32 %v21, %v307
  %v309 = vrcp.pop %v279
  %v310 = vmul.f32 %v22, %v309
  %v311 = vrcp.pop %v280
  %v312 = vmul.f32 %v23, %v311
  %v313 = vlaneseq
  %v314 = vand.u32 %v313, 127
  %vm315 = vcmp.lt.s32.totalorder %v314, 64
  %v316 = vsel %vm315, %v282, %v8
  %v317 = vsel %vm315, %v284, %v9
  %v318 = vsel %vm315, %v286, %v10
  %v319 = vsel %vm315, %v288, %v11
  %v320 = vsel %vm315, %v290, %v12
  %v321 = vsel %vm315, %v292, %v13
  %v322 = vsel %vm315, %v294, %v14
  %v323 = vsel %vm315, %v296, %v15
  %v324 = vsel %vm315, %v298, %v16
  %v325 = vsel %vm315, %v300, %v17
  %v326 = vsel %vm315, %v302, %v18
  %v327 = vsel %vm315, %v304, %v19
  %v328 = vsel %vm315, %v306, %v20
  %v329 = vsel %vm315, %v308, %v21
  %v330 = vsel %vm315, %v310, %v22
  %v331 = vsel %vm315, %v312, %v23
  %332 = vst.msk [vmem:[%s1] sm:$0xff] %vm40, %v316
  %333 = vst.msk [vmem:[%s1 + $0x8] sm:$0xff] %vm40, %v317
  %334 = vst.msk [vmem:[%s1 + $0x10] sm:$0xff] %vm40, %v318
  %335 = vst.msk [vmem:[%s1 + $0x18] sm:$0xff] %vm40, %v319
  %336 = vst.msk [vmem:[%s1 + $0x20] sm:$0xff] %vm40, %v320
  %337 = vst.msk [vmem:[%s1 + $0x28] sm:$0xff] %vm40, %v321
  %338 = vst.msk [vmem:[%s1 + $0x30] sm:$0xff] %vm40, %v322
  %339 = vst.msk [vmem:[%s1 + $0x38] sm:$0xff] %vm40, %v323
  %340 = vst.msk [vmem:[%s1 + $0x40] sm:$0xff] %vm40, %v324
  %341 = vst.msk [vmem:[%s1 + $0x48] sm:$0xff] %vm40, %v325
  %342 = vst.msk [vmem:[%s1 + $0x50] sm:$0xff] %vm40, %v326
  %343 = vst.msk [vmem:[%s1 + $0x58] sm:$0xff] %vm40, %v327
  %344 = vst.msk [vmem:[%s1 + $0x60] sm:$0xff] %vm40, %v328
  %345 = vst.msk [vmem:[%s1 + $0x68] sm:$0xff] %vm40, %v329
  %346 = vst.msk [vmem:[%s1 + $0x70] sm:$0xff] %vm40, %v330
  %347 = vst.msk [vmem:[%s1 + $0x78] sm:$0xff] %vm40, %v331
  // Predicated region
  $region6: #{hpb_forward.9} parent=0 // pred_check
    _
  $region7: #{hpb_forward.9} parent=0 // pred_check_branch
    %349 = sbr.rel (0) target = $region9
  $region8: #{hpb_forward.9} parent=0 // pred_region
    _
  $region9: #{hpb_forward.9} parent=0 // pred_fallthru
    _
  // Predicated region
  $region10: #{hpb_forward.9} parent=0 // pred_check
    _
  $region11: #{hpb_forward.9} parent=0 // pred_check_branch
    %351 = sbr.rel (0) target = $region13
  $region12: #{hpb_forward.9} parent=0 // pred_region
    _
  $region13: #{hpb_forward.9} parent=0 // pred_fallthru
    _

// kernel: hpb_forward.8
$region0: #{hpb_forward.8}
  #allocation0 [shape = 'u32[]', space=smem, size = 0x4, offset = 0x4, fixed_abs, tag = 'smem constant byte address 0x4 - core index']
  #allocation1 [shape = 'u32[144,128]{1,0:T(1,128)}', space=vmem, size = 0x12000, scoped, tag = 'internal scratch']
  %s0 = inlined_call_operand.vmem [shape: f32[128,8], index: 0, kind: input, shape index: {}]
  %s1 = inlined_call_operand.vmem [shape: f32[1,8], index: 1, kind: input, shape index: {}]
  %s2 = inlined_call_operand.vmem [shape: f32[1,8], index: 2, kind: input, shape index: {}]
  %s3 = inlined_call_operand.vmem [shape: f32[8,96], index: 3, kind: input, shape index: {}]
  %s4 = inlined_call_operand.vmem [shape: f32[128,96], index: 4, kind: output, shape index: {}]
  %s5 = sld [smem:[#allocation0]]
  $region26: #{hpb_forward.8} parent=0
    _
  %s7 = ssub.s32 1, %s5
  %s8 = scalar_select 0, %s7, %s5
  // Predicated region
  $region2: #{hpb_forward.8} parent=0 // pred_check
    _
  $region3: #{hpb_forward.8} parent=0 // pred_check_branch
    %10 = sbr.rel (0) target = $region5
  $region4: #{hpb_forward.8} parent=0 // pred_region
    _
  $region5: #{hpb_forward.8} parent=0 // pred_fallthru
    _
  // Predicated region
  $region6: #{hpb_forward.8} parent=0 // pred_check
    _
  $region7: #{hpb_forward.8} parent=0 // pred_check_branch
    %12 = sbr.rel (0) target = $region9
  $region8: #{hpb_forward.8} parent=0 // pred_region
    _
  $region9: #{hpb_forward.8} parent=0 // pred_fallthru
    _
  // Predicated region
  $region10: #{hpb_forward.8} parent=0 // pred_check
    _
  $region11: #{hpb_forward.8} parent=0 // pred_check_branch
    %14 = sbr.rel (0) target = $region13
  $region12: #{hpb_forward.8} parent=0 // pred_region
    _
  $region13: #{hpb_forward.8} parent=0 // pred_fallthru
    _
  // Predicated region
  $region14: #{hpb_forward.8} parent=0 // pred_check
    _
  $region15: #{hpb_forward.8} parent=0 // pred_check_branch
    %16 = sbr.rel (0) target = $region17
  $region16: #{hpb_forward.8} parent=0 // pred_region
    _
  $region17: #{hpb_forward.8} parent=0 // pred_fallthru
    _
  %v17 = vld [vmem:[%s0] sm:$0xff]
  %v18 = vld [vmem:[%s0 + $0x8] sm:$0xff]
  %v19 = vld [vmem:[%s0 + $0x10] sm:$0xff]
  %v20 = vld [vmem:[%s0 + $0x18] sm:$0xff]
  %v21 = vld [vmem:[%s0 + $0x20] sm:$0xff]
  %v22 = vld [vmem:[%s0 + $0x28] sm:$0xff]
  %v23 = vld [vmem:[%s0 + $0x30] sm:$0xff]
  %v24 = vld [vmem:[%s0 + $0x38] sm:$0xff]
  %v25 = vld [vmem:[%s0 + $0x40] sm:$0xff]
  %v26 = vld [vmem:[%s0 + $0x48] sm:$0xff]
  %v27 = vld [vmem:[%s0 + $0x50] sm:$0xff]
  %v28 = vld [vmem:[%s0 + $0x58] sm:$0xff]
  %v29 = vld [vmem:[%s0 + $0x60] sm:$0xff]
  %v30 = vld [vmem:[%s0 + $0x68] sm:$0xff]
  %v31 = vld [vmem:[%s0 + $0x70] sm:$0xff]
  %v32 = vld [vmem:[%s0 + $0x78] sm:$0xff]
  %vm33 = vcmask 64512
  %v34 = vsel %vm33, %v17, 0.0
  %35 = vadd.xlane.f32.xlu0 %v34
  %v36 = vpop.xlane.xlu0 %35
  %v37 = vsel %vm33, %v18, 0.0
  %38 = vadd.xlane.f32.xlu0 %v37
  %v39 = vpop.xlane.xlu0 %38
  %v40 = vsel %vm33, %v19, 0.0
  %41 = vadd.xlane.f32.xlu0 %v40
  %v42 = vpop.xlane.xlu0 %41
  %v43 = vsel %vm33, %v20, 0.0
  %44 = vadd.xlane.f32.xlu0 %v43
  %v45 = vpop.xlane.xlu0 %44
  %v46 = vsel %vm33, %v21, 0.0
  %47 = vadd.xlane.f32.xlu0 %v46
  %v48 = vpop.xlane.xlu0 %47
  %v49 = vsel %vm33, %v22, 0.0
  %50 = vadd.xlane.f32.xlu0 %v49
  %v51 = vpop.xlane.xlu0 %50
  %v52 = vsel %vm33, %v23, 0.0
  %53 = vadd.xlane.f32.xlu0 %v52
  %v54 = vpop.xlane.xlu0 %53
  %v55 = vsel %vm33, %v24, 0.0
  %56 = vadd.xlane.f32.xlu0 %v55
  %v57 = vpop.xlane.xlu0 %56
  %v58 = vsel %vm33, %v25, 0.0
  %59 = vadd.xlane.f32.xlu0 %v58
  %v60 = vpop.xlane.xlu0 %59
  %v61 = vsel %vm33, %v26, 0.0
  %62 = vadd.xlane.f32.xlu0 %v61
  %v63 = vpop.xlane.xlu0 %62
  %v64 = vsel %vm33, %v27, 0.0
  %65 = vadd.xlane.f32.xlu0 %v64
  %v66 = vpop.xlane.xlu0 %65
  %v67 = vsel %vm33, %v28, 0.0
  %68 = vadd.xlane.f32.xlu0 %v67
  %v69 = vpop.xlane.xlu0 %68
  %v70 = vsel %vm33, %v29, 0.0
  %71 = vadd.xlane.f32.xlu0 %v70
  %v72 = vpop.xlane.xlu0 %71
  %v73 = vsel %vm33, %v30, 0.0
  %74 = vadd.xlane.f32.xlu0 %v73
  %v75 = vpop.xlane.xlu0 %74
  %v76 = vsel %vm33, %v31, 0.0
  %77 = vadd.xlane.f32.xlu0 %v76
  %v78 = vpop.xlane.xlu0 %77
  %v79 = vsel %vm33, %v32, 0.0
  %80 = vadd.xlane.f32.xlu0 %v79
  %v81 = vpop.xlane.xlu0 %80
  %v82 = vrcp.pop 8.0
  %v83 = vmul.f32 %v36, %v82
  %v84 = vmul.f32 %v39, %v82
  %v85 = vmul.f32 %v42, %v82
  %v86 = vmul.f32 %v45, %v82
  %v87 = vmul.f32 %v48, %v82
  %v88 = vmul.f32 %v51, %v82
  %v89 = vmul.f32 %v54, %v82
  %v90 = vmul.f32 %v57, %v82
  %v91 = vmul.f32 %v60, %v82
  %v92 = vmul.f32 %v63, %v82
  %v93 = vmul.f32 %v66, %v82
  %v94 = vmul.f32 %v69, %v82
  %v95 = vmul.f32 %v72, %v82
  %v96 = vmul.f32 %v75, %v82
  %v97 = vmul.f32 %v78, %v82
  %v98 = vmul.f32 %v81, %v82
  %v99 = vsub.f32 %v17, %v83
  %v100 = vsub.f32 %v18, %v84
  %v101 = vsub.f32 %v19, %v85
  %v102 = vsub.f32 %v20, %v86
  %v103 = vsub.f32 %v21, %v87
  %v104 = vsub.f32 %v22, %v88
  %v105 = vsub.f32 %v23, %v89
  %v106 = vsub.f32 %v24, %v90
  %v107 = vsub.f32 %v25, %v91
  %v108 = vsub.f32 %v26, %v92
  %v109 = vsub.f32 %v27, %v93
  %v110 = vsub.f32 %v28, %v94
  %v111 = vsub.f32 %v29, %v95
  %v112 = vsub.f32 %v30, %v96
  %v113 = vsub.f32 %v31, %v97
  %v114 = vsub.f32 %v32, %v98
  %v115 = vmul.f32 %v99, %v99
  %v116 = vmul.f32 %v100, %v100
  %v117 = vmul.f32 %v101, %v101
  %v118 = vmul.f32 %v102, %v102
  %v119 = vmul.f32 %v103, %v103
  %v120 = vmul.f32 %v104, %v104
  %v121 = vmul.f32 %v105, %v105
  %v122 = vmul.f32 %v106, %v106
  %v123 = vmul.f32 %v107, %v107
  %v124 = vmul.f32 %v108, %v108
  %v125 = vmul.f32 %v109, %v109
  %v126 = vmul.f32 %v110, %v110
  %v127 = vmul.f32 %v111, %v111
  %v128 = vmul.f32 %v112, %v112
  %v129 = vmul.f32 %v113, %v113
  %v130 = vmul.f32 %v114, %v114
  %v131 = vsel %vm33, %v115, 0.0
  %132 = vadd.xlane.f32.xlu0 %v131
  %v133 = vpop.xlane.xlu0 %132
  %v134 = vsel %vm33, %v116, 0.0
  %135 = vadd.xlane.f32.xlu0 %v134
  %v136 = vpop.xlane.xlu0 %135
  %v137 = vsel %vm33, %v117, 0.0
  %138 = vadd.xlane.f32.xlu0 %v137
  %v139 = vpop.xlane.xlu0 %138
  %v140 = vsel %vm33, %v118, 0.0
  %141 = vadd.xlane.f32.xlu0 %v140
  %v142 = vpop.xlane.xlu0 %141
  %v143 = vsel %vm33, %v119, 0.0
  %144 = vadd.xlane.f32.xlu0 %v143
  %v145 = vpop.xlane.xlu0 %144
  %v146 = vsel %vm33, %v120, 0.0
  %147 = vadd.xlane.f32.xlu0 %v146
  %v148 = vpop.xlane.xlu0 %147
  %v149 = vsel %vm33, %v121, 0.0
  %150 = vadd.xlane.f32.xlu0 %v149
  %v151 = vpop.xlane.xlu0 %150
  %v152 = vsel %vm33, %v122, 0.0
  %153 = vadd.xlane.f32.xlu0 %v152
  %v154 = vpop.xlane.xlu0 %153
  %v155 = vsel %vm33, %v123, 0.0
  %156 = vadd.xlane.f32.xlu0 %v155
  %v157 = vpop.xlane.xlu0 %156
  %v158 = vsel %vm33, %v124, 0.0
  %159 = vadd.xlane.f32.xlu0 %v158
  %v160 = vpop.xlane.xlu0 %159
  %v161 = vsel %vm33, %v125, 0.0
  %162 = vadd.xlane.f32.xlu0 %v161
  %v163 = vpop.xlane.xlu0 %162
  %v164 = vsel %vm33, %v126, 0.0
  %165 = vadd.xlane.f32.xlu0 %v164
  %v166 = vpop.xlane.xlu0 %165
  %v167 = vsel %vm33, %v127, 0.0
  %168 = vadd.xlane.f32.xlu0 %v167
  %v169 = vpop.xlane.xlu0 %168
  %v170 = vsel %vm33, %v128, 0.0
  %171 = vadd.xlane.f32.xlu0 %v170
  %v172 = vpop.xlane.xlu0 %171
  %v173 = vsel %vm33, %v129, 0.0
  %174 = vadd.xlane.f32.xlu0 %v173
  %v175 = vpop.xlane.xlu0 %174
  %v176 = vsel %vm33, %v130, 0.0
  %177 = vadd.xlane.f32.xlu0 %v176
  %v178 = vpop.xlane.xlu0 %177
  %v179 = vmul.f32 %v133, %v82
  %v180 = vmul.f32 %v136, %v82
  %v181 = vmul.f32 %v139, %v82
  %v182 = vmul.f32 %v142, %v82
  %v183 = vmul.f32 %v145, %v82
  %v184 = vmul.f32 %v148, %v82
  %v185 = vmul.f32 %v151, %v82
  %v186 = vmul.f32 %v154, %v82
  %v187 = vmul.f32 %v157, %v82
  %v188 = vmul.f32 %v160, %v82
  %v189 = vmul.f32 %v163, %v82
  %v190 = vmul.f32 %v166, %v82
  %v191 = vmul.f32 %v169, %v82
  %v192 = vmul.f32 %v172, %v82
  %v193 = vmul.f32 %v175, %v82
  %v194 = vmul.f32 %v178, %v82
  %v195 = vadd.f32 %v179, 1e-05
  %v196 = vadd.f32 %v180, 1e-05
  %v197 = vadd.f32 %v181, 1e-05
  %v198 = vadd.f32 %v182, 1e-05
  %v199 = vadd.f32 %v183, 1e-05
  %v200 = vadd.f32 %v184, 1e-05
  %v201 = vadd.f32 %v185, 1e-05
  %v202 = vadd.f32 %v186, 1e-05
  %v203 = vadd.f32 %v187, 1e-05
  %v204 = vadd.f32 %v188, 1e-05
  %v205 = vadd.f32 %v189, 1e-05
  %v206 = vadd.f32 %v190, 1e-05
  %v207 = vadd.f32 %v191, 1e-05
  %v208 = vadd.f32 %v192, 1e-05
  %v209 = vadd.f32 %v193, 1e-05
  %v210 = vadd.f32 %v194, 1e-05
  %v211 = vrsqrt.pop %v195
  %v212 = vrsqrt.pop %v196
  %v213 = vrsqrt.pop %v197
  %v214 = vrsqrt.pop %v198
  %v215 = vrsqrt.pop %v199
  %v216 = vrsqrt.pop %v200
  %v217 = vrsqrt.pop %v201
  %v218 = vrsqrt.pop %v202
  %v219 = vrsqrt.pop %v203
  %v220 = vrsqrt.pop %v204
  %v221 = vrsqrt.pop %v205
  %v222 = vrsqrt.pop %v206
  %v223 = vrsqrt.pop %v207
  %v224 = vrsqrt.pop %v208
  %v225 = vrsqrt.pop %v209
  %v226 = vrsqrt.pop %v210
  %v227 = vmul.f32 %v99, %v211
  %v228 = vmul.f32 %v100, %v212
  %v229 = vmul.f32 %v101, %v213
  %v230 = vmul.f32 %v102, %v214
  %v231 = vmul.f32 %v103, %v215
  %v232 = vmul.f32 %v104, %v216
  %v233 = vmul.f32 %v105, %v217
  %v234 = vmul.f32 %v106, %v218
  %v235 = vmul.f32 %v107, %v219
  %v236 = vmul.f32 %v108, %v220
  %v237 = vmul.f32 %v109, %v221
  %v238 = vmul.f32 %v110, %v222
  %v239 = vmul.f32 %v111, %v223
  %v240 = vmul.f32 %v112, %v224
  %v241 = vmul.f32 %v113, %v225
  %v242 = vmul.f32 %v114, %v226
  %v243 = vld [vmem:[%s1] sm:$0x1]
  %v245 = vlaneseq
  %v246 = vshrl.u32 %v245, 7
  %v247 = vsub.s32 0, %v246
  %v248 = vrot.slane %v243, %v247
  %v250 = vmul.f32 %v227, %v248
  %v251 = vmul.f32 %v228, %v248
  %v252 = vmul.f32 %v229, %v248
  %v253 = vmul.f32 %v230, %v248
  %v254 = vmul.f32 %v231, %v248
  %v255 = vmul.f32 %v232, %v248
  %v256 = vmul.f32 %v233, %v248
  %v257 = vmul.f32 %v234, %v248
  %v258 = vmul.f32 %v235, %v248
  %v259 = vmul.f32 %v236, %v248
  %v260 = vmul.f32 %v237, %v248
  %v261 = vmul.f32 %v238, %v248
  %v262 = vmul.f32 %v239, %v248
  %v263 = vmul.f32 %v240, %v248
  %v264 = vmul.f32 %v241, %v248
  %v265 = vmul.f32 %v242, %v248
  %v266 = vld [vmem:[%s2] sm:$0x1]
  %v268 = vlaneseq
  %v269 = vshrl.u32 %v268, 7
  %v270 = vsub.s32 0, %v269
  %v271 = vrot.slane %v266, %v270
  %v273 = vadd.f32 %v250, %v271
  %v274 = vadd.f32 %v251, %v271
  %v275 = vadd.f32 %v252, %v271
  %v276 = vadd.f32 %v253, %v271
  %v277 = vadd.f32 %v254, %v271
  %v278 = vadd.f32 %v255, %v271
  %v279 = vadd.f32 %v256, %v271
  %v280 = vadd.f32 %v257, %v271
  %v281 = vadd.f32 %v258, %v271
  %v282 = vadd.f32 %v259, %v271
  %v283 = vadd.f32 %v260, %v271
  %v284 = vadd.f32 %v261, %v271
  %v285 = vadd.f32 %v262, %v271
  %v286 = vadd.f32 %v263, %v271
  %v287 = vadd.f32 %v264, %v271
  %v288 = vadd.f32 %v265, %v271
  %v289 = vld [vmem:[%s3] sm:$0xff]
  %v291 = vsel %vm33, %v273, 0
  %v294 = vsel %vm33, %v274, 0
  %v297 = vsel %vm33, %v275, 0
  %v300 = vsel %vm33, %v276, 0
  %v303 = vsel %vm33, %v277, 0
  %v306 = vsel %vm33, %v278, 0
  %v309 = vsel %vm33, %v279, 0
  %v312 = vsel %vm33, %v280, 0
  %v315 = vsel %vm33, %v281, 0
  %v318 = vsel %vm33, %v282, 0
  %v321 = vsel %vm33, %v283, 0
  %v324 = vsel %vm33, %v284, 0
  %v327 = vsel %vm33, %v285, 0
  %v330 = vsel %vm33, %v286, 0
  %v333 = vsel %vm33, %v287, 0
  %v336 = vsel %vm33, %v288, 0
  %338 = vmatprep.subr.mxu0 0.0
  %339 = vmatpush1.msra.mxu0 0.0
  %340 = vmatprep.subr.mxu0 0.0
  %341 = vmatpush1.msra.mxu0 0.0
  %342 = vmatprep.subr.mxu0 0.0
  %343 = vmatpush1.msra.mxu0 0.0
  %344 = vmatprep.subr.mxu0 0.0
  %345 = vmatpush1.msra.mxu0 0.0
  %346 = vmatprep.subr.mxu0 0.0
  %347 = vmatpush1.msra.mxu0 0.0
  %348 = vmatprep.subr.mxu0 0.0
  %349 = vmatpush1.msra.mxu0 0.0
  %350 = vmatprep.subr.mxu0 0.0
  %351 = vmatpush1.msra.mxu0 0.0
  %352 = vmatprep.subr.mxu0 0.0
  %353 = vmatpush1.msra.mxu0 0.0
  %354 = vmatprep.subr.mxu0 0.0
  %355 = vmatpush1.msra.mxu0 0.0
  %356 = vmatprep.subr.mxu0 0.0
  %357 = vmatpush1.msra.mxu0 0.0
  %358 = vmatprep.subr.mxu0 0.0
  %359 = vmatpush1.msra.mxu0 0.0
  %360 = vmatprep.subr.mxu0 0.0
  %361 = vmatpush1.msra.mxu0 0.0
  %362 = vmatprep.subr.mxu0 0.0
  %363 = vmatpush1.msra.mxu0 0.0
  %364 = vmatprep.subr.mxu0 0.0
  %365 = vmatpush1.msra.mxu0 0.0
  %366 = vmatprep.subr.mxu0 0.0
  %367 = vmatpush1.msra.mxu0 0.0
  %368 = vmatprep.subr.mxu0 0.0
  %369 = vmatpush1.msra.mxu0 %v289
  %370 = vmatprep.subr.mxu0 0.0
  %371 = vmatpush2.msra.mxu0 0.0
  %372 = vmatprep.subr.mxu0 0.0
  %373 = vmatpush2.msra.mxu0 0.0
  %374 = vmatprep.subr.mxu0 0.0
  %375 = vmatpush2.msra.mxu0 0.0
  %376 = vmatprep.subr.mxu0 0.0
  %377 = vmatpush2.msra.mxu0 0.0
  %378 = vmatprep.subr.mxu0 0.0
  %379 = vmatpush2.msra.mxu0 0.0
  %380 = vmatprep.subr.mxu0 0.0
  %381 = vmatpush2.msra.mxu0 0.0
  %382 = vmatprep.subr.mxu0 0.0
  %383 = vmatpush2.msra.mxu0 0.0
  %384 = vmatprep.subr.mxu0 0.0
  %385 = vmatpush2.msra.mxu0 0.0
  %386 = vmatprep.subr.mxu0 0.0
  %387 = vmatpush2.msra.mxu0 0.0
  %388 = vmatprep.subr.mxu0 0.0
  %389 = vmatpush2.msra.mxu0 0.0
  %390 = vmatprep.subr.mxu0 0.0
  %391 = vmatpush2.msra.mxu0 0.0
  %392 = vmatprep.subr.mxu0 0.0
  %393 = vmatpush2.msra.mxu0 0.0
  %394 = vmatprep.subr.mxu0 0.0
  %395 = vmatpush2.msra.mxu0 0.0
  %396 = vmatprep.subr.mxu0 0.0
  %397 = vmatpush2.msra.mxu0 0.0
  %398 = vmatprep.subr.mxu0 0.0
  %399 = vmatpush2.msra.mxu0 0.0
  %400 = vmatprep.subr.mxu0 0.0
  %401 = vmatpush2.msra.mxu0 0.0
  %402 = vmatprep.mubr.f32.mxu0 0.0
  %403 = vmatmul.mubr.f32.gmra.mxu0 %v291
  %v404 = vpop.f32.mrf.mxu0
  %v405 = vadd.f32 0.0, %v404
  %v406 = vpop.f32.mrf.mxu0
  %407 = vmatprep.mubr.f32.mxu0 0.0
  %408 = vmatmul.mubr.f32.gmra.mxu0 %v294
  %v409 = vpop.f32.mrf.mxu0
  %v410 = vadd.f32 0.0, %v409
  %v411 = vpop.f32.mrf.mxu0
  %412 = vmatprep.mubr.f32.mxu0 0.0
  %413 = vmatmul.mubr.f32.gmra.mxu0 %v297
  %v414 = vpop.f32.mrf.mxu0
  %v415 = vadd.f32 0.0, %v414
  %v416 = vpop.f32.mrf.mxu0
  %417 = vmatprep.mubr.f32.mxu0 0.0
  %418 = vmatmul.mubr.f32.gmra.mxu0 %v300
  %v419 = vpop.f32.mrf.mxu0
  %v420 = vadd.f32 0.0, %v419
  %v421 = vpop.f32.mrf.mxu0
  %422 = vmatprep.mubr.f32.mxu0 0.0
  %423 = vmatmul.mubr.f32.gmra.mxu0 %v303
  %v424 = vpop.f32.mrf.mxu0
  %v425 = vadd.f32 0.0, %v424
  %v426 = vpop.f32.mrf.mxu0
  %427 = vmatprep.mubr.f32.mxu0 0.0
  %428 = vmatmul.mubr.f32.gmra.mxu0 %v306
  %v429 = vpop.f32.mrf.mxu0
  %v430 = vadd.f32 0.0, %v429
  %v431 = vpop.f32.mrf.mxu0
  %432 = vmatprep.mubr.f32.mxu0 0.0
  %433 = vmatmul.mubr.f32.gmra.mxu0 %v309
  %v434 = vpop.f32.mrf.mxu0
  %v435 = vadd.f32 0.0, %v434
  %v436 = vpop.f32.mrf.mxu0
  %437 = vmatprep.mubr.f32.mxu0 0.0
  %438 = vmatmul.mubr.f32.gmra.mxu0 %v312
  %v439 = vpop.f32.mrf.mxu0
  %v440 = vadd.f32 0.0, %v439
  %v441 = vpop.f32.mrf.mxu0
  %442 = vmatprep.mubr.f32.mxu0 0.0
  %443 = vmatmul.mubr.f32.gmra.mxu0 %v315
  %v444 = vpop.f32.mrf.mxu0
  %v445 = vadd.f32 0.0, %v444
  %v446 = vpop.f32.mrf.mxu0
  %447 = vmatprep.mubr.f32.mxu0 0.0
  %448 = vmatmul.mubr.f32.gmra.mxu0 %v318
  %v449 = vpop.f32.mrf.mxu0
  %v450 = vadd.f32 0.0, %v449
  %v451 = vpop.f32.mrf.mxu0
  %452 = vmatprep.mubr.f32.mxu0 0.0
  %453 = vmatmul.mubr.f32.gmra.mxu0 %v321
  %v454 = vpop.f32.mrf.mxu0
  %v455 = vadd.f32 0.0, %v454
  %v456 = vpop.f32.mrf.mxu0
  %457 = vmatprep.mubr.f32.mxu0 0.0
  %458 = vmatmul.mubr.f32.gmra.mxu0 %v324
  %v459 = vpop.f32.mrf.mxu0
  %v460 = vadd.f32 0.0, %v459
  %v461 = vpop.f32.mrf.mxu0
  %462 = vmatprep.mubr.f32.mxu0 0.0
  %463 = vmatmul.mubr.f32.gmra.mxu0 %v327
  %v464 = vpop.f32.mrf.mxu0
  %v465 = vadd.f32 0.0, %v464
  %v466 = vpop.f32.mrf.mxu0
  %467 = vmatprep.mubr.f32.mxu0 0.0
  %468 = vmatmul.mubr.f32.gmra.mxu0 %v330
  %v469 = vpop.f32.mrf.mxu0
  %v470 = vadd.f32 0.0, %v469
  %v471 = vpop.f32.mrf.mxu0
  %472 = vmatprep.mubr.f32.mxu0 0.0
  %473 = vmatmul.mubr.f32.gmra.mxu0 %v333
  %v474 = vpop.f32.mrf.mxu0
  %v475 = vadd.f32 0.0, %v474
  %v476 = vpop.f32.mrf.mxu0
  %477 = vmatprep.mubr.f32.mxu0 0.0
  %478 = vmatmul.mubr.f32.gmra.mxu0 %v336
  %v479 = vpop.f32.mrf.mxu0
  %v480 = vadd.f32 0.0, %v479
  %v481 = vpop.f32.mrf.mxu0
  %482 = vdwg.mxu0
  %vm483 = vcmask 785408
  %484 = vst.msk [vmem:[%s4] sm:$0xff] %vm483, %v405
  %485 = vst.msk [vmem:[%s4 + $0x8] sm:$0xff] %vm483, %v410
  %486 = vst.msk [vmem:[%s4 + $0x10] sm:$0xff] %vm483, %v415
  %487 = vst.msk [vmem:[%s4 + $0x18] sm:$0xff] %vm483, %v420
  %488 = vst.msk [vmem:[%s4 + $0x20] sm:$0xff] %vm483, %v425
  %489 = vst.msk [vmem:[%s4 + $0x28] sm:$0xff] %vm483, %v430
  %490 = vst.msk [vmem:[%s4 + $0x30] sm:$0xff] %vm483, %v435
  %491 = vst.msk [vmem:[%s4 + $0x38] sm:$0xff] %vm483, %v440
  %492 = vst.msk [vmem:[%s4 + $0x40] sm:$0xff] %vm483, %v445
  %493 = vst.msk [vmem:[%s4 + $0x48] sm:$0xff] %vm483, %v450
  %494 = vst.msk [vmem:[%s4 + $0x50] sm:$0xff] %vm483, %v455
  %495 = vst.msk [vmem:[%s4 + $0x58] sm:$0xff] %vm483, %v460
  %496 = vst.msk [vmem:[%s4 + $0x60] sm:$0xff] %vm483, %v465
  %497 = vst.msk [vmem:[%s4 + $0x68] sm:$0xff] %vm483, %v470
  %498 = vst.msk [vmem:[%s4 + $0x70] sm:$0xff] %vm483, %v475
  %499 = vst.msk [vmem:[%s4 + $0x78] sm:$0xff] %vm483, %v480
  // Predicated region
  $region18: #{hpb_forward.8} parent=0 // pred_check
    _
  $region19: #{hpb_forward.8} parent=0 // pred_check_branch
    %501 = sbr.rel (0) target = $region21
  $region20: #{hpb_forward.8} parent=0 // pred_region
    _
  $region21: #{hpb_forward.8} parent=0 // pred_fallthru
    _
  // Predicated region
  $region22: #{hpb_forward.8} parent=0 // pred_check
    _
  $region23: #{hpb_forward.8} parent=0 // pred_check_branch
    %503 = sbr.rel (0) target = $region25
  $region24: #{hpb_forward.8} parent=0 // pred_region
    _
  $region25: #{hpb_forward.8} parent=0 // pred_fallthru
    _

// kernel: hpb_forward.11
$region0: #{hpb_forward.11}
  #allocation0 [shape = 'u32[]', space=smem, size = 0x4, offset = 0x4, fixed_abs, tag = 'smem constant byte address 0x4 - core index']
  #allocation1 [shape = 'u32[144,128]{1,0:T(1,128)}', space=vmem, size = 0x12000, scoped, tag = 'internal scratch']
  %s0 = inlined_call_operand.vmem [shape: f32[2,10,10,8], index: 0, kind: input, shape index: {}]
  %s1 = inlined_call_operand.vmem [shape: f32[9,8], index: 1, kind: input, shape index: {}]
  %s2 = inlined_call_operand.vmem [shape: f32[1,8], index: 2, kind: input, shape index: {}]
  %s3 = inlined_call_operand.vmem [shape: f32[2,8,8,8], index: 3, kind: output, shape index: {}]
  %s4 = sld [smem:[#allocation0]]
  $region45: #{hpb_forward.11} parent=0
    _
  %s6 = ssub.s32 1, %s4
  %s7 = scalar_select 0, %s6, %s4
  loop: start=0, step=1, limit=4
  $region2: #{hpb_forward.11} parent=0 // loop_pre_header
    _
  $region3: #{hpb_forward.11} parent=0 // loop_header
    %s9 = sphi 0, %s13
    %p10 = scmp.ge.s32.totalorder %s9, 4
    %s19 = sphi 0, %s21
    %s22 = sphi 0, %s19
    %s23 = sphi 0, %s22
    %s39 = sphi 0, %s23
    %s43 = sphi 0, %s43
    %s45 = sphi 0, %s43
    %s46 = sphi 0, %s45
    %s60 = sphi 0, %s46
    %s64 = sphi 0, %s64
    %s66 = sphi 0, %s64
    %s67 = sphi 0, %s66
    %s81 = sphi 0, %s67
    %s87 = sphi 0, %s89
    %s90 = sphi 0, %s87
    %s91 = sphi 0, %s90
    %s107 = sphi 0, %s91
  $region4: #{hpb_forward.11} parent=0 // loop_header_branch
    %12 = sbr.rel (%p10) target = $region8
  $region5: #{hpb_forward.11} parent=0 // loop_body
    %s14 = ssub.s32 %s9, 1
    %s15 = ssub.s32 %s9, 2
    %s16 = sadd.s32 %s9, 1
    %s17 = ssub.s32 %s9, %s16
    %p18 = scmp.eq.s32.totalorder %s17, 0
    %s20 = sadd.s32 %s19, 1
    %s21 = scalar_select %p18, %s19, %s20
    %p24 = pneg %p18
    %p25 = scmp.eq.s32.totalorder %s9, 1
    %p26 = por %p24, %p25
    %p27 = scmp.ne.s32.totalorder %s19, %s22
    %p28 = scmp.eq.s32.totalorder %s9, 0
    %p29 = por %p27, %p28
    %p30 = scmp.ne.s32.totalorder %s19, %s22
    %p31 = scmp.eq.s32.totalorder %s14, 1
    %p32 = por %p30, %p31
    %p33 = scmp.ne.s32.totalorder %s22, %s23
    %p34 = scmp.eq.s32.totalorder %s14, 0
    %p35 = por %p33, %p34
    %p36 = scmp.ne.s32.totalorder %s22, %s23
    %p37 = scmp.eq.s32.totalorder %s15, 1
    %p38 = por %p36, %p37
    %p40 = scmp.ne.s32.totalorder %s23, %s39
    %p41 = scmp.eq.s32.totalorder %s15, 0
    %p42 = por %p40, %p41
    %s44 = sadd.s32 %s43, 1
    %p47 = scmp.eq.s32.totalorder %s9, 1
    %p48 = scmp.ne.s32.totalorder %s43, %s45
    %p49 = scmp.eq.s32.totalorder %s9, 0
    %p50 = por %p48, %p49
    %p51 = scmp.ne.s32.totalorder %s43, %s45
    %p52 = scmp.eq.s32.totalorder %s14, 1
    %p53 = por %p51, %p52
    %p54 = scmp.ne.s32.totalorder %s45, %s46
    %p55 = scmp.eq.s32.totalorder %s14, 0
    %p56 = por %p54, %p55
    %p57 = scmp.ne.s32.totalorder %s45, %s46
    %p58 = scmp.eq.s32.totalorder %s15, 1
    %p59 = por %p57, %p58
    %p61 = scmp.ne.s32.totalorder %s46, %s60
    %p62 = scmp.eq.s32.totalorder %s15, 0
    %p63 = por %p61, %p62
    %s65 = sadd.s32 %s64, 1
    %p68 = scmp.eq.s32.totalorder %s9, 1
    %p69 = scmp.ne.s32.totalorder %s64, %s66
    %p70 = scmp.eq.s32.totalorder %s9, 0
    %p71 = por %p69, %p70
    %p72 = scmp.ne.s32.totalorder %s64, %s66
    %p73 = scmp.eq.s32.totalorder %s14, 1
    %p74 = por %p72, %p73
    %p75 = scmp.ne.s32.totalorder %s66, %s67
    %p76 = scmp.eq.s32.totalorder %s14, 0
    %p77 = por %p75, %p76
    %p78 = scmp.ne.s32.totalorder %s66, %s67
    %p79 = scmp.eq.s32.totalorder %s15, 1
    %p80 = por %p78, %p79
    %p82 = scmp.ne.s32.totalorder %s67, %s81
    %p83 = scmp.eq.s32.totalorder %s15, 0
    %p84 = por %p82, %p83
    %s85 = ssub.s32 %s9, %s16
    %p86 = scmp.eq.s32.totalorder %s85, 0
    %s88 = sadd.s32 %s87, 1
    %s89 = scalar_select %p86, %s87, %s88
    %p92 = pneg %p86
    %p93 = scmp.eq.s32.totalorder %s9, 1
    %p94 = por %p92, %p93
    %p95 = scmp.ne.s32.totalorder %s87, %s90
    %p96 = scmp.eq.s32.totalorder %s9, 0
    %p97 = por %p95, %p96
    %p98 = scmp.ne.s32.totalorder %s87, %s90
    %p99 = scmp.eq.s32.totalorder %s14, 1
    %p100 = por %p98, %p99
    %p101 = scmp.ne.s32.totalorder %s90, %s91
    %p102 = scmp.eq.s32.totalorder %s14, 0
    %p103 = por %p101, %p102
    %p104 = scmp.ne.s32.totalorder %s90, %s91
    %p105 = scmp.eq.s32.totalorder %s15, 1
    %p106 = por %p104, %p105
    %p108 = scmp.ne.s32.totalorder %s91, %s107
    %p109 = scmp.eq.s32.totalorder %s15, 0
    %p110 = por %p108, %p109
    %p111 = scmp.le.s32.totalorder 1, %s9
    %p112 = scmp.lt.s32.totalorder %s9, 3
    %p113 = pnand %p111, %p112
    %p114 = pneg %p113
    // Predicated region
    $region9: #{hpb_forward.11} parent=5 // pred_check
      _
    $region10: #{hpb_forward.11} parent=5 // pred_check_branch
      %116 = sbr.rel (%p113) target = $region12
    $region11: #{hpb_forward.11} parent=5 // pred_region
      %s117 = ssub.s32 %s9, 1
      // Predicated region
      $region13: #{hpb_forward.11} parent=11 // pred_check
        %p118 = pneg %p56
      $region14: #{hpb_forward.11} parent=11 // pred_check_branch
        %120 = sbr.rel (%p118) target = $region16
      $region15: #{hpb_forward.11} parent=11 // pred_region
        _
      $region16: #{hpb_forward.11} parent=11 // pred_fallthru
        _
      // Predicated region
      $region17: #{hpb_forward.11} parent=11 // pred_check
        %p121 = pneg %p77
      $region18: #{hpb_forward.11} parent=11 // pred_check_branch
        %123 = sbr.rel (%p121) target = $region20
      $region19: #{hpb_forward.11} parent=11 // pred_region
        _
      $region20: #{hpb_forward.11} parent=11 // pred_fallthru
        _
    $region12: #{hpb_forward.11} parent=5 // pred_fallthru
      _
    %p124 = scmp.lt.s32.totalorder %s9, 2
    // Predicated region
    $region21: #{hpb_forward.11} parent=5 // pred_check
      %p125 = pneg %p124
    $region22: #{hpb_forward.11} parent=5 // pred_check_branch
      %127 = sbr.rel (%p125) target = $region24
    $region23: #{hpb_forward.11} parent=5 // pred_region
      // Predicated region
      $region25: #{hpb_forward.11} parent=23 // pred_check
        %p128 = pneg %p29
      $region26: #{hpb_forward.11} parent=23 // pred_check_branch
        %130 = sbr.rel (%p128) target = $region28
      $region27: #{hpb_forward.11} parent=23 // pred_region
        %p131 = scmp.lt.s32.totalorder %s9, 1
        %s132 = scalar_select %p131, %s9, 1
        %s133 = smul.addr %s132, 20
        %s134 = smul.addr %s133, 8
        %s135 = scalar_lea.vmem %s0, %s134
      $region28: #{hpb_forward.11} parent=23 // pred_fallthru
        _
    $region24: #{hpb_forward.11} parent=5 // pred_fallthru
      _
    %p136 = scmp.le.s32.totalorder 1, %s9
    %p137 = scmp.lt.s32.totalorder %s9, 3
    %p138 = pnand %p136, %p137
    %p139 = pneg %p138
    // Predicated region
    $region29: #{hpb_forward.11} parent=5 // pred_check
      _
    $region30: #{hpb_forward.11} parent=5 // pred_check_branch
      %141 = sbr.rel (%p138) target = $region32
    $region31: #{hpb_forward.11} parent=5 // pred_region
      %s142 = ssub.s32 %s9, 1
      %p143 = scmp.lt.s32.totalorder %s14, 1
      %s144 = scalar_select %p143, %s14, 1
      %s145 = smul.addr %s144, 20
      %s146 = smul.addr %s145, 8
      %s147 = scalar_lea.vmem %s0, %s146
      %p148 = pneg %p35
      %p149 = pneg %p32
      %p150 = pneg %p56
      %p151 = pneg %p53
      %p152 = pneg %p77
      %p153 = pneg %p74
      %p154 = pneg %p103
      %p155 = pneg %p100
      %p156 = scmp.lt.s32.totalorder %s14, 1
      %s157 = scalar_select %p156, %s14, 1
      %s158 = smul.addr %s157, 8
      %s159 = smul.addr %s158, 8
      %s160 = scalar_lea.vmem %s3, %s159
      %p161 = scmp.lt.s32.totalorder %s14, 1
      %s162 = scalar_select %p161, %s14, 1
      %s163 = smul.addr %s162, 20
      %s164 = smul.addr %s163, 8
      %s165 = scalar_lea.vmem %s0, %s164
      %p166 = scmp.lt.s32.totalorder %s14, 1
      %s167 = scalar_select %p166, %s14, 1
      %s168 = smul.addr %s167, 8
      %s169 = smul.addr %s168, 8
      %s170 = scalar_lea.vmem %s3, %s169
      %v171 = vld [vmem:[%s1] sm:$0xff]
      %v172 = vld [vmem:[%s1 + $0x8] sm:$0x1]
      %v173 = vld [vmem:[%s165] sm:$0xff]
      %v174 = vld [vmem:[%s165 + $0x10] sm:$0xff]
      %v175 = vld [vmem:[%s165 + $0x20] sm:$0xff]
      %v176 = vld [vmem:[%s165 + $0x30] sm:$0xff]
      %v177 = vld [vmem:[%s165 + $0x40] sm:$0xff]
      %v178 = vld [vmem:[%s165 + $0x50] sm:$0xff]
      %v179 = vld [vmem:[%s165 + $0x60] sm:$0xff]
      %v180 = vld [vmem:[%s165 + $0x70] sm:$0xff]
      %v181 = vlaneseq
      %v182 = vshrl.u32 %v181, 7
      %v183 = vsub.s32 0, %v182
      %v184 = vrot.slane %v171, %v183
      %v185 = vmul.f32 %v173, %v184
      %v186 = vmul.f32 %v174, %v184
      %v187 = vmul.f32 %v175, %v184
      %v188 = vmul.f32 %v176, %v184
      %v189 = vmul.f32 %v177, %v184
      %v190 = vmul.f32 %v178, %v184
      %v191 = vmul.f32 %v179, %v184
      %v192 = vmul.f32 %v180, %v184
      %v193 = vadd.f32 %v185, 0.0
      %v194 = vadd.f32 %v186, 0.0
      %v195 = vadd.f32 %v187, 0.0
      %v196 = vadd.f32 %v188, 0.0
      %v197 = vadd.f32 %v189, 0.0
      %v198 = vadd.f32 %v190, 0.0
      %v199 = vadd.f32 %v191, 0.0
      %v200 = vadd.f32 %v192, 0.0
      %v201 = vld [vmem:[%s165 + $0x1] sm:$0xff]
      %v202 = vld [vmem:[%s165 + $0x11] sm:$0xff]
      %v203 = vld [vmem:[%s165 + $0x21] sm:$0xff]
      %v204 = vld [vmem:[%s165 + $0x31] sm:$0xff]
      %v205 = vld [vmem:[%s165 + $0x41] sm:$0xff]
      %v206 = vld [vmem:[%s165 + $0x51] sm:$0xff]
      %v207 = vld [vmem:[%s165 + $0x61] sm:$0xff]
      %v208 = vld [vmem:[%s165 + $0x71] sm:$0xff]
      %v209 = vlaneseq
      %v210 = vshrl.u32 %v209, 7
      %v211 = vsub.s32 1, %v210
      %v212 = vrot.slane %v171, %v211
      %v213 = vmul.f32 %v201, %v212
      %v214 = vmul.f32 %v202, %v212
      %v215 = vmul.f32 %v203, %v212
      %v216 = vmul.f32 %v204, %v212
      %v217 = vmul.f32 %v205, %v212
      %v218 = vmul.f32 %v206, %v212
      %v219 = vmul.f32 %v207, %v212
      %v220 = vmul.f32 %v208, %v212
      %v221 = vadd.f32 %v193, %v213
      %v222 = vadd.f32 %v194, %v214
      %v223 = vadd.f32 %v195, %v215
      %v224 = vadd.f32 %v196, %v216
      %v225 = vadd.f32 %v197, %v217
      %v226 = vadd.f32 %v198, %v218
      %v227 = vadd.f32 %v199, %v219
      %v228 = vadd.f32 %v200, %v220
      %v229 = vld [vmem:[%s165 + $0x2] sm:$0xff]
      %v230 = vld [vmem:[%s165 + $0x12] sm:$0xff]
      %v231 = vld [vmem:[%s165 + $0x22] sm:$0xff]
      %v232 = vld [vmem:[%s165 + $0x32] sm:$0xff]
      %v233 = vld [vmem:[%s165 + $0x42] sm:$0xff]
      %v234 = vld [vmem:[%s165 + $0x52] sm:$0xff]
      %v235 = vld [vmem:[%s165 + $0x62] sm:$0xff]
      %v236 = vld [vmem:[%s165 + $0x72] sm:$0xff]
      %v237 = vlaneseq
      %v238 = vshrl.u32 %v237, 7
      %v239 = vsub.s32 2, %v238
      %v240 = vrot.slane %v171, %v239
      %v241 = vmul.f32 %v229, %v240
      %v242 = vmul.f32 %v230, %v240
      %v243 = vmul.f32 %v231, %v240
      %v244 = vmul.f32 %v232, %v240
      %v245 = vmul.f32 %v233, %v240
      %v246 = vmul.f32 %v234, %v240
      %v247 = vmul.f32 %v235, %v240
      %v248 = vmul.f32 %v236, %v240
      %v249 = vadd.f32 %v221, %v241
      %v250 = vadd.f32 %v222, %v242
      %v251 = vadd.f32 %v223, %v243
      %v252 = vadd.f32 %v224, %v244
      %v253 = vadd.f32 %v225, %v245
      %v254 = vadd.f32 %v226, %v246
      %v255 = vadd.f32 %v227, %v247
      %v256 = vadd.f32 %v228, %v248
      %s257 = scalar_lea.vmem %s165, 16
      %v258 = vld [vmem:[%s257] sm:$0xff]
      %v259 = vld [vmem:[%s257 + $0x10] sm:$0xff]
      %v260 = vld [vmem:[%s257 + $0x20] sm:$0xff]
      %v261 = vld [vmem:[%s257 + $0x30] sm:$0xff]
      %v262 = vld [vmem:[%s257 + $0x40] sm:$0xff]
      %v263 = vld [vmem:[%s257 + $0x50] sm:$0xff]
      %v264 = vld [vmem:[%s257 + $0x60] sm:$0xff]
      %v265 = vld [vmem:[%s257 + $0x70] sm:$0xff]
      %v266 = vlaneseq
      %v267 = vshrl.u32 %v266, 7
      %v268 = vsub.s32 3, %v267
      %v269 = vrot.slane %v171, %v268
      %v270 = vmul.f32 %v258, %v269
      %v271 = vmul.f32 %v259, %v269
      %v272 = vmul.f32 %v260, %v269
      %v273 = vmul.f32 %v261, %v269
      %v274 = vmul.f32 %v262, %v269
      %v275 = vmul.f32 %v263, %v269
      %v276 = vmul.f32 %v264, %v269
      %v277 = vmul.f32 %v265, %v269
      %v278 = vadd.f32 %v249, %v270
      %v279 = vadd.f32 %v250, %v271
      %v280 = vadd.f32 %v251, %v272
      %v281 = vadd.f32 %v252, %v273
      %v282 = vadd.f32 %v253, %v274
      %v283 = vadd.f32 %v254, %v275
      %v284 = vadd.f32 %v255, %v276
      %v285 = vadd.f32 %v256, %v277
      %v286 = vld [vmem:[%s257 + $0x1] sm:$0xff]
      %v287 = vld [vmem:[%s257 + $0x11] sm:$0xff]
      %v288 = vld [vmem:[%s257 + $0x21] sm:$0xff]
      %v289 = vld [vmem:[%s257 + $0x31] sm:$0xff]
      %v290 = vld [vmem:[%s257 + $0x41] sm:$0xff]
      %v291 = vld [vmem:[%s257 + $0x51] sm:$0xff]
      %v292 = vld [vmem:[%s257 + $0x61] sm:$0xff]
      %v293 = vld [vmem:[%s257 + $0x71] sm:$0xff]
      %v294 = vlaneseq
      %v295 = vshrl.u32 %v294, 7
      %v296 = vsub.s32 4, %v295
      %v297 = vrot.slane %v171, %v296
      %v298 = vmul.f32 %v286, %v297
      %v299 = vmul.f32 %v287, %v297
      %v300 = vmul.f32 %v288, %v297
      %v301 = vmul.f32 %v289, %v297
      %v302 = vmul.f32 %v290, %v297
      %v303 = vmul.f32 %v291, %v297
      %v304 = vmul.f32 %v292, %v297
      %v305 = vmul.f32 %v293, %v297
      %v306 = vadd.f32 %v278, %v298
      %v307 = vadd.f32 %v279, %v299
      %v308 = vadd.f32 %v280, %v300
      %v309 = vadd.f32 %v281, %v301
      %v310 = vadd.f32 %v282, %v302
      %v311 = vadd.f32 %v283, %v303
      %v312 = vadd.f32 %v284, %v304
      %v313 = vadd.f32 %v285, %v305
      %v314 = vld [vmem:[%s257 + $0x2] sm:$0xff]
      %v315 = vld [vmem:[%s257 + $0x12] sm:$0xff]
      %v316 = vld [vmem:[%s257 + $0x22] sm:$0xff]
      %v317 = vld [vmem:[%s257 + $0x32] sm:$0xff]
      %v318 = vld [vmem:[%s257 + $0x42] sm:$0xff]
      %v319 = vld [vmem:[%s257 + $0x52] sm:$0xff]
      %v320 = vld [vmem:[%s257 + $0x62] sm:$0xff]
      %v321 = vld [vmem:[%s257 + $0x72] sm:$0xff]
      %v322 = vlaneseq
      %v323 = vshrl.u32 %v322, 7
      %v324 = vsub.s32 5, %v323
      %v325 = vrot.slane %v171, %v324
      %v326 = vmul.f32 %v314, %v325
      %v327 = vmul.f32 %v315, %v325
      %v328 = vmul.f32 %v316, %v325
      %v329 = vmul.f32 %v317, %v325
      %v330 = vmul.f32 %v318, %v325
      %v331 = vmul.f32 %v319, %v325
      %v332 = vmul.f32 %v320, %v325
      %v333 = vmul.f32 %v321, %v325
      %v334 = vadd.f32 %v306, %v326
      %v335 = vadd.f32 %v307, %v327
      %v336 = vadd.f32 %v308, %v328
      %v337 = vadd.f32 %v309, %v329
      %v338 = vadd.f32 %v310, %v330
      %v339 = vadd.f32 %v311, %v331
      %v340 = vadd.f32 %v312, %v332
      %v341 = vadd.f32 %v313, %v333
      %s342 = scalar_lea.vmem %s165, 32
      %v343 = vld [vmem:[%s342] sm:$0xff]
      %v344 = vld [vmem:[%s342 + $0x10] sm:$0xff]
      %v345 = vld [vmem:[%s342 + $0x20] sm:$0xff]
      %v346 = vld [vmem:[%s342 + $0x30] sm:$0xff]
      %v347 = vld [vmem:[%s342 + $0x40] sm:$0xff]
      %v348 = vld [vmem:[%s342 + $0x50] sm:$0xff]
      %v349 = vld [vmem:[%s342 + $0x60] sm:$0xff]
      %v350 = vld [vmem:[%s342 + $0x70] sm:$0xff]
      %v351 = vlaneseq
      %v352 = vshrl.u32 %v351, 7
      %v353 = vsub.s32 6, %v352
      %v354 = vrot.slane %v171, %v353
      %v355 = vmul.f32 %v343, %v354
      %v356 = vmul.f32 %v344, %v354
      %v357 = vmul.f32 %v345, %v354
      %v358 = vmul.f32 %v346, %v354
      %v359 = vmul.f32 %v347, %v354
      %v360 = vmul.f32 %v348, %v354
      %v361 = vmul.f32 %v349, %v354
      %v362 = vmul.f32 %v350, %v354
      %v363 = vadd.f32 %v334, %v355
      %v364 = vadd.f32 %v335, %v356
      %v365 = vadd.f32 %v336, %v357
      %v366 = vadd.f32 %v337, %v358
      %v367 = vadd.f32 %v338, %v359
      %v368 = vadd.f32 %v339, %v360
      %v369 = vadd.f32 %v340, %v361
      %v370 = vadd.f32 %v341, %v362
      %v371 = vld [vmem:[%s342 + $0x1] sm:$0xff]
      %v372 = vld [vmem:[%s342 + $0x11] sm:$0xff]
      %v373 = vld [vmem:[%s342 + $0x21] sm:$0xff]
      %v374 = vld [vmem:[%s342 + $0x31] sm:$0xff]
      %v375 = vld [vmem:[%s342 + $0x41] sm:$0xff]
      %v376 = vld [vmem:[%s342 + $0x51] sm:$0xff]
      %v377 = vld [vmem:[%s342 + $0x61] sm:$0xff]
      %v378 = vld [vmem:[%s342 + $0x71] sm:$0xff]
      %v379 = vlaneseq
      %v380 = vshrl.u32 %v379, 7
      %v381 = vsub.s32 7, %v380
      %v382 = vrot.slane %v171, %v381
      %v383 = vmul.f32 %v371, %v382
      %v384 = vmul.f32 %v372, %v382
      %v385 = vmul.f32 %v373, %v382
      %v386 = vmul.f32 %v374, %v382
      %v387 = vmul.f32 %v375, %v382
      %v388 = vmul.f32 %v376, %v382
      %v389 = vmul.f32 %v377, %v382
      %v390 = vmul.f32 %v378, %v382
      %v391 = vadd.f32 %v363, %v383
      %v392 = vadd.f32 %v364, %v384
      %v393 = vadd.f32 %v365, %v385
      %v394 = vadd.f32 %v366, %v386
      %v395 = vadd.f32 %v367, %v387
      %v396 = vadd.f32 %v368, %v388
      %v397 = vadd.f32 %v369, %v389
      %v398 = vadd.f32 %v370, %v390
      %v399 = vld [vmem:[%s342 + $0x2] sm:$0xff]
      %v400 = vld [vmem:[%s342 + $0x12] sm:$0xff]
      %v401 = vld [vmem:[%s342 + $0x22] sm:$0xff]
      %v402 = vld [vmem:[%s342 + $0x32] sm:$0xff]
      %v403 = vld [vmem:[%s342 + $0x42] sm:$0xff]
      %v404 = vld [vmem:[%s342 + $0x52] sm:$0xff]
      %v405 = vld [vmem:[%s342 + $0x62] sm:$0xff]
      %v406 = vld [vmem:[%s342 + $0x72] sm:$0xff]
      %v407 = vlaneseq
      %v408 = vshrl.u32 %v407, 7
      %v409 = vsub.s32 0, %v408
      %v410 = vrot.slane %v172, %v409
      %v411 = vmul.f32 %v399, %v410
      %v412 = vmul.f32 %v400, %v410
      %v413 = vmul.f32 %v401, %v410
      %v414 = vmul.f32 %v402, %v410
      %v415 = vmul.f32 %v403, %v410
      %v416 = vmul.f32 %v404, %v410
      %v417 = vmul.f32 %v405, %v410
      %v418 = vmul.f32 %v406, %v410
      %v419 = vadd.f32 %v391, %v411
      %v420 = vadd.f32 %v392, %v412
      %v421 = vadd.f32 %v393, %v413
      %v422 = vadd.f32 %v394, %v414
      %v423 = vadd.f32 %v395, %v415
      %v424 = vadd.f32 %v396, %v416
      %v425 = vadd.f32 %v397, %v417
      %v426 = vadd.f32 %v398, %v418
      %v427 = vld [vmem:[%s2] sm:$0x1]
      %v429 = vlaneseq
      %v430 = vshrl.u32 %v429, 7
      %v431 = vsub.s32 0, %v430
      %v432 = vrot.slane %v427, %v431
      %v434 = vadd.f32 %v419, %v432
      %v435 = vadd.f32 %v420, %v432
      %v436 = vadd.f32 %v421, %v432
      %v437 = vadd.f32 %v422, %v432
      %v438 = vadd.f32 %v423, %v432
      %v439 = vadd.f32 %v424, %v432
      %v440 = vadd.f32 %v425, %v432
      %v441 = vadd.f32 %v426, %v432
      %vm442 = vcmask 64512
      %443 = vst.msk [vmem:[%s170] sm:$0xff] %vm442, %v434
      %444 = vst.msk [vmem:[%s170 + $0x8] sm:$0xff] %vm442, %v435
      %445 = vst.msk [vmem:[%s170 + $0x10] sm:$0xff] %vm442, %v436
      %446 = vst.msk [vmem:[%s170 + $0x18] sm:$0xff] %vm442, %v437
      %447 = vst.msk [vmem:[%s170 + $0x20] sm:$0xff] %vm442, %v438
      %448 = vst.msk [vmem:[%s170 + $0x28] sm:$0xff] %vm442, %v439
      %449 = vst.msk [vmem:[%s170 + $0x30] sm:$0xff] %vm442, %v440
      %450 = vst.msk [vmem:[%s170 + $0x38] sm:$0xff] %vm442, %v441
      %p451 = scmp.lt.s32.totalorder %s14, 1
      %s452 = scalar_select %p451, %s14, 1
      %s453 = smul.addr %s452, 8
      %s454 = smul.addr %s453, 8
      %s455 = scalar_lea.vmem %s3, %s454
      // Predicated region
      $region33: #{hpb_forward.11} parent=31 // pred_check
        %p456 = pneg %p100
      $region34: #{hpb_forward.11} parent=31 // pred_check_branch
        %458 = sbr.rel (%p456) target = $region36
      $region35: #{hpb_forward.11} parent=31 // pred_region
        _
      $region36: #{hpb_forward.11} parent=31 // pred_fallthru
        _
    $region32: #{hpb_forward.11} parent=5 // pred_fallthru
      _
    %p459 = scmp.le.s32.totalorder 2, %s9
    // Predicated region
    $region37: #{hpb_forward.11} parent=5 // pred_check
      %p460 = pneg %p459
    $region38: #{hpb_forward.11} parent=5 // pred_check_branch
      %462 = sbr.rel (%p460) target = $region40
    $region39: #{hpb_forward.11} parent=5 // pred_region
      %s463 = ssub.s32 %s9, 2
      // Predicated region
      $region41: #{hpb_forward.11} parent=39 // pred_check
        %p464 = pneg %p106
      $region42: #{hpb_forward.11} parent=39 // pred_check_branch
        %466 = sbr.rel (%p464) target = $region44
      $region43: #{hpb_forward.11} parent=39 // pred_region
        %p467 = scmp.lt.s32.totalorder %s15, 1
        %s468 = scalar_select %p467, %s15, 1
        %s469 = smul.addr %s468, 8
        %s470 = smul.addr %s469, 8
        %s471 = scalar_lea.vmem %s3, %s470
      $region44: #{hpb_forward.11} parent=39 // pred_fallthru
        _
    $region40: #{hpb_forward.11} parent=5 // pred_fallthru
      _
  $region6: #{hpb_forward.11} parent=0 // loop_footer
    %s13 = sadd.s32 1, %s9
  $region7: #{hpb_forward.11} parent=0 // loop_footer_branch
    %8 = sbr.rel target = $region3
  $region8: #{hpb_forward.11} parent=0 // loop_exit
    _

// kernel: hpb_forward.12
$region0: #{hpb_forward.12}
  #allocation0 [shape = 'u32[]', space=smem, size = 0x4, offset = 0x4, fixed_abs, tag = 'smem constant byte address 0x4 - core index']
  #allocation1 [shape = 'u32[144,128]{1,0:T(1,128)}', space=vmem, size = 0x12000, scoped, tag = 'internal scratch']
  %s0 = inlined_call_operand.vmem [shape: f32[128,32], index: 0, kind: input, shape index: {}]
  %s1 = inlined_call_operand.vmem [shape: f32[128,8], index: 1, kind: input, shape index: {}]
  %s2 = inlined_call_operand.vmem [shape: f32[128,8], index: 2, kind: input, shape index: {}]
  %s3 = inlined_call_operand.vmem [shape: f32[32,8], index: 3, kind: input, shape index: {}]
  %s4 = inlined_call_operand.vmem [shape: f32[1,8], index: 4, kind: input, shape index: {}]
  %s5 = inlined_call_operand.vmem [shape: f32[8,8], index: 5, kind: input, shape index: {}]
  %s6 = inlined_call_operand.vmem [shape: f32[8,8], index: 6, kind: input, shape index: {}]
  %s7 = inlined_call_operand.vmem [shape: f32[1,8], index: 7, kind: input, shape index: {}]
  %s8 = inlined_call_operand.vmem [shape: f32[128,8], index: 8, kind: output, shape index: {}]
  %s9 = sld [smem:[#allocation0]]
  $region42: #{hpb_forward.12} parent=0
    _
  %s11 = ssub.s32 1, %s9
  %s12 = scalar_select 0, %s11, %s9
  // Predicated region
  $region2: #{hpb_forward.12} parent=0 // pred_check
    _
  $region3: #{hpb_forward.12} parent=0 // pred_check_branch
    %14 = sbr.rel (0) target = $region5
  $region4: #{hpb_forward.12} parent=0 // pred_region
    _
  $region5: #{hpb_forward.12} parent=0 // pred_fallthru
    _
  // Predicated region
  $region6: #{hpb_forward.12} parent=0 // pred_check
    _
  $region7: #{hpb_forward.12} parent=0 // pred_check_branch
    %16 = sbr.rel (0) target = $region9
  $region8: #{hpb_forward.12} parent=0 // pred_region
    _
  $region9: #{hpb_forward.12} parent=0 // pred_fallthru
    _
  // Predicated region
  $region10: #{hpb_forward.12} parent=0 // pred_check
    _
  $region11: #{hpb_forward.12} parent=0 // pred_check_branch
    %18 = sbr.rel (0) target = $region13
  $region12: #{hpb_forward.12} parent=0 // pred_region
    _
  $region13: #{hpb_forward.12} parent=0 // pred_fallthru
    _
  // Predicated region
  $region14: #{hpb_forward.12} parent=0 // pred_check
    _
  $region15: #{hpb_forward.12} parent=0 // pred_check_branch
    %20 = sbr.rel (0) target = $region17
  $region16: #{hpb_forward.12} parent=0 // pred_region
    _
  $region17: #{hpb_forward.12} parent=0 // pred_fallthru
    _
  // Predicated region
  $region18: #{hpb_forward.12} parent=0 // pred_check
    _
  $region19: #{hpb_forward.12} parent=0 // pred_check_branch
    %22 = sbr.rel (0) target = $region21
  $region20: #{hpb_forward.12} parent=0 // pred_region
    _
  $region21: #{hpb_forward.12} parent=0 // pred_fallthru
    _
  // Predicated region
  $region22: #{hpb_forward.12} parent=0 // pred_check
    _
  $region23: #{hpb_forward.12} parent=0 // pred_check_branch
    %24 = sbr.rel (0) target = $region25
  $region24: #{hpb_forward.12} parent=0 // pred_region
    _
  $region25: #{hpb_forward.12} parent=0 // pred_fallthru
    _
  // Predicated region
  $region26: #{hpb_forward.12} parent=0 // pred_check
    _
  $region27: #{hpb_forward.12} parent=0 // pred_check_branch
    %26 = sbr.rel (0) target = $region29
  $region28: #{hpb_forward.12} parent=0 // pred_region
    _
  $region29: #{hpb_forward.12} parent=0 // pred_fallthru
    _
  // Predicated region
  $region30: #{hpb_forward.12} parent=0 // pred_check
    _
  $region31: #{hpb_forward.12} parent=0 // pred_check_branch
    %28 = sbr.rel (0) target = $region33
  $region32: #{hpb_forward.12} parent=0 // pred_region
    _
  $region33: #{hpb_forward.12} parent=0 // pred_fallthru
    _
  %v29 = vld [vmem:[%s0] sm:$0xff]
  %v30 = vld [vmem:[%s0 + $0x8] sm:$0xff]
  %v31 = vld [vmem:[%s0 + $0x10] sm:$0xff]
  %v32 = vld [vmem:[%s0 + $0x18] sm:$0xff]
  %v33 = vld [vmem:[%s0 + $0x20] sm:$0xff]
  %v34 = vld [vmem:[%s0 + $0x28] sm:$0xff]
  %v35 = vld [vmem:[%s0 + $0x30] sm:$0xff]
  %v36 = vld [vmem:[%s0 + $0x38] sm:$0xff]
  %v37 = vld [vmem:[%s0 + $0x40] sm:$0xff]
  %v38 = vld [vmem:[%s0 + $0x48] sm:$0xff]
  %v39 = vld [vmem:[%s0 + $0x50] sm:$0xff]
  %v40 = vld [vmem:[%s0 + $0x58] sm:$0xff]
  %v41 = vld [vmem:[%s0 + $0x60] sm:$0xff]
  %v42 = vld [vmem:[%s0 + $0x68] sm:$0xff]
  %v43 = vld [vmem:[%s0 + $0x70] sm:$0xff]
  %v44 = vld [vmem:[%s0 + $0x78] sm:$0xff]
  %v45 = vld [vmem:[%s3] sm:$0xff]
  %v46 = vld [vmem:[%s3 + $0x8] sm:$0xff]
  %v47 = vld [vmem:[%s3 + $0x10] sm:$0xff]
  %v48 = vld [vmem:[%s3 + $0x18] sm:$0xff]
  %v49 = vld [vmem:[%s4] sm:$0x1]
  %v51 = vlaneseq
  %v52 = vshrl.u32 %v51, 7
  %v53 = vsub.s32 0, %v52
  %v54 = vrot.slane %v49, %v53
  %vm56 = vcmask 261120
  %v58 = vsel %vm56, %v29, 0
  %v61 = vsel %vm56, %v30, 0
  %v64 = vsel %vm56, %v31, 0
  %v67 = vsel %vm56, %v32, 0
  %v70 = vsel %vm56, %v33, 0
  %v73 = vsel %vm56, %v34, 0
  %v76 = vsel %vm56, %v35, 0
  %v79 = vsel %vm56, %v36, 0
  %v82 = vsel %vm56, %v37, 0
  %v85 = vsel %vm56, %v38, 0
  %v88 = vsel %vm56, %v39, 0
  %v91 = vsel %vm56, %v40, 0
  %v94 = vsel %vm56, %v41, 0
  %v97 = vsel %vm56, %v42, 0
  %v100 = vsel %vm56, %v43, 0
  %v103 = vsel %vm56, %v44, 0
  %105 = vmatprep.subr.mxu0 0.0
  %106 = vmatpush1.msra.mxu0 0.0
  %107 = vmatprep.subr.mxu0 0.0
  %108 = vmatpush1.msra.mxu0 0.0
  %109 = vmatprep.subr.mxu0 0.0
  %110 = vmatpush1.msra.mxu0 0.0
  %111 = vmatprep.subr.mxu0 0.0
  %112 = vmatpush1.msra.mxu0 0.0
  %113 = vmatprep.subr.mxu0 0.0
  %114 = vmatpush1.msra.mxu0 0.0
  %115 = vmatprep.subr.mxu0 0.0
  %116 = vmatpush1.msra.mxu0 0.0
  %117 = vmatprep.subr.mxu0 0.0
  %118 = vmatpush1.msra.mxu0 0.0
  %119 = vmatprep.subr.mxu0 0.0
  %120 = vmatpush1.msra.mxu0 0.0
  %121 = vmatprep.subr.mxu0 0.0
  %122 = vmatpush1.msra.mxu0 0.0
  %123 = vmatprep.subr.mxu0 0.0
  %124 = vmatpush1.msra.mxu0 0.0
  %125 = vmatprep.subr.mxu0 0.0
  %126 = vmatpush1.msra.mxu0 0.0
  %127 = vmatprep.subr.mxu0 0.0
  %128 = vmatpush1.msra.mxu0 0.0
  %129 = vmatprep.subr.mxu0 0.0
  %130 = vmatpush1.msra.mxu0 %v48
  %131 = vmatprep.subr.mxu0 0.0
  %132 = vmatpush1.msra.mxu0 %v47
  %133 = vmatprep.subr.mxu0 0.0
  %134 = vmatpush1.msra.mxu0 %v46
  %135 = vmatprep.subr.mxu0 0.0
  %136 = vmatpush1.msra.mxu0 %v45
  %137 = vmatprep.subr.mxu0 0.0
  %138 = vmatpush2.msra.mxu0 0.0
  %139 = vmatprep.subr.mxu0 0.0
  %140 = vmatpush2.msra.mxu0 0.0
  %141 = vmatprep.subr.mxu0 0.0
  %142 = vmatpush2.msra.mxu0 0.0
  %143 = vmatprep.subr.mxu0 0.0
  %144 = vmatpush2.msra.mxu0 0.0
  %145 = vmatprep.subr.mxu0 0.0
  %146 = vmatpush2.msra.mxu0 0.0
  %147 = vmatprep.subr.mxu0 0.0
  %148 = vmatpush2.msra.mxu0 0.0
  %149 = vmatprep.subr.mxu0 0.0
  %150 = vmatpush2.msra.mxu0 0.0
  %151 = vmatprep.subr.mxu0 0.0
  %152 = vmatpush2.msra.mxu0 0.0
  %153 = vmatprep.subr.mxu0 0.0
  %154 = vmatpush2.msra.mxu0 0.0
  %155 = vmatprep.subr.mxu0 0.0
  %156 = vmatpush2.msra.mxu0 0.0
  %157 = vmatprep.subr.mxu0 0.0
  %158 = vmatpush2.msra.mxu0 0.0
  %159 = vmatprep.subr.mxu0 0.0
  %160 = vmatpush2.msra.mxu0 0.0
  %161 = vmatprep.subr.mxu0 0.0
  %162 = vmatpush2.msra.mxu0 0.0
  %163 = vmatprep.subr.mxu0 0.0
  %164 = vmatpush2.msra.mxu0 0.0
  %165 = vmatprep.subr.mxu0 0.0
  %166 = vmatpush2.msra.mxu0 0.0
  %167 = vmatprep.subr.mxu0 0.0
  %168 = vmatpush2.msra.mxu0 0.0
  %169 = vmatprep.mubr.f32.mxu0 0.0
  %170 = vmatmul.mubr.f32.gmra.mxu0 %v58
  %v171 = vpop.f32.mrf.mxu0
  %v172 = vadd.f32 %v54, %v171
  %v173 = vpop.f32.mrf.mxu0
  %174 = vmatprep.mubr.f32.mxu0 0.0
  %175 = vmatmul.mubr.f32.gmra.mxu0 %v61
  %v176 = vpop.f32.mrf.mxu0
  %v177 = vadd.f32 %v54, %v176
  %v178 = vpop.f32.mrf.mxu0
  %179 = vmatprep.mubr.f32.mxu0 0.0
  %180 = vmatmul.mubr.f32.gmra.mxu0 %v64
  %v181 = vpop.f32.mrf.mxu0
  %v182 = vadd.f32 %v54, %v181
  %v183 = vpop.f32.mrf.mxu0
  %184 = vmatprep.mubr.f32.mxu0 0.0
  %185 = vmatmul.mubr.f32.gmra.mxu0 %v67
  %v186 = vpop.f32.mrf.mxu0
  %v187 = vadd.f32 %v54, %v186
  %v188 = vpop.f32.mrf.mxu0
  %189 = vmatprep.mubr.f32.mxu0 0.0
  %190 = vmatmul.mubr.f32.gmra.mxu0 %v70
  %v191 = vpop.f32.mrf.mxu0
  %v192 = vadd.f32 %v54, %v191
  %v193 = vpop.f32.mrf.mxu0
  %194 = vmatprep.mubr.f32.mxu0 0.0
  %195 = vmatmul.mubr.f32.gmra.mxu0 %v73
  %v196 = vpop.f32.mrf.mxu0
  %v197 = vadd.f32 %v54, %v196
  %v198 = vpop.f32.mrf.mxu0
  %199 = vmatprep.mubr.f32.mxu0 0.0
  %200 = vmatmul.mubr.f32.gmra.mxu0 %v76
  %v201 = vpop.f32.mrf.mxu0
  %v202 = vadd.f32 %v54, %v201
  %v203 = vpop.f32.mrf.mxu0
  %204 = vmatprep.mubr.f32.mxu0 0.0
  %205 = vmatmul.mubr.f32.gmra.mxu0 %v79
  %v206 = vpop.f32.mrf.mxu0
  %v207 = vadd.f32 %v54, %v206
  %v208 = vpop.f32.mrf.mxu0
  %209 = vmatprep.mubr.f32.mxu0 0.0
  %210 = vmatmul.mubr.f32.gmra.mxu0 %v82
  %v211 = vpop.f32.mrf.mxu0
  %v212 = vadd.f32 %v54, %v211
  %v213 = vpop.f32.mrf.mxu0
  %214 = vmatprep.mubr.f32.mxu0 0.0
  %215 = vmatmul.mubr.f32.gmra.mxu0 %v85
  %v216 = vpop.f32.mrf.mxu0
  %v217 = vadd.f32 %v54, %v216
  %v218 = vpop.f32.mrf.mxu0
  %219 = vmatprep.mubr.f32.mxu0 0.0
  %220 = vmatmul.mubr.f32.gmra.mxu0 %v88
  %v221 = vpop.f32.mrf.mxu0
  %v222 = vadd.f32 %v54, %v221
  %v223 = vpop.f32.mrf.mxu0
  %224 = vmatprep.mubr.f32.mxu0 0.0
  %225 = vmatmul.mubr.f32.gmra.mxu0 %v91
  %v226 = vpop.f32.mrf.mxu0
  %v227 = vadd.f32 %v54, %v226
  %v228 = vpop.f32.mrf.mxu0
  %229 = vmatprep.mubr.f32.mxu0 0.0
  %230 = vmatmul.mubr.f32.gmra.mxu0 %v94
  %v231 = vpop.f32.mrf.mxu0
  %v232 = vadd.f32 %v54, %v231
  %v233 = vpop.f32.mrf.mxu0
  %234 = vmatprep.mubr.f32.mxu0 0.0
  %235 = vmatmul.mubr.f32.gmra.mxu0 %v97
  %v236 = vpop.f32.mrf.mxu0
  %v237 = vadd.f32 %v54, %v236
  %v238 = vpop.f32.mrf.mxu0
  %239 = vmatprep.mubr.f32.mxu0 0.0
  %240 = vmatmul.mubr.f32.gmra.mxu0 %v100
  %v241 = vpop.f32.mrf.mxu0
  %v242 = vadd.f32 %v54, %v241
  %v243 = vpop.f32.mrf.mxu0
  %244 = vmatprep.mubr.f32.mxu0 0.0
  %245 = vmatmul.mubr.f32.gmra.mxu0 %v103
  %v246 = vpop.f32.mrf.mxu0
  %v247 = vadd.f32 %v54, %v246
  %v248 = vpop.f32.mrf.mxu0
  %249 = vdwg.mxu0
  %v250 = vld [vmem:[%s5] sm:$0xff]
  %v251 = vld [vmem:[%s1] sm:$0xff]
  %v252 = vld [vmem:[%s1 + $0x8] sm:$0xff]
  %v253 = vld [vmem:[%s1 + $0x10] sm:$0xff]
  %v254 = vld [vmem:[%s1 + $0x18] sm:$0xff]
  %v255 = vld [vmem:[%s1 + $0x20] sm:$0xff]
  %v256 = vld [vmem:[%s1 + $0x28] sm:$0xff]
  %v257 = vld [vmem:[%s1 + $0x30] sm:$0xff]
  %v258 = vld [vmem:[%s1 + $0x38] sm:$0xff]
  %v259 = vld [vmem:[%s1 + $0x40] sm:$0xff]
  %v260 = vld [vmem:[%s1 + $0x48] sm:$0xff]
  %v261 = vld [vmem:[%s1 + $0x50] sm:$0xff]
  %v262 = vld [vmem:[%s1 + $0x58] sm:$0xff]
  %v263 = vld [vmem:[%s1 + $0x60] sm:$0xff]
  %v264 = vld [vmem:[%s1 + $0x68] sm:$0xff]
  %v265 = vld [vmem:[%s1 + $0x70] sm:$0xff]
  %v266 = vld [vmem:[%s1 + $0x78] sm:$0xff]
  %v267 = vld [vmem:[%s6] sm:$0xff]
  %vm268 = vcmask 64512
  %v270 = vsel %vm268, %v251, 0
  %v273 = vsel %vm268, %v252, 0
  %v276 = vsel %vm268, %v253, 0
  %v279 = vsel %vm268, %v254, 0
  %v282 = vsel %vm268, %v255, 0
  %v285 = vsel %vm268, %v256, 0
  %v288 = vsel %vm268, %v257, 0
  %v291 = vsel %vm268, %v258, 0
  %v294 = vsel %vm268, %v259, 0
  %v297 = vsel %vm268, %v260, 0
  %v300 = vsel %vm268, %v261, 0
  %v303 = vsel %vm268, %v262, 0
  %v306 = vsel %vm268, %v263, 0
  %v309 = vsel %vm268, %v264, 0
  %v312 = vsel %vm268, %v265, 0
  %v315 = vsel %vm268, %v266, 0
  %317 = vmatprep.subr.mxu0 0.0
  %318 = vmatpush1.msra.mxu0 0.0
  %319 = vmatprep.subr.mxu0 0.0
  %320 = vmatpush1.msra.mxu0 0.0
  %321 = vmatprep.subr.mxu0 0.0
  %322 = vmatpush1.msra.mxu0 0.0
  %323 = vmatprep.subr.mxu0 0.0
  %324 = vmatpush1.msra.mxu0 0.0
  %325 = vmatprep.subr.mxu0 0.0
  %326 = vmatpush1.msra.mxu0 0.0
  %327 = vmatprep.subr.mxu0 0.0
  %328 = vmatpush1.msra.mxu0 0.0
  %329 = vmatprep.subr.mxu0 0.0
  %330 = vmatpush1.msra.mxu0 0.0
  %331 = vmatprep.subr.mxu0 0.0
  %332 = vmatpush1.msra.mxu0 0.0
  %333 = vmatprep.subr.mxu0 0.0
  %334 = vmatpush1.msra.mxu0 0.0
  %335 = vmatprep.subr.mxu0 0.0
  %336 = vmatpush1.msra.mxu0 0.0
  %337 = vmatprep.subr.mxu0 0.0
  %338 = vmatpush1.msra.mxu0 0.0
  %339 = vmatprep.subr.mxu0 0.0
  %340 = vmatpush1.msra.mxu0 0.0
  %341 = vmatprep.subr.mxu0 0.0
  %342 = vmatpush1.msra.mxu0 0.0
  %343 = vmatprep.subr.mxu0 0.0
  %344 = vmatpush1.msra.mxu0 0.0
  %345 = vmatprep.subr.mxu0 0.0
  %346 = vmatpush1.msra.mxu0 0.0
  %347 = vmatprep.subr.mxu0 0.0
  %348 = vmatpush1.msra.mxu0 %v267
  %349 = vmatprep.subr.mxu0 0.0
  %350 = vmatpush2.msra.mxu0 0.0
  %351 = vmatprep.subr.mxu0 0.0
  %352 = vmatpush2.msra.mxu0 0.0
  %353 = vmatprep.subr.mxu0 0.0
  %354 = vmatpush2.msra.mxu0 0.0
  %355 = vmatprep.subr.mxu0 0.0
  %356 = vmatpush2.msra.mxu0 0.0
  %357 = vmatprep.subr.mxu0 0.0
  %358 = vmatpush2.msra.mxu0 0.0
  %359 = vmatprep.subr.mxu0 0.0
  %360 = vmatpush2.msra.mxu0 0.0
  %361 = vmatprep.subr.mxu0 0.0
  %362 = vmatpush2.msra.mxu0 0.0
  %363 = vmatprep.subr.mxu0 0.0
  %364 = vmatpush2.msra.mxu0 0.0
  %365 = vmatprep.subr.mxu0 0.0
  %366 = vmatpush2.msra.mxu0 0.0
  %367 = vmatprep.subr.mxu0 0.0
  %368 = vmatpush2.msra.mxu0 0.0
  %369 = vmatprep.subr.mxu0 0.0
  %370 = vmatpush2.msra.mxu0 0.0
  %371 = vmatprep.subr.mxu0 0.0
  %372 = vmatpush2.msra.mxu0 0.0
  %373 = vmatprep.subr.mxu0 0.0
  %374 = vmatpush2.msra.mxu0 0.0
  %375 = vmatprep.subr.mxu0 0.0
  %376 = vmatpush2.msra.mxu0 0.0
  %377 = vmatprep.subr.mxu0 0.0
  %378 = vmatpush2.msra.mxu0 0.0
  %379 = vmatprep.subr.mxu0 0.0
  %380 = vmatpush2.msra.mxu0 0.0
  %381 = vmatprep.mubr.f32.mxu0 0.0
  %382 = vmatmul.mubr.f32.gmra.mxu0 %v270
  %v383 = vpop.f32.mrf.mxu0
  %v384 = vadd.f32 0.0, %v383
  %v385 = vpop.f32.mrf.mxu0
  %386 = vmatprep.mubr.f32.mxu0 0.0
  %387 = vmatmul.mubr.f32.gmra.mxu0 %v273
  %v388 = vpop.f32.mrf.mxu0
  %v389 = vadd.f32 0.0, %v388
  %v390 = vpop.f32.mrf.mxu0
  %391 = vmatprep.mubr.f32.mxu0 0.0
  %392 = vmatmul.mubr.f32.gmra.mxu0 %v276
  %v393 = vpop.f32.mrf.mxu0
  %v394 = vadd.f32 0.0, %v393
  %v395 = vpop.f32.mrf.mxu0
  %396 = vmatprep.mubr.f32.mxu0 0.0
  %397 = vmatmul.mubr.f32.gmra.mxu0 %v279
  %v398 = vpop.f32.mrf.mxu0
  %v399 = vadd.f32 0.0, %v398
  %v400 = vpop.f32.mrf.mxu0
  %401 = vmatprep.mubr.f32.mxu0 0.0
  %402 = vmatmul.mubr.f32.gmra.mxu0 %v282
  %v403 = vpop.f32.mrf.mxu0
  %v404 = vadd.f32 0.0, %v403
  %v405 = vpop.f32.mrf.mxu0
  %406 = vmatprep.mubr.f32.mxu0 0.0
  %407 = vmatmul.mubr.f32.gmra.mxu0 %v285
  %v408 = vpop.f32.mrf.mxu0
  %v409 = vadd.f32 0.0, %v408
  %v410 = vpop.f32.mrf.mxu0
  %411 = vmatprep.mubr.f32.mxu0 0.0
  %412 = vmatmul.mubr.f32.gmra.mxu0 %v288
  %v413 = vpop.f32.mrf.mxu0
  %v414 = vadd.f32 0.0, %v413
  %v415 = vpop.f32.mrf.mxu0
  %416 = vmatprep.mubr.f32.mxu0 0.0
  %417 = vmatmul.mubr.f32.gmra.mxu0 %v291
  %v418 = vpop.f32.mrf.mxu0
  %v419 = vadd.f32 0.0, %v418
  %v420 = vpop.f32.mrf.mxu0
  %421 = vmatprep.mubr.f32.mxu0 0.0
  %422 = vmatmul.mubr.f32.gmra.mxu0 %v294
  %v423 = vpop.f32.mrf.mxu0
  %v424 = vadd.f32 0.0, %v423
  %v425 = vpop.f32.mrf.mxu0
  %426 = vmatprep.mubr.f32.mxu0 0.0
  %427 = vmatmul.mubr.f32.gmra.mxu0 %v297
  %v428 = vpop.f32.mrf.mxu0
  %v429 = vadd.f32 0.0, %v428
  %v430 = vpop.f32.mrf.mxu0
  %431 = vmatprep.mubr.f32.mxu0 0.0
  %432 = vmatmul.mubr.f32.gmra.mxu0 %v300
  %v433 = vpop.f32.mrf.mxu0
  %v434 = vadd.f32 0.0, %v433
  %v435 = vpop.f32.mrf.mxu0
  %436 = vmatprep.mubr.f32.mxu0 0.0
  %437 = vmatmul.mubr.f32.gmra.mxu0 %v303
  %v438 = vpop.f32.mrf.mxu0
  %v439 = vadd.f32 0.0, %v438
  %v440 = vpop.f32.mrf.mxu0
  %441 = vmatprep.mubr.f32.mxu0 0.0
  %442 = vmatmul.mubr.f32.gmra.mxu0 %v306
  %v443 = vpop.f32.mrf.mxu0
  %v444 = vadd.f32 0.0, %v443
  %v445 = vpop.f32.mrf.mxu0
  %446 = vmatprep.mubr.f32.mxu0 0.0
  %447 = vmatmul.mubr.f32.gmra.mxu0 %v309
  %v448 = vpop.f32.mrf.mxu0
  %v449 = vadd.f32 0.0, %v448
  %v450 = vpop.f32.mrf.mxu0
  %451 = vmatprep.mubr.f32.mxu0 0.0
  %452 = vmatmul.mubr.f32.gmra.mxu0 %v312
  %v453 = vpop.f32.mrf.mxu0
  %v454 = vadd.f32 0.0, %v453
  %v455 = vpop.f32.mrf.mxu0
  %456 = vmatprep.mubr.f32.mxu0 0.0
  %457 = vmatmul.mubr.f32.gmra.mxu0 %v315
  %v458 = vpop.f32.mrf.mxu0
  %v459 = vadd.f32 0.0, %v458
  %v460 = vpop.f32.mrf.mxu0
  %461 = vdwg.mxu0
  %v463 = vsel %vm268, %v172, 0
  %v466 = vsel %vm268, %v177, 0
  %v469 = vsel %vm268, %v182, 0
  %v472 = vsel %vm268, %v187, 0
  %v475 = vsel %vm268, %v192, 0
  %v478 = vsel %vm268, %v197, 0
  %v481 = vsel %vm268, %v202, 0
  %v484 = vsel %vm268, %v207, 0
  %v487 = vsel %vm268, %v212, 0
  %v490 = vsel %vm268, %v217, 0
  %v493 = vsel %vm268, %v222, 0
  %v496 = vsel %vm268, %v227, 0
  %v499 = vsel %vm268, %v232, 0
  %v502 = vsel %vm268, %v237, 0
  %v505 = vsel %vm268, %v242, 0
  %v508 = vsel %vm268, %v247, 0
  %510 = vmatprep.subr.mxu0 0.0
  %511 = vmatpush1.msra.mxu0 0.0
  %512 = vmatprep.subr.mxu0 0.0
  %513 = vmatpush1.msra.mxu0 0.0
  %514 = vmatprep.subr.mxu0 0.0
  %515 = vmatpush1.msra.mxu0 0.0
  %516 = vmatprep.subr.mxu0 0.0
  %517 = vmatpush1.msra.mxu0 0.0
  %518 = vmatprep.subr.mxu0 0.0
  %519 = vmatpush1.msra.mxu0 0.0
  %520 = vmatprep.subr.mxu0 0.0
  %521 = vmatpush1.msra.mxu0 0.0
  %522 = vmatprep.subr.mxu0 0.0
  %523 = vmatpush1.msra.mxu0 0.0
  %524 = vmatprep.subr.mxu0 0.0
  %525 = vmatpush1.msra.mxu0 0.0
  %526 = vmatprep.subr.mxu0 0.0
  %527 = vmatpush1.msra.mxu0 0.0
  %528 = vmatprep.subr.mxu0 0.0
  %529 = vmatpush1.msra.mxu0 0.0
  %530 = vmatprep.subr.mxu0 0.0
  %531 = vmatpush1.msra.mxu0 0.0
  %532 = vmatprep.subr.mxu0 0.0
  %533 = vmatpush1.msra.mxu0 0.0
  %534 = vmatprep.subr.mxu0 0.0
  %535 = vmatpush1.msra.mxu0 0.0
  %536 = vmatprep.subr.mxu0 0.0
  %537 = vmatpush1.msra.mxu0 0.0
  %538 = vmatprep.subr.mxu0 0.0
  %539 = vmatpush1.msra.mxu0 0.0
  %540 = vmatprep.subr.mxu0 0.0
  %541 = vmatpush1.msra.mxu0 %v250
  %542 = vmatprep.subr.mxu0 0.0
  %543 = vmatpush2.msra.mxu0 0.0
  %544 = vmatprep.subr.mxu0 0.0
  %545 = vmatpush2.msra.mxu0 0.0
  %546 = vmatprep.subr.mxu0 0.0
  %547 = vmatpush2.msra.mxu0 0.0
  %548 = vmatprep.subr.mxu0 0.0
  %549 = vmatpush2.msra.mxu0 0.0
  %550 = vmatprep.subr.mxu0 0.0
  %551 = vmatpush2.msra.mxu0 0.0
  %552 = vmatprep.subr.mxu0 0.0
  %553 = vmatpush2.msra.mxu0 0.0
  %554 = vmatprep.subr.mxu0 0.0
  %555 = vmatpush2.msra.mxu0 0.0
  %556 = vmatprep.subr.mxu0 0.0
  %557 = vmatpush2.msra.mxu0 0.0
  %558 = vmatprep.subr.mxu0 0.0
  %559 = vmatpush2.msra.mxu0 0.0
  %560 = vmatprep.subr.mxu0 0.0
  %561 = vmatpush2.msra.mxu0 0.0
  %562 = vmatprep.subr.mxu0 0.0
  %563 = vmatpush2.msra.mxu0 0.0
  %564 = vmatprep.subr.mxu0 0.0
  %565 = vmatpush2.msra.mxu0 0.0
  %566 = vmatprep.subr.mxu0 0.0
  %567 = vmatpush2.msra.mxu0 0.0
  %568 = vmatprep.subr.mxu0 0.0
  %569 = vmatpush2.msra.mxu0 0.0
  %570 = vmatprep.subr.mxu0 0.0
  %571 = vmatpush2.msra.mxu0 0.0
  %572 = vmatprep.subr.mxu0 0.0
  %573 = vmatpush2.msra.mxu0 0.0
  %574 = vmatprep.mubr.f32.mxu0 0.0
  %575 = vmatmul.mubr.f32.gmra.mxu0 %v463
  %v576 = vpop.f32.mrf.mxu0
  %v577 = vadd.f32 %v384, %v576
  %v578 = vpop.f32.mrf.mxu0
  %579 = vmatprep.mubr.f32.mxu0 0.0
  %580 = vmatmul.mubr.f32.gmra.mxu0 %v466
  %v581 = vpop.f32.mrf.mxu0
  %v582 = vadd.f32 %v389, %v581
  %v583 = vpop.f32.mrf.mxu0
  %584 = vmatprep.mubr.f32.mxu0 0.0
  %585 = vmatmul.mubr.f32.gmra.mxu0 %v469
  %v586 = vpop.f32.mrf.mxu0
  %v587 = vadd.f32 %v394, %v586
  %v588 = vpop.f32.mrf.mxu0
  %589 = vmatprep.mubr.f32.mxu0 0.0
  %590 = vmatmul.mubr.f32.gmra.mxu0 %v472
  %v591 = vpop.f32.mrf.mxu0
  %v592 = vadd.f32 %v399, %v591
  %v593 = vpop.f32.mrf.mxu0
  %594 = vmatprep.mubr.f32.mxu0 0.0
  %595 = vmatmul.mubr.f32.gmra.mxu0 %v475
  %v596 = vpop.f32.mrf.mxu0
  %v597 = vadd.f32 %v404, %v596
  %v598 = vpop.f32.mrf.mxu0
  %599 = vmatprep.mubr.f32.mxu0 0.0
  %600 = vmatmul.mubr.f32.gmra.mxu0 %v478
  %v601 = vpop.f32.mrf.mxu0
  %v602 = vadd.f32 %v409, %v601
  %v603 = vpop.f32.mrf.mxu0
  %604 = vmatprep.mubr.f32.mxu0 0.0
  %605 = vmatmul.mubr.f32.gmra.mxu0 %v481
  %v606 = vpop.f32.mrf.mxu0
  %v607 = vadd.f32 %v414, %v606
  %v608 = vpop.f32.mrf.mxu0
  %609 = vmatprep.mubr.f32.mxu0 0.0
  %610 = vmatmul.mubr.f32.gmra.mxu0 %v484
  %v611 = vpop.f32.mrf.mxu0
  %v612 = vadd.f32 %v419, %v611
  %v613 = vpop.f32.mrf.mxu0
  %614 = vmatprep.mubr.f32.mxu0 0.0
  %615 = vmatmul.mubr.f32.gmra.mxu0 %v487
  %v616 = vpop.f32.mrf.mxu0
  %v617 = vadd.f32 %v424, %v616
  %v618 = vpop.f32.mrf.mxu0
  %619 = vmatprep.mubr.f32.mxu0 0.0
  %620 = vmatmul.mubr.f32.gmra.mxu0 %v490
  %v621 = vpop.f32.mrf.mxu0
  %v622 = vadd.f32 %v429, %v621
  %v623 = vpop.f32.mrf.mxu0
  %624 = vmatprep.mubr.f32.mxu0 0.0
  %625 = vmatmul.mubr.f32.gmra.mxu0 %v493
  %v626 = vpop.f32.mrf.mxu0
  %v627 = vadd.f32 %v434, %v626
  %v628 = vpop.f32.mrf.mxu0
  %629 = vmatprep.mubr.f32.mxu0 0.0
  %630 = vmatmul.mubr.f32.gmra.mxu0 %v496
  %v631 = vpop.f32.mrf.mxu0
  %v632 = vadd.f32 %v439, %v631
  %v633 = vpop.f32.mrf.mxu0
  %634 = vmatprep.mubr.f32.mxu0 0.0
  %635 = vmatmul.mubr.f32.gmra.mxu0 %v499
  %v636 = vpop.f32.mrf.mxu0
  %v637 = vadd.f32 %v444, %v636
  %v638 = vpop.f32.mrf.mxu0
  %639 = vmatprep.mubr.f32.mxu0 0.0
  %640 = vmatmul.mubr.f32.gmra.mxu0 %v502
  %v641 = vpop.f32.mrf.mxu0
  %v642 = vadd.f32 %v449, %v641
  %v643 = vpop.f32.mrf.mxu0
  %644 = vmatprep.mubr.f32.mxu0 0.0
  %645 = vmatmul.mubr.f32.gmra.mxu0 %v505
  %v646 = vpop.f32.mrf.mxu0
  %v647 = vadd.f32 %v454, %v646
  %v648 = vpop.f32.mrf.mxu0
  %649 = vmatprep.mubr.f32.mxu0 0.0
  %650 = vmatmul.mubr.f32.gmra.mxu0 %v508
  %v651 = vpop.f32.mrf.mxu0
  %v652 = vadd.f32 %v459, %v651
  %v653 = vpop.f32.mrf.mxu0
  %654 = vdwg.mxu0
  %v655 = vld [vmem:[%s7] sm:$0x1]
  %v657 = vlaneseq
  %v658 = vshrl.u32 %v657, 7
  %v659 = vsub.s32 0, %v658
  %v660 = vrot.slane %v655, %v659
  %v662 = vadd.f32 %v577, %v660
  %v663 = vadd.f32 %v582, %v660
  %v664 = vadd.f32 %v587, %v660
  %v665 = vadd.f32 %v592, %v660
  %v666 = vadd.f32 %v597, %v660
  %v667 = vadd.f32 %v602, %v660
  %v668 = vadd.f32 %v607, %v660
  %v669 = vadd.f32 %v612, %v660
  %v670 = vadd.f32 %v617, %v660
  %v671 = vadd.f32 %v622, %v660
  %v672 = vadd.f32 %v627, %v660
  %v673 = vadd.f32 %v632, %v660
  %v674 = vadd.f32 %v637, %v660
  %v675 = vadd.f32 %v642, %v660
  %v676 = vadd.f32 %v647, %v660
  %v677 = vadd.f32 %v652, %v660
  %v678 = vld [vmem:[%s2] sm:$0xff]
  %v679 = vld [vmem:[%s2 + $0x8] sm:$0xff]
  %v680 = vld [vmem:[%s2 + $0x10] sm:$0xff]
  %v681 = vld [vmem:[%s2 + $0x18] sm:$0xff]
  %v682 = vld [vmem:[%s2 + $0x20] sm:$0xff]
  %v683 = vld [vmem:[%s2 + $0x28] sm:$0xff]
  %v684 = vld [vmem:[%s2 + $0x30] sm:$0xff]
  %v685 = vld [vmem:[%s2 + $0x38] sm:$0xff]
  %v686 = vld [vmem:[%s2 + $0x40] sm:$0xff]
  %v687 = vld [vmem:[%s2 + $0x48] sm:$0xff]
  %v688 = vld [vmem:[%s2 + $0x50] sm:$0xff]
  %v689 = vld [vmem:[%s2 + $0x58] sm:$0xff]
  %v690 = vld [vmem:[%s2 + $0x60] sm:$0xff]
  %v691 = vld [vmem:[%s2 + $0x68] sm:$0xff]
  %v692 = vld [vmem:[%s2 + $0x70] sm:$0xff]
  %v693 = vld [vmem:[%s2 + $0x78] sm:$0xff]
  %v694 = vadd.f32 %v662, %v678
  %v695 = vadd.f32 %v663, %v679
  %v696 = vadd.f32 %v664, %v680
  %v697 = vadd.f32 %v665, %v681
  %v698 = vadd.f32 %v666, %v682
  %v699 = vadd.f32 %v667, %v683
  %v700 = vadd.f32 %v668, %v684
  %v701 = vadd.f32 %v669, %v685
  %v702 = vadd.f32 %v670, %v686
  %v703 = vadd.f32 %v671, %v687
  %v704 = vadd.f32 %v672, %v688
  %v705 = vadd.f32 %v673, %v689
  %v706 = vadd.f32 %v674, %v690
  %v707 = vadd.f32 %v675, %v691
  %v708 = vadd.f32 %v676, %v692
  %v709 = vadd.f32 %v677, %v693
  %710 = vst.msk [vmem:[%s8] sm:$0xff] %vm268, %v694
  %711 = vst.msk [vmem:[%s8 + $0x8] sm:$0xff] %vm268, %v695
  %712 = vst.msk [vmem:[%s8 + $0x10] sm:$0xff] %vm268, %v696
  %713 = vst.msk [vmem:[%s8 + $0x18] sm:$0xff] %vm268, %v697
  %714 = vst.msk [vmem:[%s8 + $0x20] sm:$0xff] %vm268, %v698
  %715 = vst.msk [vmem:[%s8 + $0x28] sm:$0xff] %vm268, %v699
  %716 = vst.msk [vmem:[%s8 + $0x30] sm:$0xff] %vm268, %v700
  %717 = vst.msk [vmem:[%s8 + $0x38] sm:$0xff] %vm268, %v701
  %718 = vst.msk [vmem:[%s8 + $0x40] sm:$0xff] %vm268, %v702
  %719 = vst.msk [vmem:[%s8 + $0x48] sm:$0xff] %vm268, %v703
  %720 = vst.msk [vmem:[%s8 + $0x50] sm:$0xff] %vm268, %v704
  %721 = vst.msk [vmem:[%s8 + $0x58] sm:$0xff] %vm268, %v705
  %722 = vst.msk [vmem:[%s8 + $0x60] sm:$0xff] %vm268, %v706
  %723 = vst.msk [vmem:[%s8 + $0x68] sm:$0xff] %vm268, %v707
  %724 = vst.msk [vmem:[%s8 + $0x70] sm:$0xff] %vm268, %v708
  %725 = vst.msk [vmem:[%s8 + $0x78] sm:$0xff] %vm268, %v709
  // Predicated region
  $region34: #{hpb_forward.12} parent=0 // pred_check
    _
  $region35: #{hpb_forward.12} parent=0 // pred_check_branch
    %727 = sbr.rel (0) target = $region37
  $region36: #{hpb_forward.12} parent=0 // pred_region
    _
  $region37: #{hpb_forward.12} parent=0 // pred_fallthru
    _
  // Predicated region
  $region38: #{hpb_forward.12} parent=0 // pred_check
    _
  $region39: #{hpb_forward.12} parent=0 // pred_check_branch
    %729 = sbr.rel (0) target = $region41
  $region40: #{hpb_forward.12} parent=0 // pred_region
    _
  $region41: #{hpb_forward.12} parent=0 // pred_fallthru
    _

// kernel: hpb_forward.13
$region0: #{hpb_forward.13}
  #allocation0 [shape = 'u32[]', space=smem, size = 0x4, offset = 0x4, fixed_abs, tag = 'smem constant byte address 0x4 - core index']
  #allocation1 [shape = 'u32[144,128]{1,0:T(1,128)}', space=vmem, size = 0x12000, scoped, tag = 'internal scratch']
  %s0 = inlined_call_operand.vmem [shape: f32[2,64,8], index: 0, kind: input, shape index: {}]
  %s1 = inlined_call_operand.vmem [shape: f32[8,16], index: 1, kind: input, shape index: {}]
  %s2 = inlined_call_operand.vmem [shape: f32[1,16], index: 2, kind: input, shape index: {}]
  %s3 = inlined_call_operand.vmem [shape: f32[8,8], index: 3, kind: input, shape index: {}]
  %s4 = inlined_call_operand.vmem [shape: f32[1,8], index: 4, kind: input, shape index: {}]
  %s5 = inlined_call_operand.vmem [shape: f32[2,64,16], index: 5, kind: output, shape index: {0}]
  %s6 = inlined_call_operand.vmem [shape: f32[2,64,8], index: 6, kind: output, shape index: {1}]
  %7 = xla_tuple %s5, %s6
  %s8 = sld [smem:[#allocation0]]
  $region61: #{hpb_forward.13} parent=0
    _
  %s10 = ssub.s32 1, %s8
  %s11 = scalar_select 0, %s10, %s8
  loop: start=0, step=1, limit=4
  $region2: #{hpb_forward.13} parent=0 // loop_pre_header
    _
  $region3: #{hpb_forward.13} parent=0 // loop_header
    %s13 = sphi 0, %s17
    %p14 = scmp.ge.s32.totalorder %s13, 4
    %s23 = sphi 0, %s25
    %s26 = sphi 0, %s23
    %s27 = sphi 0, %s26
    %s43 = sphi 0, %s27
    %s47 = sphi 0, %s47
    %s49 = sphi 0, %s47
    %s50 = sphi 0, %s49
    %s64 = sphi 0, %s50
    %s68 = sphi 0, %s68
    %s70 = sphi 0, %s68
    %s71 = sphi 0, %s70
    %s85 = sphi 0, %s71
    %s89 = sphi 0, %s89
    %s91 = sphi 0, %s89
    %s92 = sphi 0, %s91
    %s106 = sphi 0, %s92
    %s110 = sphi 0, %s110
    %s112 = sphi 0, %s110
    %s113 = sphi 0, %s112
    %s127 = sphi 0, %s113
    %s133 = sphi 0, %s135
    %s136 = sphi 0, %s133
    %s137 = sphi 0, %s136
    %s153 = sphi 0, %s137
    %s159 = sphi 0, %s161
    %s162 = sphi 0, %s159
    %s163 = sphi 0, %s162
    %s179 = sphi 0, %s163
  $region4: #{hpb_forward.13} parent=0 // loop_header_branch
    %16 = sbr.rel (%p14) target = $region8
  $region5: #{hpb_forward.13} parent=0 // loop_body
    %s18 = ssub.s32 %s13, 1
    %s19 = ssub.s32 %s13, 2
    %s20 = sadd.s32 %s13, 1
    %s21 = ssub.s32 %s13, %s20
    %p22 = scmp.eq.s32.totalorder %s21, 0
    %s24 = sadd.s32 %s23, 1
    %s25 = scalar_select %p22, %s23, %s24
    %p28 = pneg %p22
    %p29 = scmp.eq.s32.totalorder %s13, 1
    %p30 = por %p28, %p29
    %p31 = scmp.ne.s32.totalorder %s23, %s26
    %p32 = scmp.eq.s32.totalorder %s13, 0
    %p33 = por %p31, %p32
    %p34 = scmp.ne.s32.totalorder %s23, %s26
    %p35 = scmp.eq.s32.totalorder %s18, 1
    %p36 = por %p34, %p35
    %p37 = scmp.ne.s32.totalorder %s26, %s27
    %p38 = scmp.eq.s32.totalorder %s18, 0
    %p39 = por %p37, %p38
    %p40 = scmp.ne.s32.totalorder %s26, %s27
    %p41 = scmp.eq.s32.totalorder %s19, 1
    %p42 = por %p40, %p41
    %p44 = scmp.ne.s32.totalorder %s27, %s43
    %p45 = scmp.eq.s32.totalorder %s19, 0
    %p46 = por %p44, %p45
    %s48 = sadd.s32 %s47, 1
    %p51 = scmp.eq.s32.totalorder %s13, 1
    %p52 = scmp.ne.s32.totalorder %s47, %s49
    %p53 = scmp.eq.s32.totalorder %s13, 0
    %p54 = por %p52, %p53
    %p55 = scmp.ne.s32.totalorder %s47, %s49
    %p56 = scmp.eq.s32.totalorder %s18, 1
    %p57 = por %p55, %p56
    %p58 = scmp.ne.s32.totalorder %s49, %s50
    %p59 = scmp.eq.s32.totalorder %s18, 0
    %p60 = por %p58, %p59
    %p61 = scmp.ne.s32.totalorder %s49, %s50
    %p62 = scmp.eq.s32.totalorder %s19, 1
    %p63 = por %p61, %p62
    %p65 = scmp.ne.s32.totalorder %s50, %s64
    %p66 = scmp.eq.s32.totalorder %s19, 0
    %p67 = por %p65, %p66
    %s69 = sadd.s32 %s68, 1
    %p72 = scmp.eq.s32.totalorder %s13, 1
    %p73 = scmp.ne.s32.totalorder %s68, %s70
    %p74 = scmp.eq.s32.totalorder %s13, 0
    %p75 = por %p73, %p74
    %p76 = scmp.ne.s32.totalorder %s68, %s70
    %p77 = scmp.eq.s32.totalorder %s18, 1
    %p78 = por %p76, %p77
    %p79 = scmp.ne.s32.totalorder %s70, %s71
    %p80 = scmp.eq.s32.totalorder %s18, 0
    %p81 = por %p79, %p80
    %p82 = scmp.ne.s32.totalorder %s70, %s71
    %p83 = scmp.eq.s32.totalorder %s19, 1
    %p84 = por %p82, %p83
    %p86 = scmp.ne.s32.totalorder %s71, %s85
    %p87 = scmp.eq.s32.totalorder %s19, 0
    %p88 = por %p86, %p87
    %s90 = sadd.s32 %s89, 1
    %p93 = scmp.eq.s32.totalorder %s13, 1
    %p94 = scmp.ne.s32.totalorder %s89, %s91
    %p95 = scmp.eq.s32.totalorder %s13, 0
    %p96 = por %p94, %p95
    %p97 = scmp.ne.s32.totalorder %s89, %s91
    %p98 = scmp.eq.s32.totalorder %s18, 1
    %p99 = por %p97, %p98
    %p100 = scmp.ne.s32.totalorder %s91, %s92
    %p101 = scmp.eq.s32.totalorder %s18, 0
    %p102 = por %p100, %p101
    %p103 = scmp.ne.s32.totalorder %s91, %s92
    %p104 = scmp.eq.s32.totalorder %s19, 1
    %p105 = por %p103, %p104
    %p107 = scmp.ne.s32.totalorder %s92, %s106
    %p108 = scmp.eq.s32.totalorder %s19, 0
    %p109 = por %p107, %p108
    %s111 = sadd.s32 %s110, 1
    %p114 = scmp.eq.s32.totalorder %s13, 1
    %p115 = scmp.ne.s32.totalorder %s110, %s112
    %p116 = scmp.eq.s32.totalorder %s13, 0
    %p117 = por %p115, %p116
    %p118 = scmp.ne.s32.totalorder %s110, %s112
    %p119 = scmp.eq.s32.totalorder %s18, 1
    %p120 = por %p118, %p119
    %p121 = scmp.ne.s32.totalorder %s112, %s113
    %p122 = scmp.eq.s32.totalorder %s18, 0
    %p123 = por %p121, %p122
    %p124 = scmp.ne.s32.totalorder %s112, %s113
    %p125 = scmp.eq.s32.totalorder %s19, 1
    %p126 = por %p124, %p125
    %p128 = scmp.ne.s32.totalorder %s113, %s127
    %p129 = scmp.eq.s32.totalorder %s19, 0
    %p130 = por %p128, %p129
    %s131 = ssub.s32 %s13, %s20
    %p132 = scmp.eq.s32.totalorder %s131, 0
    %s134 = sadd.s32 %s133, 1
    %s135 = scalar_select %p132, %s133, %s134
    %p138 = pneg %p132
    %p139 = scmp.eq.s32.totalorder %s13, 1
    %p140 = por %p138, %p139
    %p141 = scmp.ne.s32.totalorder %s133, %s136
    %p142 = scmp.eq.s32.totalorder %s13, 0
    %p143 = por %p141, %p142
    %p144 = scmp.ne.s32.totalorder %s133, %s136
    %p145 = scmp.eq.s32.totalorder %s18, 1
    %p146 = por %p144, %p145
    %p147 = scmp.ne.s32.totalorder %s136, %s137
    %p148 = scmp.eq.s32.totalorder %s18, 0
    %p149 = por %p147, %p148
    %p150 = scmp.ne.s32.totalorder %s136, %s137
    %p151 = scmp.eq.s32.totalorder %s19, 1
    %p152 = por %p150, %p151
    %p154 = scmp.ne.s32.totalorder %s137, %s153
    %p155 = scmp.eq.s32.totalorder %s19, 0
    %p156 = por %p154, %p155
    %s157 = ssub.s32 %s13, %s20
    %p158 = scmp.eq.s32.totalorder %s157, 0
    %s160 = sadd.s32 %s159, 1
    %s161 = scalar_select %p158, %s159, %s160
    %p164 = pneg %p158
    %p165 = scmp.eq.s32.totalorder %s13, 1
    %p166 = por %p164, %p165
    %p167 = scmp.ne.s32.totalorder %s159, %s162
    %p168 = scmp.eq.s32.totalorder %s13, 0
    %p169 = por %p167, %p168
    %p170 = scmp.ne.s32.totalorder %s159, %s162
    %p171 = scmp.eq.s32.totalorder %s18, 1
    %p172 = por %p170, %p171
    %p173 = scmp.ne.s32.totalorder %s162, %s163
    %p174 = scmp.eq.s32.totalorder %s18, 0
    %p175 = por %p173, %p174
    %p176 = scmp.ne.s32.totalorder %s162, %s163
    %p177 = scmp.eq.s32.totalorder %s19, 1
    %p178 = por %p176, %p177
    %p180 = scmp.ne.s32.totalorder %s163, %s179
    %p181 = scmp.eq.s32.totalorder %s19, 0
    %p182 = por %p180, %p181
    %p183 = scmp.le.s32.totalorder 1, %s13
    %p184 = scmp.lt.s32.totalorder %s13, 3
    %p185 = pnand %p183, %p184
    %p186 = pneg %p185
    // Predicated region
    $region9: #{hpb_forward.13} parent=5 // pred_check
      _
    $region10: #{hpb_forward.13} parent=5 // pred_check_branch
      %188 = sbr.rel (%p185) target = $region12
    $region11: #{hpb_forward.13} parent=5 // pred_region
      %s189 = ssub.s32 %s13, 1
      // Predicated region
      $region13: #{hpb_forward.13} parent=11 // pred_check
        %p190 = pneg %p60
      $region14: #{hpb_forward.13} parent=11 // pred_check_branch
        %192 = sbr.rel (%p190) target = $region16
      $region15: #{hpb_forward.13} parent=11 // pred_region
        _
      $region16: #{hpb_forward.13} parent=11 // pred_fallthru
        _
      // Predicated region
      $region17: #{hpb_forward.13} parent=11 // pred_check
        %p193 = pneg %p81
      $region18: #{hpb_forward.13} parent=11 // pred_check_branch
        %195 = sbr.rel (%p193) target = $region20
      $region19: #{hpb_forward.13} parent=11 // pred_region
        _
      $region20: #{hpb_forward.13} parent=11 // pred_fallthru
        _
      // Predicated region
      $region21: #{hpb_forward.13} parent=11 // pred_check
        %p196 = pneg %p102
      $region22: #{hpb_forward.13} parent=11 // pred_check_branch
        %198 = sbr.rel (%p196) target = $region24
      $region23: #{hpb_forward.13} parent=11 // pred_region
        _
      $region24: #{hpb_forward.13} parent=11 // pred_fallthru
        _
      // Predicated region
      $region25: #{hpb_forward.13} parent=11 // pred_check
        %p199 = pneg %p123
      $region26: #{hpb_forward.13} parent=11 // pred_check_branch
        %201 = sbr.rel (%p199) target = $region28
      $region27: #{hpb_forward.13} parent=11 // pred_region
        _
      $region28: #{hpb_forward.13} parent=11 // pred_fallthru
        _
    $region12: #{hpb_forward.13} parent=5 // pred_fallthru
      _
    %p202 = scmp.lt.s32.totalorder %s13, 2
    // Predicated region
    $region29: #{hpb_forward.13} parent=5 // pred_check
      %p203 = pneg %p202
    $region30: #{hpb_forward.13} parent=5 // pred_check_branch
      %205 = sbr.rel (%p203) target = $region32
    $region31: #{hpb_forward.13} parent=5 // pred_region
      // Predicated region
      $region33: #{hpb_forward.13} parent=31 // pred_check
        %p206 = pneg %p33
      $region34: #{hpb_forward.13} parent=31 // pred_check_branch
        %208 = sbr.rel (%p206) target = $region36
      $region35: #{hpb_forward.13} parent=31 // pred_region
        %p209 = scmp.lt.s32.totalorder %s13, 1
        %s210 = scalar_select %p209, %s13, 1
        %s211 = smul.addr %s210, 8
        %s212 = smul.addr %s211, 8
        %s213 = scalar_lea.vmem %s0, %s212
      $region36: #{hpb_forward.13} parent=31 // pred_fallthru
        _
    $region32: #{hpb_forward.13} parent=5 // pred_fallthru
      _
    %p214 = scmp.le.s32.totalorder 1, %s13
    %p215 = scmp.lt.s32.totalorder %s13, 3
    %p216 = pnand %p214, %p215
    %p217 = pneg %p216
    // Predicated region
    $region37: #{hpb_forward.13} parent=5 // pred_check
      _
    $region38: #{hpb_forward.13} parent=5 // pred_check_branch
      %219 = sbr.rel (%p216) target = $region40
    $region39: #{hpb_forward.13} parent=5 // pred_region
      %s220 = ssub.s32 %s13, 1
      %p221 = scmp.lt.s32.totalorder %s18, 1
      %s222 = scalar_select %p221, %s18, 1
      %s223 = smul.addr %s222, 8
      %s224 = smul.addr %s223, 8
      %s225 = scalar_lea.vmem %s0, %s224
      %p226 = pneg %p39
      %p227 = pneg %p36
      %p228 = pneg %p60
      %p229 = pneg %p57
      %p230 = pneg %p81
      %p231 = pneg %p78
      %p232 = pneg %p102
      %p233 = pneg %p99
      %p234 = pneg %p123
      %p235 = pneg %p120
      %p236 = pneg %p149
      %p237 = pneg %p146
      %p238 = scmp.lt.s32.totalorder %s18, 1
      %s239 = scalar_select %p238, %s18, 1
      %s240 = smul.addr %s239, 8
      %s241 = smul.addr %s240, 8
      %s242 = scalar_lea.vmem %s5, %s241
      %p243 = pneg %p175
      %p244 = pneg %p172
      %p245 = scmp.lt.s32.totalorder %s18, 1
      %s246 = scalar_select %p245, %s18, 1
      %s247 = smul.addr %s246, 8
      %s248 = smul.addr %s247, 8
      %s249 = scalar_lea.vmem %s6, %s248
      %p250 = scmp.lt.s32.totalorder %s18, 1
      %s251 = scalar_select %p250, %s18, 1
      %s252 = smul.addr %s251, 8
      %s253 = smul.addr %s252, 8
      %s254 = scalar_lea.vmem %s0, %s253
      %p255 = scmp.lt.s32.totalorder %s18, 1
      %s256 = scalar_select %p255, %s18, 1
      %s257 = smul.addr %s256, 8
      %s258 = smul.addr %s257, 8
      %s259 = scalar_lea.vmem %s5, %s258
      %p260 = scmp.lt.s32.totalorder %s18, 1
      %s261 = scalar_select %p260, %s18, 1
      %s262 = smul.addr %s261, 8
      %s263 = smul.addr %s262, 8
      %s264 = scalar_lea.vmem %s6, %s263
      %v265 = vld [vmem:[%s254] sm:$0xff]
      %v266 = vld [vmem:[%s254 + $0x8] sm:$0xff]
      %v267 = vld [vmem:[%s254 + $0x10] sm:$0xff]
      %v268 = vld [vmem:[%s254 + $0x18] sm:$0xff]
      %v269 = vld [vmem:[%s254 + $0x20] sm:$0xff]
      %v270 = vld [vmem:[%s254 + $0x28] sm:$0xff]
      %v271 = vld [vmem:[%s254 + $0x30] sm:$0xff]
      %v272 = vld [vmem:[%s254 + $0x38] sm:$0xff]
      %v273 = vld [vmem:[%s1] sm:$0xff]
      %v274 = vld [vmem:[%s2] sm:$0x1]
      %v276 = vlaneseq
      %v277 = vshrl.u32 %v276, 7
      %v278 = vsub.s32 0, %v277
      %v279 = vrot.slane %v274, %v278
      %vm281 = vcmask 64512
      %v283 = vsel %vm281, %v265, 0
      %v286 = vsel %vm281, %v266, 0
      %v289 = vsel %vm281, %v267, 0
      %v292 = vsel %vm281, %v268, 0
      %v295 = vsel %vm281, %v269, 0
      %v298 = vsel %vm281, %v270, 0
      %v301 = vsel %vm281, %v271, 0
      %v304 = vsel %vm281, %v272, 0
      %306 = vmatprep.subr.mxu0 0.0
      %307 = vmatpush1.msra.mxu0 0.0
      %308 = vmatprep.subr.mxu0 0.0
      %309 = vmatpush1.msra.mxu0 0.0
      %310 = vmatprep.subr.mxu0 0.0
      %311 = vmatpush1.msra.mxu0 0.0
      %312 = vmatprep.subr.mxu0 0.0
      %313 = vmatpush1.msra.mxu0 0.0
      %314 = vmatprep.subr.mxu0 0.0
      %315 = vmatpush1.msra.mxu0 0.0
      %316 = vmatprep.subr.mxu0 0.0
      %317 = vmatpush1.msra.mxu0 0.0
      %318 = vmatprep.subr.mxu0 0.0
      %319 = vmatpush1.msra.mxu0 0.0
      %320 = vmatprep.subr.mxu0 0.0
      %321 = vmatpush1.msra.mxu0 0.0
      %322 = vmatprep.subr.mxu0 0.0
      %323 = vmatpush1.msra.mxu0 0.0
      %324 = vmatprep.subr.mxu0 0.0
      %325 = vmatpush1.msra.mxu0 0.0
      %326 = vmatprep.subr.mxu0 0.0
      %327 = vmatpush1.msra.mxu0 0.0
      %328 = vmatprep.subr.mxu0 0.0
      %329 = vmatpush1.msra.mxu0 0.0
      %330 = vmatprep.subr.mxu0 0.0
      %331 = vmatpush1.msra.mxu0 0.0
      %332 = vmatprep.subr.mxu0 0.0
      %333 = vmatpush1.msra.mxu0 0.0
      %334 = vmatprep.subr.mxu0 0.0
      %335 = vmatpush1.msra.mxu0 0.0
      %336 = vmatprep.subr.mxu0 0.0
      %337 = vmatpush1.msra.mxu0 %v273
      %338 = vmatprep.subr.mxu0 0.0
      %339 = vmatpush2.msra.mxu0 0.0
      %340 = vmatprep.subr.mxu0 0.0
      %341 = vmatpush2.msra.mxu0 0.0
      %342 = vmatprep.subr.mxu0 0.0
      %343 = vmatpush2.msra.mxu0 0.0
      %344 = vmatprep.subr.mxu0 0.0
      %345 = vmatpush2.msra.mxu0 0.0
      %346 = vmatprep.subr.mxu0 0.0
      %347 = vmatpush2.msra.mxu0 0.0
      %348 = vmatprep.subr.mxu0 0.0
      %349 = vmatpush2.msra.mxu0 0.0
      %350 = vmatprep.subr.mxu0 0.0
      %351 = vmatpush2.msra.mxu0 0.0
      %352 = vmatprep.subr.mxu0 0.0
      %353 = vmatpush2.msra.mxu0 0.0
      %354 = vmatprep.subr.mxu0 0.0
      %355 = vmatpush2.msra.mxu0 0.0
      %356 = vmatprep.subr.mxu0 0.0
      %357 = vmatpush2.msra.mxu0 0.0
      %358 = vmatprep.subr.mxu0 0.0
      %359 = vmatpush2.msra.mxu0 0.0
      %360 = vmatprep.subr.mxu0 0.0
      %361 = vmatpush2.msra.mxu0 0.0
      %362 = vmatprep.subr.mxu0 0.0
      %363 = vmatpush2.msra.mxu0 0.0
      %364 = vmatprep.subr.mxu0 0.0
      %365 = vmatpush2.msra.mxu0 0.0
      %366 = vmatprep.subr.mxu0 0.0
      %367 = vmatpush2.msra.mxu0 0.0
      %368 = vmatprep.subr.mxu0 0.0
      %369 = vmatpush2.msra.mxu0 0.0
      %370 = vmatprep.mubr.f32.mxu0 0.0
      %371 = vmatmul.mubr.f32.gmra.mxu0 %v283
      %v372 = vpop.f32.mrf.mxu0
      %v373 = vadd.f32 %v279, %v372
      %v374 = vpop.f32.mrf.mxu0
      %375 = vmatprep.mubr.f32.mxu0 0.0
      %376 = vmatmul.mubr.f32.gmra.mxu0 %v286
      %v377 = vpop.f32.mrf.mxu0
      %v378 = vadd.f32 %v279, %v377
      %v379 = vpop.f32.mrf.mxu0
      %380 = vmatprep.mubr.f32.mxu0 0.0
      %381 = vmatmul.mubr.f32.gmra.mxu0 %v289
      %v382 = vpop.f32.mrf.mxu0
      %v383 = vadd.f32 %v279, %v382
      %v384 = vpop.f32.mrf.mxu0
      %385 = vmatprep.mubr.f32.mxu0 0.0
      %386 = vmatmul.mubr.f32.gmra.mxu0 %v292
      %v387 = vpop.f32.mrf.mxu0
      %v388 = vadd.f32 %v279, %v387
      %v389 = vpop.f32.mrf.mxu0
      %390 = vmatprep.mubr.f32.mxu0 0.0
      %391 = vmatmul.mubr.f32.gmra.mxu0 %v295
      %v392 = vpop.f32.mrf.mxu0
      %v393 = vadd.f32 %v279, %v392
      %v394 = vpop.f32.mrf.mxu0
      %395 = vmatprep.mubr.f32.mxu0 0.0
      %396 = vmatmul.mubr.f32.gmra.mxu0 %v298
      %v397 = vpop.f32.mrf.mxu0
      %v398 = vadd.f32 %v279, %v397
      %v399 = vpop.f32.mrf.mxu0
      %400 = vmatprep.mubr.f32.mxu0 0.0
      %401 = vmatmul.mubr.f32.gmra.mxu0 %v301
      %v402 = vpop.f32.mrf.mxu0
      %v403 = vadd.f32 %v279, %v402
      %v404 = vpop.f32.mrf.mxu0
      %405 = vmatprep.mubr.f32.mxu0 0.0
      %406 = vmatmul.mubr.f32.gmra.mxu0 %v304
      %v407 = vpop.f32.mrf.mxu0
      %v408 = vadd.f32 %v279, %v407
      %v409 = vpop.f32.mrf.mxu0
      %410 = vdwg.mxu0
      %vm411 = vcmask 130048
      %v412 = vsel %vm411, %v373, 0.0
      %v413 = vsel %vm411, %v378, 0.0
      %v414 = vadd.f32 %v412, %v413
      %v415 = vsel %vm411, %v383, 0.0
      %v416 = vadd.f32 %v414, %v415
      %v417 = vsel %vm411, %v388, 0.0
      %v418 = vadd.f32 %v416, %v417
      %v419 = vsel %vm411, %v393, 0.0
      %v420 = vadd.f32 %v418, %v419
      %v421 = vsel %vm411, %v398, 0.0
      %v422 = vadd.f32 %v420, %v421
      %v423 = vsel %vm411, %v403, 0.0
      %v424 = vadd.f32 %v422, %v423
      %v425 = vsel %vm411, %v408, 0.0
      %v426 = vadd.f32 %v424, %v425
      %v427 = vrot.slane %v426, 4
      %v428 = vadd.f32 %v426, %v427
      %v429 = vrot.slane %v428, 2
      %v430 = vadd.f32 %v428, %v429
      %v431 = vrot.slane %v430, 1
      %v432 = vadd.f32 %v430, %v431
      %v433 = vrcp.pop 64.0
      %v434 = vmul.f32 %v432, %v433
      %v435 = vsub.f32 %v373, %v434
      %v436 = vsub.f32 %v378, %v434
      %v437 = vsub.f32 %v383, %v434
      %v438 = vsub.f32 %v388, %v434
      %v439 = vsub.f32 %v393, %v434
      %v440 = vsub.f32 %v398, %v434
      %v441 = vsub.f32 %v403, %v434
      %v442 = vsub.f32 %v408, %v434
      %v443 = vmul.f32 %v435, %v435
      %v444 = vmul.f32 %v436, %v436
      %v445 = vmul.f32 %v437, %v437
      %v446 = vmul.f32 %v438, %v438
      %v447 = vmul.f32 %v439, %v439
      %v448 = vmul.f32 %v440, %v440
      %v449 = vmul.f32 %v441, %v441
      %v450 = vmul.f32 %v442, %v442
      %v451 = vsel %vm411, %v443, 0.0
      %v452 = vsel %vm411, %v444, 0.0
      %v453 = vadd.f32 %v451, %v452
      %v454 = vsel %vm411, %v445, 0.0
      %v455 = vadd.f32 %v453, %v454
      %v456 = vsel %vm411, %v446, 0.0
      %v457 = vadd.f32 %v455, %v456
      %v458 = vsel %vm411, %v447, 0.0
      %v459 = vadd.f32 %v457, %v458
      %v460 = vsel %vm411, %v448, 0.0
      %v461 = vadd.f32 %v459, %v460
      %v462 = vsel %vm411, %v449, 0.0
      %v463 = vadd.f32 %v461, %v462
      %v464 = vsel %vm411, %v450, 0.0
      %v465 = vadd.f32 %v463, %v464
      %v466 = vrot.slane %v465, 4
      %v467 = vadd.f32 %v465, %v466
      %v468 = vrot.slane %v467, 2
      %v469 = vadd.f32 %v467, %v468
      %v470 = vrot.slane %v469, 1
      %v471 = vadd.f32 %v469, %v470
      %v472 = vmul.f32 %v471, %v433
      %v473 = vadd.f32 %v472, 1e-05
      %v474 = vrsqrt.pop %v473
      %v475 = vmul.f32 %v435, %v474
      %v476 = vmul.f32 %v436, %v474
      %v477 = vmul.f32 %v437, %v474
      %v478 = vmul.f32 %v438, %v474
      %v479 = vmul.f32 %v439, %v474
      %v480 = vmul.f32 %v440, %v474
      %v481 = vmul.f32 %v441, %v474
      %v482 = vmul.f32 %v442, %v474
      %v483 = vmul.f32 %v475, 0.5
      %v484 = vmul.f32 %v476, 0.5
      %v485 = vmul.f32 %v477, 0.5
      %v486 = vmul.f32 %v478, 0.5
      %v487 = vmul.f32 %v479, 0.5
      %v488 = vmul.f32 %v480, 0.5
      %v489 = vmul.f32 %v481, 0.5
      %v490 = vmul.f32 %v482, 0.5
      %v491 = vmul.f32 %v475, 0.70710677
      %v492 = vmul.f32 %v476, 0.70710677
      %v493 = vmul.f32 %v477, 0.70710677
      %v494 = vmul.f32 %v478, 0.70710677
      %v495 = vmul.f32 %v479, 0.70710677
      %v496 = vmul.f32 %v480, 0.70710677
      %v497 = vmul.f32 %v481, 0.70710677
      %v498 = vmul.f32 %v482, 0.70710677
      %vm499 = vcmp.lt.f32.partialorder %v491, 0.0
      %vm500 = vcmp.lt.f32.partialorder %v492, 0.0
      %vm501 = vcmp.lt.f32.partialorder %v493, 0.0
      %vm502 = vcmp.lt.f32.partialorder %v494, 0.0
      %vm503 = vcmp.lt.f32.partialorder %v495, 0.0
      %vm504 = vcmp.lt.f32.partialorder %v496, 0.0
      %vm505 = vcmp.lt.f32.partialorder %v497, 0.0
      %vm506 = vcmp.lt.f32.partialorder %v498, 0.0
      %v507 = vsel %vm499, -1.0, 1.0
      %v508 = vsel %vm500, -1.0, 1.0
      %v509 = vsel %vm501, -1.0, 1.0
      %v510 = vsel %vm502, -1.0, 1.0
      %v511 = vsel %vm503, -1.0, 1.0
      %v512 = vsel %vm504, -1.0, 1.0
      %v513 = vsel %vm505, -1.0, 1.0
      %v514 = vsel %vm506, -1.0, 1.0
      %v515 = vand.u32 2147483647, %v491
      %v516 = vand.u32 2147483647, %v492
      %v517 = vand.u32 2147483647, %v493
      %v518 = vand.u32 2147483647, %v494
      %v519 = vand.u32 2147483647, %v495
      %v520 = vand.u32 2147483647, %v496
      %v521 = vand.u32 2147483647, %v497
      %v522 = vand.u32 2147483647, %v498
      %v523 = vmul.f32 %v515, 0.3275911
      %v524 = vmul.f32 %v516, 0.3275911
      %v525 = vmul.f32 %v517, 0.3275911
      %v526 = vmul.f32 %v518, 0.3275911
      %v527 = vmul.f32 %v519, 0.3275911
      %v528 = vmul.f32 %v520, 0.3275911
      %v529 = vmul.f32 %v521, 0.3275911
      %v530 = vmul.f32 %v522, 0.3275911
      %v531 = vadd.f32 %v523, 1.0
      %v532 = vadd.f32 %v524, 1.0
      %v533 = vadd.f32 %v525, 1.0
      %v534 = vadd.f32 %v526, 1.0
      %v535 = vadd.f32 %v527, 1.0
      %v536 = vadd.f32 %v528, 1.0
      %v537 = vadd.f32 %v529, 1.0
      %v538 = vadd.f32 %v530, 1.0
      %v539 = vrcp.pop %v531
      %v540 = vmul.f32 1.0, %v539
      %v541 = vrcp.pop %v532
      %v542 = vmul.f32 1.0, %v541
      %v543 = vrcp.pop %v533
      %v544 = vmul.f32 1.0, %v543
      %v545 = vrcp.pop %v534
      %v546 = vmul.f32 1.0, %v545
      %v547 = vrcp.pop %v535
      %v548 = vmul.f32 1.0, %v547
      %v549 = vrcp.pop %v536
      %v550 = vmul.f32 1.0, %v549
      %v551 = vrcp.pop %v537
      %v552 = vmul.f32 1.0, %v551
      %v553 = vrcp.pop %v538
      %v554 = vmul.f32 1.0, %v553
      %v555 = vmul.f32 %v540, 1.0614054
      %v556 = vmul.f32 %v542, 1.0614054
      %v557 = vmul.f32 %v544, 1.0614054
      %v558 = vmul.f32 %v546, 1.0614054
      %v559 = vmul.f32 %v548, 1.0614054
      %v560 = vmul.f32 %v550, 1.0614054
      %v561 = vmul.f32 %v552, 1.0614054
      %v562 = vmul.f32 %v554, 1.0614054
      %v563 = vadd.f32 %v555, -1.4531521
      %v564 = vadd.f32 %v556, -1.4531521
      %v565 = vadd.f32 %v557, -1.4531521
      %v566 = vadd.f32 %v558, -1.4531521
      %v567 = vadd.f32 %v559, -1.4531521
      %v568 = vadd.f32 %v560, -1.4531521
      %v569 = vadd.f32 %v561, -1.4531521
      %v570 = vadd.f32 %v562, -1.4531521
      %v571 = vmul.f32 %v563, %v540
      %v572 = vmul.f32 %v564, %v542
      %v573 = vmul.f32 %v565, %v544
      %v574 = vmul.f32 %v566, %v546
      %v575 = vmul.f32 %v567, %v548
      %v576 = vmul.f32 %v568, %v550
      %v577 = vmul.f32 %v569, %v552
      %v578 = vmul.f32 %v570, %v554
      %v579 = vadd.f32 %v571, 1.4214138
      %v580 = vadd.f32 %v572, 1.4214138
      %v581 = vadd.f32 %v573, 1.4214138
      %v582 = vadd.f32 %v574, 1.4214138
      %v583 = vadd.f32 %v575, 1.4214138
      %v584 = vadd.f32 %v576, 1.4214138
      %v585 = vadd.f32 %v577, 1.4214138
      %v586 = vadd.f32 %v578, 1.4214138
      %v587 = vmul.f32 %v579, %v540
      %v588 = vmul.f32 %v580, %v542
      %v589 = vmul.f32 %v581, %v544
      %v590 = vmul.f32 %v582, %v546
      %v591 = vmul.f32 %v583, %v548
      %v592 = vmul.f32 %v584, %v550
      %v593 = vmul.f32 %v585, %v552
      %v594 = vmul.f32 %v586, %v554
      %v595 = vadd.f32 %v587, -0.28449672
      %v596 = vadd.f32 %v588, -0.28449672
      %v597 = vadd.f32 %v589, -0.28449672
      %v598 = vadd.f32 %v590, -0.28449672
      %v599 = vadd.f32 %v591, -0.28449672
      %v600 = vadd.f32 %v592, -0.28449672
      %v601 = vadd.f32 %v593, -0.28449672
      %v602 = vadd.f32 %v594, -0.28449672
      %v603 = vmul.f32 %v595, %v540
      %v604 = vmul.f32 %v596, %v542
      %v605 = vmul.f32 %v597, %v544
      %v606 = vmul.f32 %v598, %v546
      %v607 = vmul.f32 %v599, %v548
      %v608 = vmul.f32 %v600, %v550
      %v609 = vmul.f32 %v601, %v552
      %v610 = vmul.f32 %v602, %v554
      %v611 = vadd.f32 %v603, 0.2548296
      %v612 = vadd.f32 %v604, 0.2548296
      %v613 = vadd.f32 %v605, 0.2548296
      %v614 = vadd.f32 %v606, 0.2548296
      %v615 = vadd.f32 %v607, 0.2548296
      %v616 = vadd.f32 %v608, 0.2548296
      %v617 = vadd.f32 %v609, 0.2548296
      %v618 = vadd.f32 %v610, 0.2548296
      %v619 = vmul.f32 %v611, %v540
      %v620 = vmul.f32 %v612, %v542
      %v621 = vmul.f32 %v613, %v544
      %v622 = vmul.f32 %v614, %v546
      %v623 = vmul.f32 %v615, %v548
      %v624 = vmul.f32 %v616, %v550
      %v625 = vmul.f32 %v617, %v552
      %v626 = vmul.f32 %v618, %v554
      %v627 = vsub.f32 0.0, %v515
      %v628 = vsub.f32 0.0, %v516
      %v629 = vsub.f32 0.0, %v517
      %v630 = vsub.f32 0.0, %v518
      %v631 = vsub.f32 0.0, %v519
      %v632 = vsub.f32 0.0, %v520
      %v633 = vsub.f32 0.0, %v521
      %v634 = vsub.f32 0.0, %v522
      %v635 = vmul.f32 %v627, %v515
      %v636 = vmul.f32 %v628, %v516
      %v637 = vmul.f32 %v629, %v517
      %v638 = vmul.f32 %v630, %v518
      %v639 = vmul.f32 %v631, %v519
      %v640 = vmul.f32 %v632, %v520
      %v641 = vmul.f32 %v633, %v521
      %v642 = vmul.f32 %v634, %v522
      %v643 = vmul.f32 %v635, 1.442695
      %v644 = vpow.pop %v643
      %v645 = vmul.f32 %v636, 1.442695
      %v646 = vpow.pop %v645
      %v647 = vmul.f32 %v637, 1.442695
      %v648 = vpow.pop %v647
      %v649 = vmul.f32 %v638, 1.442695
      %v650 = vpow.pop %v649
      %v651 = vmul.f32 %v639, 1.442695
      %v652 = vpow.pop %v651
      %v653 = vmul.f32 %v640, 1.442695
      %v654 = vpow.pop %v653
      %v655 = vmul.f32 %v641, 1.442695
      %v656 = vpow.pop %v655
      %v657 = vmul.f32 %v642, 1.442695
      %v658 = vpow.pop %v657
      %v659 = vmul.f32 %v619, %v644
      %v660 = vmul.f32 %v620, %v646
      %v661 = vmul.f32 %v621, %v648
      %v662 = vmul.f32 %v622, %v650
      %v663 = vmul.f32 %v623, %v652
      %v664 = vmul.f32 %v624, %v654
      %v665 = vmul.f32 %v625, %v656
      %v666 = vmul.f32 %v626, %v658
      %v667 = vsub.f32 1.0, %v659
      %v668 = vsub.f32 1.0, %v660
      %v669 = vsub.f32 1.0, %v661
      %v670 = vsub.f32 1.0, %v662
      %v671 = vsub.f32 1.0, %v663
      %v672 = vsub.f32 1.0, %v664
      %v673 = vsub.f32 1.0, %v665
      %v674 = vsub.f32 1.0, %v666
      %v675 = vmul.f32 %v507, %v667
      %v676 = vmul.f32 %v508, %v668
      %v677 = vmul.f32 %v509, %v669
      %v678 = vmul.f32 %v510, %v670
      %v679 = vmul.f32 %v511, %v671
      %v680 = vmul.f32 %v512, %v672
      %v681 = vmul.f32 %v513, %v673
      %v682 = vmul.f32 %v514, %v674
      %v683 = vadd.f32 %v675, 1.0
      %v684 = vadd.f32 %v676, 1.0
      %v685 = vadd.f32 %v677, 1.0
      %v686 = vadd.f32 %v678, 1.0
      %v687 = vadd.f32 %v679, 1.0
      %v688 = vadd.f32 %v680, 1.0
      %v689 = vadd.f32 %v681, 1.0
      %v690 = vadd.f32 %v682, 1.0
      %v691 = vmul.f32 %v483, %v683
      %v692 = vmul.f32 %v484, %v684
      %v693 = vmul.f32 %v485, %v685
      %v694 = vmul.f32 %v486, %v686
      %v695 = vmul.f32 %v487, %v687
      %v696 = vmul.f32 %v488, %v688
      %v697 = vmul.f32 %v489, %v689
      %v698 = vmul.f32 %v490, %v690
      %699 = vst.msk [vmem:[%s259] sm:$0xff] %vm411, %v691
      %700 = vst.msk [vmem:[%s259 + $0x8] sm:$0xff] %vm411, %v692
      %701 = vst.msk [vmem:[%s259 + $0x10] sm:$0xff] %vm411, %v693
      %702 = vst.msk [vmem:[%s259 + $0x18] sm:$0xff] %vm411, %v694
      %703 = vst.msk [vmem:[%s259 + $0x20] sm:$0xff] %vm411, %v695
      %704 = vst.msk [vmem:[%s259 + $0x28] sm:$0xff] %vm411, %v696
      %705 = vst.msk [vmem:[%s259 + $0x30] sm:$0xff] %vm411, %v697
      %706 = vst.msk [vmem:[%s259 + $0x38] sm:$0xff] %vm411, %v698
      %v707 = vld [vmem:[%s3] sm:$0xff]
      %v708 = vld [vmem:[%s4] sm:$0x1]
      %v710 = vlaneseq
      %v711 = vshrl.u32 %v710, 7
      %v712 = vsub.s32 0, %v711
      %v713 = vrot.slane %v708, %v712
      %715 = vmatprep.subr.mxu0 0.0
      %716 = vmatpush1.msra.mxu0 0.0
      %717 = vmatprep.subr.mxu0 0.0
      %718 = vmatpush1.msra.mxu0 0.0
      %719 = vmatprep.subr.mxu0 0.0
      %720 = vmatpush1.msra.mxu0 0.0
      %721 = vmatprep.subr.mxu0 0.0
      %722 = vmatpush1.msra.mxu0 0.0
      %723 = vmatprep.subr.mxu0 0.0
      %724 = vmatpush1.msra.mxu0 0.0
      %725 = vmatprep.subr.mxu0 0.0
      %726 = vmatpush1.msra.mxu0 0.0
      %727 = vmatprep.subr.mxu0 0.0
      %728 = vmatpush1.msra.mxu0 0.0
      %729 = vmatprep.subr.mxu0 0.0
      %730 = vmatpush1.msra.mxu0 0.0
      %731 = vmatprep.subr.mxu0 0.0
      %732 = vmatpush1.msra.mxu0 0.0
      %733 = vmatprep.subr.mxu0 0.0
      %734 = vmatpush1.msra.mxu0 0.0
      %735 = vmatprep.subr.mxu0 0.0
      %736 = vmatpush1.msra.mxu0 0.0
      %737 = vmatprep.subr.mxu0 0.0
      %738 = vmatpush1.msra.mxu0 0.0
      %739 = vmatprep.subr.mxu0 0.0
      %740 = vmatpush1.msra.mxu0 0.0
      %741 = vmatprep.subr.mxu0 0.0
      %742 = vmatpush1.msra.mxu0 0.0
      %743 = vmatprep.subr.mxu0 0.0
      %744 = vmatpush1.msra.mxu0 0.0
      %745 = vmatprep.subr.mxu0 0.0
      %746 = vmatpush1.msra.mxu0 %v707
      %747 = vmatprep.subr.mxu0 0.0
      %748 = vmatpush2.msra.mxu0 0.0
      %749 = vmatprep.subr.mxu0 0.0
      %750 = vmatpush2.msra.mxu0 0.0
      %751 = vmatprep.subr.mxu0 0.0
      %752 = vmatpush2.msra.mxu0 0.0
      %753 = vmatprep.subr.mxu0 0.0
      %754 = vmatpush2.msra.mxu0 0.0
      %755 = vmatprep.subr.mxu0 0.0
      %756 = vmatpush2.msra.mxu0 0.0
      %757 = vmatprep.subr.mxu0 0.0
      %758 = vmatpush2.msra.mxu0 0.0
      %759 = vmatprep.subr.mxu0 0.0
      %760 = vmatpush2.msra.mxu0 0.0
      %761 = vmatprep.subr.mxu0 0.0
      %762 = vmatpush2.msra.mxu0 0.0
      %763 = vmatprep.subr.mxu0 0.0
      %764 = vmatpush2.msra.mxu0 0.0
      %765 = vmatprep.subr.mxu0 0.0
      %766 = vmatpush2.msra.mxu0 0.0
      %767 = vmatprep.subr.mxu0 0.0
      %768 = vmatpush2.msra.mxu0 0.0
      %769 = vmatprep.subr.mxu0 0.0
      %770 = vmatpush2.msra.mxu0 0.0
      %771 = vmatprep.subr.mxu0 0.0
      %772 = vmatpush2.msra.mxu0 0.0
      %773 = vmatprep.subr.mxu0 0.0
      %774 = vmatpush2.msra.mxu0 0.0
      %775 = vmatprep.subr.mxu0 0.0
      %776 = vmatpush2.msra.mxu0 0.0
      %777 = vmatprep.subr.mxu0 0.0
      %778 = vmatpush2.msra.mxu0 0.0
      %779 = vmatprep.mubr.f32.mxu0 0.0
      %780 = vmatmul.mubr.f32.gmra.mxu0 %v283
      %v781 = vpop.f32.mrf.mxu0
      %v782 = vadd.f32 %v713, %v781
      %v783 = vpop.f32.mrf.mxu0
      %784 = vmatprep.mubr.f32.mxu0 0.0
      %785 = vmatmul.mubr.f32.gmra.mxu0 %v286
      %v786 = vpop.f32.mrf.mxu0
      %v787 = vadd.f32 %v713, %v786
      %v788 = vpop.f32.mrf.mxu0
      %789 = vmatprep.mubr.f32.mxu0 0.0
      %790 = vmatmul.mubr.f32.gmra.mxu0 %v289
      %v791 = vpop.f32.mrf.mxu0
      %v792 = vadd.f32 %v713, %v791
      %v793 = vpop.f32.mrf.mxu0
      %794 = vmatprep.mubr.f32.mxu0 0.0
      %795 = vmatmul.mubr.f32.gmra.mxu0 %v292
      %v796 = vpop.f32.mrf.mxu0
      %v797 = vadd.f32 %v713, %v796
      %v798 = vpop.f32.mrf.mxu0
      %799 = vmatprep.mubr.f32.mxu0 0.0
      %800 = vmatmul.mubr.f32.gmra.mxu0 %v295
      %v801 = vpop.f32.mrf.mxu0
      %v802 = vadd.f32 %v713, %v801
      %v803 = vpop.f32.mrf.mxu0
      %804 = vmatprep.mubr.f32.mxu0 0.0
      %805 = vmatmul.mubr.f32.gmra.mxu0 %v298
      %v806 = vpop.f32.mrf.mxu0
      %v807 = vadd.f32 %v713, %v806
      %v808 = vpop.f32.mrf.mxu0
      %809 = vmatprep.mubr.f32.mxu0 0.0
      %810 = vmatmul.mubr.f32.gmra.mxu0 %v301
      %v811 = vpop.f32.mrf.mxu0
      %v812 = vadd.f32 %v713, %v811
      %v813 = vpop.f32.mrf.mxu0
      %814 = vmatprep.mubr.f32.mxu0 0.0
      %815 = vmatmul.mubr.f32.gmra.mxu0 %v304
      %v816 = vpop.f32.mrf.mxu0
      %v817 = vadd.f32 %v713, %v816
      %v818 = vpop.f32.mrf.mxu0
      %819 = vdwg.mxu0
      %820 = vst.msk [vmem:[%s264] sm:$0xff] %vm281, %v782
      %821 = vst.msk [vmem:[%s264 + $0x8] sm:$0xff] %vm281, %v787
      %822 = vst.msk [vmem:[%s264 + $0x10] sm:$0xff] %vm281, %v792
      %823 = vst.msk [vmem:[%s264 + $0x18] sm:$0xff] %vm281, %v797
      %824 = vst.msk [vmem:[%s264 + $0x20] sm:$0xff] %vm281, %v802
      %825 = vst.msk [vmem:[%s264 + $0x28] sm:$0xff] %vm281, %v807
      %826 = vst.msk [vmem:[%s264 + $0x30] sm:$0xff] %vm281, %v812
      %827 = vst.msk [vmem:[%s264 + $0x38] sm:$0xff] %vm281, %v817
      %p828 = scmp.lt.s32.totalorder %s18, 1
      %s829 = scalar_select %p828, %s18, 1
      %s830 = smul.addr %s829, 8
      %s831 = smul.addr %s830, 8
      %s832 = scalar_lea.vmem %s5, %s831
      %p833 = scmp.lt.s32.totalorder %s18, 1
      %s834 = scalar_select %p833, %s18, 1
      %s835 = smul.addr %s834, 8
      %s836 = smul.addr %s835, 8
      %s837 = scalar_lea.vmem %s6, %s836
      // Predicated region
      $region41: #{hpb_forward.13} parent=39 // pred_check
        %p838 = pneg %p146
      $region42: #{hpb_forward.13} parent=39 // pred_check_branch
        %840 = sbr.rel (%p838) target = $region44
      $region43: #{hpb_forward.13} parent=39 // pred_region
        _
      $region44: #{hpb_forward.13} parent=39 // pred_fallthru
        _
      // Predicated region
      $region45: #{hpb_forward.13} parent=39 // pred_check
        %p841 = pneg %p172
      $region46: #{hpb_forward.13} parent=39 // pred_check_branch
        %843 = sbr.rel (%p841) target = $region48
      $region47: #{hpb_forward.13} parent=39 // pred_region
        _
      $region48: #{hpb_forward.13} parent=39 // pred_fallthru
        _
    $region40: #{hpb_forward.13} parent=5 // pred_fallthru
      _
    %p844 = scmp.le.s32.totalorder 2, %s13
    // Predicated region
    $region49: #{hpb_forward.13} parent=5 // pred_check
      %p845 = pneg %p844
    $region50: #{hpb_forward.13} parent=5 // pred_check_branch
      %847 = sbr.rel (%p845) target = $region52
    $region51: #{hpb_forward.13} parent=5 // pred_region
      %s848 = ssub.s32 %s13, 2
      // Predicated region
      $region53: #{hpb_forward.13} parent=51 // pred_check
        %p849 = pneg %p152
      $region54: #{hpb_forward.13} parent=51 // pred_check_branch
        %851 = sbr.rel (%p849) target = $region56
      $region55: #{hpb_forward.13} parent=51 // pred_region
        %p852 = scmp.lt.s32.totalorder %s19, 1
        %s853 = scalar_select %p852, %s19, 1
        %s854 = smul.addr %s853, 8
        %s855 = smul.addr %s854, 8
        %s856 = scalar_lea.vmem %s5, %s855
      $region56: #{hpb_forward.13} parent=51 // pred_fallthru
        _
      // Predicated region
      $region57: #{hpb_forward.13} parent=51 // pred_check
        %p857 = pneg %p178
      $region58: #{hpb_forward.13} parent=51 // pred_check_branch
        %859 = sbr.rel (%p857) target = $region60
      $region59: #{hpb_forward.13} parent=51 // pred_region
        %p860 = scmp.lt.s32.totalorder %s19, 1
        %s861 = scalar_select %p860, %s19, 1
        %s862 = smul.addr %s861, 8
        %s863 = smul.addr %s862, 8
        %s864 = scalar_lea.vmem %s6, %s863
      $region60: #{hpb_forward.13} parent=51 // pred_fallthru
        _
    $region52: #{hpb_forward.13} parent=5 // pred_fallthru
      _
  $region6: #{hpb_forward.13} parent=0 // loop_footer
    %s17 = sadd.s32 1, %s13
  $region7: #{hpb_forward.13} parent=0 // loop_footer_branch
    %12 = sbr.rel target = $region3
  $region8: #{hpb_forward.13} parent=0 // loop_exit
    _

// kernel: hpb_forward.15
$region0: #{hpb_forward.15}
  #allocation0 [shape = 'u32[]', space=smem, size = 0x4, offset = 0x4, fixed_abs, tag = 'smem constant byte address 0x4 - core index']
  #allocation1 [shape = 'u32[144,128]{1,0:T(1,128)}', space=vmem, size = 0x12000, scoped, tag = 'internal scratch']
  %s0 = inlined_call_operand.vmem [shape: f32[2,64,16], index: 0, kind: input, shape index: {}]
  %s1 = inlined_call_operand.vmem [shape: f32[16,8], index: 1, kind: input, shape index: {}]
  %s2 = inlined_call_operand.vmem [shape: f32[1,8], index: 2, kind: input, shape index: {}]
  %s3 = inlined_call_operand.vmem [shape: f32[2,64,8], index: 3, kind: output, shape index: {}]
  %s4 = sld [smem:[#allocation0]]
  $region45: #{hpb_forward.15} parent=0
    _
  %s6 = ssub.s32 1, %s4
  %s7 = scalar_select 0, %s6, %s4
  loop: start=0, step=1, limit=4
  $region2: #{hpb_forward.15} parent=0 // loop_pre_header
    _
  $region3: #{hpb_forward.15} parent=0 // loop_header
    %s9 = sphi 0, %s13
    %p10 = scmp.ge.s32.totalorder %s9, 4
    %s19 = sphi 0, %s21
    %s22 = sphi 0, %s19
    %s23 = sphi 0, %s22
    %s39 = sphi 0, %s23
    %s43 = sphi 0, %s43
    %s45 = sphi 0, %s43
    %s46 = sphi 0, %s45
    %s60 = sphi 0, %s46
    %s64 = sphi 0, %s64
    %s66 = sphi 0, %s64
    %s67 = sphi 0, %s66
    %s81 = sphi 0, %s67
    %s87 = sphi 0, %s89
    %s90 = sphi 0, %s87
    %s91 = sphi 0, %s90
    %s107 = sphi 0, %s91
  $region4: #{hpb_forward.15} parent=0 // loop_header_branch
    %12 = sbr.rel (%p10) target = $region8
  $region5: #{hpb_forward.15} parent=0 // loop_body
    %s14 = ssub.s32 %s9, 1
    %s15 = ssub.s32 %s9, 2
    %s16 = sadd.s32 %s9, 1
    %s17 = ssub.s32 %s9, %s16
    %p18 = scmp.eq.s32.totalorder %s17, 0
    %s20 = sadd.s32 %s19, 1
    %s21 = scalar_select %p18, %s19, %s20
    %p24 = pneg %p18
    %p25 = scmp.eq.s32.totalorder %s9, 1
    %p26 = por %p24, %p25
    %p27 = scmp.ne.s32.totalorder %s19, %s22
    %p28 = scmp.eq.s32.totalorder %s9, 0
    %p29 = por %p27, %p28
    %p30 = scmp.ne.s32.totalorder %s19, %s22
    %p31 = scmp.eq.s32.totalorder %s14, 1
    %p32 = por %p30, %p31
    %p33 = scmp.ne.s32.totalorder %s22, %s23
    %p34 = scmp.eq.s32.totalorder %s14, 0
    %p35 = por %p33, %p34
    %p36 = scmp.ne.s32.totalorder %s22, %s23
    %p37 = scmp.eq.s32.totalorder %s15, 1
    %p38 = por %p36, %p37
    %p40 = scmp.ne.s32.totalorder %s23, %s39
    %p41 = scmp.eq.s32.totalorder %s15, 0
    %p42 = por %p40, %p41
    %s44 = sadd.s32 %s43, 1
    %p47 = scmp.eq.s32.totalorder %s9, 1
    %p48 = scmp.ne.s32.totalorder %s43, %s45
    %p49 = scmp.eq.s32.totalorder %s9, 0
    %p50 = por %p48, %p49
    %p51 = scmp.ne.s32.totalorder %s43, %s45
    %p52 = scmp.eq.s32.totalorder %s14, 1
    %p53 = por %p51, %p52
    %p54 = scmp.ne.s32.totalorder %s45, %s46
    %p55 = scmp.eq.s32.totalorder %s14, 0
    %p56 = por %p54, %p55
    %p57 = scmp.ne.s32.totalorder %s45, %s46
    %p58 = scmp.eq.s32.totalorder %s15, 1
    %p59 = por %p57, %p58
    %p61 = scmp.ne.s32.totalorder %s46, %s60
    %p62 = scmp.eq.s32.totalorder %s15, 0
    %p63 = por %p61, %p62
    %s65 = sadd.s32 %s64, 1
    %p68 = scmp.eq.s32.totalorder %s9, 1
    %p69 = scmp.ne.s32.totalorder %s64, %s66
    %p70 = scmp.eq.s32.totalorder %s9, 0
    %p71 = por %p69, %p70
    %p72 = scmp.ne.s32.totalorder %s64, %s66
    %p73 = scmp.eq.s32.totalorder %s14, 1
    %p74 = por %p72, %p73
    %p75 = scmp.ne.s32.totalorder %s66, %s67
    %p76 = scmp.eq.s32.totalorder %s14, 0
    %p77 = por %p75, %p76
    %p78 = scmp.ne.s32.totalorder %s66, %s67
    %p79 = scmp.eq.s32.totalorder %s15, 1
    %p80 = por %p78, %p79
    %p82 = scmp.ne.s32.totalorder %s67, %s81
    %p83 = scmp.eq.s32.totalorder %s15, 0
    %p84 = por %p82, %p83
    %s85 = ssub.s32 %s9, %s16
    %p86 = scmp.eq.s32.totalorder %s85, 0
    %s88 = sadd.s32 %s87, 1
    %s89 = scalar_select %p86, %s87, %s88
    %p92 = pneg %p86
    %p93 = scmp.eq.s32.totalorder %s9, 1
    %p94 = por %p92, %p93
    %p95 = scmp.ne.s32.totalorder %s87, %s90
    %p96 = scmp.eq.s32.totalorder %s9, 0
    %p97 = por %p95, %p96
    %p98 = scmp.ne.s32.totalorder %s87, %s90
    %p99 = scmp.eq.s32.totalorder %s14, 1
    %p100 = por %p98, %p99
    %p101 = scmp.ne.s32.totalorder %s90, %s91
    %p102 = scmp.eq.s32.totalorder %s14, 0
    %p103 = por %p101, %p102
    %p104 = scmp.ne.s32.totalorder %s90, %s91
    %p105 = scmp.eq.s32.totalorder %s15, 1
    %p106 = por %p104, %p105
    %p108 = scmp.ne.s32.totalorder %s91, %s107
    %p109 = scmp.eq.s32.totalorder %s15, 0
    %p110 = por %p108, %p109
    %p111 = scmp.le.s32.totalorder 1, %s9
    %p112 = scmp.lt.s32.totalorder %s9, 3
    %p113 = pnand %p111, %p112
    %p114 = pneg %p113
    // Predicated region
    $region9: #{hpb_forward.15} parent=5 // pred_check
      _
    $region10: #{hpb_forward.15} parent=5 // pred_check_branch
      %116 = sbr.rel (%p113) target = $region12
    $region11: #{hpb_forward.15} parent=5 // pred_region
      %s117 = ssub.s32 %s9, 1
      // Predicated region
      $region13: #{hpb_forward.15} parent=11 // pred_check
        %p118 = pneg %p56
      $region14: #{hpb_forward.15} parent=11 // pred_check_branch
        %120 = sbr.rel (%p118) target = $region16
      $region15: #{hpb_forward.15} parent=11 // pred_region
        _
      $region16: #{hpb_forward.15} parent=11 // pred_fallthru
        _
      // Predicated region
      $region17: #{hpb_forward.15} parent=11 // pred_check
        %p121 = pneg %p77
      $region18: #{hpb_forward.15} parent=11 // pred_check_branch
        %123 = sbr.rel (%p121) target = $region20
      $region19: #{hpb_forward.15} parent=11 // pred_region
        _
      $region20: #{hpb_forward.15} parent=11 // pred_fallthru
        _
    $region12: #{hpb_forward.15} parent=5 // pred_fallthru
      _
    %p124 = scmp.lt.s32.totalorder %s9, 2
    // Predicated region
    $region21: #{hpb_forward.15} parent=5 // pred_check
      %p125 = pneg %p124
    $region22: #{hpb_forward.15} parent=5 // pred_check_branch
      %127 = sbr.rel (%p125) target = $region24
    $region23: #{hpb_forward.15} parent=5 // pred_region
      // Predicated region
      $region25: #{hpb_forward.15} parent=23 // pred_check
        %p128 = pneg %p29
      $region26: #{hpb_forward.15} parent=23 // pred_check_branch
        %130 = sbr.rel (%p128) target = $region28
      $region27: #{hpb_forward.15} parent=23 // pred_region
        %p131 = scmp.lt.s32.totalorder %s9, 1
        %s132 = scalar_select %p131, %s9, 1
        %s133 = smul.addr %s132, 8
        %s134 = smul.addr %s133, 8
        %s135 = scalar_lea.vmem %s0, %s134
      $region28: #{hpb_forward.15} parent=23 // pred_fallthru
        _
    $region24: #{hpb_forward.15} parent=5 // pred_fallthru
      _
    %p136 = scmp.le.s32.totalorder 1, %s9
    %p137 = scmp.lt.s32.totalorder %s9, 3
    %p138 = pnand %p136, %p137
    %p139 = pneg %p138
    // Predicated region
    $region29: #{hpb_forward.15} parent=5 // pred_check
      _
    $region30: #{hpb_forward.15} parent=5 // pred_check_branch
      %141 = sbr.rel (%p138) target = $region32
    $region31: #{hpb_forward.15} parent=5 // pred_region
      %s142 = ssub.s32 %s9, 1
      %p143 = scmp.lt.s32.totalorder %s14, 1
      %s144 = scalar_select %p143, %s14, 1
      %s145 = smul.addr %s144, 8
      %s146 = smul.addr %s145, 8
      %s147 = scalar_lea.vmem %s0, %s146
      %p148 = pneg %p35
      %p149 = pneg %p32
      %p150 = pneg %p56
      %p151 = pneg %p53
      %p152 = pneg %p77
      %p153 = pneg %p74
      %p154 = pneg %p103
      %p155 = pneg %p100
      %p156 = scmp.lt.s32.totalorder %s14, 1
      %s157 = scalar_select %p156, %s14, 1
      %s158 = smul.addr %s157, 8
      %s159 = smul.addr %s158, 8
      %s160 = scalar_lea.vmem %s3, %s159
      %p161 = scmp.lt.s32.totalorder %s14, 1
      %s162 = scalar_select %p161, %s14, 1
      %s163 = smul.addr %s162, 8
      %s164 = smul.addr %s163, 8
      %s165 = scalar_lea.vmem %s0, %s164
      %p166 = scmp.lt.s32.totalorder %s14, 1
      %s167 = scalar_select %p166, %s14, 1
      %s168 = smul.addr %s167, 8
      %s169 = smul.addr %s168, 8
      %s170 = scalar_lea.vmem %s3, %s169
      %v171 = vld [vmem:[%s165] sm:$0xff]
      %v172 = vld [vmem:[%s165 + $0x8] sm:$0xff]
      %v173 = vld [vmem:[%s165 + $0x10] sm:$0xff]
      %v174 = vld [vmem:[%s165 + $0x18] sm:$0xff]
      %v175 = vld [vmem:[%s165 + $0x20] sm:$0xff]
      %v176 = vld [vmem:[%s165 + $0x28] sm:$0xff]
      %v177 = vld [vmem:[%s165 + $0x30] sm:$0xff]
      %v178 = vld [vmem:[%s165 + $0x38] sm:$0xff]
      %v179 = vld [vmem:[%s1] sm:$0xff]
      %v180 = vld [vmem:[%s1 + $0x8] sm:$0xff]
      %v181 = vld [vmem:[%s2] sm:$0x1]
      %v183 = vlaneseq
      %v184 = vshrl.u32 %v183, 7
      %v185 = vsub.s32 0, %v184
      %v186 = vrot.slane %v181, %v185
      %vm188 = vcmask 130048
      %v190 = vsel %vm188, %v171, 0
      %v193 = vsel %vm188, %v172, 0
      %v196 = vsel %vm188, %v173, 0
      %v199 = vsel %vm188, %v174, 0
      %v202 = vsel %vm188, %v175, 0
      %v205 = vsel %vm188, %v176, 0
      %v208 = vsel %vm188, %v177, 0
      %v211 = vsel %vm188, %v178, 0
      %213 = vmatprep.subr.mxu0 0.0
      %214 = vmatpush1.msra.mxu0 0.0
      %215 = vmatprep.subr.mxu0 0.0
      %216 = vmatpush1.msra.mxu0 0.0
      %217 = vmatprep.subr.mxu0 0.0
      %218 = vmatpush1.msra.mxu0 0.0
      %219 = vmatprep.subr.mxu0 0.0
      %220 = vmatpush1.msra.mxu0 0.0
      %221 = vmatprep.subr.mxu0 0.0
      %222 = vmatpush1.msra.mxu0 0.0
      %223 = vmatprep.subr.mxu0 0.0
      %224 = vmatpush1.msra.mxu0 0.0
      %225 = vmatprep.subr.mxu0 0.0
      %226 = vmatpush1.msra.mxu0 0.0
      %227 = vmatprep.subr.mxu0 0.0
      %228 = vmatpush1.msra.mxu0 0.0
      %229 = vmatprep.subr.mxu0 0.0
      %230 = vmatpush1.msra.mxu0 0.0
      %231 = vmatprep.subr.mxu0 0.0
      %232 = vmatpush1.msra.mxu0 0.0
      %233 = vmatprep.subr.mxu0 0.0
      %234 = vmatpush1.msra.mxu0 0.0
      %235 = vmatprep.subr.mxu0 0.0
      %236 = vmatpush1.msra.mxu0 0.0
      %237 = vmatprep.subr.mxu0 0.0
      %238 = vmatpush1.msra.mxu0 0.0
      %239 = vmatprep.subr.mxu0 0.0
      %240 = vmatpush1.msra.mxu0 0.0
      %241 = vmatprep.subr.mxu0 0.0
      %242 = vmatpush1.msra.mxu0 %v180
      %243 = vmatprep.subr.mxu0 0.0
      %244 = vmatpush1.msra.mxu0 %v179
      %245 = vmatprep.subr.mxu0 0.0
      %246 = vmatpush2.msra.mxu0 0.0
      %247 = vmatprep.subr.mxu0 0.0
      %248 = vmatpush2.msra.mxu0 0.0
      %249 = vmatprep.subr.mxu0 0.0
      %250 = vmatpush2.msra.mxu0 0.0
      %251 = vmatprep.subr.mxu0 0.0
      %252 = vmatpush2.msra.mxu0 0.0
      %253 = vmatprep.subr.mxu0 0.0
      %254 = vmatpush2.msra.mxu0 0.0
      %255 = vmatprep.subr.mxu0 0.0
      %256 = vmatpush2.msra.mxu0 0.0
      %257 = vmatprep.subr.mxu0 0.0
      %258 = vmatpush2.msra.mxu0 0.0
      %259 = vmatprep.subr.mxu0 0.0
      %260 = vmatpush2.msra.mxu0 0.0
      %261 = vmatprep.subr.mxu0 0.0
      %262 = vmatpush2.msra.mxu0 0.0
      %263 = vmatprep.subr.mxu0 0.0
      %264 = vmatpush2.msra.mxu0 0.0
      %265 = vmatprep.subr.mxu0 0.0
      %266 = vmatpush2.msra.mxu0 0.0
      %267 = vmatprep.subr.mxu0 0.0
      %268 = vmatpush2.msra.mxu0 0.0
      %269 = vmatprep.subr.mxu0 0.0
      %270 = vmatpush2.msra.mxu0 0.0
      %271 = vmatprep.subr.mxu0 0.0
      %272 = vmatpush2.msra.mxu0 0.0
      %273 = vmatprep.subr.mxu0 0.0
      %274 = vmatpush2.msra.mxu0 0.0
      %275 = vmatprep.subr.mxu0 0.0
      %276 = vmatpush2.msra.mxu0 0.0
      %277 = vmatprep.mubr.f32.mxu0 0.0
      %278 = vmatmul.mubr.f32.gmra.mxu0 %v190
      %v279 = vpop.f32.mrf.mxu0
      %v280 = vadd.f32 %v186, %v279
      %v281 = vpop.f32.mrf.mxu0
      %282 = vmatprep.mubr.f32.mxu0 0.0
      %283 = vmatmul.mubr.f32.gmra.mxu0 %v193
      %v284 = vpop.f32.mrf.mxu0
      %v285 = vadd.f32 %v186, %v284
      %v286 = vpop.f32.mrf.mxu0
      %287 = vmatprep.mubr.f32.mxu0 0.0
      %288 = vmatmul.mubr.f32.gmra.mxu0 %v196
      %v289 = vpop.f32.mrf.mxu0
      %v290 = vadd.f32 %v186, %v289
      %v291 = vpop.f32.mrf.mxu0
      %292 = vmatprep.mubr.f32.mxu0 0.0
      %293 = vmatmul.mubr.f32.gmra.mxu0 %v199
      %v294 = vpop.f32.mrf.mxu0
      %v295 = vadd.f32 %v186, %v294
      %v296 = vpop.f32.mrf.mxu0
      %297 = vmatprep.mubr.f32.mxu0 0.0
      %298 = vmatmul.mubr.f32.gmra.mxu0 %v202
      %v299 = vpop.f32.mrf.mxu0
      %v300 = vadd.f32 %v186, %v299
      %v301 = vpop.f32.mrf.mxu0
      %302 = vmatprep.mubr.f32.mxu0 0.0
      %303 = vmatmul.mubr.f32.gmra.mxu0 %v205
      %v304 = vpop.f32.mrf.mxu0
      %v305 = vadd.f32 %v186, %v304
      %v306 = vpop.f32.mrf.mxu0
      %307 = vmatprep.mubr.f32.mxu0 0.0
      %308 = vmatmul.mubr.f32.gmra.mxu0 %v208
      %v309 = vpop.f32.mrf.mxu0
      %v310 = vadd.f32 %v186, %v309
      %v311 = vpop.f32.mrf.mxu0
      %312 = vmatprep.mubr.f32.mxu0 0.0
      %313 = vmatmul.mubr.f32.gmra.mxu0 %v211
      %v314 = vpop.f32.mrf.mxu0
      %v315 = vadd.f32 %v186, %v314
      %v316 = vpop.f32.mrf.mxu0
      %317 = vdwg.mxu0
      %vm318 = vcmask 64512
      %v319 = vsel %vm318, %v280, 0.0
      %v320 = vsel %vm318, %v285, 0.0
      %v321 = vadd.f32 %v319, %v320
      %v322 = vsel %vm318, %v290, 0.0
      %v323 = vadd.f32 %v321, %v322
      %v324 = vsel %vm318, %v295, 0.0
      %v325 = vadd.f32 %v323, %v324
      %v326 = vsel %vm318, %v300, 0.0
      %v327 = vadd.f32 %v325, %v326
      %v328 = vsel %vm318, %v305, 0.0
      %v329 = vadd.f32 %v327, %v328
      %v330 = vsel %vm318, %v310, 0.0
      %v331 = vadd.f32 %v329, %v330
      %v332 = vsel %vm318, %v315, 0.0
      %v333 = vadd.f32 %v331, %v332
      %v334 = vrot.slane %v333, 4
      %v335 = vadd.f32 %v333, %v334
      %v336 = vrot.slane %v335, 2
      %v337 = vadd.f32 %v335, %v336
      %v338 = vrot.slane %v337, 1
      %v339 = vadd.f32 %v337, %v338
      %v340 = vrcp.pop 64.0
      %v341 = vmul.f32 %v339, %v340
      %v342 = vsub.f32 %v280, %v341
      %v343 = vsub.f32 %v285, %v341
      %v344 = vsub.f32 %v290, %v341
      %v345 = vsub.f32 %v295, %v341
      %v346 = vsub.f32 %v300, %v341
      %v347 = vsub.f32 %v305, %v341
      %v348 = vsub.f32 %v310, %v341
      %v349 = vsub.f32 %v315, %v341
      %v350 = vmul.f32 %v342, %v342
      %v351 = vmul.f32 %v343, %v343
      %v352 = vmul.f32 %v344, %v344
      %v353 = vmul.f32 %v345, %v345
      %v354 = vmul.f32 %v346, %v346
      %v355 = vmul.f32 %v347, %v347
      %v356 = vmul.f32 %v348, %v348
      %v357 = vmul.f32 %v349, %v349
      %v358 = vsel %vm318, %v350, 0.0
      %v359 = vsel %vm318, %v351, 0.0
      %v360 = vadd.f32 %v358, %v359
      %v361 = vsel %vm318, %v352, 0.0
      %v362 = vadd.f32 %v360, %v361
      %v363 = vsel %vm318, %v353, 0.0
      %v364 = vadd.f32 %v362, %v363
      %v365 = vsel %vm318, %v354, 0.0
      %v366 = vadd.f32 %v364, %v365
      %v367 = vsel %vm318, %v355, 0.0
      %v368 = vadd.f32 %v366, %v367
      %v369 = vsel %vm318, %v356, 0.0
      %v370 = vadd.f32 %v368, %v369
      %v371 = vsel %vm318, %v357, 0.0
      %v372 = vadd.f32 %v370, %v371
      %v373 = vrot.slane %v372, 4
      %v374 = vadd.f32 %v372, %v373
      %v375 = vrot.slane %v374, 2
      %v376 = vadd.f32 %v374, %v375
      %v377 = vrot.slane %v376, 1
      %v378 = vadd.f32 %v376, %v377
      %v379 = vmul.f32 %v378, %v340
      %v380 = vadd.f32 %v379, 1e-05
      %v381 = vrsqrt.pop %v380
      %v382 = vmul.f32 %v342, %v381
      %v383 = vmul.f32 %v343, %v381
      %v384 = vmul.f32 %v344, %v381
      %v385 = vmul.f32 %v345, %v381
      %v386 = vmul.f32 %v346, %v381
      %v387 = vmul.f32 %v347, %v381
      %v388 = vmul.f32 %v348, %v381
      %v389 = vmul.f32 %v349, %v381
      %390 = vst.msk [vmem:[%s170] sm:$0xff] %vm318, %v382
      %391 = vst.msk [vmem:[%s170 + $0x8] sm:$0xff] %vm318, %v383
      %392 = vst.msk [vmem:[%s170 + $0x10] sm:$0xff] %vm318, %v384
      %393 = vst.msk [vmem:[%s170 + $0x18] sm:$0xff] %vm318, %v385
      %394 = vst.msk [vmem:[%s170 + $0x20] sm:$0xff] %vm318, %v386
      %395 = vst.msk [vmem:[%s170 + $0x28] sm:$0xff] %vm318, %v387
      %396 = vst.msk [vmem:[%s170 + $0x30] sm:$0xff] %vm318, %v388
      %397 = vst.msk [vmem:[%s170 + $0x38] sm:$0xff] %vm318, %v389
      %p398 = scmp.lt.s32.totalorder %s14, 1
      %s399 = scalar_select %p398, %s14, 1
      %s400 = smul.addr %s399, 8
      %s401 = smul.addr %s400, 8
      %s402 = scalar_lea.vmem %s3, %s401
      // Predicated region
      $region33: #{hpb_forward.15} parent=31 // pred_check
        %p403 = pneg %p100
      $region34: #{hpb_forward.15} parent=31 // pred_check_branch
        %405 = sbr.rel (%p403) target = $region36
      $region35: #{hpb_forward.15} parent=31 // pred_region
        _
      $region36: #{hpb_forward.15} parent=31 // pred_fallthru
        _
    $region32: #{hpb_forward.15} parent=5 // pred_fallthru
      _
    %p406 = scmp.le.s32.totalorder 2, %s9
    // Predicated region
    $region37: #{hpb_forward.15} parent=5 // pred_check
      %p407 = pneg %p406
    $region38: #{hpb_forward.15} parent=5 // pred_check_branch
      %409 = sbr.rel (%p407) target = $region40
    $region39: #{hpb_forward.15} parent=5 // pred_region
      %s410 = ssub.s32 %s9, 2
      // Predicated region
      $region41: #{hpb_forward.15} parent=39 // pred_check
        %p411 = pneg %p106
      $region42: #{hpb_forward.15} parent=39 // pred_check_branch
        %413 = sbr.rel (%p411) target = $region44
      $region43: #{hpb_forward.15} parent=39 // pred_region
        %p414 = scmp.lt.s32.totalorder %s15, 1
        %s415 = scalar_select %p414, %s15, 1
        %s416 = smul.addr %s415, 8
        %s417 = smul.addr %s416, 8
        %s418 = scalar_lea.vmem %s3, %s417
      $region44: #{hpb_forward.15} parent=39 // pred_fallthru
        _
    $region40: #{hpb_forward.15} parent=5 // pred_fallthru
      _
  $region6: #{hpb_forward.15} parent=0 // loop_footer
    %s13 = sadd.s32 1, %s9
  $region7: #{hpb_forward.15} parent=0 // loop_footer_branch
    %8 = sbr.rel target = $region3
  $region8: #{hpb_forward.15} parent=0 // loop_exit
    _

// kernel: hpb_forward.10
$region0: #{hpb_forward.10}
  #allocation0 [shape = 'u32[]', space=smem, size = 0x4, offset = 0x4, fixed_abs, tag = 'smem constant byte address 0x4 - core index']
  #allocation1 [shape = 'u32[144,128]{1,0:T(1,128)}', space=vmem, size = 0x12000, scoped, tag = 'internal scratch']
  #allocation2 [shape = 'f32[8,64,1]{2,1,0:T(8,128)}', space=vmem, size = 0x40000, scoped, tag = 'scratch operand']
  #allocation3 [shape = 'f32[8,64,1]{2,1,0:T(8,128)}', space=vmem, size = 0x40000, scoped, tag = 'scratch operand']
  #allocation4 [shape = 'f32[8,64,8]{2,1,0:T(8,128)}', space=vmem, size = 0x40000, scoped, tag = 'scratch operand']
  %s0 = inlined_call_operand.vmem [shape: f32[8,64,8], index: 0, kind: input, shape index: {}]
  %s1 = inlined_call_operand.vmem [shape: f32[8,64,8], index: 1, kind: input, shape index: {}]
  %s2 = inlined_call_operand.vmem [shape: f32[8,64,8], index: 2, kind: input, shape index: {}]
  %s3 = inlined_call_operand.vmem [shape: f32[8,64,8], index: 3, kind: output, shape index: {}]
  %s4 = sld [smem:[#allocation0]]
  $region30: #{hpb_forward.10} parent=0
    _
  %s6 = ssub.s32 1, %s4
  %s7 = scalar_select 0, %s6, %s4
  // Predicated region
  $region2: #{hpb_forward.10} parent=0 // pred_check
    _
  $region3: #{hpb_forward.10} parent=0 // pred_check_branch
    %9 = sbr.rel (0) target = $region5
  $region4: #{hpb_forward.10} parent=0 // pred_region
    _
  $region5: #{hpb_forward.10} parent=0 // pred_fallthru
    _
  // Predicated region
  $region6: #{hpb_forward.10} parent=0 // pred_check
    _
  $region7: #{hpb_forward.10} parent=0 // pred_check_branch
    %11 = sbr.rel (0) target = $region9
  $region8: #{hpb_forward.10} parent=0 // pred_region
    _
  $region9: #{hpb_forward.10} parent=0 // pred_fallthru
    _
  // Predicated region
  $region10: #{hpb_forward.10} parent=0 // pred_check
    _
  $region11: #{hpb_forward.10} parent=0 // pred_check_branch
    %13 = sbr.rel (0) target = $region13
  $region12: #{hpb_forward.10} parent=0 // pred_region
    _
  $region13: #{hpb_forward.10} parent=0 // pred_fallthru
    _
  %p14 = scmp.eq.s32.totalorder 0, 0
  // Predicated region
  $region14: #{hpb_forward.10} parent=0 // pred_check
    %p15 = pneg %p14
  $region15: #{hpb_forward.10} parent=0 // pred_check_branch
    %17 = sbr.rel (%p15) target = $region17
  $region16: #{hpb_forward.10} parent=0 // pred_region
    %vm18 = vcmask 7168
    %19 = vst.msk [vmem:[#allocation2] sm:$0xff] %vm18, -inf
    %20 = vst.msk [vmem:[#allocation2 + $0x8] sm:$0xff] %vm18, -inf
    %21 = vst.msk [vmem:[#allocation2 + $0x10] sm:$0xff] %vm18, -inf
    %22 = vst.msk [vmem:[#allocation2 + $0x18] sm:$0xff] %vm18, -inf
    %23 = vst.msk [vmem:[#allocation2 + $0x20] sm:$0xff] %vm18, -inf
    %24 = vst.msk [vmem:[#allocation2 + $0x28] sm:$0xff] %vm18, -inf
    %25 = vst.msk [vmem:[#allocation2 + $0x30] sm:$0xff] %vm18, -inf
    %26 = vst.msk [vmem:[#allocation2 + $0x38] sm:$0xff] %vm18, -inf
    %27 = vst.msk [vmem:[#allocation2 + $0x40] sm:$0xff] %vm18, -inf
    %28 = vst.msk [vmem:[#allocation2 + $0x48] sm:$0xff] %vm18, -inf
    %29 = vst.msk [vmem:[#allocation2 + $0x50] sm:$0xff] %vm18, -inf
    %30 = vst.msk [vmem:[#allocation2 + $0x58] sm:$0xff] %vm18, -inf
    %31 = vst.msk [vmem:[#allocation2 + $0x60] sm:$0xff] %vm18, -inf
    %32 = vst.msk [vmem:[#allocation2 + $0x68] sm:$0xff] %vm18, -inf
    %33 = vst.msk [vmem:[#allocation2 + $0x70] sm:$0xff] %vm18, -inf
    %34 = vst.msk [vmem:[#allocation2 + $0x78] sm:$0xff] %vm18, -inf
    %35 = vst.msk [vmem:[#allocation2 + $0x80] sm:$0xff] %vm18, -inf
    %36 = vst.msk [vmem:[#allocation2 + $0x88] sm:$0xff] %vm18, -inf
    %37 = vst.msk [vmem:[#allocation2 + $0x90] sm:$0xff] %vm18, -inf
    %38 = vst.msk [vmem:[#allocation2 + $0x98] sm:$0xff] %vm18, -inf
    %39 = vst.msk [vmem:[#allocation2 + $0xa0] sm:$0xff] %vm18, -inf
    %40 = vst.msk [vmem:[#allocation2 + $0xa8] sm:$0xff] %vm18, -inf
    %41 = vst.msk [vmem:[#allocation2 + $0xb0] sm:$0xff] %vm18, -inf
    %42 = vst.msk [vmem:[#allocation2 + $0xb8] sm:$0xff] %vm18, -inf
    %43 = vst.msk [vmem:[#allocation2 + $0xc0] sm:$0xff] %vm18, -inf
    %44 = vst.msk [vmem:[#allocation2 + $0xc8] sm:$0xff] %vm18, -inf
    %45 = vst.msk [vmem:[#allocation2 + $0xd0] sm:$0xff] %vm18, -inf
    %46 = vst.msk [vmem:[#allocation2 + $0xd8] sm:$0xff] %vm18, -inf
    %47 = vst.msk [vmem:[#allocation2 + $0xe0] sm:$0xff] %vm18, -inf
    %48 = vst.msk [vmem:[#allocation2 + $0xe8] sm:$0xff] %vm18, -inf
    %49 = vst.msk [vmem:[#allocation2 + $0xf0] sm:$0xff] %vm18, -inf
    %50 = vst.msk [vmem:[#allocation2 + $0xf8] sm:$0xff] %vm18, -inf
    %51 = vst.msk [vmem:[#allocation2 + $0x100] sm:$0xff] %vm18, -inf
    %52 = vst.msk [vmem:[#allocation2 + $0x108] sm:$0xff] %vm18, -inf
    %53 = vst.msk [vmem:[#allocation2 + $0x110] sm:$0xff] %vm18, -inf
    %54 = vst.msk [vmem:[#allocation2 + $0x118] sm:$0xff] %vm18, -inf
    %55 = vst.msk [vmem:[#allocation2 + $0x120] sm:$0xff] %vm18, -inf
    %56 = vst.msk [vmem:[#allocation2 + $0x128] sm:$0xff] %vm18, -inf
    %57 = vst.msk [vmem:[#allocation2 + $0x130] sm:$0xff] %vm18, -inf
    %58 = vst.msk [vmem:[#allocation2 + $0x138] sm:$0xff] %vm18, -inf
    %59 = vst.msk [vmem:[#allocation2 + $0x140] sm:$0xff] %vm18, -inf
    %60 = vst.msk [vmem:[#allocation2 + $0x148] sm:$0xff] %vm18, -inf
    %61 = vst.msk [vmem:[#allocation2 + $0x150] sm:$0xff] %vm18, -inf
    %62 = vst.msk [vmem:[#allocation2 + $0x158] sm:$0xff] %vm18, -inf
    %63 = vst.msk [vmem:[#allocation2 + $0x160] sm:$0xff] %vm18, -inf
    %64 = vst.msk [vmem:[#allocation2 + $0x168] sm:$0xff] %vm18, -inf
    %65 = vst.msk [vmem:[#allocation2 + $0x170] sm:$0xff] %vm18, -inf
    %66 = vst.msk [vmem:[#allocation2 + $0x178] sm:$0xff] %vm18, -inf
    %67 = vst.msk [vmem:[#allocation2 + $0x180] sm:$0xff] %vm18, -inf
    %68 = vst.msk [vmem:[#allocation2 + $0x188] sm:$0xff] %vm18, -inf
    %69 = vst.msk [vmem:[#allocation2 + $0x190] sm:$0xff] %vm18, -inf
    %70 = vst.msk [vmem:[#allocation2 + $0x198] sm:$0xff] %vm18, -inf
    %71 = vst.msk [vmem:[#allocation2 + $0x1a0] sm:$0xff] %vm18, -inf
    %72 = vst.msk [vmem:[#allocation2 + $0x1a8] sm:$0xff] %vm18, -inf
    %73 = vst.msk [vmem:[#allocation2 + $0x1b0] sm:$0xff] %vm18, -inf
    %74 = vst.msk [vmem:[#allocation2 + $0x1b8] sm:$0xff] %vm18, -inf
    %75 = vst.msk [vmem:[#allocation2 + $0x1c0] sm:$0xff] %vm18, -inf
    %76 = vst.msk [vmem:[#allocation2 + $0x1c8] sm:$0xff] %vm18, -inf
    %77 = vst.msk [vmem:[#allocation2 + $0x1d0] sm:$0xff] %vm18, -inf
    %78 = vst.msk [vmem:[#allocation2 + $0x1d8] sm:$0xff] %vm18, -inf
    %79 = vst.msk [vmem:[#allocation2 + $0x1e0] sm:$0xff] %vm18, -inf
    %80 = vst.msk [vmem:[#allocation2 + $0x1e8] sm:$0xff] %vm18, -inf
    %81 = vst.msk [vmem:[#allocation2 + $0x1f0] sm:$0xff] %vm18, -inf
    %82 = vst.msk [vmem:[#allocation2 + $0x1f8] sm:$0xff] %vm18, -inf
    %83 = vst.msk [vmem:[#allocation3] sm:$0xff] %vm18, 0.0
    %84 = vst.msk [vmem:[#allocation3 + $0x8] sm:$0xff] %vm18, 0.0
    %85 = vst.msk [vmem:[#allocation3 + $0x10] sm:$0xff] %vm18, 0.0
    %86 = vst.msk [vmem:[#allocation3 + $0x18] sm:$0xff] %vm18, 0.0
    %87 = vst.msk [vmem:[#allocation3 + $0x20] sm:$0xff] %vm18, 0.0
    %88 = vst.msk [vmem:[#allocation3 + $0x28] sm:$0xff] %vm18, 0.0
    %89 = vst.msk [vmem:[#allocation3 + $0x30] sm:$0xff] %vm18, 0.0
    %90 = vst.msk [vmem:[#allocation3 + $0x38] sm:$0xff] %vm18, 0.0
    %91 = vst.msk [vmem:[#allocation3 + $0x40] sm:$0xff] %vm18, 0.0
    %92 = vst.msk [vmem:[#allocation3 + $0x48] sm:$0xff] %vm18, 0.0
    %93 = vst.msk [vmem:[#allocation3 + $0x50] sm:$0xff] %vm18, 0.0
    %94 = vst.msk [vmem:[#allocation3 + $0x58] sm:$0xff] %vm18, 0.0
    %95 = vst.msk [vmem:[#allocation3 + $0x60] sm:$0xff] %vm18, 0.0
    %96 = vst.msk [vmem:[#allocation3 + $0x68] sm:$0xff] %vm18, 0.0
    %97 = vst.msk [vmem:[#allocation3 + $0x70] sm:$0xff] %vm18, 0.0
    %98 = vst.msk [vmem:[#allocation3 + $0x78] sm:$0xff] %vm18, 0.0
    %99 = vst.msk [vmem:[#allocation3 + $0x80] sm:$0xff] %vm18, 0.0
    %100 = vst.msk [vmem:[#allocation3 + $0x88] sm:$0xff] %vm18, 0.0
    %101 = vst.msk [vmem:[#allocation3 + $0x90] sm:$0xff] %vm18, 0.0
    %102 = vst.msk [vmem:[#allocation3 + $0x98] sm:$0xff] %vm18, 0.0
    %103 = vst.msk [vmem:[#allocation3 + $0xa0] sm:$0xff] %vm18, 0.0
    %104 = vst.msk [vmem:[#allocation3 + $0xa8] sm:$0xff] %vm18, 0.0
    %105 = vst.msk [vmem:[#allocation3 + $0xb0] sm:$0xff] %vm18, 0.0
    %106 = vst.msk [vmem:[#allocation3 + $0xb8] sm:$0xff] %vm18, 0.0
    %107 = vst.msk [vmem:[#allocation3 + $0xc0] sm:$0xff] %vm18, 0.0
    %108 = vst.msk [vmem:[#allocation3 + $0xc8] sm:$0xff] %vm18, 0.0
    %109 = vst.msk [vmem:[#allocation3 + $0xd0] sm:$0xff] %vm18, 0.0
    %110 = vst.msk [vmem:[#allocation3 + $0xd8] sm:$0xff] %vm18, 0.0
    %111 = vst.msk [vmem:[#allocation3 + $0xe0] sm:$0xff] %vm18, 0.0
    %112 = vst.msk [vmem:[#allocation3 + $0xe8] sm:$0xff] %vm18, 0.0
    %113 = vst.msk [vmem:[#allocation3 + $0xf0] sm:$0xff] %vm18, 0.0
    %114 = vst.msk [vmem:[#allocation3 + $0xf8] sm:$0xff] %vm18, 0.0
    %115 = vst.msk [vmem:[#allocation3 + $0x100] sm:$0xff] %vm18, 0.0
    %116 = vst.msk [vmem:[#allocation3 + $0x108] sm:$0xff] %vm18, 0.0
    %117 = vst.msk [vmem:[#allocation3 + $0x110] sm:$0xff] %vm18, 0.0
    %118 = vst.msk [vmem:[#allocation3 + $0x118] sm:$0xff] %vm18, 0.0
    %119 = vst.msk [vmem:[#allocation3 + $0x120] sm:$0xff] %vm18, 0.0
    %120 = vst.msk [vmem:[#allocation3 + $0x128] sm:$0xff] %vm18, 0.0
    %121 = vst.msk [vmem:[#allocation3 + $0x130] sm:$0xff] %vm18, 0.0
    %122 = vst.msk [vmem:[#allocation3 + $0x138] sm:$0xff] %vm18, 0.0
    %123 = vst.msk [vmem:[#allocation3 + $0x140] sm:$0xff] %vm18, 0.0
    %124 = vst.msk [vmem:[#allocation3 + $0x148] sm:$0xff] %vm18, 0.0
    %125 = vst.msk [vmem:[#allocation3 + $0x150] sm:$0xff] %vm18, 0.0
    %126 = vst.msk [vmem:[#allocation3 + $0x158] sm:$0xff] %vm18, 0.0
    %127 = vst.msk [vmem:[#allocation3 + $0x160] sm:$0xff] %vm18, 0.0
    %128 = vst.msk [vmem:[#allocation3 + $0x168] sm:$0xff] %vm18, 0.0
    %129 = vst.msk [vmem:[#allocation3 + $0x170] sm:$0xff] %vm18, 0.0
    %130 = vst.msk [vmem:[#allocation3 + $0x178] sm:$0xff] %vm18, 0.0
    %131 = vst.msk [vmem:[#allocation3 + $0x180] sm:$0xff] %vm18, 0.0
    %132 = vst.msk [vmem:[#allocation3 + $0x188] sm:$0xff] %vm18, 0.0
    %133 = vst.msk [vmem:[#allocation3 + $0x190] sm:$0xff] %vm18, 0.0
    %134 = vst.msk [vmem:[#allocation3 + $0x198] sm:$0xff] %vm18, 0.0
    %135 = vst.msk [vmem:[#allocation3 + $0x1a0] sm:$0xff] %vm18, 0.0
    %136 = vst.msk [vmem:[#allocation3 + $0x1a8] sm:$0xff] %vm18, 0.0
    %137 = vst.msk [vmem:[#allocation3 + $0x1b0] sm:$0xff] %vm18, 0.0
    %138 = vst.msk [vmem:[#allocation3 + $0x1b8] sm:$0xff] %vm18, 0.0
    %139 = vst.msk [vmem:[#allocation3 + $0x1c0] sm:$0xff] %vm18, 0.0
    %140 = vst.msk [vmem:[#allocation3 + $0x1c8] sm:$0xff] %vm18, 0.0
    %141 = vst.msk [vmem:[#allocation3 + $0x1d0] sm:$0xff] %vm18, 0.0
    %142 = vst.msk [vmem:[#allocation3 + $0x1d8] sm:$0xff] %vm18, 0.0
    %143 = vst.msk [vmem:[#allocation3 + $0x1e0] sm:$0xff] %vm18, 0.0
    %144 = vst.msk [vmem:[#allocation3 + $0x1e8] sm:$0xff] %vm18, 0.0
    %145 = vst.msk [vmem:[#allocation3 + $0x1f0] sm:$0xff] %vm18, 0.0
    %146 = vst.msk [vmem:[#allocation3 + $0x1f8] sm:$0xff] %vm18, 0.0
    %vm147 = vcmask 64512
    %148 = vst.msk [vmem:[#allocation4] sm:$0xff] %vm147, 0.0
    %149 = vst.msk [vmem:[#allocation4 + $0x8] sm:$0xff] %vm147, 0.0
    %150 = vst.msk [vmem:[#allocation4 + $0x10] sm:$0xff] %vm147, 0.0
    %151 = vst.msk [vmem:[#allocation4 + $0x18] sm:$0xff] %vm147, 0.0
    %152 = vst.msk [vmem:[#allocation4 + $0x20] sm:$0xff] %vm147, 0.0
    %153 = vst.msk [vmem:[#allocation4 + $0x28] sm:$0xff] %vm147, 0.0
    %154 = vst.msk [vmem:[#allocation4 + $0x30] sm:$0xff] %vm147, 0.0
    %155 = vst.msk [vmem:[#allocation4 + $0x38] sm:$0xff] %vm147, 0.0
    %156 = vst.msk [vmem:[#allocation4 + $0x40] sm:$0xff] %vm147, 0.0
    %157 = vst.msk [vmem:[#allocation4 + $0x48] sm:$0xff] %vm147, 0.0
    %158 = vst.msk [vmem:[#allocation4 + $0x50] sm:$0xff] %vm147, 0.0
    %159 = vst.msk [vmem:[#allocation4 + $0x58] sm:$0xff] %vm147, 0.0
    %160 = vst.msk [vmem:[#allocation4 + $0x60] sm:$0xff] %vm147, 0.0
    %161 = vst.msk [vmem:[#allocation4 + $0x68] sm:$0xff] %vm147, 0.0
    %162 = vst.msk [vmem:[#allocation4 + $0x70] sm:$0xff] %vm147, 0.0
    %163 = vst.msk [vmem:[#allocation4 + $0x78] sm:$0xff] %vm147, 0.0
    %164 = vst.msk [vmem:[#allocation4 + $0x80] sm:$0xff] %vm147, 0.0
    %165 = vst.msk [vmem:[#allocation4 + $0x88] sm:$0xff] %vm147, 0.0
    %166 = vst.msk [vmem:[#allocation4 + $0x90] sm:$0xff] %vm147, 0.0
    %167 = vst.msk [vmem:[#allocation4 + $0x98] sm:$0xff] %vm147, 0.0
    %168 = vst.msk [vmem:[#allocation4 + $0xa0] sm:$0xff] %vm147, 0.0
    %169 = vst.msk [vmem:[#allocation4 + $0xa8] sm:$0xff] %vm147, 0.0
    %170 = vst.msk [vmem:[#allocation4 + $0xb0] sm:$0xff] %vm147, 0.0
    %171 = vst.msk [vmem:[#allocation4 + $0xb8] sm:$0xff] %vm147, 0.0
    %172 = vst.msk [vmem:[#allocation4 + $0xc0] sm:$0xff] %vm147, 0.0
    %173 = vst.msk [vmem:[#allocation4 + $0xc8] sm:$0xff] %vm147, 0.0
    %174 = vst.msk [vmem:[#allocation4 + $0xd0] sm:$0xff] %vm147, 0.0
    %175 = vst.msk [vmem:[#allocation4 + $0xd8] sm:$0xff] %vm147, 0.0
    %176 = vst.msk [vmem:[#allocation4 + $0xe0] sm:$0xff] %vm147, 0.0
    %177 = vst.msk [vmem:[#allocation4 + $0xe8] sm:$0xff] %vm147, 0.0
    %178 = vst.msk [vmem:[#allocation4 + $0xf0] sm:$0xff] %vm147, 0.0
    %179 = vst.msk [vmem:[#allocation4 + $0xf8] sm:$0xff] %vm147, 0.0
    %180 = vst.msk [vmem:[#allocation4 + $0x100] sm:$0xff] %vm147, 0.0
    %181 = vst.msk [vmem:[#allocation4 + $0x108] sm:$0xff] %vm147, 0.0
    %182 = vst.msk [vmem:[#allocation4 + $0x110] sm:$0xff] %vm147, 0.0
    %183 = vst.msk [vmem:[#allocation4 + $0x118] sm:$0xff] %vm147, 0.0
    %184 = vst.msk [vmem:[#allocation4 + $0x120] sm:$0xff] %vm147, 0.0
    %185 = vst.msk [vmem:[#allocation4 + $0x128] sm:$0xff] %vm147, 0.0
    %186 = vst.msk [vmem:[#allocation4 + $0x130] sm:$0xff] %vm147, 0.0
    %187 = vst.msk [vmem:[#allocation4 + $0x138] sm:$0xff] %vm147, 0.0
    %188 = vst.msk [vmem:[#allocation4 + $0x140] sm:$0xff] %vm147, 0.0
    %189 = vst.msk [vmem:[#allocation4 + $0x148] sm:$0xff] %vm147, 0.0
    %190 = vst.msk [vmem:[#allocation4 + $0x150] sm:$0xff] %vm147, 0.0
    %191 = vst.msk [vmem:[#allocation4 + $0x158] sm:$0xff] %vm147, 0.0
    %192 = vst.msk [vmem:[#allocation4 + $0x160] sm:$0xff] %vm147, 0.0
    %193 = vst.msk [vmem:[#allocation4 + $0x168] sm:$0xff] %vm147, 0.0
    %194 = vst.msk [vmem:[#allocation4 + $0x170] sm:$0xff] %vm147, 0.0
    %195 = vst.msk [vmem:[#allocation4 + $0x178] sm:$0xff] %vm147, 0.0
    %196 = vst.msk [vmem:[#allocation4 + $0x180] sm:$0xff] %vm147, 0.0
    %197 = vst.msk [vmem:[#allocation4 + $0x188] sm:$0xff] %vm147, 0.0
    %198 = vst.msk [vmem:[#allocation4 + $0x190] sm:$0xff] %vm147, 0.0
    %199 = vst.msk [vmem:[#allocation4 + $0x198] sm:$0xff] %vm147, 0.0
    %200 = vst.msk [vmem:[#allocation4 + $0x1a0] sm:$0xff] %vm147, 0.0
    %201 = vst.msk [vmem:[#allocation4 + $0x1a8] sm:$0xff] %vm147, 0.0
    %202 = vst.msk [vmem:[#allocation4 + $0x1b0] sm:$0xff] %vm147, 0.0
    %203 = vst.msk [vmem:[#allocation4 + $0x1b8] sm:$0xff] %vm147, 0.0
    %204 = vst.msk [vmem:[#allocation4 + $0x1c0] sm:$0xff] %vm147, 0.0
    %205 = vst.msk [vmem:[#allocation4 + $0x1c8] sm:$0xff] %vm147, 0.0
    %206 = vst.msk [vmem:[#allocation4 + $0x1d0] sm:$0xff] %vm147, 0.0
    %207 = vst.msk [vmem:[#allocation4 + $0x1d8] sm:$0xff] %vm147, 0.0
    %208 = vst.msk [vmem:[#allocation4 + $0x1e0] sm:$0xff] %vm147, 0.0
    %209 = vst.msk [vmem:[#allocation4 + $0x1e8] sm:$0xff] %vm147, 0.0
    %210 = vst.msk [vmem:[#allocation4 + $0x1f0] sm:$0xff] %vm147, 0.0
    %211 = vst.msk [vmem:[#allocation4 + $0x1f8] sm:$0xff] %vm147, 0.0
  $region17: #{hpb_forward.10} parent=0 // pred_fallthru
    _
  %v212 = vld [vmem:[%s0] sm:$0xff]
  %v213 = vld [vmem:[%s0 + $0x8] sm:$0xff]
  %v214 = vld [vmem:[%s0 + $0x10] sm:$0xff]
  %v215 = vld [vmem:[%s0 + $0x18] sm:$0xff]
  %v216 = vld [vmem:[%s0 + $0x20] sm:$0xff]
  %v217 = vld [vmem:[%s0 + $0x28] sm:$0xff]
  %v218 = vld [vmem:[%s0 + $0x30] sm:$0xff]
  %v219 = vld [vmem:[%s0 + $0x38] sm:$0xff]
  %v220 = vld [vmem:[%s0 + $0x40] sm:$0xff]
  %v221 = vld [vmem:[%s0 + $0x48] sm:$0xff]
  %v222 = vld [vmem:[%s0 + $0x50] sm:$0xff]
  %v223 = vld [vmem:[%s0 + $0x58] sm:$0xff]
  %v224 = vld [vmem:[%s0 + $0x60] sm:$0xff]
  %v225 = vld [vmem:[%s0 + $0x68] sm:$0xff]
  %v226 = vld [vmem:[%s0 + $0x70] sm:$0xff]
  %v227 = vld [vmem:[%s0 + $0x78] sm:$0xff]
  %v228 = vld [vmem:[%s0 + $0x80] sm:$0xff]
  %v229 = vld [vmem:[%s0 + $0x88] sm:$0xff]
  %v230 = vld [vmem:[%s0 + $0x90] sm:$0xff]
  %v231 = vld [vmem:[%s0 + $0x98] sm:$0xff]
  %v232 = vld [vmem:[%s0 + $0xa0] sm:$0xff]
  %v233 = vld [vmem:[%s0 + $0xa8] sm:$0xff]
  %v234 = vld [vmem:[%s0 + $0xb0] sm:$0xff]
  %v235 = vld [vmem:[%s0 + $0xb8] sm:$0xff]
  %v236 = vld [vmem:[%s0 + $0xc0] sm:$0xff]
  %v237 = vld [vmem:[%s0 + $0xc8] sm:$0xff]
  %v238 = vld [vmem:[%s0 + $0xd0] sm:$0xff]
  %v239 = vld [vmem:[%s0 + $0xd8] sm:$0xff]
  %v240 = vld [vmem:[%s0 + $0xe0] sm:$0xff]
  %v241 = vld [vmem:[%s0 + $0xe8] sm:$0xff]
  %v242 = vld [vmem:[%s0 + $0xf0] sm:$0xff]
  %v243 = vld [vmem:[%s0 + $0xf8] sm:$0xff]
  %v244 = vld [vmem:[%s0 + $0x100] sm:$0xff]
  %v245 = vld [vmem:[%s0 + $0x108] sm:$0xff]
  %v246 = vld [vmem:[%s0 + $0x110] sm:$0xff]
  %v247 = vld [vmem:[%s0 + $0x118] sm:$0xff]
  %v248 = vld [vmem:[%s0 + $0x120] sm:$0xff]
  %v249 = vld [vmem:[%s0 + $0x128] sm:$0xff]
  %v250 = vld [vmem:[%s0 + $0x130] sm:$0xff]
  %v251 = vld [vmem:[%s0 + $0x138] sm:$0xff]
  %v252 = vld [vmem:[%s0 + $0x140] sm:$0xff]
  %v253 = vld [vmem:[%s0 + $0x148] sm:$0xff]
  %v254 = vld [vmem:[%s0 + $0x150] sm:$0xff]
  %v255 = vld [vmem:[%s0 + $0x158] sm:$0xff]
  %v256 = vld [vmem:[%s0 + $0x160] sm:$0xff]
  %v257 = vld [vmem:[%s0 + $0x168] sm:$0xff]
  %v258 = vld [vmem:[%s0 + $0x170] sm:$0xff]
  %v259 = vld [vmem:[%s0 + $0x178] sm:$0xff]
  %v260 = vld [vmem:[%s0 + $0x180] sm:$0xff]
  %v261 = vld [vmem:[%s0 + $0x188] sm:$0xff]
  %v262 = vld [vmem:[%s0 + $0x190] sm:$0xff]
  %v263 = vld [vmem:[%s0 + $0x198] sm:$0xff]
  %v264 = vld [vmem:[%s0 + $0x1a0] sm:$0xff]
  %v265 = vld [vmem:[%s0 + $0x1a8] sm:$0xff]
  %v266 = vld [vmem:[%s0 + $0x1b0] sm:$0xff]
  %v267 = vld [vmem:[%s0 + $0x1b8] sm:$0xff]
  %v268 = vld [vmem:[%s0 + $0x1c0] sm:$0xff]
  %v269 = vld [vmem:[%s0 + $0x1c8] sm:$0xff]
  %v270 = vld [vmem:[%s0 + $0x1d0] sm:$0xff]
  %v271 = vld [vmem:[%s0 + $0x1d8] sm:$0xff]
  %v272 = vld [vmem:[%s0 + $0x1e0] sm:$0xff]
  %v273 = vld [vmem:[%s0 + $0x1e8] sm:$0xff]
  %v274 = vld [vmem:[%s0 + $0x1f0] sm:$0xff]
  %v275 = vld [vmem:[%s0 + $0x1f8] sm:$0xff]
  %v276 = vld [vmem:[%s1] sm:$0xff]
  %v277 = vld [vmem:[%s1 + $0x8] sm:$0xff]
  %v278 = vld [vmem:[%s1 + $0x10] sm:$0xff]
  %v279 = vld [vmem:[%s1 + $0x18] sm:$0xff]
  %v280 = vld [vmem:[%s1 + $0x20] sm:$0xff]
  %v281 = vld [vmem:[%s1 + $0x28] sm:$0xff]
  %v282 = vld [vmem:[%s1 + $0x30] sm:$0xff]
  %v283 = vld [vmem:[%s1 + $0x38] sm:$0xff]
  %v284 = vld [vmem:[%s1 + $0x40] sm:$0xff]
  %v285 = vld [vmem:[%s1 + $0x48] sm:$0xff]
  %v286 = vld [vmem:[%s1 + $0x50] sm:$0xff]
  %v287 = vld [vmem:[%s1 + $0x58] sm:$0xff]
  %v288 = vld [vmem:[%s1 + $0x60] sm:$0xff]
  %v289 = vld [vmem:[%s1 + $0x68] sm:$0xff]
  %v290 = vld [vmem:[%s1 + $0x70] sm:$0xff]
  %v291 = vld [vmem:[%s1 + $0x78] sm:$0xff]
  %v292 = vld [vmem:[%s1 + $0x80] sm:$0xff]
  %v293 = vld [vmem:[%s1 + $0x88] sm:$0xff]
  %v294 = vld [vmem:[%s1 + $0x90] sm:$0xff]
  %v295 = vld [vmem:[%s1 + $0x98] sm:$0xff]
  %v296 = vld [vmem:[%s1 + $0xa0] sm:$0xff]
  %v297 = vld [vmem:[%s1 + $0xa8] sm:$0xff]
  %v298 = vld [vmem:[%s1 + $0xb0] sm:$0xff]
  %v299 = vld [vmem:[%s1 + $0xb8] sm:$0xff]
  %v300 = vld [vmem:[%s1 + $0xc0] sm:$0xff]
  %v301 = vld [vmem:[%s1 + $0xc8] sm:$0xff]
  %v302 = vld [vmem:[%s1 + $0xd0] sm:$0xff]
  %v303 = vld [vmem:[%s1 + $0xd8] sm:$0xff]
  %v304 = vld [vmem:[%s1 + $0xe0] sm:$0xff]
  %v305 = vld [vmem:[%s1 + $0xe8] sm:$0xff]
  %v306 = vld [vmem:[%s1 + $0xf0] sm:$0xff]
  %v307 = vld [vmem:[%s1 + $0xf8] sm:$0xff]
  %v308 = vld [vmem:[%s1 + $0x100] sm:$0xff]
  %v309 = vld [vmem:[%s1 + $0x108] sm:$0xff]
  %v310 = vld [vmem:[%s1 + $0x110] sm:$0xff]
  %v311 = vld [vmem:[%s1 + $0x118] sm:$0xff]
  %v312 = vld [vmem:[%s1 + $0x120] sm:$0xff]
  %v313 = vld [vmem:[%s1 + $0x128] sm:$0xff]
  %v314 = vld [vmem:[%s1 + $0x130] sm:$0xff]
  %v315 = vld [vmem:[%s1 + $0x138] sm:$0xff]
  %v316 = vld [vmem:[%s1 + $0x140] sm:$0xff]
  %v317 = vld [vmem:[%s1 + $0x148] sm:$0xff]
  %v318 = vld [vmem:[%s1 + $0x150] sm:$0xff]
  %v319 = vld [vmem:[%s1 + $0x158] sm:$0xff]
  %v320 = vld [vmem:[%s1 + $0x160] sm:$0xff]
  %v321 = vld [vmem:[%s1 + $0x168] sm:$0xff]
  %v322 = vld [vmem:[%s1 + $0x170] sm:$0xff]
  %v323 = vld [vmem:[%s1 + $0x178] sm:$0xff]
  %v324 = vld [vmem:[%s1 + $0x180] sm:$0xff]
  %v325 = vld [vmem:[%s1 + $0x188] sm:$0xff]
  %v326 = vld [vmem:[%s1 + $0x190] sm:$0xff]
  %v327 = vld [vmem:[%s1 + $0x198] sm:$0xff]
  %v328 = vld [vmem:[%s1 + $0x1a0] sm:$0xff]
  %v329 = vld [vmem:[%s1 + $0x1a8] sm:$0xff]
  %v330 = vld [vmem:[%s1 + $0x1b0] sm:$0xff]
  %v331 = vld [vmem:[%s1 + $0x1b8] sm:$0xff]
  %v332 = vld [vmem:[%s1 + $0x1c0] sm:$0xff]
  %v333 = vld [vmem:[%s1 + $0x1c8] sm:$0xff]
  %v334 = vld [vmem:[%s1 + $0x1d0] sm:$0xff]
  %v335 = vld [vmem:[%s1 + $0x1d8] sm:$0xff]
  %v336 = vld [vmem:[%s1 + $0x1e0] sm:$0xff]
  %v337 = vld [vmem:[%s1 + $0x1e8] sm:$0xff]
  %v338 = vld [vmem:[%s1 + $0x1f0] sm:$0xff]
  %v339 = vld [vmem:[%s1 + $0x1f8] sm:$0xff]
  %v340 = vld [vmem:[%s2] sm:$0xff]
  %v341 = vld [vmem:[%s2 + $0x8] sm:$0xff]
  %v342 = vld [vmem:[%s2 + $0x10] sm:$0xff]
  %v343 = vld [vmem:[%s2 + $0x18] sm:$0xff]
  %v344 = vld [vmem:[%s2 + $0x20] sm:$0xff]
  %v345 = vld [vmem:[%s2 + $0x28] sm:$0xff]
  %v346 = vld [vmem:[%s2 + $0x30] sm:$0xff]
  %v347 = vld [vmem:[%s2 + $0x38] sm:$0xff]
  %v348 = vld [vmem:[%s2 + $0x40] sm:$0xff]
  %v349 = vld [vmem:[%s2 + $0x48] sm:$0xff]
  %v350 = vld [vmem:[%s2 + $0x50] sm:$0xff]
  %v351 = vld [vmem:[%s2 + $0x58] sm:$0xff]
  %v352 = vld [vmem:[%s2 + $0x60] sm:$0xff]
  %v353 = vld [vmem:[%s2 + $0x68] sm:$0xff]
  %v354 = vld [vmem:[%s2 + $0x70] sm:$0xff]
  %v355 = vld [vmem:[%s2 + $0x78] sm:$0xff]
  %v356 = vld [vmem:[%s2 + $0x80] sm:$0xff]
  %v357 = vld [vmem:[%s2 + $0x88] sm:$0xff]
  %v358 = vld [vmem:[%s2 + $0x90] sm:$0xff]
  %v359 = vld [vmem:[%s2 + $0x98] sm:$0xff]
  %v360 = vld [vmem:[%s2 + $0xa0] sm:$0xff]
  %v361 = vld [vmem:[%s2 + $0xa8] sm:$0xff]
  %v362 = vld [vmem:[%s2 + $0xb0] sm:$0xff]
  %v363 = vld [vmem:[%s2 + $0xb8] sm:$0xff]
  %v364 = vld [vmem:[%s2 + $0xc0] sm:$0xff]
  %v365 = vld [vmem:[%s2 + $0xc8] sm:$0xff]
  %v366 = vld [vmem:[%s2 + $0xd0] sm:$0xff]
  %v367 = vld [vmem:[%s2 + $0xd8] sm:$0xff]
  %v368 = vld [vmem:[%s2 + $0xe0] sm:$0xff]
  %v369 = vld [vmem:[%s2 + $0xe8] sm:$0xff]
  %v370 = vld [vmem:[%s2 + $0xf0] sm:$0xff]
  %v371 = vld [vmem:[%s2 + $0xf8] sm:$0xff]
  %v372 = vld [vmem:[%s2 + $0x100] sm:$0xff]
  %v373 = vld [vmem:[%s2 + $0x108] sm:$0xff]
  %v374 = vld [vmem:[%s2 + $0x110] sm:$0xff]
  %v375 = vld [vmem:[%s2 + $0x118] sm:$0xff]
  %v376 = vld [vmem:[%s2 + $0x120] sm:$0xff]
  %v377 = vld [vmem:[%s2 + $0x128] sm:$0xff]
  %v378 = vld [vmem:[%s2 + $0x130] sm:$0xff]
  %v379 = vld [vmem:[%s2 + $0x138] sm:$0xff]
  %v380 = vld [vmem:[%s2 + $0x140] sm:$0xff]
  %v381 = vld [vmem:[%s2 + $0x148] sm:$0xff]
  %v382 = vld [vmem:[%s2 + $0x150] sm:$0xff]
  %v383 = vld [vmem:[%s2 + $0x158] sm:$0xff]
  %v384 = vld [vmem:[%s2 + $0x160] sm:$0xff]
  %v385 = vld [vmem:[%s2 + $0x168] sm:$0xff]
  %v386 = vld [vmem:[%s2 + $0x170] sm:$0xff]
  %v387 = vld [vmem:[%s2 + $0x178] sm:$0xff]
  %v388 = vld [vmem:[%s2 + $0x180] sm:$0xff]
  %v389 = vld [vmem:[%s2 + $0x188] sm:$0xff]
  %v390 = vld [vmem:[%s2 + $0x190] sm:$0xff]
  %v391 = vld [vmem:[%s2 + $0x198] sm:$0xff]
  %v392 = vld [vmem:[%s2 + $0x1a0] sm:$0xff]
  %v393 = vld [vmem:[%s2 + $0x1a8] sm:$0xff]
  %v394 = vld [vmem:[%s2 + $0x1b0] sm:$0xff]
  %v395 = vld [vmem:[%s2 + $0x1b8] sm:$0xff]
  %v396 = vld [vmem:[%s2 + $0x1c0] sm:$0xff]
  %v397 = vld [vmem:[%s2 + $0x1c8] sm:$0xff]
  %v398 = vld [vmem:[%s2 + $0x1d0] sm:$0xff]
  %v399 = vld [vmem:[%s2 + $0x1d8] sm:$0xff]
  %v400 = vld [vmem:[%s2 + $0x1e0] sm:$0xff]
  %v401 = vld [vmem:[%s2 + $0x1e8] sm:$0xff]
  %v402 = vld [vmem:[%s2 + $0x1f0] sm:$0xff]
  %v403 = vld [vmem:[%s2 + $0x1f8] sm:$0xff]
  %vm404 = vcmask 64512
  %v406 = vsel %vm404, %v212, 0
  %v409 = vsel %vm404, %v213, 0
  %v412 = vsel %vm404, %v214, 0
  %v415 = vsel %vm404, %v215, 0
  %v418 = vsel %vm404, %v216, 0
  %v421 = vsel %vm404, %v217, 0
  %v424 = vsel %vm404, %v218, 0
  %v427 = vsel %vm404, %v219, 0
  %v430 = vsel %vm404, %v276, 0
  %v433 = vsel %vm404, %v277, 0
  %v436 = vsel %vm404, %v278, 0
  %v439 = vsel %vm404, %v279, 0
  %v442 = vsel %vm404, %v280, 0
  %v445 = vsel %vm404, %v281, 0
  %v448 = vsel %vm404, %v282, 0
  %v451 = vsel %vm404, %v283, 0
  %453 = vmatprep.subr.mxu0 0.0
  %454 = vmatpush1.xpose.msra.mxu0 0.0
  %455 = vmatprep.subr.mxu0 0.0
  %456 = vmatpush1.xpose.msra.mxu0 0.0
  %457 = vmatprep.subr.mxu0 0.0
  %458 = vmatpush1.xpose.msra.mxu0 0.0
  %459 = vmatprep.subr.mxu0 0.0
  %460 = vmatpush1.xpose.msra.mxu0 0.0
  %461 = vmatprep.subr.mxu0 0.0
  %462 = vmatpush1.xpose.msra.mxu0 0.0
  %463 = vmatprep.subr.mxu0 0.0
  %464 = vmatpush1.xpose.msra.mxu0 0.0
  %465 = vmatprep.subr.mxu0 0.0
  %466 = vmatpush1.xpose.msra.mxu0 0.0
  %467 = vmatprep.subr.mxu0 0.0
  %468 = vmatpush1.xpose.msra.mxu0 0.0
  %469 = vmatprep.subr.mxu0 0.0
  %470 = vmatpush1.xpose.msra.mxu0 %v451
  %471 = vmatprep.subr.mxu0 0.0
  %472 = vmatpush1.xpose.msra.mxu0 %v448
  %473 = vmatprep.subr.mxu0 0.0
  %474 = vmatpush1.xpose.msra.mxu0 %v445
  %475 = vmatprep.subr.mxu0 0.0
  %476 = vmatpush1.xpose.msra.mxu0 %v442
  %477 = vmatprep.subr.mxu0 0.0
  %478 = vmatpush1.xpose.msra.mxu0 %v439
  %479 = vmatprep.subr.mxu0 0.0
  %480 = vmatpush1.xpose.msra.mxu0 %v436
  %481 = vmatprep.subr.mxu0 0.0
  %482 = vmatpush1.xpose.msra.mxu0 %v433
  %483 = vmatprep.subr.mxu0 0.0
  %484 = vmatpush1.xpose.msra.mxu0 %v430
  %485 = vmatprep.subr.mxu0 0.0
  %486 = vmatpush2.xpose.msra.mxu0 0.0
  %487 = vmatprep.subr.mxu0 0.0
  %488 = vmatpush2.xpose.msra.mxu0 0.0
  %489 = vmatprep.subr.mxu0 0.0
  %490 = vmatpush2.xpose.msra.mxu0 0.0
  %491 = vmatprep.subr.mxu0 0.0
  %492 = vmatpush2.xpose.msra.mxu0 0.0
  %493 = vmatprep.subr.mxu0 0.0
  %494 = vmatpush2.xpose.msra.mxu0 0.0
  %495 = vmatprep.subr.mxu0 0.0
  %496 = vmatpush2.xpose.msra.mxu0 0.0
  %497 = vmatprep.subr.mxu0 0.0
  %498 = vmatpush2.xpose.msra.mxu0 0.0
  %499 = vmatprep.subr.mxu0 0.0
  %500 = vmatpush2.xpose.msra.mxu0 0.0
  %501 = vmatprep.subr.mxu0 0.0
  %502 = vmatpush2.xpose.msra.mxu0 0.0
  %503 = vmatprep.subr.mxu0 0.0
  %504 = vmatpush2.xpose.msra.mxu0 0.0
  %505 = vmatprep.subr.mxu0 0.0
  %506 = vmatpush2.xpose.msra.mxu0 0.0
  %507 = vmatprep.subr.mxu0 0.0
  %508 = vmatpush2.xpose.msra.mxu0 0.0
  %509 = vmatprep.subr.mxu0 0.0
  %510 = vmatpush2.xpose.msra.mxu0 0.0
  %511 = vmatprep.subr.mxu0 0.0
  %512 = vmatpush2.xpose.msra.mxu0 0.0
  %513 = vmatprep.subr.mxu0 0.0
  %514 = vmatpush2.xpose.msra.mxu0 0.0
  %515 = vmatprep.subr.mxu0 0.0
  %516 = vmatpush2.xpose.msra.mxu0 0.0
  %517 = vmatprep.mubr.f32.mxu0 0.0
  %518 = vmatmul.mubr.f32.gmra.mxu0 %v406
  %v519 = vpop.f32.mrf.mxu0
  %v520 = vadd.f32 0.0, %v519
  %v521 = vpop.f32.mrf.mxu0
  %522 = vmatprep.mubr.f32.mxu0 0.0
  %523 = vmatmul.mubr.f32.gmra.mxu0 %v409
  %v524 = vpop.f32.mrf.mxu0
  %v525 = vadd.f32 0.0, %v524
  %v526 = vpop.f32.mrf.mxu0
  %527 = vmatprep.mubr.f32.mxu0 0.0
  %528 = vmatmul.mubr.f32.gmra.mxu0 %v412
  %v529 = vpop.f32.mrf.mxu0
  %v530 = vadd.f32 0.0, %v529
  %v531 = vpop.f32.mrf.mxu0
  %532 = vmatprep.mubr.f32.mxu0 0.0
  %533 = vmatmul.mubr.f32.gmra.mxu0 %v415
  %v534 = vpop.f32.mrf.mxu0
  %v535 = vadd.f32 0.0, %v534
  %v536 = vpop.f32.mrf.mxu0
  %537 = vmatprep.mubr.f32.mxu0 0.0
  %538 = vmatmul.mubr.f32.gmra.mxu0 %v418
  %v539 = vpop.f32.mrf.mxu0
  %v540 = vadd.f32 0.0, %v539
  %v541 = vpop.f32.mrf.mxu0
  %542 = vmatprep.mubr.f32.mxu0 0.0
  %543 = vmatmul.mubr.f32.gmra.mxu0 %v421
  %v544 = vpop.f32.mrf.mxu0
  %v545 = vadd.f32 0.0, %v544
  %v546 = vpop.f32.mrf.mxu0
  %547 = vmatprep.mubr.f32.mxu0 0.0
  %548 = vmatmul.mubr.f32.gmra.mxu0 %v424
  %v549 = vpop.f32.mrf.mxu0
  %v550 = vadd.f32 0.0, %v549
  %v551 = vpop.f32.mrf.mxu0
  %552 = vmatprep.mubr.f32.mxu0 0.0
  %553 = vmatmul.mubr.f32.gmra.mxu0 %v427
  %v554 = vpop.f32.mrf.mxu0
  %v555 = vadd.f32 0.0, %v554
  %v556 = vpop.f32.mrf.mxu0
  %557 = vdwg.mxu0
  %v559 = vsel %vm404, %v220, 0
  %v562 = vsel %vm404, %v221, 0
  %v565 = vsel %vm404, %v222, 0
  %v568 = vsel %vm404, %v223, 0
  %v571 = vsel %vm404, %v224, 0
  %v574 = vsel %vm404, %v225, 0
  %v577 = vsel %vm404, %v226, 0
  %v580 = vsel %vm404, %v227, 0
  %v583 = vsel %vm404, %v284, 0
  %v586 = vsel %vm404, %v285, 0
  %v589 = vsel %vm404, %v286, 0
  %v592 = vsel %vm404, %v287, 0
  %v595 = vsel %vm404, %v288, 0
  %v598 = vsel %vm404, %v289, 0
  %v601 = vsel %vm404, %v290, 0
  %v604 = vsel %vm404, %v291, 0
  %606 = vmatprep.subr.mxu0 0.0
  %607 = vmatpush1.xpose.msra.mxu0 0.0
  %608 = vmatprep.subr.mxu0 0.0
  %609 = vmatpush1.xpose.msra.mxu0 0.0
  %610 = vmatprep.subr.mxu0 0.0
  %611 = vmatpush1.xpose.msra.mxu0 0.0
  %612 = vmatprep.subr.mxu0 0.0
  %613 = vmatpush1.xpose.msra.mxu0 0.0
  %614 = vmatprep.subr.mxu0 0.0
  %615 = vmatpush1.xpose.msra.mxu0 0.0
  %616 = vmatprep.subr.mxu0 0.0
  %617 = vmatpush1.xpose.msra.mxu0 0.0
  %618 = vmatprep.subr.mxu0 0.0
  %619 = vmatpush1.xpose.msra.mxu0 0.0
  %620 = vmatprep.subr.mxu0 0.0
  %621 = vmatpush1.xpose.msra.mxu0 0.0
  %622 = vmatprep.subr.mxu0 0.0
  %623 = vmatpush1.xpose.msra.mxu0 %v604
  %624 = vmatprep.subr.mxu0 0.0
  %625 = vmatpush1.xpose.msra.mxu0 %v601
  %626 = vmatprep.subr.mxu0 0.0
  %627 = vmatpush1.xpose.msra.mxu0 %v598
  %628 = vmatprep.subr.mxu0 0.0
  %629 = vmatpush1.xpose.msra.mxu0 %v595
  %630 = vmatprep.subr.mxu0 0.0
  %631 = vmatpush1.xpose.msra.mxu0 %v592
  %632 = vmatprep.subr.mxu0 0.0
  %633 = vmatpush1.xpose.msra.mxu0 %v589
  %634 = vmatprep.subr.mxu0 0.0
  %635 = vmatpush1.xpose.msra.mxu0 %v586
  %636 = vmatprep.subr.mxu0 0.0
  %637 = vmatpush1.xpose.msra.mxu0 %v583
  %638 = vmatprep.subr.mxu0 0.0
  %639 = vmatpush2.xpose.msra.mxu0 0.0
  %640 = vmatprep.subr.mxu0 0.0
  %641 = vmatpush2.xpose.msra.mxu0 0.0
  %642 = vmatprep.subr.mxu0 0.0
  %643 = vmatpush2.xpose.msra.mxu0 0.0
  %644 = vmatprep.subr.mxu0 0.0
  %645 = vmatpush2.xpose.msra.mxu0 0.0
  %646 = vmatprep.subr.mxu0 0.0
  %647 = vmatpush2.xpose.msra.mxu0 0.0
  %648 = vmatprep.subr.mxu0 0.0
  %649 = vmatpush2.xpose.msra.mxu0 0.0
  %650 = vmatprep.subr.mxu0 0.0
  %651 = vmatpush2.xpose.msra.mxu0 0.0
  %652 = vmatprep.subr.mxu0 0.0
  %653 = vmatpush2.xpose.msra.mxu0 0.0
  %654 = vmatprep.subr.mxu0 0.0
  %655 = vmatpush2.xpose.msra.mxu0 0.0
  %656 = vmatprep.subr.mxu0 0.0
  %657 = vmatpush2.xpose.msra.mxu0 0.0
  %658 = vmatprep.subr.mxu0 0.0
  %659 = vmatpush2.xpose.msra.mxu0 0.0
  %660 = vmatprep.subr.mxu0 0.0
  %661 = vmatpush2.xpose.msra.mxu0 0.0
  %662 = vmatprep.subr.mxu0 0.0
  %663 = vmatpush2.xpose.msra.mxu0 0.0
  %664 = vmatprep.subr.mxu0 0.0
  %665 = vmatpush2.xpose.msra.mxu0 0.0
  %666 = vmatprep.subr.mxu0 0.0
  %667 = vmatpush2.xpose.msra.mxu0 0.0
  %668 = vmatprep.subr.mxu0 0.0
  %669 = vmatpush2.xpose.msra.mxu0 0.0
  %670 = vmatprep.mubr.f32.mxu0 0.0
  %671 = vmatmul.mubr.f32.gmra.mxu0 %v559
  %v672 = vpop.f32.mrf.mxu0
  %v673 = vadd.f32 0.0, %v672
  %v674 = vpop.f32.mrf.mxu0
  %675 = vmatprep.mubr.f32.mxu0 0.0
  %676 = vmatmul.mubr.f32.gmra.mxu0 %v562
  %v677 = vpop.f32.mrf.mxu0
  %v678 = vadd.f32 0.0, %v677
  %v679 = vpop.f32.mrf.mxu0
  %680 = vmatprep.mubr.f32.mxu0 0.0
  %681 = vmatmul.mubr.f32.gmra.mxu0 %v565
  %v682 = vpop.f32.mrf.mxu0
  %v683 = vadd.f32 0.0, %v682
  %v684 = vpop.f32.mrf.mxu0
  %685 = vmatprep.mubr.f32.mxu0 0.0
  %686 = vmatmul.mubr.f32.gmra.mxu0 %v568
  %v687 = vpop.f32.mrf.mxu0
  %v688 = vadd.f32 0.0, %v687
  %v689 = vpop.f32.mrf.mxu0
  %690 = vmatprep.mubr.f32.mxu0 0.0
  %691 = vmatmul.mubr.f32.gmra.mxu0 %v571
  %v692 = vpop.f32.mrf.mxu0
  %v693 = vadd.f32 0.0, %v692
  %v694 = vpop.f32.mrf.mxu0
  %695 = vmatprep.mubr.f32.mxu0 0.0
  %696 = vmatmul.mubr.f32.gmra.mxu0 %v574
  %v697 = vpop.f32.mrf.mxu0
  %v698 = vadd.f32 0.0, %v697
  %v699 = vpop.f32.mrf.mxu0
  %700 = vmatprep.mubr.f32.mxu0 0.0
  %701 = vmatmul.mubr.f32.gmra.mxu0 %v577
  %v702 = vpop.f32.mrf.mxu0
  %v703 = vadd.f32 0.0, %v702
  %v704 = vpop.f32.mrf.mxu0
  %705 = vmatprep.mubr.f32.mxu0 0.0
  %706 = vmatmul.mubr.f32.gmra.mxu0 %v580
  %v707 = vpop.f32.mrf.mxu0
  %v708 = vadd.f32 0.0, %v707
  %v709 = vpop.f32.mrf.mxu0
  %710 = vdwg.mxu0
  %v712 = vsel %vm404, %v228, 0
  %v715 = vsel %vm404, %v229, 0
  %v718 = vsel %vm404, %v230, 0
  %v721 = vsel %vm404, %v231, 0
  %v724 = vsel %vm404, %v232, 0
  %v727 = vsel %vm404, %v233, 0
  %v730 = vsel %vm404, %v234, 0
  %v733 = vsel %vm404, %v235, 0
  %v736 = vsel %vm404, %v292, 0
  %v739 = vsel %vm404, %v293, 0
  %v742 = vsel %vm404, %v294, 0
  %v745 = vsel %vm404, %v295, 0
  %v748 = vsel %vm404, %v296, 0
  %v751 = vsel %vm404, %v297, 0
  %v754 = vsel %vm404, %v298, 0
  %v757 = vsel %vm404, %v299, 0
  %759 = vmatprep.subr.mxu0 0.0
  %760 = vmatpush1.xpose.msra.mxu0 0.0
  %761 = vmatprep.subr.mxu0 0.0
  %762 = vmatpush1.xpose.msra.mxu0 0.0
  %763 = vmatprep.subr.mxu0 0.0
  %764 = vmatpush1.xpose.msra.mxu0 0.0
  %765 = vmatprep.subr.mxu0 0.0
  %766 = vmatpush1.xpose.msra.mxu0 0.0
  %767 = vmatprep.subr.mxu0 0.0
  %768 = vmatpush1.xpose.msra.mxu0 0.0
  %769 = vmatprep.subr.mxu0 0.0
  %770 = vmatpush1.xpose.msra.mxu0 0.0
  %771 = vmatprep.subr.mxu0 0.0
  %772 = vmatpush1.xpose.msra.mxu0 0.0
  %773 = vmatprep.subr.mxu0 0.0
  %774 = vmatpush1.xpose.msra.mxu0 0.0
  %775 = vmatprep.subr.mxu0 0.0
  %776 = vmatpush1.xpose.msra.mxu0 %v757
  %777 = vmatprep.subr.mxu0 0.0
  %778 = vmatpush1.xpose.msra.mxu0 %v754
  %779 = vmatprep.subr.mxu0 0.0
  %780 = vmatpush1.xpose.msra.mxu0 %v751
  %781 = vmatprep.subr.mxu0 0.0
  %782 = vmatpush1.xpose.msra.mxu0 %v748
  %783 = vmatprep.subr.mxu0 0.0
  %784 = vmatpush1.xpose.msra.mxu0 %v745
  %785 = vmatprep.subr.mxu0 0.0
  %786 = vmatpush1.xpose.msra.mxu0 %v742
  %787 = vmatprep.subr.mxu0 0.0
  %788 = vmatpush1.xpose.msra.mxu0 %v739
  %789 = vmatprep.subr.mxu0 0.0
  %790 = vmatpush1.xpose.msra.mxu0 %v736
  %791 = vmatprep.subr.mxu0 0.0
  %792 = vmatpush2.xpose.msra.mxu0 0.0
  %793 = vmatprep.subr.mxu0 0.0
  %794 = vmatpush2.xpose.msra.mxu0 0.0
  %795 = vmatprep.subr.mxu0 0.0
  %796 = vmatpush2.xpose.msra.mxu0 0.0
  %797 = vmatprep.subr.mxu0 0.0
  %798 = vmatpush2.xpose.msra.mxu0 0.0
  %799 = vmatprep.subr.mxu0 0.0
  %800 = vmatpush2.xpose.msra.mxu0 0.0
  %801 = vmatprep.subr.mxu0 0.0
  %802 = vmatpush2.xpose.msra.mxu0 0.0
  %803 = vmatprep.subr.mxu0 0.0
  %804 = vmatpush2.xpose.msra.mxu0 0.0
  %805 = vmatprep.subr.mxu0 0.0
  %806 = vmatpush2.xpose.msra.mxu0 0.0
  %807 = vmatprep.subr.mxu0 0.0
  %808 = vmatpush2.xpose.msra.mxu0 0.0
  %809 = vmatprep.subr.mxu0 0.0
  %810 = vmatpush2.xpose.msra.mxu0 0.0
  %811 = vmatprep.subr.mxu0 0.0
  %812 = vmatpush2.xpose.msra.mxu0 0.0
  %813 = vmatprep.subr.mxu0 0.0
  %814 = vmatpush2.xpose.msra.mxu0 0.0
  %815 = vmatprep.subr.mxu0 0.0
  %816 = vmatpush2.xpose.msra.mxu0 0.0
  %817 = vmatprep.subr.mxu0 0.0
  %818 = vmatpush2.xpose.msra.mxu0 0.0
  %819 = vmatprep.subr.mxu0 0.0
  %820 = vmatpush2.xpose.msra.mxu0 0.0
  %821 = vmatprep.subr.mxu0 0.0
  %822 = vmatpush2.xpose.msra.mxu0 0.0
  %823 = vmatprep.mubr.f32.mxu0 0.0
  %824 = vmatmul.mubr.f32.gmra.mxu0 %v712
  %v825 = vpop.f32.mrf.mxu0
  %v826 = vadd.f32 0.0, %v825
  %v827 = vpop.f32.mrf.mxu0
  %828 = vmatprep.mubr.f32.mxu0 0.0
  %829 = vmatmul.mubr.f32.gmra.mxu0 %v715
  %v830 = vpop.f32.mrf.mxu0
  %v831 = vadd.f32 0.0, %v830
  %v832 = vpop.f32.mrf.mxu0
  %833 = vmatprep.mubr.f32.mxu0 0.0
  %834 = vmatmul.mubr.f32.gmra.mxu0 %v718
  %v835 = vpop.f32.mrf.mxu0
  %v836 = vadd.f32 0.0, %v835
  %v837 = vpop.f32.mrf.mxu0
  %838 = vmatprep.mubr.f32.mxu0 0.0
  %839 = vmatmul.mubr.f32.gmra.mxu0 %v721
  %v840 = vpop.f32.mrf.mxu0
  %v841 = vadd.f32 0.0, %v840
  %v842 = vpop.f32.mrf.mxu0
  %843 = vmatprep.mubr.f32.mxu0 0.0
  %844 = vmatmul.mubr.f32.gmra.mxu0 %v724
  %v845 = vpop.f32.mrf.mxu0
  %v846 = vadd.f32 0.0, %v845
  %v847 = vpop.f32.mrf.mxu0
  %848 = vmatprep.mubr.f32.mxu0 0.0
  %849 = vmatmul.mubr.f32.gmra.mxu0 %v727
  %v850 = vpop.f32.mrf.mxu0
  %v851 = vadd.f32 0.0, %v850
  %v852 = vpop.f32.mrf.mxu0
  %853 = vmatprep.mubr.f32.mxu0 0.0
  %854 = vmatmul.mubr.f32.gmra.mxu0 %v730
  %v855 = vpop.f32.mrf.mxu0
  %v856 = vadd.f32 0.0, %v855
  %v857 = vpop.f32.mrf.mxu0
  %858 = vmatprep.mubr.f32.mxu0 0.0
  %859 = vmatmul.mubr.f32.gmra.mxu0 %v733
  %v860 = vpop.f32.mrf.mxu0
  %v861 = vadd.f32 0.0, %v860
  %v862 = vpop.f32.mrf.mxu0
  %863 = vdwg.mxu0
  %v865 = vsel %vm404, %v236, 0
  %v868 = vsel %vm404, %v237, 0
  %v871 = vsel %vm404, %v238, 0
  %v874 = vsel %vm404, %v239, 0
  %v877 = vsel %vm404, %v240, 0
  %v880 = vsel %vm404, %v241, 0
  %v883 = vsel %vm404, %v242, 0
  %v886 = vsel %vm404, %v243, 0
  %v889 = vsel %vm404, %v300, 0
  %v892 = vsel %vm404, %v301, 0
  %v895 = vsel %vm404, %v302, 0
  %v898 = vsel %vm404, %v303, 0
  %v901 = vsel %vm404, %v304, 0
  %v904 = vsel %vm404, %v305, 0
  %v907 = vsel %vm404, %v306, 0
  %v910 = vsel %vm404, %v307, 0
  %912 = vmatprep.subr.mxu0 0.0
  %913 = vmatpush1.xpose.msra.mxu0 0.0
  %914 = vmatprep.subr.mxu0 0.0
  %915 = vmatpush1.xpose.msra.mxu0 0.0
  %916 = vmatprep.subr.mxu0 0.0
  %917 = vmatpush1.xpose.msra.mxu0 0.0
  %918 = vmatprep.subr.mxu0 0.0
  %919 = vmatpush1.xpose.msra.mxu0 0.0
  %920 = vmatprep.subr.mxu0 0.0
  %921 = vmatpush1.xpose.msra.mxu0 0.0
  %922 = vmatprep.subr.mxu0 0.0
  %923 = vmatpush1.xpose.msra.mxu0 0.0
  %924 = vmatprep.subr.mxu0 0.0
  %925 = vmatpush1.xpose.msra.mxu0 0.0
  %926 = vmatprep.subr.mxu0 0.0
  %927 = vmatpush1.xpose.msra.mxu0 0.0
  %928 = vmatprep.subr.mxu0 0.0
  %929 = vmatpush1.xpose.msra.mxu0 %v910
  %930 = vmatprep.subr.mxu0 0.0
  %931 = vmatpush1.xpose.msra.mxu0 %v907
  %932 = vmatprep.subr.mxu0 0.0
  %933 = vmatpush1.xpose.msra.mxu0 %v904
  %934 = vmatprep.subr.mxu0 0.0
  %935 = vmatpush1.xpose.msra.mxu0 %v901
  %936 = vmatprep.subr.mxu0 0.0
  %937 = vmatpush1.xpose.msra.mxu0 %v898
  %938 = vmatprep.subr.mxu0 0.0
  %939 = vmatpush1.xpose.msra.mxu0 %v895
  %940 = vmatprep.subr.mxu0 0.0
  %941 = vmatpush1.xpose.msra.mxu0 %v892
  %942 = vmatprep.subr.mxu0 0.0
  %943 = vmatpush1.xpose.msra.mxu0 %v889
  %944 = vmatprep.subr.mxu0 0.0
  %945 = vmatpush2.xpose.msra.mxu0 0.0
  %946 = vmatprep.subr.mxu0 0.0
  %947 = vmatpush2.xpose.msra.mxu0 0.0
  %948 = vmatprep.subr.mxu0 0.0
  %949 = vmatpush2.xpose.msra.mxu0 0.0
  %950 = vmatprep.subr.mxu0 0.0
  %951 = vmatpush2.xpose.msra.mxu0 0.0
  %952 = vmatprep.subr.mxu0 0.0
  %953 = vmatpush2.xpose.msra.mxu0 0.0
  %954 = vmatprep.subr.mxu0 0.0
  %955 = vmatpush2.xpose.msra.mxu0 0.0
  %956 = vmatprep.subr.mxu0 0.0
  %957 = vmatpush2.xpose.msra.mxu0 0.0
  %958 = vmatprep.subr.mxu0 0.0
  %959 = vmatpush2.xpose.msra.mxu0 0.0
  %960 = vmatprep.subr.mxu0 0.0
  %961 = vmatpush2.xpose.msra.mxu0 0.0
  %962 = vmatprep.subr.mxu0 0.0
  %963 = vmatpush2.xpose.msra.mxu0 0.0
  %964 = vmatprep.subr.mxu0 0.0
  %965 = vmatpush2.xpose.msra.mxu0 0.0
  %966 = vmatprep.subr.mxu0 0.0
  %967 = vmatpush2.xpose.msra.mxu0 0.0
  %968 = vmatprep.subr.mxu0 0.0
  %969 = vmatpush2.xpose.msra.mxu0 0.0
  %970 = vmatprep.subr.mxu0 0.0
  %971 = vmatpush2.xpose.msra.mxu0 0.0
  %972 = vmatprep.subr.mxu0 0.0
  %973 = vmatpush2.xpose.msra.mxu0 0.0
  %974 = vmatprep.subr.mxu0 0.0
  %975 = vmatpush2.xpose.msra.mxu0 0.0
  %976 = vmatprep.mubr.f32.mxu0 0.0
  %977 = vmatmul.mubr.f32.gmra.mxu0 %v865
  %v978 = vpop.f32.mrf.mxu0
  %v979 = vadd.f32 0.0, %v978
  %v980 = vpop.f32.mrf.mxu0
  %981 = vmatprep.mubr.f32.mxu0 0.0
  %982 = vmatmul.mubr.f32.gmra.mxu0 %v868
  %v983 = vpop.f32.mrf.mxu0
  %v984 = vadd.f32 0.0, %v983
  %v985 = vpop.f32.mrf.mxu0
  %986 = vmatprep.mubr.f32.mxu0 0.0
  %987 = vmatmul.mubr.f32.gmra.mxu0 %v871
  %v988 = vpop.f32.mrf.mxu0
  %v989 = vadd.f32 0.0, %v988
  %v990 = vpop.f32.mrf.mxu0
  %991 = vmatprep.mubr.f32.mxu0 0.0
  %992 = vmatmul.mubr.f32.gmra.mxu0 %v874
  %v993 = vpop.f32.mrf.mxu0
  %v994 = vadd.f32 0.0, %v993
  %v995 = vpop.f32.mrf.mxu0
  %996 = vmatprep.mubr.f32.mxu0 0.0
  %997 = vmatmul.mubr.f32.gmra.mxu0 %v877
  %v998 = vpop.f32.mrf.mxu0
  %v999 = vadd.f32 0.0, %v998
  %v1000 = vpop.f32.mrf.mxu0
  %1001 = vmatprep.mubr.f32.mxu0 0.0
  %1002 = vmatmul.mubr.f32.gmra.mxu0 %v880
  %v1003 = vpop.f32.mrf.mxu0
  %v1004 = vadd.f32 0.0, %v1003
  %v1005 = vpop.f32.mrf.mxu0
  %1006 = vmatprep.mubr.f32.mxu0 0.0
  %1007 = vmatmul.mubr.f32.gmra.mxu0 %v883
  %v1008 = vpop.f32.mrf.mxu0
  %v1009 = vadd.f32 0.0, %v1008
  %v1010 = vpop.f32.mrf.mxu0
  %1011 = vmatprep.mubr.f32.mxu0 0.0
  %1012 = vmatmul.mubr.f32.gmra.mxu0 %v886
  %v1013 = vpop.f32.mrf.mxu0
  %v1014 = vadd.f32 0.0, %v1013
  %v1015 = vpop.f32.mrf.mxu0
  %1016 = vdwg.mxu0
  %v1018 = vsel %vm404, %v244, 0
  %v1021 = vsel %vm404, %v245, 0
  %v1024 = vsel %vm404, %v246, 0
  %v1027 = vsel %vm404, %v247, 0
  %v1030 = vsel %vm404, %v248, 0
  %v1033 = vsel %vm404, %v249, 0
  %v1036 = vsel %vm404, %v250, 0
  %v1039 = vsel %vm404, %v251, 0
  %v1042 = vsel %vm404, %v308, 0
  %v1045 = vsel %vm404, %v309, 0
  %v1048 = vsel %vm404, %v310, 0
  %v1051 = vsel %vm404, %v311, 0
  %v1054 = vsel %vm404, %v312, 0
  %v1057 = vsel %vm404, %v313, 0
  %v1060 = vsel %vm404, %v314, 0
  %v1063 = vsel %vm404, %v315, 0
  %1065 = vmatprep.subr.mxu0 0.0
  %1066 = vmatpush1.xpose.msra.mxu0 0.0
  %1067 = vmatprep.subr.mxu0 0.0
  %1068 = vmatpush1.xpose.msra.mxu0 0.0
  %1069 = vmatprep.subr.mxu0 0.0
  %1070 = vmatpush1.xpose.msra.mxu0 0.0
  %1071 = vmatprep.subr.mxu0 0.0
  %1072 = vmatpush1.xpose.msra.mxu0 0.0
  %1073 = vmatprep.subr.mxu0 0.0
  %1074 = vmatpush1.xpose.msra.mxu0 0.0
  %1075 = vmatprep.subr.mxu0 0.0
  %1076 = vmatpush1.xpose.msra.mxu0 0.0
  %1077 = vmatprep.subr.mxu0 0.0
  %1078 = vmatpush1.xpose.msra.mxu0 0.0
  %1079 = vmatprep.subr.mxu0 0.0
  %1080 = vmatpush1.xpose.msra.mxu0 0.0
  %1081 = vmatprep.subr.mxu0 0.0
  %1082 = vmatpush1.xpose.msra.mxu0 %v1063
  %1083 = vmatprep.subr.mxu0 0.0
  %1084 = vmatpush1.xpose.msra.mxu0 %v1060
  %1085 = vmatprep.subr.mxu0 0.0
  %1086 = vmatpush1.xpose.msra.mxu0 %v1057
  %1087 = vmatprep.subr.mxu0 0.0
  %1088 = vmatpush1.xpose.msra.mxu0 %v1054
  %1089 = vmatprep.subr.mxu0 0.0
  %1090 = vmatpush1.xpose.msra.mxu0 %v1051
  %1091 = vmatprep.subr.mxu0 0.0
  %1092 = vmatpush1.xpose.msra.mxu0 %v1048
  %1093 = vmatprep.subr.mxu0 0.0
  %1094 = vmatpush1.xpose.msra.mxu0 %v1045
  %1095 = vmatprep.subr.mxu0 0.0
  %1096 = vmatpush1.xpose.msra.mxu0 %v1042
  %1097 = vmatprep.subr.mxu0 0.0
  %1098 = vmatpush2.xpose.msra.mxu0 0.0
  %1099 = vmatprep.subr.mxu0 0.0
  %1100 = vmatpush2.xpose.msra.mxu0 0.0
  %1101 = vmatprep.subr.mxu0 0.0
  %1102 = vmatpush2.xpose.msra.mxu0 0.0
  %1103 = vmatprep.subr.mxu0 0.0
  %1104 = vmatpush2.xpose.msra.mxu0 0.0
  %1105 = vmatprep.subr.mxu0 0.0
  %1106 = vmatpush2.xpose.msra.mxu0 0.0
  %1107 = vmatprep.subr.mxu0 0.0
  %1108 = vmatpush2.xpose.msra.mxu0 0.0
  %1109 = vmatprep.subr.mxu0 0.0
  %1110 = vmatpush2.xpose.msra.mxu0 0.0
  %1111 = vmatprep.subr.mxu0 0.0
  %1112 = vmatpush2.xpose.msra.mxu0 0.0
  %1113 = vmatprep.subr.mxu0 0.0
  %1114 = vmatpush2.xpose.msra.mxu0 0.0
  %1115 = vmatprep.subr.mxu0 0.0
  %1116 = vmatpush2.xpose.msra.mxu0 0.0
  %1117 = vmatprep.subr.mxu0 0.0
  %1118 = vmatpush2.xpose.msra.mxu0 0.0
  %1119 = vmatprep.subr.mxu0 0.0
  %1120 = vmatpush2.xpose.msra.mxu0 0.0
  %1121 = vmatprep.subr.mxu0 0.0
  %1122 = vmatpush2.xpose.msra.mxu0 0.0
  %1123 = vmatprep.subr.mxu0 0.0
  %1124 = vmatpush2.xpose.msra.mxu0 0.0
  %1125 = vmatprep.subr.mxu0 0.0
  %1126 = vmatpush2.xpose.msra.mxu0 0.0
  %1127 = vmatprep.subr.mxu0 0.0
  %1128 = vmatpush2.xpose.msra.mxu0 0.0
  %1129 = vmatprep.mubr.f32.mxu0 0.0
  %1130 = vmatmul.mubr.f32.gmra.mxu0 %v1018
  %v1131 = vpop.f32.mrf.mxu0
  %v1132 = vadd.f32 0.0, %v1131
  %v1133 = vpop.f32.mrf.mxu0
  %1134 = vmatprep.mubr.f32.mxu0 0.0
  %1135 = vmatmul.mubr.f32.gmra.mxu0 %v1021
  %v1136 = vpop.f32.mrf.mxu0
  %v1137 = vadd.f32 0.0, %v1136
  %v1138 = vpop.f32.mrf.mxu0
  %1139 = vmatprep.mubr.f32.mxu0 0.0
  %1140 = vmatmul.mubr.f32.gmra.mxu0 %v1024
  %v1141 = vpop.f32.mrf.mxu0
  %v1142 = vadd.f32 0.0, %v1141
  %v1143 = vpop.f32.mrf.mxu0
  %1144 = vmatprep.mubr.f32.mxu0 0.0
  %1145 = vmatmul.mubr.f32.gmra.mxu0 %v1027
  %v1146 = vpop.f32.mrf.mxu0
  %v1147 = vadd.f32 0.0, %v1146
  %v1148 = vpop.f32.mrf.mxu0
  %1149 = vmatprep.mubr.f32.mxu0 0.0
  %1150 = vmatmul.mubr.f32.gmra.mxu0 %v1030
  %v1151 = vpop.f32.mrf.mxu0
  %v1152 = vadd.f32 0.0, %v1151
  %v1153 = vpop.f32.mrf.mxu0
  %1154 = vmatprep.mubr.f32.mxu0 0.0
  %1155 = vmatmul.mubr.f32.gmra.mxu0 %v1033
  %v1156 = vpop.f32.mrf.mxu0
  %v1157 = vadd.f32 0.0, %v1156
  %v1158 = vpop.f32.mrf.mxu0
  %1159 = vmatprep.mubr.f32.mxu0 0.0
  %1160 = vmatmul.mubr.f32.gmra.mxu0 %v1036
  %v1161 = vpop.f32.mrf.mxu0
  %v1162 = vadd.f32 0.0, %v1161
  %v1163 = vpop.f32.mrf.mxu0
  %1164 = vmatprep.mubr.f32.mxu0 0.0
  %1165 = vmatmul.mubr.f32.gmra.mxu0 %v1039
  %v1166 = vpop.f32.mrf.mxu0
  %v1167 = vadd.f32 0.0, %v1166
  %v1168 = vpop.f32.mrf.mxu0
  %1169 = vdwg.mxu0
  %v1171 = vsel %vm404, %v252, 0
  %v1174 = vsel %vm404, %v253, 0
  %v1177 = vsel %vm404, %v254, 0
  %v1180 = vsel %vm404, %v255, 0
  %v1183 = vsel %vm404, %v256, 0
  %v1186 = vsel %vm404, %v257, 0
  %v1189 = vsel %vm404, %v258, 0
  %v1192 = vsel %vm404, %v259, 0
  %v1195 = vsel %vm404, %v316, 0
  %v1198 = vsel %vm404, %v317, 0
  %v1201 = vsel %vm404, %v318, 0
  %v1204 = vsel %vm404, %v319, 0
  %v1207 = vsel %vm404, %v320, 0
  %v1210 = vsel %vm404, %v321, 0
  %v1213 = vsel %vm404, %v322, 0
  %v1216 = vsel %vm404, %v323, 0
  %1218 = vmatprep.subr.mxu0 0.0
  %1219 = vmatpush1.xpose.msra.mxu0 0.0
  %1220 = vmatprep.subr.mxu0 0.0
  %1221 = vmatpush1.xpose.msra.mxu0 0.0
  %1222 = vmatprep.subr.mxu0 0.0
  %1223 = vmatpush1.xpose.msra.mxu0 0.0
  %1224 = vmatprep.subr.mxu0 0.0
  %1225 = vmatpush1.xpose.msra.mxu0 0.0
  %1226 = vmatprep.subr.mxu0 0.0
  %1227 = vmatpush1.xpose.msra.mxu0 0.0
  %1228 = vmatprep.subr.mxu0 0.0
  %1229 = vmatpush1.xpose.msra.mxu0 0.0
  %1230 = vmatprep.subr.mxu0 0.0
  %1231 = vmatpush1.xpose.msra.mxu0 0.0
  %1232 = vmatprep.subr.mxu0 0.0
  %1233 = vmatpush1.xpose.msra.mxu0 0.0
  %1234 = vmatprep.subr.mxu0 0.0
  %1235 = vmatpush1.xpose.msra.mxu0 %v1216
  %1236 = vmatprep.subr.mxu0 0.0
  %1237 = vmatpush1.xpose.msra.mxu0 %v1213
  %1238 = vmatprep.subr.mxu0 0.0
  %1239 = vmatpush1.xpose.msra.mxu0 %v1210
  %1240 = vmatprep.subr.mxu0 0.0
  %1241 = vmatpush1.xpose.msra.mxu0 %v1207
  %1242 = vmatprep.subr.mxu0 0.0
  %1243 = vmatpush1.xpose.msra.mxu0 %v1204
  %1244 = vmatprep.subr.mxu0 0.0
  %1245 = vmatpush1.xpose.msra.mxu0 %v1201
  %1246 = vmatprep.subr.mxu0 0.0
  %1247 = vmatpush1.xpose.msra.mxu0 %v1198
  %1248 = vmatprep.subr.mxu0 0.0
  %1249 = vmatpush1.xpose.msra.mxu0 %v1195
  %1250 = vmatprep.subr.mxu0 0.0
  %1251 = vmatpush2.xpose.msra.mxu0 0.0
  %1252 = vmatprep.subr.mxu0 0.0
  %1253 = vmatpush2.xpose.msra.mxu0 0.0
  %1254 = vmatprep.subr.mxu0 0.0
  %1255 = vmatpush2.xpose.msra.mxu0 0.0
  %1256 = vmatprep.subr.mxu0 0.0
  %1257 = vmatpush2.xpose.msra.mxu0 0.0
  %1258 = vmatprep.subr.mxu0 0.0
  %1259 = vmatpush2.xpose.msra.mxu0 0.0
  %1260 = vmatprep.subr.mxu0 0.0
  %1261 = vmatpush2.xpose.msra.mxu0 0.0
  %1262 = vmatprep.subr.mxu0 0.0
  %1263 = vmatpush2.xpose.msra.mxu0 0.0
  %1264 = vmatprep.subr.mxu0 0.0
  %1265 = vmatpush2.xpose.msra.mxu0 0.0
  %1266 = vmatprep.subr.mxu0 0.0
  %1267 = vmatpush2.xpose.msra.mxu0 0.0
  %1268 = vmatprep.subr.mxu0 0.0
  %1269 = vmatpush2.xpose.msra.mxu0 0.0
  %1270 = vmatprep.subr.mxu0 0.0
  %1271 = vmatpush2.xpose.msra.mxu0 0.0
  %1272 = vmatprep.subr.mxu0 0.0
  %1273 = vmatpush2.xpose.msra.mxu0 0.0
  %1274 = vmatprep.subr.mxu0 0.0
  %1275 = vmatpush2.xpose.msra.mxu0 0.0
  %1276 = vmatprep.subr.mxu0 0.0
  %1277 = vmatpush2.xpose.msra.mxu0 0.0
  %1278 = vmatprep.subr.mxu0 0.0
  %1279 = vmatpush2.xpose.msra.mxu0 0.0
  %1280 = vmatprep.subr.mxu0 0.0
  %1281 = vmatpush2.xpose.msra.mxu0 0.0
  %1282 = vmatprep.mubr.f32.mxu0 0.0
  %1283 = vmatmul.mubr.f32.gmra.mxu0 %v1171
  %v1284 = vpop.f32.mrf.mxu0
  %v1285 = vadd.f32 0.0, %v1284
  %v1286 = vpop.f32.mrf.mxu0
  %1287 = vmatprep.mubr.f32.mxu0 0.0
  %1288 = vmatmul.mubr.f32.gmra.mxu0 %v1174
  %v1289 = vpop.f32.mrf.mxu0
  %v1290 = vadd.f32 0.0, %v1289
  %v1291 = vpop.f32.mrf.mxu0
  %1292 = vmatprep.mubr.f32.mxu0 0.0
  %1293 = vmatmul.mubr.f32.gmra.mxu0 %v1177
  %v1294 = vpop.f32.mrf.mxu0
  %v1295 = vadd.f32 0.0, %v1294
  %v1296 = vpop.f32.mrf.mxu0
  %1297 = vmatprep.mubr.f32.mxu0 0.0
  %1298 = vmatmul.mubr.f32.gmra.mxu0 %v1180
  %v1299 = vpop.f32.mrf.mxu0
  %v1300 = vadd.f32 0.0, %v1299
  %v1301 = vpop.f32.mrf.mxu0
  %1302 = vmatprep.mubr.f32.mxu0 0.0
  %1303 = vmatmul.mubr.f32.gmra.mxu0 %v1183
  %v1304 = vpop.f32.mrf.mxu0
  %v1305 = vadd.f32 0.0, %v1304
  %v1306 = vpop.f32.mrf.mxu0
  %1307 = vmatprep.mubr.f32.mxu0 0.0
  %1308 = vmatmul.mubr.f32.gmra.mxu0 %v1186
  %v1309 = vpop.f32.mrf.mxu0
  %v1310 = vadd.f32 0.0, %v1309
  %v1311 = vpop.f32.mrf.mxu0
  %1312 = vmatprep.mubr.f32.mxu0 0.0
  %1313 = vmatmul.mubr.f32.gmra.mxu0 %v1189
  %v1314 = vpop.f32.mrf.mxu0
  %v1315 = vadd.f32 0.0, %v1314
  %v1316 = vpop.f32.mrf.mxu0
  %1317 = vmatprep.mubr.f32.mxu0 0.0
  %1318 = vmatmul.mubr.f32.gmra.mxu0 %v1192
  %v1319 = vpop.f32.mrf.mxu0
  %v1320 = vadd.f32 0.0, %v1319
  %v1321 = vpop.f32.mrf.mxu0
  %1322 = vdwg.mxu0
  %v1324 = vsel %vm404, %v260, 0
  %v1327 = vsel %vm404, %v261, 0
  %v1330 = vsel %vm404, %v262, 0
  %v1333 = vsel %vm404, %v263, 0
  %v1336 = vsel %vm404, %v264, 0
  %v1339 = vsel %vm404, %v265, 0
  %v1342 = vsel %vm404, %v266, 0
  %v1345 = vsel %vm404, %v267, 0
  %v1348 = vsel %vm404, %v324, 0
  %v1351 = vsel %vm404, %v325, 0
  %v1354 = vsel %vm404, %v326, 0
  %v1357 = vsel %vm404, %v327, 0
  %v1360 = vsel %vm404, %v328, 0
  %v1363 = vsel %vm404, %v329, 0
  %v1366 = vsel %vm404, %v330, 0
  %v1369 = vsel %vm404, %v331, 0
  %1371 = vmatprep.subr.mxu0 0.0
  %1372 = vmatpush1.xpose.msra.mxu0 0.0
  %1373 = vmatprep.subr.mxu0 0.0
  %1374 = vmatpush1.xpose.msra.mxu0 0.0
  %1375 = vmatprep.subr.mxu0 0.0
  %1376 = vmatpush1.xpose.msra.mxu0 0.0
  %1377 = vmatprep.subr.mxu0 0.0
  %1378 = vmatpush1.xpose.msra.mxu0 0.0
  %1379 = vmatprep.subr.mxu0 0.0
  %1380 = vmatpush1.xpose.msra.mxu0 0.0
  %1381 = vmatprep.subr.mxu0 0.0
  %1382 = vmatpush1.xpose.msra.mxu0 0.0
  %1383 = vmatprep.subr.mxu0 0.0
  %1384 = vmatpush1.xpose.msra.mxu0 0.0
  %1385 = vmatprep.subr.mxu0 0.0
  %1386 = vmatpush1.xpose.msra.mxu0 0.0
  %1387 = vmatprep.subr.mxu0 0.0
  %1388 = vmatpush1.xpose.msra.mxu0 %v1369
  %1389 = vmatprep.subr.mxu0 0.0
  %1390 = vmatpush1.xpose.msra.mxu0 %v1366
  %1391 = vmatprep.subr.mxu0 0.0
  %1392 = vmatpush1.xpose.msra.mxu0 %v1363
  %1393 = vmatprep.subr.mxu0 0.0
  %1394 = vmatpush1.xpose.msra.mxu0 %v1360
  %1395 = vmatprep.subr.mxu0 0.0
  %1396 = vmatpush1.xpose.msra.mxu0 %v1357
  %1397 = vmatprep.subr.mxu0 0.0
  %1398 = vmatpush1.xpose.msra.mxu0 %v1354
  %1399 = vmatprep.subr.mxu0 0.0
  %1400 = vmatpush1.xpose.msra.mxu0 %v1351
  %1401 = vmatprep.subr.mxu0 0.0
  %1402 = vmatpush1.xpose.msra.mxu0 %v1348
  %1403 = vmatprep.subr.mxu0 0.0
  %1404 = vmatpush2.xpose.msra.mxu0 0.0
  %1405 = vmatprep.subr.mxu0 0.0
  %1406 = vmatpush2.xpose.msra.mxu0 0.0
  %1407 = vmatprep.subr.mxu0 0.0
  %1408 = vmatpush2.xpose.msra.mxu0 0.0
  %1409 = vmatprep.subr.mxu0 0.0
  %1410 = vmatpush2.xpose.msra.mxu0 0.0
  %1411 = vmatprep.subr.mxu0 0.0
  %1412 = vmatpush2.xpose.msra.mxu0 0.0
  %1413 = vmatprep.subr.mxu0 0.0
  %1414 = vmatpush2.xpose.msra.mxu0 0.0
  %1415 = vmatprep.subr.mxu0 0.0
  %1416 = vmatpush2.xpose.msra.mxu0 0.0
  %1417 = vmatprep.subr.mxu0 0.0
  %1418 = vmatpush2.xpose.msra.mxu0 0.0
  %1419 = vmatprep.subr.mxu0 0.0
  %1420 = vmatpush2.xpose.msra.mxu0 0.0
  %1421 = vmatprep.subr.mxu0 0.0
  %1422 = vmatpush2.xpose.msra.mxu0 0.0
  %1423 = vmatprep.subr.mxu0 0.0
  %1424 = vmatpush2.xpose.msra.mxu0 0.0
  %1425 = vmatprep.subr.mxu0 0.0
  %1426 = vmatpush2.xpose.msra.mxu0 0.0
  %1427 = vmatprep.subr.mxu0 0.0
  %1428 = vmatpush2.xpose.msra.mxu0 0.0
  %1429 = vmatprep.subr.mxu0 0.0
  %1430 = vmatpush2.xpose.msra.mxu0 0.0
  %1431 = vmatprep.subr.mxu0 0.0
  %1432 = vmatpush2.xpose.msra.mxu0 0.0
  %1433 = vmatprep.subr.mxu0 0.0
  %1434 = vmatpush2.xpose.msra.mxu0 0.0
  %1435 = vmatprep.mubr.f32.mxu0 0.0
  %1436 = vmatmul.mubr.f32.gmra.mxu0 %v1324
  %v1437 = vpop.f32.mrf.mxu0
  %v1438 = vadd.f32 0.0, %v1437
  %v1439 = vpop.f32.mrf.mxu0
  %1440 = vmatprep.mubr.f32.mxu0 0.0
  %1441 = vmatmul.mubr.f32.gmra.mxu0 %v1327
  %v1442 = vpop.f32.mrf.mxu0
  %v1443 = vadd.f32 0.0, %v1442
  %v1444 = vpop.f32.mrf.mxu0
  %1445 = vmatprep.mubr.f32.mxu0 0.0
  %1446 = vmatmul.mubr.f32.gmra.mxu0 %v1330
  %v1447 = vpop.f32.mrf.mxu0
  %v1448 = vadd.f32 0.0, %v1447
  %v1449 = vpop.f32.mrf.mxu0
  %1450 = vmatprep.mubr.f32.mxu0 0.0
  %1451 = vmatmul.mubr.f32.gmra.mxu0 %v1333
  %v1452 = vpop.f32.mrf.mxu0
  %v1453 = vadd.f32 0.0, %v1452
  %v1454 = vpop.f32.mrf.mxu0
  %1455 = vmatprep.mubr.f32.mxu0 0.0
  %1456 = vmatmul.mubr.f32.gmra.mxu0 %v1336
  %v1457 = vpop.f32.mrf.mxu0
  %v1458 = vadd.f32 0.0, %v1457
  %v1459 = vpop.f32.mrf.mxu0
  %1460 = vmatprep.mubr.f32.mxu0 0.0
  %1461 = vmatmul.mubr.f32.gmra.mxu0 %v1339
  %v1462 = vpop.f32.mrf.mxu0
  %v1463 = vadd.f32 0.0, %v1462
  %v1464 = vpop.f32.mrf.mxu0
  %1465 = vmatprep.mubr.f32.mxu0 0.0
  %1466 = vmatmul.mubr.f32.gmra.mxu0 %v1342
  %v1467 = vpop.f32.mrf.mxu0
  %v1468 = vadd.f32 0.0, %v1467
  %v1469 = vpop.f32.mrf.mxu0
  %1470 = vmatprep.mubr.f32.mxu0 0.0
  %1471 = vmatmul.mubr.f32.gmra.mxu0 %v1345
  %v1472 = vpop.f32.mrf.mxu0
  %v1473 = vadd.f32 0.0, %v1472
  %v1474 = vpop.f32.mrf.mxu0
  %1475 = vdwg.mxu0
  %v1477 = vsel %vm404, %v268, 0
  %v1480 = vsel %vm404, %v269, 0
  %v1483 = vsel %vm404, %v270, 0
  %v1486 = vsel %vm404, %v271, 0
  %v1489 = vsel %vm404, %v272, 0
  %v1492 = vsel %vm404, %v273, 0
  %v1495 = vsel %vm404, %v274, 0
  %v1498 = vsel %vm404, %v275, 0
  %v1501 = vsel %vm404, %v332, 0
  %v1504 = vsel %vm404, %v333, 0
  %v1507 = vsel %vm404, %v334, 0
  %v1510 = vsel %vm404, %v335, 0
  %v1513 = vsel %vm404, %v336, 0
  %v1516 = vsel %vm404, %v337, 0
  %v1519 = vsel %vm404, %v338, 0
  %v1522 = vsel %vm404, %v339, 0
  %1524 = vmatprep.subr.mxu0 0.0
  %1525 = vmatpush1.xpose.msra.mxu0 0.0
  %1526 = vmatprep.subr.mxu0 0.0
  %1527 = vmatpush1.xpose.msra.mxu0 0.0
  %1528 = vmatprep.subr.mxu0 0.0
  %1529 = vmatpush1.xpose.msra.mxu0 0.0
  %1530 = vmatprep.subr.mxu0 0.0
  %1531 = vmatpush1.xpose.msra.mxu0 0.0
  %1532 = vmatprep.subr.mxu0 0.0
  %1533 = vmatpush1.xpose.msra.mxu0 0.0
  %1534 = vmatprep.subr.mxu0 0.0
  %1535 = vmatpush1.xpose.msra.mxu0 0.0
  %1536 = vmatprep.subr.mxu0 0.0
  %1537 = vmatpush1.xpose.msra.mxu0 0.0
  %1538 = vmatprep.subr.mxu0 0.0
  %1539 = vmatpush1.xpose.msra.mxu0 0.0
  %1540 = vmatprep.subr.mxu0 0.0
  %1541 = vmatpush1.xpose.msra.mxu0 %v1522
  %1542 = vmatprep.subr.mxu0 0.0
  %1543 = vmatpush1.xpose.msra.mxu0 %v1519
  %1544 = vmatprep.subr.mxu0 0.0
  %1545 = vmatpush1.xpose.msra.mxu0 %v1516
  %1546 = vmatprep.subr.mxu0 0.0
  %1547 = vmatpush1.xpose.msra.mxu0 %v1513
  %1548 = vmatprep.subr.mxu0 0.0
  %1549 = vmatpush1.xpose.msra.mxu0 %v1510
  %1550 = vmatprep.subr.mxu0 0.0
  %1551 = vmatpush1.xpose.msra.mxu0 %v1507
  %1552 = vmatprep.subr.mxu0 0.0
  %1553 = vmatpush1.xpose.msra.mxu0 %v1504
  %1554 = vmatprep.subr.mxu0 0.0
  %1555 = vmatpush1.xpose.msra.mxu0 %v1501
  %1556 = vmatprep.subr.mxu0 0.0
  %1557 = vmatpush2.xpose.msra.mxu0 0.0
  %1558 = vmatprep.subr.mxu0 0.0
  %1559 = vmatpush2.xpose.msra.mxu0 0.0
  %1560 = vmatprep.subr.mxu0 0.0
  %1561 = vmatpush2.xpose.msra.mxu0 0.0
  %1562 = vmatprep.subr.mxu0 0.0
  %1563 = vmatpush2.xpose.msra.mxu0 0.0
  %1564 = vmatprep.subr.mxu0 0.0
  %1565 = vmatpush2.xpose.msra.mxu0 0.0
  %1566 = vmatprep.subr.mxu0 0.0
  %1567 = vmatpush2.xpose.msra.mxu0 0.0
  %1568 = vmatprep.subr.mxu0 0.0
  %1569 = vmatpush2.xpose.msra.mxu0 0.0
  %1570 = vmatprep.subr.mxu0 0.0
  %1571 = vmatpush2.xpose.msra.mxu0 0.0
  %1572 = vmatprep.subr.mxu0 0.0
  %1573 = vmatpush2.xpose.msra.mxu0 0.0
  %1574 = vmatprep.subr.mxu0 0.0
  %1575 = vmatpush2.xpose.msra.mxu0 0.0
  %1576 = vmatprep.subr.mxu0 0.0
  %1577 = vmatpush2.xpose.msra.mxu0 0.0
  %1578 = vmatprep.subr.mxu0 0.0
  %1579 = vmatpush2.xpose.msra.mxu0 0.0
  %1580 = vmatprep.subr.mxu0 0.0
  %1581 = vmatpush2.xpose.msra.mxu0 0.0
  %1582 = vmatprep.subr.mxu0 0.0
  %1583 = vmatpush2.xpose.msra.mxu0 0.0
  %1584 = vmatprep.subr.mxu0 0.0
  %1585 = vmatpush2.xpose.msra.mxu0 0.0
  %1586 = vmatprep.subr.mxu0 0.0
  %1587 = vmatpush2.xpose.msra.mxu0 0.0
  %1588 = vmatprep.mubr.f32.mxu0 0.0
  %1589 = vmatmul.mubr.f32.gmra.mxu0 %v1477
  %v1590 = vpop.f32.mrf.mxu0
  %v1591 = vadd.f32 0.0, %v1590
  %v1592 = vpop.f32.mrf.mxu0
  %1593 = vmatprep.mubr.f32.mxu0 0.0
  %1594 = vmatmul.mubr.f32.gmra.mxu0 %v1480
  %v1595 = vpop.f32.mrf.mxu0
  %v1596 = vadd.f32 0.0, %v1595
  %v1597 = vpop.f32.mrf.mxu0
  %1598 = vmatprep.mubr.f32.mxu0 0.0
  %1599 = vmatmul.mubr.f32.gmra.mxu0 %v1483
  %v1600 = vpop.f32.mrf.mxu0
  %v1601 = vadd.f32 0.0, %v1600
  %v1602 = vpop.f32.mrf.mxu0
  %1603 = vmatprep.mubr.f32.mxu0 0.0
  %1604 = vmatmul.mubr.f32.gmra.mxu0 %v1486
  %v1605 = vpop.f32.mrf.mxu0
  %v1606 = vadd.f32 0.0, %v1605
  %v1607 = vpop.f32.mrf.mxu0
  %1608 = vmatprep.mubr.f32.mxu0 0.0
  %1609 = vmatmul.mubr.f32.gmra.mxu0 %v1489
  %v1610 = vpop.f32.mrf.mxu0
  %v1611 = vadd.f32 0.0, %v1610
  %v1612 = vpop.f32.mrf.mxu0
  %1613 = vmatprep.mubr.f32.mxu0 0.0
  %1614 = vmatmul.mubr.f32.gmra.mxu0 %v1492
  %v1615 = vpop.f32.mrf.mxu0
  %v1616 = vadd.f32 0.0, %v1615
  %v1617 = vpop.f32.mrf.mxu0
  %1618 = vmatprep.mubr.f32.mxu0 0.0
  %1619 = vmatmul.mubr.f32.gmra.mxu0 %v1495
  %v1620 = vpop.f32.mrf.mxu0
  %v1621 = vadd.f32 0.0, %v1620
  %v1622 = vpop.f32.mrf.mxu0
  %1623 = vmatprep.mubr.f32.mxu0 0.0
  %1624 = vmatmul.mubr.f32.gmra.mxu0 %v1498
  %v1625 = vpop.f32.mrf.mxu0
  %v1626 = vadd.f32 0.0, %v1625
  %v1627 = vpop.f32.mrf.mxu0
  %1628 = vdwg.mxu0
  %v1629 = vld [vmem:[#allocation2] sm:$0xff]
  %v1630 = vld [vmem:[#allocation2 + $0x8] sm:$0xff]
  %v1631 = vld [vmem:[#allocation2 + $0x10] sm:$0xff]
  %v1632 = vld [vmem:[#allocation2 + $0x18] sm:$0xff]
  %v1633 = vld [vmem:[#allocation2 + $0x20] sm:$0xff]
  %v1634 = vld [vmem:[#allocation2 + $0x28] sm:$0xff]
  %v1635 = vld [vmem:[#allocation2 + $0x30] sm:$0xff]
  %v1636 = vld [vmem:[#allocation2 + $0x38] sm:$0xff]
  %v1637 = vld [vmem:[#allocation2 + $0x40] sm:$0xff]
  %v1638 = vld [vmem:[#allocation2 + $0x48] sm:$0xff]
  %v1639 = vld [vmem:[#allocation2 + $0x50] sm:$0xff]
  %v1640 = vld [vmem:[#allocation2 + $0x58] sm:$0xff]
  %v1641 = vld [vmem:[#allocation2 + $0x60] sm:$0xff]
  %v1642 = vld [vmem:[#allocation2 + $0x68] sm:$0xff]
  %v1643 = vld [vmem:[#allocation2 + $0x70] sm:$0xff]
  %v1644 = vld [vmem:[#allocation2 + $0x78] sm:$0xff]
  %v1645 = vld [vmem:[#allocation2 + $0x80] sm:$0xff]
  %v1646 = vld [vmem:[#allocation2 + $0x88] sm:$0xff]
  %v1647 = vld [vmem:[#allocation2 + $0x90] sm:$0xff]
  %v1648 = vld [vmem:[#allocation2 + $0x98] sm:$0xff]
  %v1649 = vld [vmem:[#allocation2 + $0xa0] sm:$0xff]
  %v1650 = vld [vmem:[#allocation2 + $0xa8] sm:$0xff]
  %v1651 = vld [vmem:[#allocation2 + $0xb0] sm:$0xff]
  %v1652 = vld [vmem:[#allocation2 + $0xb8] sm:$0xff]
  %v1653 = vld [vmem:[#allocation2 + $0xc0] sm:$0xff]
  %v1654 = vld [vmem:[#allocation2 + $0xc8] sm:$0xff]
  %v1655 = vld [vmem:[#allocation2 + $0xd0] sm:$0xff]
  %v1656 = vld [vmem:[#allocation2 + $0xd8] sm:$0xff]
  %v1657 = vld [vmem:[#allocation2 + $0xe0] sm:$0xff]
  %v1658 = vld [vmem:[#allocation2 + $0xe8] sm:$0xff]
  %v1659 = vld [vmem:[#allocation2 + $0xf0] sm:$0xff]
  %v1660 = vld [vmem:[#allocation2 + $0xf8] sm:$0xff]
  %v1661 = vld [vmem:[#allocation2 + $0x100] sm:$0xff]
  %v1662 = vld [vmem:[#allocation2 + $0x108] sm:$0xff]
  %v1663 = vld [vmem:[#allocation2 + $0x110] sm:$0xff]
  %v1664 = vld [vmem:[#allocation2 + $0x118] sm:$0xff]
  %v1665 = vld [vmem:[#allocation2 + $0x120] sm:$0xff]
  %v1666 = vld [vmem:[#allocation2 + $0x128] sm:$0xff]
  %v1667 = vld [vmem:[#allocation2 + $0x130] sm:$0xff]
  %v1668 = vld [vmem:[#allocation2 + $0x138] sm:$0xff]
  %v1669 = vld [vmem:[#allocation2 + $0x140] sm:$0xff]
  %v1670 = vld [vmem:[#allocation2 + $0x148] sm:$0xff]
  %v1671 = vld [vmem:[#allocation2 + $0x150] sm:$0xff]
  %v1672 = vld [vmem:[#allocation2 + $0x158] sm:$0xff]
  %v1673 = vld [vmem:[#allocation2 + $0x160] sm:$0xff]
  %v1674 = vld [vmem:[#allocation2 + $0x168] sm:$0xff]
  %v1675 = vld [vmem:[#allocation2 + $0x170] sm:$0xff]
  %v1676 = vld [vmem:[#allocation2 + $0x178] sm:$0xff]
  %v1677 = vld [vmem:[#allocation2 + $0x180] sm:$0xff]
  %v1678 = vld [vmem:[#allocation2 + $0x188] sm:$0xff]
  %v1679 = vld [vmem:[#allocation2 + $0x190] sm:$0xff]
  %v1680 = vld [vmem:[#allocation2 + $0x198] sm:$0xff]
  %v1681 = vld [vmem:[#allocation2 + $0x1a0] sm:$0xff]
  %v1682 = vld [vmem:[#allocation2 + $0x1a8] sm:$0xff]
  %v1683 = vld [vmem:[#allocation2 + $0x1b0] sm:$0xff]
  %v1684 = vld [vmem:[#allocation2 + $0x1b8] sm:$0xff]
  %v1685 = vld [vmem:[#allocation2 + $0x1c0] sm:$0xff]
  %v1686 = vld [vmem:[#allocation2 + $0x1c8] sm:$0xff]
  %v1687 = vld [vmem:[#allocation2 + $0x1d0] sm:$0xff]
  %v1688 = vld [vmem:[#allocation2 + $0x1d8] sm:$0xff]
  %v1689 = vld [vmem:[#allocation2 + $0x1e0] sm:$0xff]
  %v1690 = vld [vmem:[#allocation2 + $0x1e8] sm:$0xff]
  %v1691 = vld [vmem:[#allocation2 + $0x1f0] sm:$0xff]
  %v1692 = vld [vmem:[#allocation2 + $0x1f8] sm:$0xff]
  %vm1693 = vcmask 523264
  %v1694 = vsel %vm1693, %v520, -inf
  %1695 = vmax.xlane.f32.xlu0 %v1694
  %v1696 = vpop.xlane.xlu0 %1695
  %v1697 = vsel %vm1693, %v525, -inf
  %1698 = vmax.xlane.f32.xlu0 %v1697
  %v1699 = vpop.xlane.xlu0 %1698
  %v1700 = vsel %vm1693, %v530, -inf
  %1701 = vmax.xlane.f32.xlu0 %v1700
  %v1702 = vpop.xlane.xlu0 %1701
  %v1703 = vsel %vm1693, %v535, -inf
  %1704 = vmax.xlane.f32.xlu0 %v1703
  %v1705 = vpop.xlane.xlu0 %1704
  %v1706 = vsel %vm1693, %v540, -inf
  %1707 = vmax.xlane.f32.xlu0 %v1706
  %v1708 = vpop.xlane.xlu0 %1707
  %v1709 = vsel %vm1693, %v545, -inf
  %1710 = vmax.xlane.f32.xlu0 %v1709
  %v1711 = vpop.xlane.xlu0 %1710
  %v1712 = vsel %vm1693, %v550, -inf
  %1713 = vmax.xlane.f32.xlu0 %v1712
  %v1714 = vpop.xlane.xlu0 %1713
  %v1715 = vsel %vm1693, %v555, -inf
  %1716 = vmax.xlane.f32.xlu0 %v1715
  %v1717 = vpop.xlane.xlu0 %1716
  %v1718 = vsel %vm1693, %v673, -inf
  %1719 = vmax.xlane.f32.xlu0 %v1718
  %v1720 = vpop.xlane.xlu0 %1719
  %v1721 = vsel %vm1693, %v678, -inf
  %1722 = vmax.xlane.f32.xlu0 %v1721
  %v1723 = vpop.xlane.xlu0 %1722
  %v1724 = vsel %vm1693, %v683, -inf
  %1725 = vmax.xlane.f32.xlu0 %v1724
  %v1726 = vpop.xlane.xlu0 %1725
  %v1727 = vsel %vm1693, %v688, -inf
  %1728 = vmax.xlane.f32.xlu0 %v1727
  %v1729 = vpop.xlane.xlu0 %1728
  %v1730 = vsel %vm1693, %v693, -inf
  %1731 = vmax.xlane.f32.xlu0 %v1730
  %v1732 = vpop.xlane.xlu0 %1731
  %v1733 = vsel %vm1693, %v698, -inf
  %1734 = vmax.xlane.f32.xlu0 %v1733
  %v1735 = vpop.xlane.xlu0 %1734
  %v1736 = vsel %vm1693, %v703, -inf
  %1737 = vmax.xlane.f32.xlu0 %v1736
  %v1738 = vpop.xlane.xlu0 %1737
  %v1739 = vsel %vm1693, %v708, -inf
  %1740 = vmax.xlane.f32.xlu0 %v1739
  %v1741 = vpop.xlane.xlu0 %1740
  %v1742 = vsel %vm1693, %v826, -inf
  %1743 = vmax.xlane.f32.xlu0 %v1742
  %v1744 = vpop.xlane.xlu0 %1743
  %v1745 = vsel %vm1693, %v831, -inf
  %1746 = vmax.xlane.f32.xlu0 %v1745
  %v1747 = vpop.xlane.xlu0 %1746
  %v1748 = vsel %vm1693, %v836, -inf
  %1749 = vmax.xlane.f32.xlu0 %v1748
  %v1750 = vpop.xlane.xlu0 %1749
  %v1751 = vsel %vm1693, %v841, -inf
  %1752 = vmax.xlane.f32.xlu0 %v1751
  %v1753 = vpop.xlane.xlu0 %1752
  %v1754 = vsel %vm1693, %v846, -inf
  %1755 = vmax.xlane.f32.xlu0 %v1754
  %v1756 = vpop.xlane.xlu0 %1755
  %v1757 = vsel %vm1693, %v851, -inf
  %1758 = vmax.xlane.f32.xlu0 %v1757
  %v1759 = vpop.xlane.xlu0 %1758
  %v1760 = vsel %vm1693, %v856, -inf
  %1761 = vmax.xlane.f32.xlu0 %v1760
  %v1762 = vpop.xlane.xlu0 %1761
  %v1763 = vsel %vm1693, %v861, -inf
  %1764 = vmax.xlane.f32.xlu0 %v1763
  %v1765 = vpop.xlane.xlu0 %1764
  %v1766 = vsel %vm1693, %v979, -inf
  %1767 = vmax.xlane.f32.xlu0 %v1766
  %v1768 = vpop.xlane.xlu0 %1767
  %v1769 = vsel %vm1693, %v984, -inf
  %1770 = vmax.xlane.f32.xlu0 %v1769
  %v1771 = vpop.xlane.xlu0 %1770
  %v1772 = vsel %vm1693, %v989, -inf
  %1773 = vmax.xlane.f32.xlu0 %v1772
  %v1774 = vpop.xlane.xlu0 %1773
  %v1775 = vsel %vm1693, %v994, -inf
  %1776 = vmax.xlane.f32.xlu0 %v1775
  %v1777 = vpop.xlane.xlu0 %1776
  %v1778 = vsel %vm1693, %v999, -inf
  %1779 = vmax.xlane.f32.xlu0 %v1778
  %v1780 = vpop.xlane.xlu0 %1779
  %v1781 = vsel %vm1693, %v1004, -inf
  %1782 = vmax.xlane.f32.xlu0 %v1781
  %v1783 = vpop.xlane.xlu0 %1782
  %v1784 = vsel %vm1693, %v1009, -inf
  %1785 = vmax.xlane.f32.xlu0 %v1784
  %v1786 = vpop.xlane.xlu0 %1785
  %v1787 = vsel %vm1693, %v1014, -inf
  %1788 = vmax.xlane.f32.xlu0 %v1787
  %v1789 = vpop.xlane.xlu0 %1788
  %v1790 = vsel %vm1693, %v1132, -inf
  %1791 = vmax.xlane.f32.xlu0 %v1790
  %v1792 = vpop.xlane.xlu0 %1791
  %v1793 = vsel %vm1693, %v1137, -inf
  %1794 = vmax.xlane.f32.xlu0 %v1793
  %v1795 = vpop.xlane.xlu0 %1794
  %v1796 = vsel %vm1693, %v1142, -inf
  %1797 = vmax.xlane.f32.xlu0 %v1796
  %v1798 = vpop.xlane.xlu0 %1797
  %v1799 = vsel %vm1693, %v1147, -inf
  %1800 = vmax.xlane.f32.xlu0 %v1799
  %v1801 = vpop.xlane.xlu0 %1800
  %v1802 = vsel %vm1693, %v1152, -inf
  %1803 = vmax.xlane.f32.xlu0 %v1802
  %v1804 = vpop.xlane.xlu0 %1803
  %v1805 = vsel %vm1693, %v1157, -inf
  %1806 = vmax.xlane.f32.xlu0 %v1805
  %v1807 = vpop.xlane.xlu0 %1806
  %v1808 = vsel %vm1693, %v1162, -inf
  %1809 = vmax.xlane.f32.xlu0 %v1808
  %v1810 = vpop.xlane.xlu0 %1809
  %v1811 = vsel %vm1693, %v1167, -inf
  %1812 = vmax.xlane.f32.xlu0 %v1811
  %v1813 = vpop.xlane.xlu0 %1812
  %v1814 = vsel %vm1693, %v1285, -inf
  %1815 = vmax.xlane.f32.xlu0 %v1814
  %v1816 = vpop.xlane.xlu0 %1815
  %v1817 = vsel %vm1693, %v1290, -inf
  %1818 = vmax.xlane.f32.xlu0 %v1817
  %v1819 = vpop.xlane.xlu0 %1818
  %v1820 = vsel %vm1693, %v1295, -inf
  %1821 = vmax.xlane.f32.xlu0 %v1820
  %v1822 = vpop.xlane.xlu0 %1821
  %v1823 = vsel %vm1693, %v1300, -inf
  %1824 = vmax.xlane.f32.xlu0 %v1823
  %v1825 = vpop.xlane.xlu0 %1824
  %v1826 = vsel %vm1693, %v1305, -inf
  %1827 = vmax.xlane.f32.xlu0 %v1826
  %v1828 = vpop.xlane.xlu0 %1827
  %v1829 = vsel %vm1693, %v1310, -inf
  %1830 = vmax.xlane.f32.xlu0 %v1829
  %v1831 = vpop.xlane.xlu0 %1830
  %v1832 = vsel %vm1693, %v1315, -inf
  %1833 = vmax.xlane.f32.xlu0 %v1832
  %v1834 = vpop.xlane.xlu0 %1833
  %v1835 = vsel %vm1693, %v1320, -inf
  %1836 = vmax.xlane.f32.xlu0 %v1835
  %v1837 = vpop.xlane.xlu0 %1836
  %v1838 = vsel %vm1693, %v1438, -inf
  %1839 = vmax.xlane.f32.xlu0 %v1838
  %v1840 = vpop.xlane.xlu0 %1839
  %v1841 = vsel %vm1693, %v1443, -inf
  %1842 = vmax.xlane.f32.xlu0 %v1841
  %v1843 = vpop.xlane.xlu0 %1842
  %v1844 = vsel %vm1693, %v1448, -inf
  %1845 = vmax.xlane.f32.xlu0 %v1844
  %v1846 = vpop.xlane.xlu0 %1845
  %v1847 = vsel %vm1693, %v1453, -inf
  %1848 = vmax.xlane.f32.xlu0 %v1847
  %v1849 = vpop.xlane.xlu0 %1848
  %v1850 = vsel %vm1693, %v1458, -inf
  %1851 = vmax.xlane.f32.xlu0 %v1850
  %v1852 = vpop.xlane.xlu0 %1851
  %v1853 = vsel %vm1693, %v1463, -inf
  %1854 = vmax.xlane.f32.xlu0 %v1853
  %v1855 = vpop.xlane.xlu0 %1854
  %v1856 = vsel %vm1693, %v1468, -inf
  %1857 = vmax.xlane.f32.xlu0 %v1856
  %v1858 = vpop.xlane.xlu0 %1857
  %v1859 = vsel %vm1693, %v1473, -inf
  %1860 = vmax.xlane.f32.xlu0 %v1859
  %v1861 = vpop.xlane.xlu0 %1860
  %v1862 = vsel %vm1693, %v1591, -inf
  %1863 = vmax.xlane.f32.xlu0 %v1862
  %v1864 = vpop.xlane.xlu0 %1863
  %v1865 = vsel %vm1693, %v1596, -inf
  %1866 = vmax.xlane.f32.xlu0 %v1865
  %v1867 = vpop.xlane.xlu0 %1866
  %v1868 = vsel %vm1693, %v1601, -inf
  %1869 = vmax.xlane.f32.xlu0 %v1868
  %v1870 = vpop.xlane.xlu0 %1869
  %v1871 = vsel %vm1693, %v1606, -inf
  %1872 = vmax.xlane.f32.xlu0 %v1871
  %v1873 = vpop.xlane.xlu0 %1872
  %v1874 = vsel %vm1693, %v1611, -inf
  %1875 = vmax.xlane.f32.xlu0 %v1874
  %v1876 = vpop.xlane.xlu0 %1875
  %v1877 = vsel %vm1693, %v1616, -inf
  %1878 = vmax.xlane.f32.xlu0 %v1877
  %v1879 = vpop.xlane.xlu0 %1878
  %v1880 = vsel %vm1693, %v1621, -inf
  %1881 = vmax.xlane.f32.xlu0 %v1880
  %v1882 = vpop.xlane.xlu0 %1881
  %v1883 = vsel %vm1693, %v1626, -inf
  %1884 = vmax.xlane.f32.xlu0 %v1883
  %v1885 = vpop.xlane.xlu0 %1884
  %v1886 = vmax.f32 %v1629, %v1696
  %v1887 = vmax.f32 %v1630, %v1699
  %v1888 = vmax.f32 %v1631, %v1702
  %v1889 = vmax.f32 %v1632, %v1705
  %v1890 = vmax.f32 %v1633, %v1708
  %v1891 = vmax.f32 %v1634, %v1711
  %v1892 = vmax.f32 %v1635, %v1714
  %v1893 = vmax.f32 %v1636, %v1717
  %v1894 = vmax.f32 %v1637, %v1720
  %v1895 = vmax.f32 %v1638, %v1723
  %v1896 = vmax.f32 %v1639, %v1726
  %v1897 = vmax.f32 %v1640, %v1729
  %v1898 = vmax.f32 %v1641, %v1732
  %v1899 = vmax.f32 %v1642, %v1735
  %v1900 = vmax.f32 %v1643, %v1738
  %v1901 = vmax.f32 %v1644, %v1741
  %v1902 = vmax.f32 %v1645, %v1744
  %v1903 = vmax.f32 %v1646, %v1747
  %v1904 = vmax.f32 %v1647, %v1750
  %v1905 = vmax.f32 %v1648, %v1753
  %v1906 = vmax.f32 %v1649, %v1756
  %v1907 = vmax.f32 %v1650, %v1759
  %v1908 = vmax.f32 %v1651, %v1762
  %v1909 = vmax.f32 %v1652, %v1765
  %v1910 = vmax.f32 %v1653, %v1768
  %v1911 = vmax.f32 %v1654, %v1771
  %v1912 = vmax.f32 %v1655, %v1774
  %v1913 = vmax.f32 %v1656, %v1777
  %v1914 = vmax.f32 %v1657, %v1780
  %v1915 = vmax.f32 %v1658, %v1783
  %v1916 = vmax.f32 %v1659, %v1786
  %v1917 = vmax.f32 %v1660, %v1789
  %v1918 = vmax.f32 %v1661, %v1792
  %v1919 = vmax.f32 %v1662, %v1795
  %v1920 = vmax.f32 %v1663, %v1798
  %v1921 = vmax.f32 %v1664, %v1801
  %v1922 = vmax.f32 %v1665, %v1804
  %v1923 = vmax.f32 %v1666, %v1807
  %v1924 = vmax.f32 %v1667, %v1810
  %v1925 = vmax.f32 %v1668, %v1813
  %v1926 = vmax.f32 %v1669, %v1816
  %v1927 = vmax.f32 %v1670, %v1819
  %v1928 = vmax.f32 %v1671, %v1822
  %v1929 = vmax.f32 %v1672, %v1825
  %v1930 = vmax.f32 %v1673, %v1828
  %v1931 = vmax.f32 %v1674, %v1831
  %v1932 = vmax.f32 %v1675, %v1834
  %v1933 = vmax.f32 %v1676, %v1837
  %v1934 = vmax.f32 %v1677, %v1840
  %v1935 = vmax.f32 %v1678, %v1843
  %v1936 = vmax.f32 %v1679, %v1846
  %v1937 = vmax.f32 %v1680, %v1849
  %v1938 = vmax.f32 %v1681, %v1852
  %v1939 = vmax.f32 %v1682, %v1855
  %v1940 = vmax.f32 %v1683, %v1858
  %v1941 = vmax.f32 %v1684, %v1861
  %v1942 = vmax.f32 %v1685, %v1864
  %v1943 = vmax.f32 %v1686, %v1867
  %v1944 = vmax.f32 %v1687, %v1870
  %v1945 = vmax.f32 %v1688, %v1873
  %v1946 = vmax.f32 %v1689, %v1876
  %v1947 = vmax.f32 %v1690, %v1879
  %v1948 = vmax.f32 %v1691, %v1882
  %v1949 = vmax.f32 %v1692, %v1885
  %v1950 = vsub.f32 %v1629, %v1886
  %v1951 = vsub.f32 %v1630, %v1887
  %v1952 = vsub.f32 %v1631, %v1888
  %v1953 = vsub.f32 %v1632, %v1889
  %v1954 = vsub.f32 %v1633, %v1890
  %v1955 = vsub.f32 %v1634, %v1891
  %v1956 = vsub.f32 %v1635, %v1892
  %v1957 = vsub.f32 %v1636, %v1893
  %v1958 = vsub.f32 %v1637, %v1894
  %v1959 = vsub.f32 %v1638, %v1895
  %v1960 = vsub.f32 %v1639, %v1896
  %v1961 = vsub.f32 %v1640, %v1897
  %v1962 = vsub.f32 %v1641, %v1898
  %v1963 = vsub.f32 %v1642, %v1899
  %v1964 = vsub.f32 %v1643, %v1900
  %v1965 = vsub.f32 %v1644, %v1901
  %v1966 = vsub.f32 %v1645, %v1902
  %v1967 = vsub.f32 %v1646, %v1903
  %v1968 = vsub.f32 %v1647, %v1904
  %v1969 = vsub.f32 %v1648, %v1905
  %v1970 = vsub.f32 %v1649, %v1906
  %v1971 = vsub.f32 %v1650, %v1907
  %v1972 = vsub.f32 %v1651, %v1908
  %v1973 = vsub.f32 %v1652, %v1909
  %v1974 = vsub.f32 %v1653, %v1910
  %v1975 = vsub.f32 %v1654, %v1911
  %v1976 = vsub.f32 %v1655, %v1912
  %v1977 = vsub.f32 %v1656, %v1913
  %v1978 = vsub.f32 %v1657, %v1914
  %v1979 = vsub.f32 %v1658, %v1915
  %v1980 = vsub.f32 %v1659, %v1916
  %v1981 = vsub.f32 %v1660, %v1917
  %v1982 = vsub.f32 %v1661, %v1918
  %v1983 = vsub.f32 %v1662, %v1919
  %v1984 = vsub.f32 %v1663, %v1920
  %v1985 = vsub.f32 %v1664, %v1921
  %v1986 = vsub.f32 %v1665, %v1922
  %v1987 = vsub.f32 %v1666, %v1923
  %v1988 = vsub.f32 %v1667, %v1924
  %v1989 = vsub.f32 %v1668, %v1925
  %v1990 = vsub.f32 %v1669, %v1926
  %v1991 = vsub.f32 %v1670, %v1927
  %v1992 = vsub.f32 %v1671, %v1928
  %v1993 = vsub.f32 %v1672, %v1929
  %v1994 = vsub.f32 %v1673, %v1930
  %v1995 = vsub.f32 %v1674, %v1931
  %v1996 = vsub.f32 %v1675, %v1932
  %v1997 = vsub.f32 %v1676, %v1933
  %v1998 = vsub.f32 %v1677, %v1934
  %v1999 = vsub.f32 %v1678, %v1935
  %v2000 = vsub.f32 %v1679, %v1936
  %v2001 = vsub.f32 %v1680, %v1937
  %v2002 = vsub.f32 %v1681, %v1938
  %v2003 = vsub.f32 %v1682, %v1939
  %v2004 = vsub.f32 %v1683, %v1940
  %v2005 = vsub.f32 %v1684, %v1941
  %v2006 = vsub.f32 %v1685, %v1942
  %v2007 = vsub.f32 %v1686, %v1943
  %v2008 = vsub.f32 %v1687, %v1944
  %v2009 = vsub.f32 %v1688, %v1945
  %v2010 = vsub.f32 %v1689, %v1946
  %v2011 = vsub.f32 %v1690, %v1947
  %v2012 = vsub.f32 %v1691, %v1948
  %v2013 = vsub.f32 %v1692, %v1949
  %v2014 = vmul.f32 %v1950, 1.442695
  %v2015 = vpow.pop %v2014
  %v2016 = vmul.f32 %v1951, 1.442695
  %v2017 = vpow.pop %v2016
  %v2018 = vmul.f32 %v1952, 1.442695
  %v2019 = vpow.pop %v2018
  %v2020 = vmul.f32 %v1953, 1.442695
  %v2021 = vpow.pop %v2020
  %v2022 = vmul.f32 %v1954, 1.442695
  %v2023 = vpow.pop %v2022
  %v2024 = vmul.f32 %v1955, 1.442695
  %v2025 = vpow.pop %v2024
  %v2026 = vmul.f32 %v1956, 1.442695
  %v2027 = vpow.pop %v2026
  %v2028 = vmul.f32 %v1957, 1.442695
  %v2029 = vpow.pop %v2028
  %v2030 = vmul.f32 %v1958, 1.442695
  %v2031 = vpow.pop %v2030
  %v2032 = vmul.f32 %v1959, 1.442695
  %v2033 = vpow.pop %v2032
  %v2034 = vmul.f32 %v1960, 1.442695
  %v2035 = vpow.pop %v2034
  %v2036 = vmul.f32 %v1961, 1.442695
  %v2037 = vpow.pop %v2036
  %v2038 = vmul.f32 %v1962, 1.442695
  %v2039 = vpow.pop %v2038
  %v2040 = vmul.f32 %v1963, 1.442695
  %v2041 = vpow.pop %v2040
  %v2042 = vmul.f32 %v1964, 1.442695
  %v2043 = vpow.pop %v2042
  %v2044 = vmul.f32 %v1965, 1.442695
  %v2045 = vpow.pop %v2044
  %v2046 = vmul.f32 %v1966, 1.442695
  %v2047 = vpow.pop %v2046
  %v2048 = vmul.f32 %v1967, 1.442695
  %v2049 = vpow.pop %v2048
  %v2050 = vmul.f32 %v1968, 1.442695
  %v2051 = vpow.pop %v2050
  %v2052 = vmul.f32 %v1969, 1.442695
  %v2053 = vpow.pop %v2052
  %v2054 = vmul.f32 %v1970, 1.442695
  %v2055 = vpow.pop %v2054
  %v2056 = vmul.f32 %v1971, 1.442695
  %v2057 = vpow.pop %v2056
  %v2058 = vmul.f32 %v1972, 1.442695
  %v2059 = vpow.pop %v2058
  %v2060 = vmul.f32 %v1973, 1.442695
  %v2061 = vpow.pop %v2060
  %v2062 = vmul.f32 %v1974, 1.442695
  %v2063 = vpow.pop %v2062
  %v2064 = vmul.f32 %v1975, 1.442695
  %v2065 = vpow.pop %v2064
  %v2066 = vmul.f32 %v1976, 1.442695
  %v2067 = vpow.pop %v2066
  %v2068 = vmul.f32 %v1977, 1.442695
  %v2069 = vpow.pop %v2068
  %v2070 = vmul.f32 %v1978, 1.442695
  %v2071 = vpow.pop %v2070
  %v2072 = vmul.f32 %v1979, 1.442695
  %v2073 = vpow.pop %v2072
  %v2074 = vmul.f32 %v1980, 1.442695
  %v2075 = vpow.pop %v2074
  %v2076 = vmul.f32 %v1981, 1.442695
  %v2077 = vpow.pop %v2076
  %v2078 = vmul.f32 %v1982, 1.442695
  %v2079 = vpow.pop %v2078
  %v2080 = vmul.f32 %v1983, 1.442695
  %v2081 = vpow.pop %v2080
  %v2082 = vmul.f32 %v1984, 1.442695
  %v2083 = vpow.pop %v2082
  %v2084 = vmul.f32 %v1985, 1.442695
  %v2085 = vpow.pop %v2084
  %v2086 = vmul.f32 %v1986, 1.442695
  %v2087 = vpow.pop %v2086
  %v2088 = vmul.f32 %v1987, 1.442695
  %v2089 = vpow.pop %v2088
  %v2090 = vmul.f32 %v1988, 1.442695
  %v2091 = vpow.pop %v2090
  %v2092 = vmul.f32 %v1989, 1.442695
  %v2093 = vpow.pop %v2092
  %v2094 = vmul.f32 %v1990, 1.442695
  %v2095 = vpow.pop %v2094
  %v2096 = vmul.f32 %v1991, 1.442695
  %v2097 = vpow.pop %v2096
  %v2098 = vmul.f32 %v1992, 1.442695
  %v2099 = vpow.pop %v2098
  %v2100 = vmul.f32 %v1993, 1.442695
  %v2101 = vpow.pop %v2100
  %v2102 = vmul.f32 %v1994, 1.442695
  %v2103 = vpow.pop %v2102
  %v2104 = vmul.f32 %v1995, 1.442695
  %v2105 = vpow.pop %v2104
  %v2106 = vmul.f32 %v1996, 1.442695
  %v2107 = vpow.pop %v2106
  %v2108 = vmul.f32 %v1997, 1.442695
  %v2109 = vpow.pop %v2108
  %v2110 = vmul.f32 %v1998, 1.442695
  %v2111 = vpow.pop %v2110
  %v2112 = vmul.f32 %v1999, 1.442695
  %v2113 = vpow.pop %v2112
  %v2114 = vmul.f32 %v2000, 1.442695
  %v2115 = vpow.pop %v2114
  %v2116 = vmul.f32 %v2001, 1.442695
  %v2117 = vpow.pop %v2116
  %v2118 = vmul.f32 %v2002, 1.442695
  %v2119 = vpow.pop %v2118
  %v2120 = vmul.f32 %v2003, 1.442695
  %v2121 = vpow.pop %v2120
  %v2122 = vmul.f32 %v2004, 1.442695
  %v2123 = vpow.pop %v2122
  %v2124 = vmul.f32 %v2005, 1.442695
  %v2125 = vpow.pop %v2124
  %v2126 = vmul.f32 %v2006, 1.442695
  %v2127 = vpow.pop %v2126
  %v2128 = vmul.f32 %v2007, 1.442695
  %v2129 = vpow.pop %v2128
  %v2130 = vmul.f32 %v2008, 1.442695
  %v2131 = vpow.pop %v2130
  %v2132 = vmul.f32 %v2009, 1.442695
  %v2133 = vpow.pop %v2132
  %v2134 = vmul.f32 %v2010, 1.442695
  %v2135 = vpow.pop %v2134
  %v2136 = vmul.f32 %v2011, 1.442695
  %v2137 = vpow.pop %v2136
  %v2138 = vmul.f32 %v2012, 1.442695
  %v2139 = vpow.pop %v2138
  %v2140 = vmul.f32 %v2013, 1.442695
  %v2141 = vpow.pop %v2140
  %2143 = vset.pattern.permute.xlu0 0
  %2144 = vperm.xlu0 %2143, %v1886
  %v2145 = vpop.permute.xlu0 %2144
  %2148 = vset.pattern.permute.xlu0 0
  %2149 = vperm.xlu0 %2148, %v1887
  %v2150 = vpop.permute.xlu0 %2149
  %2153 = vset.pattern.permute.xlu0 0
  %2154 = vperm.xlu0 %2153, %v1888
  %v2155 = vpop.permute.xlu0 %2154
  %2158 = vset.pattern.permute.xlu0 0
  %2159 = vperm.xlu0 %2158, %v1889
  %v2160 = vpop.permute.xlu0 %2159
  %2163 = vset.pattern.permute.xlu0 0
  %2164 = vperm.xlu0 %2163, %v1890
  %v2165 = vpop.permute.xlu0 %2164
  %2168 = vset.pattern.permute.xlu0 0
  %2169 = vperm.xlu0 %2168, %v1891
  %v2170 = vpop.permute.xlu0 %2169
  %2173 = vset.pattern.permute.xlu0 0
  %2174 = vperm.xlu0 %2173, %v1892
  %v2175 = vpop.permute.xlu0 %2174
  %2178 = vset.pattern.permute.xlu0 0
  %2179 = vperm.xlu0 %2178, %v1893
  %v2180 = vpop.permute.xlu0 %2179
  %2183 = vset.pattern.permute.xlu0 0
  %2184 = vperm.xlu0 %2183, %v1894
  %v2185 = vpop.permute.xlu0 %2184
  %2188 = vset.pattern.permute.xlu0 0
  %2189 = vperm.xlu0 %2188, %v1895
  %v2190 = vpop.permute.xlu0 %2189
  %2193 = vset.pattern.permute.xlu0 0
  %2194 = vperm.xlu0 %2193, %v1896
  %v2195 = vpop.permute.xlu0 %2194
  %2198 = vset.pattern.permute.xlu0 0
  %2199 = vperm.xlu0 %2198, %v1897
  %v2200 = vpop.permute.xlu0 %2199
  %2203 = vset.pattern.permute.xlu0 0
  %2204 = vperm.xlu0 %2203, %v1898
  %v2205 = vpop.permute.xlu0 %2204
  %2208 = vset.pattern.permute.xlu0 0
  %2209 = vperm.xlu0 %2208, %v1899
  %v2210 = vpop.permute.xlu0 %2209
  %2213 = vset.pattern.permute.xlu0 0
  %2214 = vperm.xlu0 %2213, %v1900
  %v2215 = vpop.permute.xlu0 %2214
  %2218 = vset.pattern.permute.xlu0 0
  %2219 = vperm.xlu0 %2218, %v1901
  %v2220 = vpop.permute.xlu0 %2219
  %2223 = vset.pattern.permute.xlu0 0
  %2224 = vperm.xlu0 %2223, %v1902
  %v2225 = vpop.permute.xlu0 %2224
  %2228 = vset.pattern.permute.xlu0 0
  %2229 = vperm.xlu0 %2228, %v1903
  %v2230 = vpop.permute.xlu0 %2229
  %2233 = vset.pattern.permute.xlu0 0
  %2234 = vperm.xlu0 %2233, %v1904
  %v2235 = vpop.permute.xlu0 %2234
  %2238 = vset.pattern.permute.xlu0 0
  %2239 = vperm.xlu0 %2238, %v1905
  %v2240 = vpop.permute.xlu0 %2239
  %2243 = vset.pattern.permute.xlu0 0
  %2244 = vperm.xlu0 %2243, %v1906
  %v2245 = vpop.permute.xlu0 %2244
  %2248 = vset.pattern.permute.xlu0 0
  %2249 = vperm.xlu0 %2248, %v1907
  %v2250 = vpop.permute.xlu0 %2249
  %2253 = vset.pattern.permute.xlu0 0
  %2254 = vperm.xlu0 %2253, %v1908
  %v2255 = vpop.permute.xlu0 %2254
  %2258 = vset.pattern.permute.xlu0 0
  %2259 = vperm.xlu0 %2258, %v1909
  %v2260 = vpop.permute.xlu0 %2259
  %2263 = vset.pattern.permute.xlu0 0
  %2264 = vperm.xlu0 %2263, %v1910
  %v2265 = vpop.permute.xlu0 %2264
  %2268 = vset.pattern.permute.xlu0 0
  %2269 = vperm.xlu0 %2268, %v1911
  %v2270 = vpop.permute.xlu0 %2269
  %2273 = vset.pattern.permute.xlu0 0
  %2274 = vperm.xlu0 %2273, %v1912
  %v2275 = vpop.permute.xlu0 %2274
  %2278 = vset.pattern.permute.xlu0 0
  %2279 = vperm.xlu0 %2278, %v1913
  %v2280 = vpop.permute.xlu0 %2279
  %2283 = vset.pattern.permute.xlu0 0
  %2284 = vperm.xlu0 %2283, %v1914
  %v2285 = vpop.permute.xlu0 %2284
  %2288 = vset.pattern.permute.xlu0 0
  %2289 = vperm.xlu0 %2288, %v1915
  %v2290 = vpop.permute.xlu0 %2289
  %2293 = vset.pattern.permute.xlu0 0
  %2294 = vperm.xlu0 %2293, %v1916
  %v2295 = vpop.permute.xlu0 %2294
  %2298 = vset.pattern.permute.xlu0 0
  %2299 = vperm.xlu0 %2298, %v1917
  %v2300 = vpop.permute.xlu0 %2299
  %2303 = vset.pattern.permute.xlu0 0
  %2304 = vperm.xlu0 %2303, %v1918
  %v2305 = vpop.permute.xlu0 %2304
  %2308 = vset.pattern.permute.xlu0 0
  %2309 = vperm.xlu0 %2308, %v1919
  %v2310 = vpop.permute.xlu0 %2309
  %2313 = vset.pattern.permute.xlu0 0
  %2314 = vperm.xlu0 %2313, %v1920
  %v2315 = vpop.permute.xlu0 %2314
  %2318 = vset.pattern.permute.xlu0 0
  %2319 = vperm.xlu0 %2318, %v1921
  %v2320 = vpop.permute.xlu0 %2319
  %2323 = vset.pattern.permute.xlu0 0
  %2324 = vperm.xlu0 %2323, %v1922
  %v2325 = vpop.permute.xlu0 %2324
  %2328 = vset.pattern.permute.xlu0 0
  %2329 = vperm.xlu0 %2328, %v1923
  %v2330 = vpop.permute.xlu0 %2329
  %2333 = vset.pattern.permute.xlu0 0
  %2334 = vperm.xlu0 %2333, %v1924
  %v2335 = vpop.permute.xlu0 %2334
  %2338 = vset.pattern.permute.xlu0 0
  %2339 = vperm.xlu0 %2338, %v1925
  %v2340 = vpop.permute.xlu0 %2339
  %2343 = vset.pattern.permute.xlu0 0
  %2344 = vperm.xlu0 %2343, %v1926
  %v2345 = vpop.permute.xlu0 %2344
  %2348 = vset.pattern.permute.xlu0 0
  %2349 = vperm.xlu0 %2348, %v1927
  %v2350 = vpop.permute.xlu0 %2349
  %2353 = vset.pattern.permute.xlu0 0
  %2354 = vperm.xlu0 %2353, %v1928
  %v2355 = vpop.permute.xlu0 %2354
  %2358 = vset.pattern.permute.xlu0 0
  %2359 = vperm.xlu0 %2358, %v1929
  %v2360 = vpop.permute.xlu0 %2359
  %2363 = vset.pattern.permute.xlu0 0
  %2364 = vperm.xlu0 %2363, %v1930
  %v2365 = vpop.permute.xlu0 %2364
  %2368 = vset.pattern.permute.xlu0 0
  %2369 = vperm.xlu0 %2368, %v1931
  %v2370 = vpop.permute.xlu0 %2369
  %2373 = vset.pattern.permute.xlu0 0
  %2374 = vperm.xlu0 %2373, %v1932
  %v2375 = vpop.permute.xlu0 %2374
  %2378 = vset.pattern.permute.xlu0 0
  %2379 = vperm.xlu0 %2378, %v1933
  %v2380 = vpop.permute.xlu0 %2379
  %2383 = vset.pattern.permute.xlu0 0
  %2384 = vperm.xlu0 %2383, %v1934
  %v2385 = vpop.permute.xlu0 %2384
  %2388 = vset.pattern.permute.xlu0 0
  %2389 = vperm.xlu0 %2388, %v1935
  %v2390 = vpop.permute.xlu0 %2389
  %2393 = vset.pattern.permute.xlu0 0
  %2394 = vperm.xlu0 %2393, %v1936
  %v2395 = vpop.permute.xlu0 %2394
  %2398 = vset.pattern.permute.xlu0 0
  %2399 = vperm.xlu0 %2398, %v1937
  %v2400 = vpop.permute.xlu0 %2399
  %2403 = vset.pattern.permute.xlu0 0
  %2404 = vperm.xlu0 %2403, %v1938
  %v2405 = vpop.permute.xlu0 %2404
  %2408 = vset.pattern.permute.xlu0 0
  %2409 = vperm.xlu0 %2408, %v1939
  %v2410 = vpop.permute.xlu0 %2409
  %2413 = vset.pattern.permute.xlu0 0
  %2414 = vperm.xlu0 %2413, %v1940
  %v2415 = vpop.permute.xlu0 %2414
  %2418 = vset.pattern.permute.xlu0 0
  %2419 = vperm.xlu0 %2418, %v1941
  %v2420 = vpop.permute.xlu0 %2419
  %2423 = vset.pattern.permute.xlu0 0
  %2424 = vperm.xlu0 %2423, %v1942
  %v2425 = vpop.permute.xlu0 %2424
  %2428 = vset.pattern.permute.xlu0 0
  %2429 = vperm.xlu0 %2428, %v1943
  %v2430 = vpop.permute.xlu0 %2429
  %2433 = vset.pattern.permute.xlu0 0
  %2434 = vperm.xlu0 %2433, %v1944
  %v2435 = vpop.permute.xlu0 %2434
  %2438 = vset.pattern.permute.xlu0 0
  %2439 = vperm.xlu0 %2438, %v1945
  %v2440 = vpop.permute.xlu0 %2439
  %2443 = vset.pattern.permute.xlu0 0
  %2444 = vperm.xlu0 %2443, %v1946
  %v2445 = vpop.permute.xlu0 %2444
  %2448 = vset.pattern.permute.xlu0 0
  %2449 = vperm.xlu0 %2448, %v1947
  %v2450 = vpop.permute.xlu0 %2449
  %2453 = vset.pattern.permute.xlu0 0
  %2454 = vperm.xlu0 %2453, %v1948
  %v2455 = vpop.permute.xlu0 %2454
  %2458 = vset.pattern.permute.xlu0 0
  %2459 = vperm.xlu0 %2458, %v1949
  %v2460 = vpop.permute.xlu0 %2459
  %v2462 = vsub.f32 %v520, %v2145
  %v2463 = vsub.f32 %v525, %v2150
  %v2464 = vsub.f32 %v530, %v2155
  %v2465 = vsub.f32 %v535, %v2160
  %v2466 = vsub.f32 %v540, %v2165
  %v2467 = vsub.f32 %v545, %v2170
  %v2468 = vsub.f32 %v550, %v2175
  %v2469 = vsub.f32 %v555, %v2180
  %v2470 = vsub.f32 %v673, %v2185
  %v2471 = vsub.f32 %v678, %v2190
  %v2472 = vsub.f32 %v683, %v2195
  %v2473 = vsub.f32 %v688, %v2200
  %v2474 = vsub.f32 %v693, %v2205
  %v2475 = vsub.f32 %v698, %v2210
  %v2476 = vsub.f32 %v703, %v2215
  %v2477 = vsub.f32 %v708, %v2220
  %v2478 = vsub.f32 %v826, %v2225
  %v2479 = vsub.f32 %v831, %v2230
  %v2480 = vsub.f32 %v836, %v2235
  %v2481 = vsub.f32 %v841, %v2240
  %v2482 = vsub.f32 %v846, %v2245
  %v2483 = vsub.f32 %v851, %v2250
  %v2484 = vsub.f32 %v856, %v2255
  %v2485 = vsub.f32 %v861, %v2260
  %v2486 = vsub.f32 %v979, %v2265
  %v2487 = vsub.f32 %v984, %v2270
  %v2488 = vsub.f32 %v989, %v2275
  %v2489 = vsub.f32 %v994, %v2280
  %v2490 = vsub.f32 %v999, %v2285
  %v2491 = vsub.f32 %v1004, %v2290
  %v2492 = vsub.f32 %v1009, %v2295
  %v2493 = vsub.f32 %v1014, %v2300
  %v2494 = vsub.f32 %v1132, %v2305
  %v2495 = vsub.f32 %v1137, %v2310
  %v2496 = vsub.f32 %v1142, %v2315
  %v2497 = vsub.f32 %v1147, %v2320
  %v2498 = vsub.f32 %v1152, %v2325
  %v2499 = vsub.f32 %v1157, %v2330
  %v2500 = vsub.f32 %v1162, %v2335
  %v2501 = vsub.f32 %v1167, %v2340
  %v2502 = vsub.f32 %v1285, %v2345
  %v2503 = vsub.f32 %v1290, %v2350
  %v2504 = vsub.f32 %v1295, %v2355
  %v2505 = vsub.f32 %v1300, %v2360
  %v2506 = vsub.f32 %v1305, %v2365
  %v2507 = vsub.f32 %v1310, %v2370
  %v2508 = vsub.f32 %v1315, %v2375
  %v2509 = vsub.f32 %v1320, %v2380
  %v2510 = vsub.f32 %v1438, %v2385
  %v2511 = vsub.f32 %v1443, %v2390
  %v2512 = vsub.f32 %v1448, %v2395
  %v2513 = vsub.f32 %v1453, %v2400
  %v2514 = vsub.f32 %v1458, %v2405
  %v2515 = vsub.f32 %v1463, %v2410
  %v2516 = vsub.f32 %v1468, %v2415
  %v2517 = vsub.f32 %v1473, %v2420
  %v2518 = vsub.f32 %v1591, %v2425
  %v2519 = vsub.f32 %v1596, %v2430
  %v2520 = vsub.f32 %v1601, %v2435
  %v2521 = vsub.f32 %v1606, %v2440
  %v2522 = vsub.f32 %v1611, %v2445
  %v2523 = vsub.f32 %v1616, %v2450
  %v2524 = vsub.f32 %v1621, %v2455
  %v2525 = vsub.f32 %v1626, %v2460
  %v2526 = vmul.f32 %v2462, 1.442695
  %v2527 = vpow.pop %v2526
  %v2528 = vmul.f32 %v2463, 1.442695
  %v2529 = vpow.pop %v2528
  %v2530 = vmul.f32 %v2464, 1.442695
  %v2531 = vpow.pop %v2530
  %v2532 = vmul.f32 %v2465, 1.442695
  %v2533 = vpow.pop %v2532
  %v2534 = vmul.f32 %v2466, 1.442695
  %v2535 = vpow.pop %v2534
  %v2536 = vmul.f32 %v2467, 1.442695
  %v2537 = vpow.pop %v2536
  %v2538 = vmul.f32 %v2468, 1.442695
  %v2539 = vpow.pop %v2538
  %v2540 = vmul.f32 %v2469, 1.442695
  %v2541 = vpow.pop %v2540
  %v2542 = vmul.f32 %v2470, 1.442695
  %v2543 = vpow.pop %v2542
  %v2544 = vmul.f32 %v2471, 1.442695
  %v2545 = vpow.pop %v2544
  %v2546 = vmul.f32 %v2472, 1.442695
  %v2547 = vpow.pop %v2546
  %v2548 = vmul.f32 %v2473, 1.442695
  %v2549 = vpow.pop %v2548
  %v2550 = vmul.f32 %v2474, 1.442695
  %v2551 = vpow.pop %v2550
  %v2552 = vmul.f32 %v2475, 1.442695
  %v2553 = vpow.pop %v2552
  %v2554 = vmul.f32 %v2476, 1.442695
  %v2555 = vpow.pop %v2554
  %v2556 = vmul.f32 %v2477, 1.442695
  %v2557 = vpow.pop %v2556
  %v2558 = vmul.f32 %v2478, 1.442695
  %v2559 = vpow.pop %v2558
  %v2560 = vmul.f32 %v2479, 1.442695
  %v2561 = vpow.pop %v2560
  %v2562 = vmul.f32 %v2480, 1.442695
  %v2563 = vpow.pop %v2562
  %v2564 = vmul.f32 %v2481, 1.442695
  %v2565 = vpow.pop %v2564
  %v2566 = vmul.f32 %v2482, 1.442695
  %v2567 = vpow.pop %v2566
  %v2568 = vmul.f32 %v2483, 1.442695
  %v2569 = vpow.pop %v2568
  %v2570 = vmul.f32 %v2484, 1.442695
  %v2571 = vpow.pop %v2570
  %v2572 = vmul.f32 %v2485, 1.442695
  %v2573 = vpow.pop %v2572
  %v2574 = vmul.f32 %v2486, 1.442695
  %v2575 = vpow.pop %v2574
  %v2576 = vmul.f32 %v2487, 1.442695
  %v2577 = vpow.pop %v2576
  %v2578 = vmul.f32 %v2488, 1.442695
  %v2579 = vpow.pop %v2578
  %v2580 = vmul.f32 %v2489, 1.442695
  %v2581 = vpow.pop %v2580
  %v2582 = vmul.f32 %v2490, 1.442695
  %v2583 = vpow.pop %v2582
  %v2584 = vmul.f32 %v2491, 1.442695
  %v2585 = vpow.pop %v2584
  %v2586 = vmul.f32 %v2492, 1.442695
  %v2587 = vpow.pop %v2586
  %v2588 = vmul.f32 %v2493, 1.442695
  %v2589 = vpow.pop %v2588
  %v2590 = vmul.f32 %v2494, 1.442695
  %v2591 = vpow.pop %v2590
  %v2592 = vmul.f32 %v2495, 1.442695
  %v2593 = vpow.pop %v2592
  %v2594 = vmul.f32 %v2496, 1.442695
  %v2595 = vpow.pop %v2594
  %v2596 = vmul.f32 %v2497, 1.442695
  %v2597 = vpow.pop %v2596
  %v2598 = vmul.f32 %v2498, 1.442695
  %v2599 = vpow.pop %v2598
  %v2600 = vmul.f32 %v2499, 1.442695
  %v2601 = vpow.pop %v2600
  %v2602 = vmul.f32 %v2500, 1.442695
  %v2603 = vpow.pop %v2602
  %v2604 = vmul.f32 %v2501, 1.442695
  %v2605 = vpow.pop %v2604
  %v2606 = vmul.f32 %v2502, 1.442695
  %v2607 = vpow.pop %v2606
  %v2608 = vmul.f32 %v2503, 1.442695
  %v2609 = vpow.pop %v2608
  %v2610 = vmul.f32 %v2504, 1.442695
  %v2611 = vpow.pop %v2610
  %v2612 = vmul.f32 %v2505, 1.442695
  %v2613 = vpow.pop %v2612
  %v2614 = vmul.f32 %v2506, 1.442695
  %v2615 = vpow.pop %v2614
  %v2616 = vmul.f32 %v2507, 1.442695
  %v2617 = vpow.pop %v2616
  %v2618 = vmul.f32 %v2508, 1.442695
  %v2619 = vpow.pop %v2618
  %v2620 = vmul.f32 %v2509, 1.442695
  %v2621 = vpow.pop %v2620
  %v2622 = vmul.f32 %v2510, 1.442695
  %v2623 = vpow.pop %v2622
  %v2624 = vmul.f32 %v2511, 1.442695
  %v2625 = vpow.pop %v2624
  %v2626 = vmul.f32 %v2512, 1.442695
  %v2627 = vpow.pop %v2626
  %v2628 = vmul.f32 %v2513, 1.442695
  %v2629 = vpow.pop %v2628
  %v2630 = vmul.f32 %v2514, 1.442695
  %v2631 = vpow.pop %v2630
  %v2632 = vmul.f32 %v2515, 1.442695
  %v2633 = vpow.pop %v2632
  %v2634 = vmul.f32 %v2516, 1.442695
  %v2635 = vpow.pop %v2634
  %v2636 = vmul.f32 %v2517, 1.442695
  %v2637 = vpow.pop %v2636
  %v2638 = vmul.f32 %v2518, 1.442695
  %v2639 = vpow.pop %v2638
  %v2640 = vmul.f32 %v2519, 1.442695
  %v2641 = vpow.pop %v2640
  %v2642 = vmul.f32 %v2520, 1.442695
  %v2643 = vpow.pop %v2642
  %v2644 = vmul.f32 %v2521, 1.442695
  %v2645 = vpow.pop %v2644
  %v2646 = vmul.f32 %v2522, 1.442695
  %v2647 = vpow.pop %v2646
  %v2648 = vmul.f32 %v2523, 1.442695
  %v2649 = vpow.pop %v2648
  %v2650 = vmul.f32 %v2524, 1.442695
  %v2651 = vpow.pop %v2650
  %v2652 = vmul.f32 %v2525, 1.442695
  %v2653 = vpow.pop %v2652
  %v2654 = vld [vmem:[#allocation3] sm:$0xff]
  %v2655 = vld [vmem:[#allocation3 + $0x8] sm:$0xff]
  %v2656 = vld [vmem:[#allocation3 + $0x10] sm:$0xff]
  %v2657 = vld [vmem:[#allocation3 + $0x18] sm:$0xff]
  %v2658 = vld [vmem:[#allocation3 + $0x20] sm:$0xff]
  %v2659 = vld [vmem:[#allocation3 + $0x28] sm:$0xff]
  %v2660 = vld [vmem:[#allocation3 + $0x30] sm:$0xff]
  %v2661 = vld [vmem:[#allocation3 + $0x38] sm:$0xff]
  %v2662 = vld [vmem:[#allocation3 + $0x40] sm:$0xff]
  %v2663 = vld [vmem:[#allocation3 + $0x48] sm:$0xff]
  %v2664 = vld [vmem:[#allocation3 + $0x50] sm:$0xff]
  %v2665 = vld [vmem:[#allocation3 + $0x58] sm:$0xff]
  %v2666 = vld [vmem:[#allocation3 + $0x60] sm:$0xff]
  %v2667 = vld [vmem:[#allocation3 + $0x68] sm:$0xff]
  %v2668 = vld [vmem:[#allocation3 + $0x70] sm:$0xff]
  %v2669 = vld [vmem:[#allocation3 + $0x78] sm:$0xff]
  %v2670 = vld [vmem:[#allocation3 + $0x80] sm:$0xff]
  %v2671 = vld [vmem:[#allocation3 + $0x88] sm:$0xff]
  %v2672 = vld [vmem:[#allocation3 + $0x90] sm:$0xff]
  %v2673 = vld [vmem:[#allocation3 + $0x98] sm:$0xff]
  %v2674 = vld [vmem:[#allocation3 + $0xa0] sm:$0xff]
  %v2675 = vld [vmem:[#allocation3 + $0xa8] sm:$0xff]
  %v2676 = vld [vmem:[#allocation3 + $0xb0] sm:$0xff]
  %v2677 = vld [vmem:[#allocation3 + $0xb8] sm:$0xff]
  %v2678 = vld [vmem:[#allocation3 + $0xc0] sm:$0xff]
  %v2679 = vld [vmem:[#allocation3 + $0xc8] sm:$0xff]
  %v2680 = vld [vmem:[#allocation3 + $0xd0] sm:$0xff]
  %v2681 = vld [vmem:[#allocation3 + $0xd8] sm:$0xff]
  %v2682 = vld [vmem:[#allocation3 + $0xe0] sm:$0xff]
  %v2683 = vld [vmem:[#allocation3 + $0xe8] sm:$0xff]
  %v2684 = vld [vmem:[#allocation3 + $0xf0] sm:$0xff]
  %v2685 = vld [vmem:[#allocation3 + $0xf8] sm:$0xff]
  %v2686 = vld [vmem:[#allocation3 + $0x100] sm:$0xff]
  %v2687 = vld [vmem:[#allocation3 + $0x108] sm:$0xff]
  %v2688 = vld [vmem:[#allocation3 + $0x110] sm:$0xff]
  %v2689 = vld [vmem:[#allocation3 + $0x118] sm:$0xff]
  %v2690 = vld [vmem:[#allocation3 + $0x120] sm:$0xff]
  %v2691 = vld [vmem:[#allocation3 + $0x128] sm:$0xff]
  %v2692 = vld [vmem:[#allocation3 + $0x130] sm:$0xff]
  %v2693 = vld [vmem:[#allocation3 + $0x138] sm:$0xff]
  %v2694 = vld [vmem:[#allocation3 + $0x140] sm:$0xff]
  %v2695 = vld [vmem:[#allocation3 + $0x148] sm:$0xff]
  %v2696 = vld [vmem:[#allocation3 + $0x150] sm:$0xff]
  %v2697 = vld [vmem:[#allocation3 + $0x158] sm:$0xff]
  %v2698 = vld [vmem:[#allocation3 + $0x160] sm:$0xff]
  %v2699 = vld [vmem:[#allocation3 + $0x168] sm:$0xff]
  %v2700 = vld [vmem:[#allocation3 + $0x170] sm:$0xff]
  %v2701 = vld [vmem:[#allocation3 + $0x178] sm:$0xff]
  %v2702 = vld [vmem:[#allocation3 + $0x180] sm:$0xff]
  %v2703 = vld [vmem:[#allocation3 + $0x188] sm:$0xff]
  %v2704 = vld [vmem:[#allocation3 + $0x190] sm:$0xff]
  %v2705 = vld [vmem:[#allocation3 + $0x198] sm:$0xff]
  %v2706 = vld [vmem:[#allocation3 + $0x1a0] sm:$0xff]
  %v2707 = vld [vmem:[#allocation3 + $0x1a8] sm:$0xff]
  %v2708 = vld [vmem:[#allocation3 + $0x1b0] sm:$0xff]
  %v2709 = vld [vmem:[#allocation3 + $0x1b8] sm:$0xff]
  %v2710 = vld [vmem:[#allocation3 + $0x1c0] sm:$0xff]
  %v2711 = vld [vmem:[#allocation3 + $0x1c8] sm:$0xff]
  %v2712 = vld [vmem:[#allocation3 + $0x1d0] sm:$0xff]
  %v2713 = vld [vmem:[#allocation3 + $0x1d8] sm:$0xff]
  %v2714 = vld [vmem:[#allocation3 + $0x1e0] sm:$0xff]
  %v2715 = vld [vmem:[#allocation3 + $0x1e8] sm:$0xff]
  %v2716 = vld [vmem:[#allocation3 + $0x1f0] sm:$0xff]
  %v2717 = vld [vmem:[#allocation3 + $0x1f8] sm:$0xff]
  %v2718 = vmul.f32 %v2015, %v2654
  %v2719 = vmul.f32 %v2017, %v2655
  %v2720 = vmul.f32 %v2019, %v2656
  %v2721 = vmul.f32 %v2021, %v2657
  %v2722 = vmul.f32 %v2023, %v2658
  %v2723 = vmul.f32 %v2025, %v2659
  %v2724 = vmul.f32 %v2027, %v2660
  %v2725 = vmul.f32 %v2029, %v2661
  %v2726 = vmul.f32 %v2031, %v2662
  %v2727 = vmul.f32 %v2033, %v2663
  %v2728 = vmul.f32 %v2035, %v2664
  %v2729 = vmul.f32 %v2037, %v2665
  %v2730 = vmul.f32 %v2039, %v2666
  %v2731 = vmul.f32 %v2041, %v2667
  %v2732 = vmul.f32 %v2043, %v2668
  %v2733 = vmul.f32 %v2045, %v2669
  %v2734 = vmul.f32 %v2047, %v2670
  %v2735 = vmul.f32 %v2049, %v2671
  %v2736 = vmul.f32 %v2051, %v2672
  %v2737 = vmul.f32 %v2053, %v2673
  %v2738 = vmul.f32 %v2055, %v2674
  %v2739 = vmul.f32 %v2057, %v2675
  %v2740 = vmul.f32 %v2059, %v2676
  %v2741 = vmul.f32 %v2061, %v2677
  %v2742 = vmul.f32 %v2063, %v2678
  %v2743 = vmul.f32 %v2065, %v2679
  %v2744 = vmul.f32 %v2067, %v2680
  %v2745 = vmul.f32 %v2069, %v2681
  %v2746 = vmul.f32 %v2071, %v2682
  %v2747 = vmul.f32 %v2073, %v2683
  %v2748 = vmul.f32 %v2075, %v2684
  %v2749 = vmul.f32 %v2077, %v2685
  %v2750 = vmul.f32 %v2079, %v2686
  %v2751 = vmul.f32 %v2081, %v2687
  %v2752 = vmul.f32 %v2083, %v2688
  %v2753 = vmul.f32 %v2085, %v2689
  %v2754 = vmul.f32 %v2087, %v2690
  %v2755 = vmul.f32 %v2089, %v2691
  %v2756 = vmul.f32 %v2091, %v2692
  %v2757 = vmul.f32 %v2093, %v2693
  %v2758 = vmul.f32 %v2095, %v2694
  %v2759 = vmul.f32 %v2097, %v2695
  %v2760 = vmul.f32 %v2099, %v2696
  %v2761 = vmul.f32 %v2101, %v2697
  %v2762 = vmul.f32 %v2103, %v2698
  %v2763 = vmul.f32 %v2105, %v2699
  %v2764 = vmul.f32 %v2107, %v2700
  %v2765 = vmul.f32 %v2109, %v2701
  %v2766 = vmul.f32 %v2111, %v2702
  %v2767 = vmul.f32 %v2113, %v2703
  %v2768 = vmul.f32 %v2115, %v2704
  %v2769 = vmul.f32 %v2117, %v2705
  %v2770 = vmul.f32 %v2119, %v2706
  %v2771 = vmul.f32 %v2121, %v2707
  %v2772 = vmul.f32 %v2123, %v2708
  %v2773 = vmul.f32 %v2125, %v2709
  %v2774 = vmul.f32 %v2127, %v2710
  %v2775 = vmul.f32 %v2129, %v2711
  %v2776 = vmul.f32 %v2131, %v2712
  %v2777 = vmul.f32 %v2133, %v2713
  %v2778 = vmul.f32 %v2135, %v2714
  %v2779 = vmul.f32 %v2137, %v2715
  %v2780 = vmul.f32 %v2139, %v2716
  %v2781 = vmul.f32 %v2141, %v2717
  %v2782 = vsel %vm1693, %v2527, 0.0
  %2783 = vadd.xlane.f32.xlu0 %v2782
  %v2784 = vpop.xlane.xlu0 %2783
  %v2785 = vsel %vm1693, %v2529, 0.0
  %2786 = vadd.xlane.f32.xlu0 %v2785
  %v2787 = vpop.xlane.xlu0 %2786
  %v2788 = vsel %vm1693, %v2531, 0.0
  %2789 = vadd.xlane.f32.xlu0 %v2788
  %v2790 = vpop.xlane.xlu0 %2789
  %v2791 = vsel %vm1693, %v2533, 0.0
  %2792 = vadd.xlane.f32.xlu0 %v2791
  %v2793 = vpop.xlane.xlu0 %2792
  %v2794 = vsel %vm1693, %v2535, 0.0
  %2795 = vadd.xlane.f32.xlu0 %v2794
  %v2796 = vpop.xlane.xlu0 %2795
  %v2797 = vsel %vm1693, %v2537, 0.0
  %2798 = vadd.xlane.f32.xlu0 %v2797
  %v2799 = vpop.xlane.xlu0 %2798
  %v2800 = vsel %vm1693, %v2539, 0.0
  %2801 = vadd.xlane.f32.xlu0 %v2800
  %v2802 = vpop.xlane.xlu0 %2801
  %v2803 = vsel %vm1693, %v2541, 0.0
  %2804 = vadd.xlane.f32.xlu0 %v2803
  %v2805 = vpop.xlane.xlu0 %2804
  %v2806 = vsel %vm1693, %v2543, 0.0
  %2807 = vadd.xlane.f32.xlu0 %v2806
  %v2808 = vpop.xlane.xlu0 %2807
  %v2809 = vsel %vm1693, %v2545, 0.0
  %2810 = vadd.xlane.f32.xlu0 %v2809
  %v2811 = vpop.xlane.xlu0 %2810
  %v2812 = vsel %vm1693, %v2547, 0.0
  %2813 = vadd.xlane.f32.xlu0 %v2812
  %v2814 = vpop.xlane.xlu0 %2813
  %v2815 = vsel %vm1693, %v2549, 0.0
  %2816 = vadd.xlane.f32.xlu0 %v2815
  %v2817 = vpop.xlane.xlu0 %2816
  %v2818 = vsel %vm1693, %v2551, 0.0
  %2819 = vadd.xlane.f32.xlu0 %v2818
  %v2820 = vpop.xlane.xlu0 %2819
  %v2821 = vsel %vm1693, %v2553, 0.0
  %2822 = vadd.xlane.f32.xlu0 %v2821
  %v2823 = vpop.xlane.xlu0 %2822
  %v2824 = vsel %vm1693, %v2555, 0.0
  %2825 = vadd.xlane.f32.xlu0 %v2824
  %v2826 = vpop.xlane.xlu0 %2825
  %v2827 = vsel %vm1693, %v2557, 0.0
  %2828 = vadd.xlane.f32.xlu0 %v2827
  %v2829 = vpop.xlane.xlu0 %2828
  %v2830 = vsel %vm1693, %v2559, 0.0
  %2831 = vadd.xlane.f32.xlu0 %v2830
  %v2832 = vpop.xlane.xlu0 %2831
  %v2833 = vsel %vm1693, %v2561, 0.0
  %2834 = vadd.xlane.f32.xlu0 %v2833
  %v2835 = vpop.xlane.xlu0 %2834
  %v2836 = vsel %vm1693, %v2563, 0.0
  %2837 = vadd.xlane.f32.xlu0 %v2836
  %v2838 = vpop.xlane.xlu0 %2837
  %v2839 = vsel %vm1693, %v2565, 0.0
  %2840 = vadd.xlane.f32.xlu0 %v2839
  %v2841 = vpop.xlane.xlu0 %2840
  %v2842 = vsel %vm1693, %v2567, 0.0
  %2843 = vadd.xlane.f32.xlu0 %v2842
  %v2844 = vpop.xlane.xlu0 %2843
  %v2845 = vsel %vm1693, %v2569, 0.0
  %2846 = vadd.xlane.f32.xlu0 %v2845
  %v2847 = vpop.xlane.xlu0 %2846
  %v2848 = vsel %vm1693, %v2571, 0.0
  %2849 = vadd.xlane.f32.xlu0 %v2848
  %v2850 = vpop.xlane.xlu0 %2849
  %v2851 = vsel %vm1693, %v2573, 0.0
  %2852 = vadd.xlane.f32.xlu0 %v2851
  %v2853 = vpop.xlane.xlu0 %2852
  %v2854 = vsel %vm1693, %v2575, 0.0
  %2855 = vadd.xlane.f32.xlu0 %v2854
  %v2856 = vpop.xlane.xlu0 %2855
  %v2857 = vsel %vm1693, %v2577, 0.0
  %2858 = vadd.xlane.f32.xlu0 %v2857
  %v2859 = vpop.xlane.xlu0 %2858
  %v2860 = vsel %vm1693, %v2579, 0.0
  %2861 = vadd.xlane.f32.xlu0 %v2860
  %v2862 = vpop.xlane.xlu0 %2861
  %v2863 = vsel %vm1693, %v2581, 0.0
  %2864 = vadd.xlane.f32.xlu0 %v2863
  %v2865 = vpop.xlane.xlu0 %2864
  %v2866 = vsel %vm1693, %v2583, 0.0
  %2867 = vadd.xlane.f32.xlu0 %v2866
  %v2868 = vpop.xlane.xlu0 %2867
  %v2869 = vsel %vm1693, %v2585, 0.0
  %2870 = vadd.xlane.f32.xlu0 %v2869
  %v2871 = vpop.xlane.xlu0 %2870
  %v2872 = vsel %vm1693, %v2587, 0.0
  %2873 = vadd.xlane.f32.xlu0 %v2872
  %v2874 = vpop.xlane.xlu0 %2873
  %v2875 = vsel %vm1693, %v2589, 0.0
  %2876 = vadd.xlane.f32.xlu0 %v2875
  %v2877 = vpop.xlane.xlu0 %2876
  %v2878 = vsel %vm1693, %v2591, 0.0
  %2879 = vadd.xlane.f32.xlu0 %v2878
  %v2880 = vpop.xlane.xlu0 %2879
  %v2881 = vsel %vm1693, %v2593, 0.0
  %2882 = vadd.xlane.f32.xlu0 %v2881
  %v2883 = vpop.xlane.xlu0 %2882
  %v2884 = vsel %vm1693, %v2595, 0.0
  %2885 = vadd.xlane.f32.xlu0 %v2884
  %v2886 = vpop.xlane.xlu0 %2885
  %v2887 = vsel %vm1693, %v2597, 0.0
  %2888 = vadd.xlane.f32.xlu0 %v2887
  %v2889 = vpop.xlane.xlu0 %2888
  %v2890 = vsel %vm1693, %v2599, 0.0
  %2891 = vadd.xlane.f32.xlu0 %v2890
  %v2892 = vpop.xlane.xlu0 %2891
  %v2893 = vsel %vm1693, %v2601, 0.0
  %2894 = vadd.xlane.f32.xlu0 %v2893
  %v2895 = vpop.xlane.xlu0 %2894
  %v2896 = vsel %vm1693, %v2603, 0.0
  %2897 = vadd.xlane.f32.xlu0 %v2896
  %v2898 = vpop.xlane.xlu0 %2897
  %v2899 = vsel %vm1693, %v2605, 0.0
  %2900 = vadd.xlane.f32.xlu0 %v2899
  %v2901 = vpop.xlane.xlu0 %2900
  %v2902 = vsel %vm1693, %v2607, 0.0
  %2903 = vadd.xlane.f32.xlu0 %v2902
  %v2904 = vpop.xlane.xlu0 %2903
  %v2905 = vsel %vm1693, %v2609, 0.0
  %2906 = vadd.xlane.f32.xlu0 %v2905
  %v2907 = vpop.xlane.xlu0 %2906
  %v2908 = vsel %vm1693, %v2611, 0.0
  %2909 = vadd.xlane.f32.xlu0 %v2908
  %v2910 = vpop.xlane.xlu0 %2909
  %v2911 = vsel %vm1693, %v2613, 0.0
  %2912 = vadd.xlane.f32.xlu0 %v2911
  %v2913 = vpop.xlane.xlu0 %2912
  %v2914 = vsel %vm1693, %v2615, 0.0
  %2915 = vadd.xlane.f32.xlu0 %v2914
  %v2916 = vpop.xlane.xlu0 %2915
  %v2917 = vsel %vm1693, %v2617, 0.0
  %2918 = vadd.xlane.f32.xlu0 %v2917
  %v2919 = vpop.xlane.xlu0 %2918
  %v2920 = vsel %vm1693, %v2619, 0.0
  %2921 = vadd.xlane.f32.xlu0 %v2920
  %v2922 = vpop.xlane.xlu0 %2921
  %v2923 = vsel %vm1693, %v2621, 0.0
  %2924 = vadd.xlane.f32.xlu0 %v2923
  %v2925 = vpop.xlane.xlu0 %2924
  %v2926 = vsel %vm1693, %v2623, 0.0
  %2927 = vadd.xlane.f32.xlu0 %v2926
  %v2928 = vpop.xlane.xlu0 %2927
  %v2929 = vsel %vm1693, %v2625, 0.0
  %2930 = vadd.xlane.f32.xlu0 %v2929
  %v2931 = vpop.xlane.xlu0 %2930
  %v2932 = vsel %vm1693, %v2627, 0.0
  %2933 = vadd.xlane.f32.xlu0 %v2932
  %v2934 = vpop.xlane.xlu0 %2933
  %v2935 = vsel %vm1693, %v2629, 0.0
  %2936 = vadd.xlane.f32.xlu0 %v2935
  %v2937 = vpop.xlane.xlu0 %2936
  %v2938 = vsel %vm1693, %v2631, 0.0
  %2939 = vadd.xlane.f32.xlu0 %v2938
  %v2940 = vpop.xlane.xlu0 %2939
  %v2941 = vsel %vm1693, %v2633, 0.0
  %2942 = vadd.xlane.f32.xlu0 %v2941
  %v2943 = vpop.xlane.xlu0 %2942
  %v2944 = vsel %vm1693, %v2635, 0.0
  %2945 = vadd.xlane.f32.xlu0 %v2944
  %v2946 = vpop.xlane.xlu0 %2945
  %v2947 = vsel %vm1693, %v2637, 0.0
  %2948 = vadd.xlane.f32.xlu0 %v2947
  %v2949 = vpop.xlane.xlu0 %2948
  %v2950 = vsel %vm1693, %v2639, 0.0
  %2951 = vadd.xlane.f32.xlu0 %v2950
  %v2952 = vpop.xlane.xlu0 %2951
  %v2953 = vsel %vm1693, %v2641, 0.0
  %2954 = vadd.xlane.f32.xlu0 %v2953
  %v2955 = vpop.xlane.xlu0 %2954
  %v2956 = vsel %vm1693, %v2643, 0.0
  %2957 = vadd.xlane.f32.xlu0 %v2956
  %v2958 = vpop.xlane.xlu0 %2957
  %v2959 = vsel %vm1693, %v2645, 0.0
  %2960 = vadd.xlane.f32.xlu0 %v2959
  %v2961 = vpop.xlane.xlu0 %2960
  %v2962 = vsel %vm1693, %v2647, 0.0
  %2963 = vadd.xlane.f32.xlu0 %v2962
  %v2964 = vpop.xlane.xlu0 %2963
  %v2965 = vsel %vm1693, %v2649, 0.0
  %2966 = vadd.xlane.f32.xlu0 %v2965
  %v2967 = vpop.xlane.xlu0 %2966
  %v2968 = vsel %vm1693, %v2651, 0.0
  %2969 = vadd.xlane.f32.xlu0 %v2968
  %v2970 = vpop.xlane.xlu0 %2969
  %v2971 = vsel %vm1693, %v2653, 0.0
  %2972 = vadd.xlane.f32.xlu0 %v2971
  %v2973 = vpop.xlane.xlu0 %2972
  %v2974 = vadd.f32 %v2718, %v2784
  %v2975 = vadd.f32 %v2719, %v2787
  %v2976 = vadd.f32 %v2720, %v2790
  %v2977 = vadd.f32 %v2721, %v2793
  %v2978 = vadd.f32 %v2722, %v2796
  %v2979 = vadd.f32 %v2723, %v2799
  %v2980 = vadd.f32 %v2724, %v2802
  %v2981 = vadd.f32 %v2725, %v2805
  %v2982 = vadd.f32 %v2726, %v2808
  %v2983 = vadd.f32 %v2727, %v2811
  %v2984 = vadd.f32 %v2728, %v2814
  %v2985 = vadd.f32 %v2729, %v2817
  %v2986 = vadd.f32 %v2730, %v2820
  %v2987 = vadd.f32 %v2731, %v2823
  %v2988 = vadd.f32 %v2732, %v2826
  %v2989 = vadd.f32 %v2733, %v2829
  %v2990 = vadd.f32 %v2734, %v2832
  %v2991 = vadd.f32 %v2735, %v2835
  %v2992 = vadd.f32 %v2736, %v2838
  %v2993 = vadd.f32 %v2737, %v2841
  %v2994 = vadd.f32 %v2738, %v2844
  %v2995 = vadd.f32 %v2739, %v2847
  %v2996 = vadd.f32 %v2740, %v2850
  %v2997 = vadd.f32 %v2741, %v2853
  %v2998 = vadd.f32 %v2742, %v2856
  %v2999 = vadd.f32 %v2743, %v2859
  %v3000 = vadd.f32 %v2744, %v2862
  %v3001 = vadd.f32 %v2745, %v2865
  %v3002 = vadd.f32 %v2746, %v2868
  %v3003 = vadd.f32 %v2747, %v2871
  %v3004 = vadd.f32 %v2748, %v2874
  %v3005 = vadd.f32 %v2749, %v2877
  %v3006 = vadd.f32 %v2750, %v2880
  %v3007 = vadd.f32 %v2751, %v2883
  %v3008 = vadd.f32 %v2752, %v2886
  %v3009 = vadd.f32 %v2753, %v2889
  %v3010 = vadd.f32 %v2754, %v2892
  %v3011 = vadd.f32 %v2755, %v2895
  %v3012 = vadd.f32 %v2756, %v2898
  %v3013 = vadd.f32 %v2757, %v2901
  %v3014 = vadd.f32 %v2758, %v2904
  %v3015 = vadd.f32 %v2759, %v2907
  %v3016 = vadd.f32 %v2760, %v2910
  %v3017 = vadd.f32 %v2761, %v2913
  %v3018 = vadd.f32 %v2762, %v2916
  %v3019 = vadd.f32 %v2763, %v2919
  %v3020 = vadd.f32 %v2764, %v2922
  %v3021 = vadd.f32 %v2765, %v2925
  %v3022 = vadd.f32 %v2766, %v2928
  %v3023 = vadd.f32 %v2767, %v2931
  %v3024 = vadd.f32 %v2768, %v2934
  %v3025 = vadd.f32 %v2769, %v2937
  %v3026 = vadd.f32 %v2770, %v2940
  %v3027 = vadd.f32 %v2771, %v2943
  %v3028 = vadd.f32 %v2772, %v2946
  %v3029 = vadd.f32 %v2773, %v2949
  %v3030 = vadd.f32 %v2774, %v2952
  %v3031 = vadd.f32 %v2775, %v2955
  %v3032 = vadd.f32 %v2776, %v2958
  %v3033 = vadd.f32 %v2777, %v2961
  %v3034 = vadd.f32 %v2778, %v2964
  %v3035 = vadd.f32 %v2779, %v2967
  %v3036 = vadd.f32 %v2780, %v2970
  %v3037 = vadd.f32 %v2781, %v2973
  %vm3038 = vcmask 7168
  %3039 = vst.msk [vmem:[#allocation3] sm:$0xff] %vm3038, %v2974
  %3040 = vst.msk [vmem:[#allocation3 + $0x8] sm:$0xff] %vm3038, %v2975
  %3041 = vst.msk [vmem:[#allocation3 + $0x10] sm:$0xff] %vm3038, %v2976
  %3042 = vst.msk [vmem:[#allocation3 + $0x18] sm:$0xff] %vm3038, %v2977
  %3043 = vst.msk [vmem:[#allocation3 + $0x20] sm:$0xff] %vm3038, %v2978
  %3044 = vst.msk [vmem:[#allocation3 + $0x28] sm:$0xff] %vm3038, %v2979
  %3045 = vst.msk [vmem:[#allocation3 + $0x30] sm:$0xff] %vm3038, %v2980
  %3046 = vst.msk [vmem:[#allocation3 + $0x38] sm:$0xff] %vm3038, %v2981
  %3047 = vst.msk [vmem:[#allocation3 + $0x40] sm:$0xff] %vm3038, %v2982
  %3048 = vst.msk [vmem:[#allocation3 + $0x48] sm:$0xff] %vm3038, %v2983
  %3049 = vst.msk [vmem:[#allocation3 + $0x50] sm:$0xff] %vm3038, %v2984
  %3050 = vst.msk [vmem:[#allocation3 + $0x58] sm:$0xff] %vm3038, %v2985
  %3051 = vst.msk [vmem:[#allocation3 + $0x60] sm:$0xff] %vm3038, %v2986
  %3052 = vst.msk [vmem:[#allocation3 + $0x68] sm:$0xff] %vm3038, %v2987
  %3053 = vst.msk [vmem:[#allocation3 + $0x70] sm:$0xff] %vm3038, %v2988
  %3054 = vst.msk [vmem:[#allocation3 + $0x78] sm:$0xff] %vm3038, %v2989
  %3055 = vst.msk [vmem:[#allocation3 + $0x80] sm:$0xff] %vm3038, %v2990
  %3056 = vst.msk [vmem:[#allocation3 + $0x88] sm:$0xff] %vm3038, %v2991
  %3057 = vst.msk [vmem:[#allocation3 + $0x90] sm:$0xff] %vm3038, %v2992
  %3058 = vst.msk [vmem:[#allocation3 + $0x98] sm:$0xff] %vm3038, %v2993
  %3059 = vst.msk [vmem:[#allocation3 + $0xa0] sm:$0xff] %vm3038, %v2994
  %3060 = vst.msk [vmem:[#allocation3 + $0xa8] sm:$0xff] %vm3038, %v2995
  %3061 = vst.msk [vmem:[#allocation3 + $0xb0] sm:$0xff] %vm3038, %v2996
  %3062 = vst.msk [vmem:[#allocation3 + $0xb8] sm:$0xff] %vm3038, %v2997
  %3063 = vst.msk [vmem:[#allocation3 + $0xc0] sm:$0xff] %vm3038, %v2998
  %3064 = vst.msk [vmem:[#allocation3 + $0xc8] sm:$0xff] %vm3038, %v2999
  %3065 = vst.msk [vmem:[#allocation3 + $0xd0] sm:$0xff] %vm3038, %v3000
  %3066 = vst.msk [vmem:[#allocation3 + $0xd8] sm:$0xff] %vm3038, %v3001
  %3067 = vst.msk [vmem:[#allocation3 + $0xe0] sm:$0xff] %vm3038, %v3002
  %3068 = vst.msk [vmem:[#allocation3 + $0xe8] sm:$0xff] %vm3038, %v3003
  %3069 = vst.msk [vmem:[#allocation3 + $0xf0] sm:$0xff] %vm3038, %v3004
  %3070 = vst.msk [vmem:[#allocation3 + $0xf8] sm:$0xff] %vm3038, %v3005
  %3071 = vst.msk [vmem:[#allocation3 + $0x100] sm:$0xff] %vm3038, %v3006
  %3072 = vst.msk [vmem:[#allocation3 + $0x108] sm:$0xff] %vm3038, %v3007
  %3073 = vst.msk [vmem:[#allocation3 + $0x110] sm:$0xff] %vm3038, %v3008
  %3074 = vst.msk [vmem:[#allocation3 + $0x118] sm:$0xff] %vm3038, %v3009
  %3075 = vst.msk [vmem:[#allocation3 + $0x120] sm:$0xff] %vm3038, %v3010
  %3076 = vst.msk [vmem:[#allocation3 + $0x128] sm:$0xff] %vm3038, %v3011
  %3077 = vst.msk [vmem:[#allocation3 + $0x130] sm:$0xff] %vm3038, %v3012
  %3078 = vst.msk [vmem:[#allocation3 + $0x138] sm:$0xff] %vm3038, %v3013
  %3079 = vst.msk [vmem:[#allocation3 + $0x140] sm:$0xff] %vm3038, %v3014
  %3080 = vst.msk [vmem:[#allocation3 + $0x148] sm:$0xff] %vm3038, %v3015
  %3081 = vst.msk [vmem:[#allocation3 + $0x150] sm:$0xff] %vm3038, %v3016
  %3082 = vst.msk [vmem:[#allocation3 + $0x158] sm:$0xff] %vm3038, %v3017
  %3083 = vst.msk [vmem:[#allocation3 + $0x160] sm:$0xff] %vm3038, %v3018
  %3084 = vst.msk [vmem:[#allocation3 + $0x168] sm:$0xff] %vm3038, %v3019
  %3085 = vst.msk [vmem:[#allocation3 + $0x170] sm:$0xff] %vm3038, %v3020
  %3086 = vst.msk [vmem:[#allocation3 + $0x178] sm:$0xff] %vm3038, %v3021
  %3087 = vst.msk [vmem:[#allocation3 + $0x180] sm:$0xff] %vm3038, %v3022
  %3088 = vst.msk [vmem:[#allocation3 + $0x188] sm:$0xff] %vm3038, %v3023
  %3089 = vst.msk [vmem:[#allocation3 + $0x190] sm:$0xff] %vm3038, %v3024
  %3090 = vst.msk [vmem:[#allocation3 + $0x198] sm:$0xff] %vm3038, %v3025
  %3091 = vst.msk [vmem:[#allocation3 + $0x1a0] sm:$0xff] %vm3038, %v3026
  %3092 = vst.msk [vmem:[#allocation3 + $0x1a8] sm:$0xff] %vm3038, %v3027
  %3093 = vst.msk [vmem:[#allocation3 + $0x1b0] sm:$0xff] %vm3038, %v3028
  %3094 = vst.msk [vmem:[#allocation3 + $0x1b8] sm:$0xff] %vm3038, %v3029
  %3095 = vst.msk [vmem:[#allocation3 + $0x1c0] sm:$0xff] %vm3038, %v3030
  %3096 = vst.msk [vmem:[#allocation3 + $0x1c8] sm:$0xff] %vm3038, %v3031
  %3097 = vst.msk [vmem:[#allocation3 + $0x1d0] sm:$0xff] %vm3038, %v3032
  %3098 = vst.msk [vmem:[#allocation3 + $0x1d8] sm:$0xff] %vm3038, %v3033
  %3099 = vst.msk [vmem:[#allocation3 + $0x1e0] sm:$0xff] %vm3038, %v3034
  %3100 = vst.msk [vmem:[#allocation3 + $0x1e8] sm:$0xff] %vm3038, %v3035
  %3101 = vst.msk [vmem:[#allocation3 + $0x1f0] sm:$0xff] %vm3038, %v3036
  %3102 = vst.msk [vmem:[#allocation3 + $0x1f8] sm:$0xff] %vm3038, %v3037
  %v3103 = vld [vmem:[#allocation4] sm:$0xff]
  %v3104 = vld [vmem:[#allocation4 + $0x8] sm:$0xff]
  %v3105 = vld [vmem:[#allocation4 + $0x10] sm:$0xff]
  %v3106 = vld [vmem:[#allocation4 + $0x18] sm:$0xff]
  %v3107 = vld [vmem:[#allocation4 + $0x20] sm:$0xff]
  %v3108 = vld [vmem:[#allocation4 + $0x28] sm:$0xff]
  %v3109 = vld [vmem:[#allocation4 + $0x30] sm:$0xff]
  %v3110 = vld [vmem:[#allocation4 + $0x38] sm:$0xff]
  %v3111 = vld [vmem:[#allocation4 + $0x40] sm:$0xff]
  %v3112 = vld [vmem:[#allocation4 + $0x48] sm:$0xff]
  %v3113 = vld [vmem:[#allocation4 + $0x50] sm:$0xff]
  %v3114 = vld [vmem:[#allocation4 + $0x58] sm:$0xff]
  %v3115 = vld [vmem:[#allocation4 + $0x60] sm:$0xff]
  %v3116 = vld [vmem:[#allocation4 + $0x68] sm:$0xff]
  %v3117 = vld [vmem:[#allocation4 + $0x70] sm:$0xff]
  %v3118 = vld [vmem:[#allocation4 + $0x78] sm:$0xff]
  %v3119 = vld [vmem:[#allocation4 + $0x80] sm:$0xff]
  %v3120 = vld [vmem:[#allocation4 + $0x88] sm:$0xff]
  %v3121 = vld [vmem:[#allocation4 + $0x90] sm:$0xff]
  %v3122 = vld [vmem:[#allocation4 + $0x98] sm:$0xff]
  %v3123 = vld [vmem:[#allocation4 + $0xa0] sm:$0xff]
  %v3124 = vld [vmem:[#allocation4 + $0xa8] sm:$0xff]
  %v3125 = vld [vmem:[#allocation4 + $0xb0] sm:$0xff]
  %v3126 = vld [vmem:[#allocation4 + $0xb8] sm:$0xff]
  %v3127 = vld [vmem:[#allocation4 + $0xc0] sm:$0xff]
  %v3128 = vld [vmem:[#allocation4 + $0xc8] sm:$0xff]
  %v3129 = vld [vmem:[#allocation4 + $0xd0] sm:$0xff]
  %v3130 = vld [vmem:[#allocation4 + $0xd8] sm:$0xff]
  %v3131 = vld [vmem:[#allocation4 + $0xe0] sm:$0xff]
  %v3132 = vld [vmem:[#allocation4 + $0xe8] sm:$0xff]
  %v3133 = vld [vmem:[#allocation4 + $0xf0] sm:$0xff]
  %v3134 = vld [vmem:[#allocation4 + $0xf8] sm:$0xff]
  %v3135 = vld [vmem:[#allocation4 + $0x100] sm:$0xff]
  %v3136 = vld [vmem:[#allocation4 + $0x108] sm:$0xff]
  %v3137 = vld [vmem:[#allocation4 + $0x110] sm:$0xff]
  %v3138 = vld [vmem:[#allocation4 + $0x118] sm:$0xff]
  %v3139 = vld [vmem:[#allocation4 + $0x120] sm:$0xff]
  %v3140 = vld [vmem:[#allocation4 + $0x128] sm:$0xff]
  %v3141 = vld [vmem:[#allocation4 + $0x130] sm:$0xff]
  %v3142 = vld [vmem:[#allocation4 + $0x138] sm:$0xff]
  %v3143 = vld [vmem:[#allocation4 + $0x140] sm:$0xff]
  %v3144 = vld [vmem:[#allocation4 + $0x148] sm:$0xff]
  %v3145 = vld [vmem:[#allocation4 + $0x150] sm:$0xff]
  %v3146 = vld [vmem:[#allocation4 + $0x158] sm:$0xff]
  %v3147 = vld [vmem:[#allocation4 + $0x160] sm:$0xff]
  %v3148 = vld [vmem:[#allocation4 + $0x168] sm:$0xff]
  %v3149 = vld [vmem:[#allocation4 + $0x170] sm:$0xff]
  %v3150 = vld [vmem:[#allocation4 + $0x178] sm:$0xff]
  %v3151 = vld [vmem:[#allocation4 + $0x180] sm:$0xff]
  %v3152 = vld [vmem:[#allocation4 + $0x188] sm:$0xff]
  %v3153 = vld [vmem:[#allocation4 + $0x190] sm:$0xff]
  %v3154 = vld [vmem:[#allocation4 + $0x198] sm:$0xff]
  %v3155 = vld [vmem:[#allocation4 + $0x1a0] sm:$0xff]
  %v3156 = vld [vmem:[#allocation4 + $0x1a8] sm:$0xff]
  %v3157 = vld [vmem:[#allocation4 + $0x1b0] sm:$0xff]
  %v3158 = vld [vmem:[#allocation4 + $0x1b8] sm:$0xff]
  %v3159 = vld [vmem:[#allocation4 + $0x1c0] sm:$0xff]
  %v3160 = vld [vmem:[#allocation4 + $0x1c8] sm:$0xff]
  %v3161 = vld [vmem:[#allocation4 + $0x1d0] sm:$0xff]
  %v3162 = vld [vmem:[#allocation4 + $0x1d8] sm:$0xff]
  %v3163 = vld [vmem:[#allocation4 + $0x1e0] sm:$0xff]
  %v3164 = vld [vmem:[#allocation4 + $0x1e8] sm:$0xff]
  %v3165 = vld [vmem:[#allocation4 + $0x1f0] sm:$0xff]
  %v3166 = vld [vmem:[#allocation4 + $0x1f8] sm:$0xff]
  %3168 = vset.pattern.permute.xlu0 0
  %3169 = vperm.xlu0 %3168, %v2015
  %v3170 = vpop.permute.xlu0 %3169
  %3173 = vset.pattern.permute.xlu0 0
  %3174 = vperm.xlu0 %3173, %v2017
  %v3175 = vpop.permute.xlu0 %3174
  %3178 = vset.pattern.permute.xlu0 0
  %3179 = vperm.xlu0 %3178, %v2019
  %v3180 = vpop.permute.xlu0 %3179
  %3183 = vset.pattern.permute.xlu0 0
  %3184 = vperm.xlu0 %3183, %v2021
  %v3185 = vpop.permute.xlu0 %3184
  %3188 = vset.pattern.permute.xlu0 0
  %3189 = vperm.xlu0 %3188, %v2023
  %v3190 = vpop.permute.xlu0 %3189
  %3193 = vset.pattern.permute.xlu0 0
  %3194 = vperm.xlu0 %3193, %v2025
  %v3195 = vpop.permute.xlu0 %3194
  %3198 = vset.pattern.permute.xlu0 0
  %3199 = vperm.xlu0 %3198, %v2027
  %v3200 = vpop.permute.xlu0 %3199
  %3203 = vset.pattern.permute.xlu0 0
  %3204 = vperm.xlu0 %3203, %v2029
  %v3205 = vpop.permute.xlu0 %3204
  %3208 = vset.pattern.permute.xlu0 0
  %3209 = vperm.xlu0 %3208, %v2031
  %v3210 = vpop.permute.xlu0 %3209
  %3213 = vset.pattern.permute.xlu0 0
  %3214 = vperm.xlu0 %3213, %v2033
  %v3215 = vpop.permute.xlu0 %3214
  %3218 = vset.pattern.permute.xlu0 0
  %3219 = vperm.xlu0 %3218, %v2035
  %v3220 = vpop.permute.xlu0 %3219
  %3223 = vset.pattern.permute.xlu0 0
  %3224 = vperm.xlu0 %3223, %v2037
  %v3225 = vpop.permute.xlu0 %3224
  %3228 = vset.pattern.permute.xlu0 0
  %3229 = vperm.xlu0 %3228, %v2039
  %v3230 = vpop.permute.xlu0 %3229
  %3233 = vset.pattern.permute.xlu0 0
  %3234 = vperm.xlu0 %3233, %v2041
  %v3235 = vpop.permute.xlu0 %3234
  %3238 = vset.pattern.permute.xlu0 0
  %3239 = vperm.xlu0 %3238, %v2043
  %v3240 = vpop.permute.xlu0 %3239
  %3243 = vset.pattern.permute.xlu0 0
  %3244 = vperm.xlu0 %3243, %v2045
  %v3245 = vpop.permute.xlu0 %3244
  %3248 = vset.pattern.permute.xlu0 0
  %3249 = vperm.xlu0 %3248, %v2047
  %v3250 = vpop.permute.xlu0 %3249
  %3253 = vset.pattern.permute.xlu0 0
  %3254 = vperm.xlu0 %3253, %v2049
  %v3255 = vpop.permute.xlu0 %3254
  %3258 = vset.pattern.permute.xlu0 0
  %3259 = vperm.xlu0 %3258, %v2051
  %v3260 = vpop.permute.xlu0 %3259
  %3263 = vset.pattern.permute.xlu0 0
  %3264 = vperm.xlu0 %3263, %v2053
  %v3265 = vpop.permute.xlu0 %3264
  %3268 = vset.pattern.permute.xlu0 0
  %3269 = vperm.xlu0 %3268, %v2055
  %v3270 = vpop.permute.xlu0 %3269
  %3273 = vset.pattern.permute.xlu0 0
  %3274 = vperm.xlu0 %3273, %v2057
  %v3275 = vpop.permute.xlu0 %3274
  %3278 = vset.pattern.permute.xlu0 0
  %3279 = vperm.xlu0 %3278, %v2059
  %v3280 = vpop.permute.xlu0 %3279
  %3283 = vset.pattern.permute.xlu0 0
  %3284 = vperm.xlu0 %3283, %v2061
  %v3285 = vpop.permute.xlu0 %3284
  %3288 = vset.pattern.permute.xlu0 0
  %3289 = vperm.xlu0 %3288, %v2063
  %v3290 = vpop.permute.xlu0 %3289
  %3293 = vset.pattern.permute.xlu0 0
  %3294 = vperm.xlu0 %3293, %v2065
  %v3295 = vpop.permute.xlu0 %3294
  %3298 = vset.pattern.permute.xlu0 0
  %3299 = vperm.xlu0 %3298, %v2067
  %v3300 = vpop.permute.xlu0 %3299
  %3303 = vset.pattern.permute.xlu0 0
  %3304 = vperm.xlu0 %3303, %v2069
  %v3305 = vpop.permute.xlu0 %3304
  %3308 = vset.pattern.permute.xlu0 0
  %3309 = vperm.xlu0 %3308, %v2071
  %v3310 = vpop.permute.xlu0 %3309
  %3313 = vset.pattern.permute.xlu0 0
  %3314 = vperm.xlu0 %3313, %v2073
  %v3315 = vpop.permute.xlu0 %3314
  %3318 = vset.pattern.permute.xlu0 0
  %3319 = vperm.xlu0 %3318, %v2075
  %v3320 = vpop.permute.xlu0 %3319
  %3323 = vset.pattern.permute.xlu0 0
  %3324 = vperm.xlu0 %3323, %v2077
  %v3325 = vpop.permute.xlu0 %3324
  %3328 = vset.pattern.permute.xlu0 0
  %3329 = vperm.xlu0 %3328, %v2079
  %v3330 = vpop.permute.xlu0 %3329
  %3333 = vset.pattern.permute.xlu0 0
  %3334 = vperm.xlu0 %3333, %v2081
  %v3335 = vpop.permute.xlu0 %3334
  %3338 = vset.pattern.permute.xlu0 0
  %3339 = vperm.xlu0 %3338, %v2083
  %v3340 = vpop.permute.xlu0 %3339
  %3343 = vset.pattern.permute.xlu0 0
  %3344 = vperm.xlu0 %3343, %v2085
  %v3345 = vpop.permute.xlu0 %3344
  %3348 = vset.pattern.permute.xlu0 0
  %3349 = vperm.xlu0 %3348, %v2087
  %v3350 = vpop.permute.xlu0 %3349
  %3353 = vset.pattern.permute.xlu0 0
  %3354 = vperm.xlu0 %3353, %v2089
  %v3355 = vpop.permute.xlu0 %3354
  %3358 = vset.pattern.permute.xlu0 0
  %3359 = vperm.xlu0 %3358, %v2091
  %v3360 = vpop.permute.xlu0 %3359
  %3363 = vset.pattern.permute.xlu0 0
  %3364 = vperm.xlu0 %3363, %v2093
  %v3365 = vpop.permute.xlu0 %3364
  %3368 = vset.pattern.permute.xlu0 0
  %3369 = vperm.xlu0 %3368, %v2095
  %v3370 = vpop.permute.xlu0 %3369
  %3373 = vset.pattern.permute.xlu0 0
  %3374 = vperm.xlu0 %3373, %v2097
  %v3375 = vpop.permute.xlu0 %3374
  %3378 = vset.pattern.permute.xlu0 0
  %3379 = vperm.xlu0 %3378, %v2099
  %v3380 = vpop.permute.xlu0 %3379
  %3383 = vset.pattern.permute.xlu0 0
  %3384 = vperm.xlu0 %3383, %v2101
  %v3385 = vpop.permute.xlu0 %3384
  %3388 = vset.pattern.permute.xlu0 0
  %3389 = vperm.xlu0 %3388, %v2103
  %v3390 = vpop.permute.xlu0 %3389
  %3393 = vset.pattern.permute.xlu0 0
  %3394 = vperm.xlu0 %3393, %v2105
  %v3395 = vpop.permute.xlu0 %3394
  %3398 = vset.pattern.permute.xlu0 0
  %3399 = vperm.xlu0 %3398, %v2107
  %v3400 = vpop.permute.xlu0 %3399
  %3403 = vset.pattern.permute.xlu0 0
  %3404 = vperm.xlu0 %3403, %v2109
  %v3405 = vpop.permute.xlu0 %3404
  %3408 = vset.pattern.permute.xlu0 0
  %3409 = vperm.xlu0 %3408, %v2111
  %v3410 = vpop.permute.xlu0 %3409
  %3413 = vset.pattern.permute.xlu0 0
  %3414 = vperm.xlu0 %3413, %v2113
  %v3415 = vpop.permute.xlu0 %3414
  %3418 = vset.pattern.permute.xlu0 0
  %3419 = vperm.xlu0 %3418, %v2115
  %v3420 = vpop.permute.xlu0 %3419
  %3423 = vset.pattern.permute.xlu0 0
  %3424 = vperm.xlu0 %3423, %v2117
  %v3425 = vpop.permute.xlu0 %3424
  %3428 = vset.pattern.permute.xlu0 0
  %3429 = vperm.xlu0 %3428, %v2119
  %v3430 = vpop.permute.xlu0 %3429
  %3433 = vset.pattern.permute.xlu0 0
  %3434 = vperm.xlu0 %3433, %v2121
  %v3435 = vpop.permute.xlu0 %3434
  %3438 = vset.pattern.permute.xlu0 0
  %3439 = vperm.xlu0 %3438, %v2123
  %v3440 = vpop.permute.xlu0 %3439
  %3443 = vset.pattern.permute.xlu0 0
  %3444 = vperm.xlu0 %3443, %v2125
  %v3445 = vpop.permute.xlu0 %3444
  %3448 = vset.pattern.permute.xlu0 0
  %3449 = vperm.xlu0 %3448, %v2127
  %v3450 = vpop.permute.xlu0 %3449
  %3453 = vset.pattern.permute.xlu0 0
  %3454 = vperm.xlu0 %3453, %v2129
  %v3455 = vpop.permute.xlu0 %3454
  %3458 = vset.pattern.permute.xlu0 0
  %3459 = vperm.xlu0 %3458, %v2131
  %v3460 = vpop.permute.xlu0 %3459
  %3463 = vset.pattern.permute.xlu0 0
  %3464 = vperm.xlu0 %3463, %v2133
  %v3465 = vpop.permute.xlu0 %3464
  %3468 = vset.pattern.permute.xlu0 0
  %3469 = vperm.xlu0 %3468, %v2135
  %v3470 = vpop.permute.xlu0 %3469
  %3473 = vset.pattern.permute.xlu0 0
  %3474 = vperm.xlu0 %3473, %v2137
  %v3475 = vpop.permute.xlu0 %3474
  %3478 = vset.pattern.permute.xlu0 0
  %3479 = vperm.xlu0 %3478, %v2139
  %v3480 = vpop.permute.xlu0 %3479
  %3483 = vset.pattern.permute.xlu0 0
  %3484 = vperm.xlu0 %3483, %v2141
  %v3485 = vpop.permute.xlu0 %3484
  %v3487 = vmul.f32 %v3170, %v3103
  %v3488 = vmul.f32 %v3175, %v3104
  %v3489 = vmul.f32 %v3180, %v3105
  %v3490 = vmul.f32 %v3185, %v3106
  %v3491 = vmul.f32 %v3190, %v3107
  %v3492 = vmul.f32 %v3195, %v3108
  %v3493 = vmul.f32 %v3200, %v3109
  %v3494 = vmul.f32 %v3205, %v3110
  %v3495 = vmul.f32 %v3210, %v3111
  %v3496 = vmul.f32 %v3215, %v3112
  %v3497 = vmul.f32 %v3220, %v3113
  %v3498 = vmul.f32 %v3225, %v3114
  %v3499 = vmul.f32 %v3230, %v3115
  %v3500 = vmul.f32 %v3235, %v3116
  %v3501 = vmul.f32 %v3240, %v3117
  %v3502 = vmul.f32 %v3245, %v3118
  %v3503 = vmul.f32 %v3250, %v3119
  %v3504 = vmul.f32 %v3255, %v3120
  %v3505 = vmul.f32 %v3260, %v3121
  %v3506 = vmul.f32 %v3265, %v3122
  %v3507 = vmul.f32 %v3270, %v3123
  %v3508 = vmul.f32 %v3275, %v3124
  %v3509 = vmul.f32 %v3280, %v3125
  %v3510 = vmul.f32 %v3285, %v3126
  %v3511 = vmul.f32 %v3290, %v3127
  %v3512 = vmul.f32 %v3295, %v3128
  %v3513 = vmul.f32 %v3300, %v3129
  %v3514 = vmul.f32 %v3305, %v3130
  %v3515 = vmul.f32 %v3310, %v3131
  %v3516 = vmul.f32 %v3315, %v3132
  %v3517 = vmul.f32 %v3320, %v3133
  %v3518 = vmul.f32 %v3325, %v3134
  %v3519 = vmul.f32 %v3330, %v3135
  %v3520 = vmul.f32 %v3335, %v3136
  %v3521 = vmul.f32 %v3340, %v3137
  %v3522 = vmul.f32 %v3345, %v3138
  %v3523 = vmul.f32 %v3350, %v3139
  %v3524 = vmul.f32 %v3355, %v3140
  %v3525 = vmul.f32 %v3360, %v3141
  %v3526 = vmul.f32 %v3365, %v3142
  %v3527 = vmul.f32 %v3370, %v3143
  %v3528 = vmul.f32 %v3375, %v3144
  %v3529 = vmul.f32 %v3380, %v3145
  %v3530 = vmul.f32 %v3385, %v3146
  %v3531 = vmul.f32 %v3390, %v3147
  %v3532 = vmul.f32 %v3395, %v3148
  %v3533 = vmul.f32 %v3400, %v3149
  %v3534 = vmul.f32 %v3405, %v3150
  %v3535 = vmul.f32 %v3410, %v3151
  %v3536 = vmul.f32 %v3415, %v3152
  %v3537 = vmul.f32 %v3420, %v3153
  %v3538 = vmul.f32 %v3425, %v3154
  %v3539 = vmul.f32 %v3430, %v3155
  %v3540 = vmul.f32 %v3435, %v3156
  %v3541 = vmul.f32 %v3440, %v3157
  %v3542 = vmul.f32 %v3445, %v3158
  %v3543 = vmul.f32 %v3450, %v3159
  %v3544 = vmul.f32 %v3455, %v3160
  %v3545 = vmul.f32 %v3460, %v3161
  %v3546 = vmul.f32 %v3465, %v3162
  %v3547 = vmul.f32 %v3470, %v3163
  %v3548 = vmul.f32 %v3475, %v3164
  %v3549 = vmul.f32 %v3480, %v3165
  %v3550 = vmul.f32 %v3485, %v3166
  %v3552 = vsel %vm1693, %v2527, 0
  %v3555 = vsel %vm1693, %v2529, 0
  %v3558 = vsel %vm1693, %v2531, 0
  %v3561 = vsel %vm1693, %v2533, 0
  %v3564 = vsel %vm1693, %v2535, 0
  %v3567 = vsel %vm1693, %v2537, 0
  %v3570 = vsel %vm1693, %v2539, 0
  %v3573 = vsel %vm1693, %v2541, 0
  %3575 = vmatprep.subr.mxu0 0.0
  %3576 = vmatpush1.msra.mxu0 0.0
  %3577 = vmatprep.subr.mxu0 0.0
  %3578 = vmatpush1.msra.mxu0 0.0
  %3579 = vmatprep.subr.mxu0 0.0
  %3580 = vmatpush1.msra.mxu0 0.0
  %3581 = vmatprep.subr.mxu0 0.0
  %3582 = vmatpush1.msra.mxu0 0.0
  %3583 = vmatprep.subr.mxu0 0.0
  %3584 = vmatpush1.msra.mxu0 0.0
  %3585 = vmatprep.subr.mxu0 0.0
  %3586 = vmatpush1.msra.mxu0 0.0
  %3587 = vmatprep.subr.mxu0 0.0
  %3588 = vmatpush1.msra.mxu0 0.0
  %3589 = vmatprep.subr.mxu0 0.0
  %3590 = vmatpush1.msra.mxu0 0.0
  %3591 = vmatprep.subr.mxu0 0.0
  %3592 = vmatpush1.msra.mxu0 %v347
  %3593 = vmatprep.subr.mxu0 0.0
  %3594 = vmatpush1.msra.mxu0 %v346
  %3595 = vmatprep.subr.mxu0 0.0
  %3596 = vmatpush1.msra.mxu0 %v345
  %3597 = vmatprep.subr.mxu0 0.0
  %3598 = vmatpush1.msra.mxu0 %v344
  %3599 = vmatprep.subr.mxu0 0.0
  %3600 = vmatpush1.msra.mxu0 %v343
  %3601 = vmatprep.subr.mxu0 0.0
  %3602 = vmatpush1.msra.mxu0 %v342
  %3603 = vmatprep.subr.mxu0 0.0
  %3604 = vmatpush1.msra.mxu0 %v341
  %3605 = vmatprep.subr.mxu0 0.0
  %3606 = vmatpush1.msra.mxu0 %v340
  %3607 = vmatprep.subr.mxu0 0.0
  %3608 = vmatpush2.msra.mxu0 0.0
  %3609 = vmatprep.subr.mxu0 0.0
  %3610 = vmatpush2.msra.mxu0 0.0
  %3611 = vmatprep.subr.mxu0 0.0
  %3612 = vmatpush2.msra.mxu0 0.0
  %3613 = vmatprep.subr.mxu0 0.0
  %3614 = vmatpush2.msra.mxu0 0.0
  %3615 = vmatprep.subr.mxu0 0.0
  %3616 = vmatpush2.msra.mxu0 0.0
  %3617 = vmatprep.subr.mxu0 0.0
  %3618 = vmatpush2.msra.mxu0 0.0
  %3619 = vmatprep.subr.mxu0 0.0
  %3620 = vmatpush2.msra.mxu0 0.0
  %3621 = vmatprep.subr.mxu0 0.0
  %3622 = vmatpush2.msra.mxu0 0.0
  %3623 = vmatprep.subr.mxu0 0.0
  %3624 = vmatpush2.msra.mxu0 0.0
  %3625 = vmatprep.subr.mxu0 0.0
  %3626 = vmatpush2.msra.mxu0 0.0
  %3627 = vmatprep.subr.mxu0 0.0
  %3628 = vmatpush2.msra.mxu0 0.0
  %3629 = vmatprep.subr.mxu0 0.0
  %3630 = vmatpush2.msra.mxu0 0.0
  %3631 = vmatprep.subr.mxu0 0.0
  %3632 = vmatpush2.msra.mxu0 0.0
  %3633 = vmatprep.subr.mxu0 0.0
  %3634 = vmatpush2.msra.mxu0 0.0
  %3635 = vmatprep.subr.mxu0 0.0
  %3636 = vmatpush2.msra.mxu0 0.0
  %3637 = vmatprep.subr.mxu0 0.0
  %3638 = vmatpush2.msra.mxu0 0.0
  %3639 = vmatprep.mubr.f32.mxu0 0.0
  %3640 = vmatmul.mubr.f32.gmra.mxu0 %v3552
  %v3641 = vpop.f32.mrf.mxu0
  %v3642 = vadd.f32 0.0, %v3641
  %v3643 = vpop.f32.mrf.mxu0
  %3644 = vmatprep.mubr.f32.mxu0 0.0
  %3645 = vmatmul.mubr.f32.gmra.mxu0 %v3555
  %v3646 = vpop.f32.mrf.mxu0
  %v3647 = vadd.f32 0.0, %v3646
  %v3648 = vpop.f32.mrf.mxu0
  %3649 = vmatprep.mubr.f32.mxu0 0.0
  %3650 = vmatmul.mubr.f32.gmra.mxu0 %v3558
  %v3651 = vpop.f32.mrf.mxu0
  %v3652 = vadd.f32 0.0, %v3651
  %v3653 = vpop.f32.mrf.mxu0
  %3654 = vmatprep.mubr.f32.mxu0 0.0
  %3655 = vmatmul.mubr.f32.gmra.mxu0 %v3561
  %v3656 = vpop.f32.mrf.mxu0
  %v3657 = vadd.f32 0.0, %v3656
  %v3658 = vpop.f32.mrf.mxu0
  %3659 = vmatprep.mubr.f32.mxu0 0.0
  %3660 = vmatmul.mubr.f32.gmra.mxu0 %v3564
  %v3661 = vpop.f32.mrf.mxu0
  %v3662 = vadd.f32 0.0, %v3661
  %v3663 = vpop.f32.mrf.mxu0
  %3664 = vmatprep.mubr.f32.mxu0 0.0
  %3665 = vmatmul.mubr.f32.gmra.mxu0 %v3567
  %v3666 = vpop.f32.mrf.mxu0
  %v3667 = vadd.f32 0.0, %v3666
  %v3668 = vpop.f32.mrf.mxu0
  %3669 = vmatprep.mubr.f32.mxu0 0.0
  %3670 = vmatmul.mubr.f32.gmra.mxu0 %v3570
  %v3671 = vpop.f32.mrf.mxu0
  %v3672 = vadd.f32 0.0, %v3671
  %v3673 = vpop.f32.mrf.mxu0
  %3674 = vmatprep.mubr.f32.mxu0 0.0
  %3675 = vmatmul.mubr.f32.gmra.mxu0 %v3573
  %v3676 = vpop.f32.mrf.mxu0
  %v3677 = vadd.f32 0.0, %v3676
  %v3678 = vpop.f32.mrf.mxu0
  %3679 = vdwg.mxu0
  %v3681 = vsel %vm1693, %v2543, 0
  %v3684 = vsel %vm1693, %v2545, 0
  %v3687 = vsel %vm1693, %v2547, 0
  %v3690 = vsel %vm1693, %v2549, 0
  %v3693 = vsel %vm1693, %v2551, 0
  %v3696 = vsel %vm1693, %v2553, 0
  %v3699 = vsel %vm1693, %v2555, 0
  %v3702 = vsel %vm1693, %v2557, 0
  %3704 = vmatprep.subr.mxu0 0.0
  %3705 = vmatpush1.msra.mxu0 0.0
  %3706 = vmatprep.subr.mxu0 0.0
  %3707 = vmatpush1.msra.mxu0 0.0
  %3708 = vmatprep.subr.mxu0 0.0
  %3709 = vmatpush1.msra.mxu0 0.0
  %3710 = vmatprep.subr.mxu0 0.0
  %3711 = vmatpush1.msra.mxu0 0.0
  %3712 = vmatprep.subr.mxu0 0.0
  %3713 = vmatpush1.msra.mxu0 0.0
  %3714 = vmatprep.subr.mxu0 0.0
  %3715 = vmatpush1.msra.mxu0 0.0
  %3716 = vmatprep.subr.mxu0 0.0
  %3717 = vmatpush1.msra.mxu0 0.0
  %3718 = vmatprep.subr.mxu0 0.0
  %3719 = vmatpush1.msra.mxu0 0.0
  %3720 = vmatprep.subr.mxu0 0.0
  %3721 = vmatpush1.msra.mxu0 %v355
  %3722 = vmatprep.subr.mxu0 0.0
  %3723 = vmatpush1.msra.mxu0 %v354
  %3724 = vmatprep.subr.mxu0 0.0
  %3725 = vmatpush1.msra.mxu0 %v353
  %3726 = vmatprep.subr.mxu0 0.0
  %3727 = vmatpush1.msra.mxu0 %v352
  %3728 = vmatprep.subr.mxu0 0.0
  %3729 = vmatpush1.msra.mxu0 %v351
  %3730 = vmatprep.subr.mxu0 0.0
  %3731 = vmatpush1.msra.mxu0 %v350
  %3732 = vmatprep.subr.mxu0 0.0
  %3733 = vmatpush1.msra.mxu0 %v349
  %3734 = vmatprep.subr.mxu0 0.0
  %3735 = vmatpush1.msra.mxu0 %v348
  %3736 = vmatprep.subr.mxu0 0.0
  %3737 = vmatpush2.msra.mxu0 0.0
  %3738 = vmatprep.subr.mxu0 0.0
  %3739 = vmatpush2.msra.mxu0 0.0
  %3740 = vmatprep.subr.mxu0 0.0
  %3741 = vmatpush2.msra.mxu0 0.0
  %3742 = vmatprep.subr.mxu0 0.0
  %3743 = vmatpush2.msra.mxu0 0.0
  %3744 = vmatprep.subr.mxu0 0.0
  %3745 = vmatpush2.msra.mxu0 0.0
  %3746 = vmatprep.subr.mxu0 0.0
  %3747 = vmatpush2.msra.mxu0 0.0
  %3748 = vmatprep.subr.mxu0 0.0
  %3749 = vmatpush2.msra.mxu0 0.0
  %3750 = vmatprep.subr.mxu0 0.0
  %3751 = vmatpush2.msra.mxu0 0.0
  %3752 = vmatprep.subr.mxu0 0.0
  %3753 = vmatpush2.msra.mxu0 0.0
  %3754 = vmatprep.subr.mxu0 0.0
  %3755 = vmatpush2.msra.mxu0 0.0
  %3756 = vmatprep.subr.mxu0 0.0
  %3757 = vmatpush2.msra.mxu0 0.0
  %3758 = vmatprep.subr.mxu0 0.0
  %3759 = vmatpush2.msra.mxu0 0.0
  %3760 = vmatprep.subr.mxu0 0.0
  %3761 = vmatpush2.msra.mxu0 0.0
  %3762 = vmatprep.subr.mxu0 0.0
  %3763 = vmatpush2.msra.mxu0 0.0
  %3764 = vmatprep.subr.mxu0 0.0
  %3765 = vmatpush2.msra.mxu0 0.0
  %3766 = vmatprep.subr.mxu0 0.0
  %3767 = vmatpush2.msra.mxu0 0.0
  %3768 = vmatprep.mubr.f32.mxu0 0.0
  %3769 = vmatmul.mubr.f32.gmra.mxu0 %v3681
  %v3770 = vpop.f32.mrf.mxu0
  %v3771 = vadd.f32 0.0, %v3770
  %v3772 = vpop.f32.mrf.mxu0
  %3773 = vmatprep.mubr.f32.mxu0 0.0
  %3774 = vmatmul.mubr.f32.gmra.mxu0 %v3684
  %v3775 = vpop.f32.mrf.mxu0
  %v3776 = vadd.f32 0.0, %v3775
  %v3777 = vpop.f32.mrf.mxu0
  %3778 = vmatprep.mubr.f32.mxu0 0.0
  %3779 = vmatmul.mubr.f32.gmra.mxu0 %v3687
  %v3780 = vpop.f32.mrf.mxu0
  %v3781 = vadd.f32 0.0, %v3780
  %v3782 = vpop.f32.mrf.mxu0
  %3783 = vmatprep.mubr.f32.mxu0 0.0
  %3784 = vmatmul.mubr.f32.gmra.mxu0 %v3690
  %v3785 = vpop.f32.mrf.mxu0
  %v3786 = vadd.f32 0.0, %v3785
  %v3787 = vpop.f32.mrf.mxu0
  %3788 = vmatprep.mubr.f32.mxu0 0.0
  %3789 = vmatmul.mubr.f32.gmra.mxu0 %v3693
  %v3790 = vpop.f32.mrf.mxu0
  %v3791 = vadd.f32 0.0, %v3790
  %v3792 = vpop.f32.mrf.mxu0
  %3793 = vmatprep.mubr.f32.mxu0 0.0
  %3794 = vmatmul.mubr.f32.gmra.mxu0 %v3696
  %v3795 = vpop.f32.mrf.mxu0
  %v3796 = vadd.f32 0.0, %v3795
  %v3797 = vpop.f32.mrf.mxu0
  %3798 = vmatprep.mubr.f32.mxu0 0.0
  %3799 = vmatmul.mubr.f32.gmra.mxu0 %v3699
  %v3800 = vpop.f32.mrf.mxu0
  %v3801 = vadd.f32 0.0, %v3800
  %v3802 = vpop.f32.mrf.mxu0
  %3803 = vmatprep.mubr.f32.mxu0 0.0
  %3804 = vmatmul.mubr.f32.gmra.mxu0 %v3702
  %v3805 = vpop.f32.mrf.mxu0
  %v3806 = vadd.f32 0.0, %v3805
  %v3807 = vpop.f32.mrf.mxu0
  %3808 = vdwg.mxu0
  %v3810 = vsel %vm1693, %v2559, 0
  %v3813 = vsel %vm1693, %v2561, 0
  %v3816 = vsel %vm1693, %v2563, 0
  %v3819 = vsel %vm1693, %v2565, 0
  %v3822 = vsel %vm1693, %v2567, 0
  %v3825 = vsel %vm1693, %v2569, 0
  %v3828 = vsel %vm1693, %v2571, 0
  %v3831 = vsel %vm1693, %v2573, 0
  %3833 = vmatprep.subr.mxu0 0.0
  %3834 = vmatpush1.msra.mxu0 0.0
  %3835 = vmatprep.subr.mxu0 0.0
  %3836 = vmatpush1.msra.mxu0 0.0
  %3837 = vmatprep.subr.mxu0 0.0
  %3838 = vmatpush1.msra.mxu0 0.0
  %3839 = vmatprep.subr.mxu0 0.0
  %3840 = vmatpush1.msra.mxu0 0.0
  %3841 = vmatprep.subr.mxu0 0.0
  %3842 = vmatpush1.msra.mxu0 0.0
  %3843 = vmatprep.subr.mxu0 0.0
  %3844 = vmatpush1.msra.mxu0 0.0
  %3845 = vmatprep.subr.mxu0 0.0
  %3846 = vmatpush1.msra.mxu0 0.0
  %3847 = vmatprep.subr.mxu0 0.0
  %3848 = vmatpush1.msra.mxu0 0.0
  %3849 = vmatprep.subr.mxu0 0.0
  %3850 = vmatpush1.msra.mxu0 %v363
  %3851 = vmatprep.subr.mxu0 0.0
  %3852 = vmatpush1.msra.mxu0 %v362
  %3853 = vmatprep.subr.mxu0 0.0
  %3854 = vmatpush1.msra.mxu0 %v361
  %3855 = vmatprep.subr.mxu0 0.0
  %3856 = vmatpush1.msra.mxu0 %v360
  %3857 = vmatprep.subr.mxu0 0.0
  %3858 = vmatpush1.msra.mxu0 %v359
  %3859 = vmatprep.subr.mxu0 0.0
  %3860 = vmatpush1.msra.mxu0 %v358
  %3861 = vmatprep.subr.mxu0 0.0
  %3862 = vmatpush1.msra.mxu0 %v357
  %3863 = vmatprep.subr.mxu0 0.0
  %3864 = vmatpush1.msra.mxu0 %v356
  %3865 = vmatprep.subr.mxu0 0.0
  %3866 = vmatpush2.msra.mxu0 0.0
  %3867 = vmatprep.subr.mxu0 0.0
  %3868 = vmatpush2.msra.mxu0 0.0
  %3869 = vmatprep.subr.mxu0 0.0
  %3870 = vmatpush2.msra.mxu0 0.0
  %3871 = vmatprep.subr.mxu0 0.0
  %3872 = vmatpush2.msra.mxu0 0.0
  %3873 = vmatprep.subr.mxu0 0.0
  %3874 = vmatpush2.msra.mxu0 0.0
  %3875 = vmatprep.subr.mxu0 0.0
  %3876 = vmatpush2.msra.mxu0 0.0
  %3877 = vmatprep.subr.mxu0 0.0
  %3878 = vmatpush2.msra.mxu0 0.0
  %3879 = vmatprep.subr.mxu0 0.0
  %3880 = vmatpush2.msra.mxu0 0.0
  %3881 = vmatprep.subr.mxu0 0.0
  %3882 = vmatpush2.msra.mxu0 0.0
  %3883 = vmatprep.subr.mxu0 0.0
  %3884 = vmatpush2.msra.mxu0 0.0
  %3885 = vmatprep.subr.mxu0 0.0
  %3886 = vmatpush2.msra.mxu0 0.0
  %3887 = vmatprep.subr.mxu0 0.0
  %3888 = vmatpush2.msra.mxu0 0.0
  %3889 = vmatprep.subr.mxu0 0.0
  %3890 = vmatpush2.msra.mxu0 0.0
  %3891 = vmatprep.subr.mxu0 0.0
  %3892 = vmatpush2.msra.mxu0 0.0
  %3893 = vmatprep.subr.mxu0 0.0
  %3894 = vmatpush2.msra.mxu0 0.0
  %3895 = vmatprep.subr.mxu0 0.0
  %3896 = vmatpush2.msra.mxu0 0.0
  %3897 = vmatprep.mubr.f32.mxu0 0.0
  %3898 = vmatmul.mubr.f32.gmra.mxu0 %v3810
  %v3899 = vpop.f32.mrf.mxu0
  %v3900 = vadd.f32 0.0, %v3899
  %v3901 = vpop.f32.mrf.mxu0
  %3902 = vmatprep.mubr.f32.mxu0 0.0
  %3903 = vmatmul.mubr.f32.gmra.mxu0 %v3813
  %v3904 = vpop.f32.mrf.mxu0
  %v3905 = vadd.f32 0.0, %v3904
  %v3906 = vpop.f32.mrf.mxu0
  %3907 = vmatprep.mubr.f32.mxu0 0.0
  %3908 = vmatmul.mubr.f32.gmra.mxu0 %v3816
  %v3909 = vpop.f32.mrf.mxu0
  %v3910 = vadd.f32 0.0, %v3909
  %v3911 = vpop.f32.mrf.mxu0
  %3912 = vmatprep.mubr.f32.mxu0 0.0
  %3913 = vmatmul.mubr.f32.gmra.mxu0 %v3819
  %v3914 = vpop.f32.mrf.mxu0
  %v3915 = vadd.f32 0.0, %v3914
  %v3916 = vpop.f32.mrf.mxu0
  %3917 = vmatprep.mubr.f32.mxu0 0.0
  %3918 = vmatmul.mubr.f32.gmra.mxu0 %v3822
  %v3919 = vpop.f32.mrf.mxu0
  %v3920 = vadd.f32 0.0, %v3919
  %v3921 = vpop.f32.mrf.mxu0
  %3922 = vmatprep.mubr.f32.mxu0 0.0
  %3923 = vmatmul.mubr.f32.gmra.mxu0 %v3825
  %v3924 = vpop.f32.mrf.mxu0
  %v3925 = vadd.f32 0.0, %v3924
  %v3926 = vpop.f32.mrf.mxu0
  %3927 = vmatprep.mubr.f32.mxu0 0.0
  %3928 = vmatmul.mubr.f32.gmra.mxu0 %v3828
  %v3929 = vpop.f32.mrf.mxu0
  %v3930 = vadd.f32 0.0, %v3929
  %v3931 = vpop.f32.mrf.mxu0
  %3932 = vmatprep.mubr.f32.mxu0 0.0
  %3933 = vmatmul.mubr.f32.gmra.mxu0 %v3831
  %v3934 = vpop.f32.mrf.mxu0
  %v3935 = vadd.f32 0.0, %v3934
  %v3936 = vpop.f32.mrf.mxu0
  %3937 = vdwg.mxu0
  %v3939 = vsel %vm1693, %v2575, 0
  %v3942 = vsel %vm1693, %v2577, 0
  %v3945 = vsel %vm1693, %v2579, 0
  %v3948 = vsel %vm1693, %v2581, 0
  %v3951 = vsel %vm1693, %v2583, 0
  %v3954 = vsel %vm1693, %v2585, 0
  %v3957 = vsel %vm1693, %v2587, 0
  %v3960 = vsel %vm1693, %v2589, 0
  %3962 = vmatprep.subr.mxu0 0.0
  %3963 = vmatpush1.msra.mxu0 0.0
  %3964 = vmatprep.subr.mxu0 0.0
  %3965 = vmatpush1.msra.mxu0 0.0
  %3966 = vmatprep.subr.mxu0 0.0
  %3967 = vmatpush1.msra.mxu0 0.0
  %3968 = vmatprep.subr.mxu0 0.0
  %3969 = vmatpush1.msra.mxu0 0.0
  %3970 = vmatprep.subr.mxu0 0.0
  %3971 = vmatpush1.msra.mxu0 0.0
  %3972 = vmatprep.subr.mxu0 0.0
  %3973 = vmatpush1.msra.mxu0 0.0
  %3974 = vmatprep.subr.mxu0 0.0
  %3975 = vmatpush1.msra.mxu0 0.0
  %3976 = vmatprep.subr.mxu0 0.0
  %3977 = vmatpush1.msra.mxu0 0.0
  %3978 = vmatprep.subr.mxu0 0.0
  %3979 = vmatpush1.msra.mxu0 %v371
  %3980 = vmatprep.subr.mxu0 0.0
  %3981 = vmatpush1.msra.mxu0 %v370
  %3982 = vmatprep.subr.mxu0 0.0
  %3983 = vmatpush1.msra.mxu0 %v369
  %3984 = vmatprep.subr.mxu0 0.0
  %3985 = vmatpush1.msra.mxu0 %v368
  %3986 = vmatprep.subr.mxu0 0.0
  %3987 = vmatpush1.msra.mxu0 %v367
  %3988 = vmatprep.subr.mxu0 0.0
  %3989 = vmatpush1.msra.mxu0 %v366
  %3990 = vmatprep.subr.mxu0 0.0
  %3991 = vmatpush1.msra.mxu0 %v365
  %3992 = vmatprep.subr.mxu0 0.0
  %3993 = vmatpush1.msra.mxu0 %v364
  %3994 = vmatprep.subr.mxu0 0.0
  %3995 = vmatpush2.msra.mxu0 0.0
  %3996 = vmatprep.subr.mxu0 0.0
  %3997 = vmatpush2.msra.mxu0 0.0
  %3998 = vmatprep.subr.mxu0 0.0
  %3999 = vmatpush2.msra.mxu0 0.0
  %4000 = vmatprep.subr.mxu0 0.0
  %4001 = vmatpush2.msra.mxu0 0.0
  %4002 = vmatprep.subr.mxu0 0.0
  %4003 = vmatpush2.msra.mxu0 0.0
  %4004 = vmatprep.subr.mxu0 0.0
  %4005 = vmatpush2.msra.mxu0 0.0
  %4006 = vmatprep.subr.mxu0 0.0
  %4007 = vmatpush2.msra.mxu0 0.0
  %4008 = vmatprep.subr.mxu0 0.0
  %4009 = vmatpush2.msra.mxu0 0.0
  %4010 = vmatprep.subr.mxu0 0.0
  %4011 = vmatpush2.msra.mxu0 0.0
  %4012 = vmatprep.subr.mxu0 0.0
  %4013 = vmatpush2.msra.mxu0 0.0
  %4014 = vmatprep.subr.mxu0 0.0
  %4015 = vmatpush2.msra.mxu0 0.0
  %4016 = vmatprep.subr.mxu0 0.0
  %4017 = vmatpush2.msra.mxu0 0.0
  %4018 = vmatprep.subr.mxu0 0.0
  %4019 = vmatpush2.msra.mxu0 0.0
  %4020 = vmatprep.subr.mxu0 0.0
  %4021 = vmatpush2.msra.mxu0 0.0
  %4022 = vmatprep.subr.mxu0 0.0
  %4023 = vmatpush2.msra.mxu0 0.0
  %4024 = vmatprep.subr.mxu0 0.0
  %4025 = vmatpush2.msra.mxu0 0.0
  %4026 = vmatprep.mubr.f32.mxu0 0.0
  %4027 = vmatmul.mubr.f32.gmra.mxu0 %v3939
  %v4028 = vpop.f32.mrf.mxu0
  %v4029 = vadd.f32 0.0, %v4028
  %v4030 = vpop.f32.mrf.mxu0
  %4031 = vmatprep.mubr.f32.mxu0 0.0
  %4032 = vmatmul.mubr.f32.gmra.mxu0 %v3942
  %v4033 = vpop.f32.mrf.mxu0
  %v4034 = vadd.f32 0.0, %v4033
  %v4035 = vpop.f32.mrf.mxu0
  %4036 = vmatprep.mubr.f32.mxu0 0.0
  %4037 = vmatmul.mubr.f32.gmra.mxu0 %v3945
  %v4038 = vpop.f32.mrf.mxu0
  %v4039 = vadd.f32 0.0, %v4038
  %v4040 = vpop.f32.mrf.mxu0
  %4041 = vmatprep.mubr.f32.mxu0 0.0
  %4042 = vmatmul.mubr.f32.gmra.mxu0 %v3948
  %v4043 = vpop.f32.mrf.mxu0
  %v4044 = vadd.f32 0.0, %v4043
  %v4045 = vpop.f32.mrf.mxu0
  %4046 = vmatprep.mubr.f32.mxu0 0.0
  %4047 = vmatmul.mubr.f32.gmra.mxu0 %v3951
  %v4048 = vpop.f32.mrf.mxu0
  %v4049 = vadd.f32 0.0, %v4048
  %v4050 = vpop.f32.mrf.mxu0
  %4051 = vmatprep.mubr.f32.mxu0 0.0
  %4052 = vmatmul.mubr.f32.gmra.mxu0 %v3954
  %v4053 = vpop.f32.mrf.mxu0
  %v4054 = vadd.f32 0.0, %v4053
  %v4055 = vpop.f32.mrf.mxu0
  %4056 = vmatprep.mubr.f32.mxu0 0.0
  %4057 = vmatmul.mubr.f32.gmra.mxu0 %v3957
  %v4058 = vpop.f32.mrf.mxu0
  %v4059 = vadd.f32 0.0, %v4058
  %v4060 = vpop.f32.mrf.mxu0
  %4061 = vmatprep.mubr.f32.mxu0 0.0
  %4062 = vmatmul.mubr.f32.gmra.mxu0 %v3960
  %v4063 = vpop.f32.mrf.mxu0
  %v4064 = vadd.f32 0.0, %v4063
  %v4065 = vpop.f32.mrf.mxu0
  %4066 = vdwg.mxu0
  %v4068 = vsel %vm1693, %v2591, 0
  %v4071 = vsel %vm1693, %v2593, 0
  %v4074 = vsel %vm1693, %v2595, 0
  %v4077 = vsel %vm1693, %v2597, 0
  %v4080 = vsel %vm1693, %v2599, 0
  %v4083 = vsel %vm1693, %v2601, 0
  %v4086 = vsel %vm1693, %v2603, 0
  %v4089 = vsel %vm1693, %v2605, 0
  %4091 = vmatprep.subr.mxu0 0.0
  %4092 = vmatpush1.msra.mxu0 0.0
  %4093 = vmatprep.subr.mxu0 0.0
  %4094 = vmatpush1.msra.mxu0 0.0
  %4095 = vmatprep.subr.mxu0 0.0
  %4096 = vmatpush1.msra.mxu0 0.0
  %4097 = vmatprep.subr.mxu0 0.0
  %4098 = vmatpush1.msra.mxu0 0.0
  %4099 = vmatprep.subr.mxu0 0.0
  %4100 = vmatpush1.msra.mxu0 0.0
  %4101 = vmatprep.subr.mxu0 0.0
  %4102 = vmatpush1.msra.mxu0 0.0
  %4103 = vmatprep.subr.mxu0 0.0
  %4104 = vmatpush1.msra.mxu0 0.0
  %4105 = vmatprep.subr.mxu0 0.0
  %4106 = vmatpush1.msra.mxu0 0.0
  %4107 = vmatprep.subr.mxu0 0.0
  %4108 = vmatpush1.msra.mxu0 %v379
  %4109 = vmatprep.subr.mxu0 0.0
  %4110 = vmatpush1.msra.mxu0 %v378
  %4111 = vmatprep.subr.mxu0 0.0
  %4112 = vmatpush1.msra.mxu0 %v377
  %4113 = vmatprep.subr.mxu0 0.0
  %4114 = vmatpush1.msra.mxu0 %v376
  %4115 = vmatprep.subr.mxu0 0.0
  %4116 = vmatpush1.msra.mxu0 %v375
  %4117 = vmatprep.subr.mxu0 0.0
  %4118 = vmatpush1.msra.mxu0 %v374
  %4119 = vmatprep.subr.mxu0 0.0
  %4120 = vmatpush1.msra.mxu0 %v373
  %4121 = vmatprep.subr.mxu0 0.0
  %4122 = vmatpush1.msra.mxu0 %v372
  %4123 = vmatprep.subr.mxu0 0.0
  %4124 = vmatpush2.msra.mxu0 0.0
  %4125 = vmatprep.subr.mxu0 0.0
  %4126 = vmatpush2.msra.mxu0 0.0
  %4127 = vmatprep.subr.mxu0 0.0
  %4128 = vmatpush2.msra.mxu0 0.0
  %4129 = vmatprep.subr.mxu0 0.0
  %4130 = vmatpush2.msra.mxu0 0.0
  %4131 = vmatprep.subr.mxu0 0.0
  %4132 = vmatpush2.msra.mxu0 0.0
  %4133 = vmatprep.subr.mxu0 0.0
  %4134 = vmatpush2.msra.mxu0 0.0
  %4135 = vmatprep.subr.mxu0 0.0
  %4136 = vmatpush2.msra.mxu0 0.0
  %4137 = vmatprep.subr.mxu0 0.0
  %4138 = vmatpush2.msra.mxu0 0.0
  %4139 = vmatprep.subr.mxu0 0.0
  %4140 = vmatpush2.msra.mxu0 0.0
  %4141 = vmatprep.subr.mxu0 0.0
  %4142 = vmatpush2.msra.mxu0 0.0
  %4143 = vmatprep.subr.mxu0 0.0
  %4144 = vmatpush2.msra.mxu0 0.0
  %4145 = vmatprep.subr.mxu0 0.0
  %4146 = vmatpush2.msra.mxu0 0.0
  %4147 = vmatprep.subr.mxu0 0.0
  %4148 = vmatpush2.msra.mxu0 0.0
  %4149 = vmatprep.subr.mxu0 0.0
  %4150 = vmatpush2.msra.mxu0 0.0
  %4151 = vmatprep.subr.mxu0 0.0
  %4152 = vmatpush2.msra.mxu0 0.0
  %4153 = vmatprep.subr.mxu0 0.0
  %4154 = vmatpush2.msra.mxu0 0.0
  %4155 = vmatprep.mubr.f32.mxu0 0.0
  %4156 = vmatmul.mubr.f32.gmra.mxu0 %v4068
  %v4157 = vpop.f32.mrf.mxu0
  %v4158 = vadd.f32 0.0, %v4157
  %v4159 = vpop.f32.mrf.mxu0
  %4160 = vmatprep.mubr.f32.mxu0 0.0
  %4161 = vmatmul.mubr.f32.gmra.mxu0 %v4071
  %v4162 = vpop.f32.mrf.mxu0
  %v4163 = vadd.f32 0.0, %v4162
  %v4164 = vpop.f32.mrf.mxu0
  %4165 = vmatprep.mubr.f32.mxu0 0.0
  %4166 = vmatmul.mubr.f32.gmra.mxu0 %v4074
  %v4167 = vpop.f32.mrf.mxu0
  %v4168 = vadd.f32 0.0, %v4167
  %v4169 = vpop.f32.mrf.mxu0
  %4170 = vmatprep.mubr.f32.mxu0 0.0
  %4171 = vmatmul.mubr.f32.gmra.mxu0 %v4077
  %v4172 = vpop.f32.mrf.mxu0
  %v4173 = vadd.f32 0.0, %v4172
  %v4174 = vpop.f32.mrf.mxu0
  %4175 = vmatprep.mubr.f32.mxu0 0.0
  %4176 = vmatmul.mubr.f32.gmra.mxu0 %v4080
  %v4177 = vpop.f32.mrf.mxu0
  %v4178 = vadd.f32 0.0, %v4177
  %v4179 = vpop.f32.mrf.mxu0
  %4180 = vmatprep.mubr.f32.mxu0 0.0
  %4181 = vmatmul.mubr.f32.gmra.mxu0 %v4083
  %v4182 = vpop.f32.mrf.mxu0
  %v4183 = vadd.f32 0.0, %v4182
  %v4184 = vpop.f32.mrf.mxu0
  %4185 = vmatprep.mubr.f32.mxu0 0.0
  %4186 = vmatmul.mubr.f32.gmra.mxu0 %v4086
  %v4187 = vpop.f32.mrf.mxu0
  %v4188 = vadd.f32 0.0, %v4187
  %v4189 = vpop.f32.mrf.mxu0
  %4190 = vmatprep.mubr.f32.mxu0 0.0
  %4191 = vmatmul.mubr.f32.gmra.mxu0 %v4089
  %v4192 = vpop.f32.mrf.mxu0
  %v4193 = vadd.f32 0.0, %v4192
  %v4194 = vpop.f32.mrf.mxu0
  %4195 = vdwg.mxu0
  %v4197 = vsel %vm1693, %v2607, 0
  %v4200 = vsel %vm1693, %v2609, 0
  %v4203 = vsel %vm1693, %v2611, 0
  %v4206 = vsel %vm1693, %v2613, 0
  %v4209 = vsel %vm1693, %v2615, 0
  %v4212 = vsel %vm1693, %v2617, 0
  %v4215 = vsel %vm1693, %v2619, 0
  %v4218 = vsel %vm1693, %v2621, 0
  %4220 = vmatprep.subr.mxu0 0.0
  %4221 = vmatpush1.msra.mxu0 0.0
  %4222 = vmatprep.subr.mxu0 0.0
  %4223 = vmatpush1.msra.mxu0 0.0
  %4224 = vmatprep.subr.mxu0 0.0
  %4225 = vmatpush1.msra.mxu0 0.0
  %4226 = vmatprep.subr.mxu0 0.0
  %4227 = vmatpush1.msra.mxu0 0.0
  %4228 = vmatprep.subr.mxu0 0.0
  %4229 = vmatpush1.msra.mxu0 0.0
  %4230 = vmatprep.subr.mxu0 0.0
  %4231 = vmatpush1.msra.mxu0 0.0
  %4232 = vmatprep.subr.mxu0 0.0
  %4233 = vmatpush1.msra.mxu0 0.0
  %4234 = vmatprep.subr.mxu0 0.0
  %4235 = vmatpush1.msra.mxu0 0.0
  %4236 = vmatprep.subr.mxu0 0.0
  %4237 = vmatpush1.msra.mxu0 %v387
  %4238 = vmatprep.subr.mxu0 0.0
  %4239 = vmatpush1.msra.mxu0 %v386
  %4240 = vmatprep.subr.mxu0 0.0
  %4241 = vmatpush1.msra.mxu0 %v385
  %4242 = vmatprep.subr.mxu0 0.0
  %4243 = vmatpush1.msra.mxu0 %v384
  %4244 = vmatprep.subr.mxu0 0.0
  %4245 = vmatpush1.msra.mxu0 %v383
  %4246 = vmatprep.subr.mxu0 0.0
  %4247 = vmatpush1.msra.mxu0 %v382
  %4248 = vmatprep.subr.mxu0 0.0
  %4249 = vmatpush1.msra.mxu0 %v381
  %4250 = vmatprep.subr.mxu0 0.0
  %4251 = vmatpush1.msra.mxu0 %v380
  %4252 = vmatprep.subr.mxu0 0.0
  %4253 = vmatpush2.msra.mxu0 0.0
  %4254 = vmatprep.subr.mxu0 0.0
  %4255 = vmatpush2.msra.mxu0 0.0
  %4256 = vmatprep.subr.mxu0 0.0
  %4257 = vmatpush2.msra.mxu0 0.0
  %4258 = vmatprep.subr.mxu0 0.0
  %4259 = vmatpush2.msra.mxu0 0.0
  %4260 = vmatprep.subr.mxu0 0.0
  %4261 = vmatpush2.msra.mxu0 0.0
  %4262 = vmatprep.subr.mxu0 0.0
  %4263 = vmatpush2.msra.mxu0 0.0
  %4264 = vmatprep.subr.mxu0 0.0
  %4265 = vmatpush2.msra.mxu0 0.0
  %4266 = vmatprep.subr.mxu0 0.0
  %4267 = vmatpush2.msra.mxu0 0.0
  %4268 = vmatprep.subr.mxu0 0.0
  %4269 = vmatpush2.msra.mxu0 0.0
  %4270 = vmatprep.subr.mxu0 0.0
  %4271 = vmatpush2.msra.mxu0 0.0
  %4272 = vmatprep.subr.mxu0 0.0
  %4273 = vmatpush2.msra.mxu0 0.0
  %4274 = vmatprep.subr.mxu0 0.0
  %4275 = vmatpush2.msra.mxu0 0.0
  %4276 = vmatprep.subr.mxu0 0.0
  %4277 = vmatpush2.msra.mxu0 0.0
  %4278 = vmatprep.subr.mxu0 0.0
  %4279 = vmatpush2.msra.mxu0 0.0
  %4280 = vmatprep.subr.mxu0 0.0
  %4281 = vmatpush2.msra.mxu0 0.0
  %4282 = vmatprep.subr.mxu0 0.0
  %4283 = vmatpush2.msra.mxu0 0.0
  %4284 = vmatprep.mubr.f32.mxu0 0.0
  %4285 = vmatmul.mubr.f32.gmra.mxu0 %v4197
  %v4286 = vpop.f32.mrf.mxu0
  %v4287 = vadd.f32 0.0, %v4286
  %v4288 = vpop.f32.mrf.mxu0
  %4289 = vmatprep.mubr.f32.mxu0 0.0
  %4290 = vmatmul.mubr.f32.gmra.mxu0 %v4200
  %v4291 = vpop.f32.mrf.mxu0
  %v4292 = vadd.f32 0.0, %v4291
  %v4293 = vpop.f32.mrf.mxu0
  %4294 = vmatprep.mubr.f32.mxu0 0.0
  %4295 = vmatmul.mubr.f32.gmra.mxu0 %v4203
  %v4296 = vpop.f32.mrf.mxu0
  %v4297 = vadd.f32 0.0, %v4296
  %v4298 = vpop.f32.mrf.mxu0
  %4299 = vmatprep.mubr.f32.mxu0 0.0
  %4300 = vmatmul.mubr.f32.gmra.mxu0 %v4206
  %v4301 = vpop.f32.mrf.mxu0
  %v4302 = vadd.f32 0.0, %v4301
  %v4303 = vpop.f32.mrf.mxu0
  %4304 = vmatprep.mubr.f32.mxu0 0.0
  %4305 = vmatmul.mubr.f32.gmra.mxu0 %v4209
  %v4306 = vpop.f32.mrf.mxu0
  %v4307 = vadd.f32 0.0, %v4306
  %v4308 = vpop.f32.mrf.mxu0
  %4309 = vmatprep.mubr.f32.mxu0 0.0
  %4310 = vmatmul.mubr.f32.gmra.mxu0 %v4212
  %v4311 = vpop.f32.mrf.mxu0
  %v4312 = vadd.f32 0.0, %v4311
  %v4313 = vpop.f32.mrf.mxu0
  %4314 = vmatprep.mubr.f32.mxu0 0.0
  %4315 = vmatmul.mubr.f32.gmra.mxu0 %v4215
  %v4316 = vpop.f32.mrf.mxu0
  %v4317 = vadd.f32 0.0, %v4316
  %v4318 = vpop.f32.mrf.mxu0
  %4319 = vmatprep.mubr.f32.mxu0 0.0
  %4320 = vmatmul.mubr.f32.gmra.mxu0 %v4218
  %v4321 = vpop.f32.mrf.mxu0
  %v4322 = vadd.f32 0.0, %v4321
  %v4323 = vpop.f32.mrf.mxu0
  %4324 = vdwg.mxu0
  %v4326 = vsel %vm1693, %v2623, 0
  %v4329 = vsel %vm1693, %v2625, 0
  %v4332 = vsel %vm1693, %v2627, 0
  %v4335 = vsel %vm1693, %v2629, 0
  %v4338 = vsel %vm1693, %v2631, 0
  %v4341 = vsel %vm1693, %v2633, 0
  %v4344 = vsel %vm1693, %v2635, 0
  %v4347 = vsel %vm1693, %v2637, 0
  %4349 = vmatprep.subr.mxu0 0.0
  %4350 = vmatpush1.msra.mxu0 0.0
  %4351 = vmatprep.subr.mxu0 0.0
  %4352 = vmatpush1.msra.mxu0 0.0
  %4353 = vmatprep.subr.mxu0 0.0
  %4354 = vmatpush1.msra.mxu0 0.0
  %4355 = vmatprep.subr.mxu0 0.0
  %4356 = vmatpush1.msra.mxu0 0.0
  %4357 = vmatprep.subr.mxu0 0.0
  %4358 = vmatpush1.msra.mxu0 0.0
  %4359 = vmatprep.subr.mxu0 0.0
  %4360 = vmatpush1.msra.mxu0 0.0
  %4361 = vmatprep.subr.mxu0 0.0
  %4362 = vmatpush1.msra.mxu0 0.0
  %4363 = vmatprep.subr.mxu0 0.0
  %4364 = vmatpush1.msra.mxu0 0.0
  %4365 = vmatprep.subr.mxu0 0.0
  %4366 = vmatpush1.msra.mxu0 %v395
  %4367 = vmatprep.subr.mxu0 0.0
  %4368 = vmatpush1.msra.mxu0 %v394
  %4369 = vmatprep.subr.mxu0 0.0
  %4370 = vmatpush1.msra.mxu0 %v393
  %4371 = vmatprep.subr.mxu0 0.0
  %4372 = vmatpush1.msra.mxu0 %v392
  %4373 = vmatprep.subr.mxu0 0.0
  %4374 = vmatpush1.msra.mxu0 %v391
  %4375 = vmatprep.subr.mxu0 0.0
  %4376 = vmatpush1.msra.mxu0 %v390
  %4377 = vmatprep.subr.mxu0 0.0
  %4378 = vmatpush1.msra.mxu0 %v389
  %4379 = vmatprep.subr.mxu0 0.0
  %4380 = vmatpush1.msra.mxu0 %v388
  %4381 = vmatprep.subr.mxu0 0.0
  %4382 = vmatpush2.msra.mxu0 0.0
  %4383 = vmatprep.subr.mxu0 0.0
  %4384 = vmatpush2.msra.mxu0 0.0
  %4385 = vmatprep.subr.mxu0 0.0
  %4386 = vmatpush2.msra.mxu0 0.0
  %4387 = vmatprep.subr.mxu0 0.0
  %4388 = vmatpush2.msra.mxu0 0.0
  %4389 = vmatprep.subr.mxu0 0.0
  %4390 = vmatpush2.msra.mxu0 0.0
  %4391 = vmatprep.subr.mxu0 0.0
  %4392 = vmatpush2.msra.mxu0 0.0
  %4393 = vmatprep.subr.mxu0 0.0
  %4394 = vmatpush2.msra.mxu0 0.0
  %4395 = vmatprep.subr.mxu0 0.0
  %4396 = vmatpush2.msra.mxu0 0.0
  %4397 = vmatprep.subr.mxu0 0.0
  %4398 = vmatpush2.msra.mxu0 0.0
  %4399 = vmatprep.subr.mxu0 0.0
  %4400 = vmatpush2.msra.mxu0 0.0
  %4401 = vmatprep.subr.mxu0 0.0
  %4402 = vmatpush2.msra.mxu0 0.0
  %4403 = vmatprep.subr.mxu0 0.0
  %4404 = vmatpush2.msra.mxu0 0.0
  %4405 = vmatprep.subr.mxu0 0.0
  %4406 = vmatpush2.msra.mxu0 0.0
  %4407 = vmatprep.subr.mxu0 0.0
  %4408 = vmatpush2.msra.mxu0 0.0
  %4409 = vmatprep.subr.mxu0 0.0
  %4410 = vmatpush2.msra.mxu0 0.0
  %4411 = vmatprep.subr.mxu0 0.0
  %4412 = vmatpush2.msra.mxu0 0.0
  %4413 = vmatprep.mubr.f32.mxu0 0.0
  %4414 = vmatmul.mubr.f32.gmra.mxu0 %v4326
  %v4415 = vpop.f32.mrf.mxu0
  %v4416 = vadd.f32 0.0, %v4415
  %v4417 = vpop.f32.mrf.mxu0
  %4418 = vmatprep.mubr.f32.mxu0 0.0
  %4419 = vmatmul.mubr.f32.gmra.mxu0 %v4329
  %v4420 = vpop.f32.mrf.mxu0
  %v4421 = vadd.f32 0.0, %v4420
  %v4422 = vpop.f32.mrf.mxu0
  %4423 = vmatprep.mubr.f32.mxu0 0.0
  %4424 = vmatmul.mubr.f32.gmra.mxu0 %v4332
  %v4425 = vpop.f32.mrf.mxu0
  %v4426 = vadd.f32 0.0, %v4425
  %v4427 = vpop.f32.mrf.mxu0
  %4428 = vmatprep.mubr.f32.mxu0 0.0
  %4429 = vmatmul.mubr.f32.gmra.mxu0 %v4335
  %v4430 = vpop.f32.mrf.mxu0
  %v4431 = vadd.f32 0.0, %v4430
  %v4432 = vpop.f32.mrf.mxu0
  %4433 = vmatprep.mubr.f32.mxu0 0.0
  %4434 = vmatmul.mubr.f32.gmra.mxu0 %v4338
  %v4435 = vpop.f32.mrf.mxu0
  %v4436 = vadd.f32 0.0, %v4435
  %v4437 = vpop.f32.mrf.mxu0
  %4438 = vmatprep.mubr.f32.mxu0 0.0
  %4439 = vmatmul.mubr.f32.gmra.mxu0 %v4341
  %v4440 = vpop.f32.mrf.mxu0
  %v4441 = vadd.f32 0.0, %v4440
  %v4442 = vpop.f32.mrf.mxu0
  %4443 = vmatprep.mubr.f32.mxu0 0.0
  %4444 = vmatmul.mubr.f32.gmra.mxu0 %v4344
  %v4445 = vpop.f32.mrf.mxu0
  %v4446 = vadd.f32 0.0, %v4445
  %v4447 = vpop.f32.mrf.mxu0
  %4448 = vmatprep.mubr.f32.mxu0 0.0
  %4449 = vmatmul.mubr.f32.gmra.mxu0 %v4347
  %v4450 = vpop.f32.mrf.mxu0
  %v4451 = vadd.f32 0.0, %v4450
  %v4452 = vpop.f32.mrf.mxu0
  %4453 = vdwg.mxu0
  %v4455 = vsel %vm1693, %v2639, 0
  %v4458 = vsel %vm1693, %v2641, 0
  %v4461 = vsel %vm1693, %v2643, 0
  %v4464 = vsel %vm1693, %v2645, 0
  %v4467 = vsel %vm1693, %v2647, 0
  %v4470 = vsel %vm1693, %v2649, 0
  %v4473 = vsel %vm1693, %v2651, 0
  %v4476 = vsel %vm1693, %v2653, 0
  %4478 = vmatprep.subr.mxu0 0.0
  %4479 = vmatpush1.msra.mxu0 0.0
  %4480 = vmatprep.subr.mxu0 0.0
  %4481 = vmatpush1.msra.mxu0 0.0
  %4482 = vmatprep.subr.mxu0 0.0
  %4483 = vmatpush1.msra.mxu0 0.0
  %4484 = vmatprep.subr.mxu0 0.0
  %4485 = vmatpush1.msra.mxu0 0.0
  %4486 = vmatprep.subr.mxu0 0.0
  %4487 = vmatpush1.msra.mxu0 0.0
  %4488 = vmatprep.subr.mxu0 0.0
  %4489 = vmatpush1.msra.mxu0 0.0
  %4490 = vmatprep.subr.mxu0 0.0
  %4491 = vmatpush1.msra.mxu0 0.0
  %4492 = vmatprep.subr.mxu0 0.0
  %4493 = vmatpush1.msra.mxu0 0.0
  %4494 = vmatprep.subr.mxu0 0.0
  %4495 = vmatpush1.msra.mxu0 %v403
  %4496 = vmatprep.subr.mxu0 0.0
  %4497 = vmatpush1.msra.mxu0 %v402
  %4498 = vmatprep.subr.mxu0 0.0
  %4499 = vmatpush1.msra.mxu0 %v401
  %4500 = vmatprep.subr.mxu0 0.0
  %4501 = vmatpush1.msra.mxu0 %v400
  %4502 = vmatprep.subr.mxu0 0.0
  %4503 = vmatpush1.msra.mxu0 %v399
  %4504 = vmatprep.subr.mxu0 0.0
  %4505 = vmatpush1.msra.mxu0 %v398
  %4506 = vmatprep.subr.mxu0 0.0
  %4507 = vmatpush1.msra.mxu0 %v397
  %4508 = vmatprep.subr.mxu0 0.0
  %4509 = vmatpush1.msra.mxu0 %v396
  %4510 = vmatprep.subr.mxu0 0.0
  %4511 = vmatpush2.msra.mxu0 0.0
  %4512 = vmatprep.subr.mxu0 0.0
  %4513 = vmatpush2.msra.mxu0 0.0
  %4514 = vmatprep.subr.mxu0 0.0
  %4515 = vmatpush2.msra.mxu0 0.0
  %4516 = vmatprep.subr.mxu0 0.0
  %4517 = vmatpush2.msra.mxu0 0.0
  %4518 = vmatprep.subr.mxu0 0.0
  %4519 = vmatpush2.msra.mxu0 0.0
  %4520 = vmatprep.subr.mxu0 0.0
  %4521 = vmatpush2.msra.mxu0 0.0
  %4522 = vmatprep.subr.mxu0 0.0
  %4523 = vmatpush2.msra.mxu0 0.0
  %4524 = vmatprep.subr.mxu0 0.0
  %4525 = vmatpush2.msra.mxu0 0.0
  %4526 = vmatprep.subr.mxu0 0.0
  %4527 = vmatpush2.msra.mxu0 0.0
  %4528 = vmatprep.subr.mxu0 0.0
  %4529 = vmatpush2.msra.mxu0 0.0
  %4530 = vmatprep.subr.mxu0 0.0
  %4531 = vmatpush2.msra.mxu0 0.0
  %4532 = vmatprep.subr.mxu0 0.0
  %4533 = vmatpush2.msra.mxu0 0.0
  %4534 = vmatprep.subr.mxu0 0.0
  %4535 = vmatpush2.msra.mxu0 0.0
  %4536 = vmatprep.subr.mxu0 0.0
  %4537 = vmatpush2.msra.mxu0 0.0
  %4538 = vmatprep.subr.mxu0 0.0
  %4539 = vmatpush2.msra.mxu0 0.0
  %4540 = vmatprep.subr.mxu0 0.0
  %4541 = vmatpush2.msra.mxu0 0.0
  %4542 = vmatprep.mubr.f32.mxu0 0.0
  %4543 = vmatmul.mubr.f32.gmra.mxu0 %v4455
  %v4544 = vpop.f32.mrf.mxu0
  %v4545 = vadd.f32 0.0, %v4544
  %v4546 = vpop.f32.mrf.mxu0
  %4547 = vmatprep.mubr.f32.mxu0 0.0
  %4548 = vmatmul.mubr.f32.gmra.mxu0 %v4458
  %v4549 = vpop.f32.mrf.mxu0
  %v4550 = vadd.f32 0.0, %v4549
  %v4551 = vpop.f32.mrf.mxu0
  %4552 = vmatprep.mubr.f32.mxu0 0.0
  %4553 = vmatmul.mubr.f32.gmra.mxu0 %v4461
  %v4554 = vpop.f32.mrf.mxu0
  %v4555 = vadd.f32 0.0, %v4554
  %v4556 = vpop.f32.mrf.mxu0
  %4557 = vmatprep.mubr.f32.mxu0 0.0
  %4558 = vmatmul.mubr.f32.gmra.mxu0 %v4464
  %v4559 = vpop.f32.mrf.mxu0
  %v4560 = vadd.f32 0.0, %v4559
  %v4561 = vpop.f32.mrf.mxu0
  %4562 = vmatprep.mubr.f32.mxu0 0.0
  %4563 = vmatmul.mubr.f32.gmra.mxu0 %v4467
  %v4564 = vpop.f32.mrf.mxu0
  %v4565 = vadd.f32 0.0, %v4564
  %v4566 = vpop.f32.mrf.mxu0
  %4567 = vmatprep.mubr.f32.mxu0 0.0
  %4568 = vmatmul.mubr.f32.gmra.mxu0 %v4470
  %v4569 = vpop.f32.mrf.mxu0
  %v4570 = vadd.f32 0.0, %v4569
  %v4571 = vpop.f32.mrf.mxu0
  %4572 = vmatprep.mubr.f32.mxu0 0.0
  %4573 = vmatmul.mubr.f32.gmra.mxu0 %v4473
  %v4574 = vpop.f32.mrf.mxu0
  %v4575 = vadd.f32 0.0, %v4574
  %v4576 = vpop.f32.mrf.mxu0
  %4577 = vmatprep.mubr.f32.mxu0 0.0
  %4578 = vmatmul.mubr.f32.gmra.mxu0 %v4476
  %v4579 = vpop.f32.mrf.mxu0
  %v4580 = vadd.f32 0.0, %v4579
  %v4581 = vpop.f32.mrf.mxu0
  %4582 = vdwg.mxu0
  %v4583 = vadd.f32 %v3487, %v3642
  %v4584 = vadd.f32 %v3488, %v3647
  %v4585 = vadd.f32 %v3489, %v3652
  %v4586 = vadd.f32 %v3490, %v3657
  %v4587 = vadd.f32 %v3491, %v3662
  %v4588 = vadd.f32 %v3492, %v3667
  %v4589 = vadd.f32 %v3493, %v3672
  %v4590 = vadd.f32 %v3494, %v3677
  %v4591 = vadd.f32 %v3495, %v3771
  %v4592 = vadd.f32 %v3496, %v3776
  %v4593 = vadd.f32 %v3497, %v3781
  %v4594 = vadd.f32 %v3498, %v3786
  %v4595 = vadd.f32 %v3499, %v3791
  %v4596 = vadd.f32 %v3500, %v3796
  %v4597 = vadd.f32 %v3501, %v3801
  %v4598 = vadd.f32 %v3502, %v3806
  %v4599 = vadd.f32 %v3503, %v3900
  %v4600 = vadd.f32 %v3504, %v3905
  %v4601 = vadd.f32 %v3505, %v3910
  %v4602 = vadd.f32 %v3506, %v3915
  %v4603 = vadd.f32 %v3507, %v3920
  %v4604 = vadd.f32 %v3508, %v3925
  %v4605 = vadd.f32 %v3509, %v3930
  %v4606 = vadd.f32 %v3510, %v3935
  %v4607 = vadd.f32 %v3511, %v4029
  %v4608 = vadd.f32 %v3512, %v4034
  %v4609 = vadd.f32 %v3513, %v4039
  %v4610 = vadd.f32 %v3514, %v4044
  %v4611 = vadd.f32 %v3515, %v4049
  %v4612 = vadd.f32 %v3516, %v4054
  %v4613 = vadd.f32 %v3517, %v4059
  %v4614 = vadd.f32 %v3518, %v4064
  %v4615 = vadd.f32 %v3519, %v4158
  %v4616 = vadd.f32 %v3520, %v4163
  %v4617 = vadd.f32 %v3521, %v4168
  %v4618 = vadd.f32 %v3522, %v4173
  %v4619 = vadd.f32 %v3523, %v4178
  %v4620 = vadd.f32 %v3524, %v4183
  %v4621 = vadd.f32 %v3525, %v4188
  %v4622 = vadd.f32 %v3526, %v4193
  %v4623 = vadd.f32 %v3527, %v4287
  %v4624 = vadd.f32 %v3528, %v4292
  %v4625 = vadd.f32 %v3529, %v4297
  %v4626 = vadd.f32 %v3530, %v4302
  %v4627 = vadd.f32 %v3531, %v4307
  %v4628 = vadd.f32 %v3532, %v4312
  %v4629 = vadd.f32 %v3533, %v4317
  %v4630 = vadd.f32 %v3534, %v4322
  %v4631 = vadd.f32 %v3535, %v4416
  %v4632 = vadd.f32 %v3536, %v4421
  %v4633 = vadd.f32 %v3537, %v4426
  %v4634 = vadd.f32 %v3538, %v4431
  %v4635 = vadd.f32 %v3539, %v4436
  %v4636 = vadd.f32 %v3540, %v4441
  %v4637 = vadd.f32 %v3541, %v4446
  %v4638 = vadd.f32 %v3542, %v4451
  %v4639 = vadd.f32 %v3543, %v4545
  %v4640 = vadd.f32 %v3544, %v4550
  %v4641 = vadd.f32 %v3545, %v4555
  %v4642 = vadd.f32 %v3546, %v4560
  %v4643 = vadd.f32 %v3547, %v4565
  %v4644 = vadd.f32 %v3548, %v4570
  %v4645 = vadd.f32 %v3549, %v4575
  %v4646 = vadd.f32 %v3550, %v4580
  %4647 = vst.msk [vmem:[#allocation4] sm:$0xff] %vm404, %v4583
  %4648 = vst.msk [vmem:[#allocation4 + $0x8] sm:$0xff] %vm404, %v4584
  %4649 = vst.msk [vmem:[#allocation4 + $0x10] sm:$0xff] %vm404, %v4585
  %4650 = vst.msk [vmem:[#allocation4 + $0x18] sm:$0xff] %vm404, %v4586
  %4651 = vst.msk [vmem:[#allocation4 + $0x20] sm:$0xff] %vm404, %v4587
  %4652 = vst.msk [vmem:[#allocation4 + $0x28] sm:$0xff] %vm404, %v4588
  %4653 = vst.msk [vmem:[#allocation4 + $0x30] sm:$0xff] %vm404, %v4589
  %4654 = vst.msk [vmem:[#allocation4 + $0x38] sm:$0xff] %vm404, %v4590
  %4655 = vst.msk [vmem:[#allocation4 + $0x40] sm:$0xff] %vm404, %v4591
  %4656 = vst.msk [vmem:[#allocation4 + $0x48] sm:$0xff] %vm404, %v4592
  %4657 = vst.msk [vmem:[#allocation4 + $0x50] sm:$0xff] %vm404, %v4593
  %4658 = vst.msk [vmem:[#allocation4 + $0x58] sm:$0xff] %vm404, %v4594
  %4659 = vst.msk [vmem:[#allocation4 + $0x60] sm:$0xff] %vm404, %v4595
  %4660 = vst.msk [vmem:[#allocation4 + $0x68] sm:$0xff] %vm404, %v4596
  %4661 = vst.msk [vmem:[#allocation4 + $0x70] sm:$0xff] %vm404, %v4597
  %4662 = vst.msk [vmem:[#allocation4 + $0x78] sm:$0xff] %vm404, %v4598
  %4663 = vst.msk [vmem:[#allocation4 + $0x80] sm:$0xff] %vm404, %v4599
  %4664 = vst.msk [vmem:[#allocation4 + $0x88] sm:$0xff] %vm404, %v4600
  %4665 = vst.msk [vmem:[#allocation4 + $0x90] sm:$0xff] %vm404, %v4601
  %4666 = vst.msk [vmem:[#allocation4 + $0x98] sm:$0xff] %vm404, %v4602
  %4667 = vst.msk [vmem:[#allocation4 + $0xa0] sm:$0xff] %vm404, %v4603
  %4668 = vst.msk [vmem:[#allocation4 + $0xa8] sm:$0xff] %vm404, %v4604
  %4669 = vst.msk [vmem:[#allocation4 + $0xb0] sm:$0xff] %vm404, %v4605
  %4670 = vst.msk [vmem:[#allocation4 + $0xb8] sm:$0xff] %vm404, %v4606
  %4671 = vst.msk [vmem:[#allocation4 + $0xc0] sm:$0xff] %vm404, %v4607
  %4672 = vst.msk [vmem:[#allocation4 + $0xc8] sm:$0xff] %vm404, %v4608
  %4673 = vst.msk [vmem:[#allocation4 + $0xd0] sm:$0xff] %vm404, %v4609
  %4674 = vst.msk [vmem:[#allocation4 + $0xd8] sm:$0xff] %vm404, %v4610
  %4675 = vst.msk [vmem:[#allocation4 + $0xe0] sm:$0xff] %vm404, %v4611
  %4676 = vst.msk [vmem:[#allocation4 + $0xe8] sm:$0xff] %vm404, %v4612
  %4677 = vst.msk [vmem:[#allocation4 + $0xf0] sm:$0xff] %vm404, %v4613
  %4678 = vst.msk [vmem:[#allocation4 + $0xf8] sm:$0xff] %vm404, %v4614
  %4679 = vst.msk [vmem:[#allocation4 + $0x100] sm:$0xff] %vm404, %v4615
  %4680 = vst.msk [vmem:[#allocation4 + $0x108] sm:$0xff] %vm404, %v4616
  %4681 = vst.msk [vmem:[#allocation4 + $0x110] sm:$0xff] %vm404, %v4617
  %4682 = vst.msk [vmem:[#allocation4 + $0x118] sm:$0xff] %vm404, %v4618
  %4683 = vst.msk [vmem:[#allocation4 + $0x120] sm:$0xff] %vm404, %v4619
  %4684 = vst.msk [vmem:[#allocation4 + $0x128] sm:$0xff] %vm404, %v4620
  %4685 = vst.msk [vmem:[#allocation4 + $0x130] sm:$0xff] %vm404, %v4621
  %4686 = vst.msk [vmem:[#allocation4 + $0x138] sm:$0xff] %vm404, %v4622
  %4687 = vst.msk [vmem:[#allocation4 + $0x140] sm:$0xff] %vm404, %v4623
  %4688 = vst.msk [vmem:[#allocation4 + $0x148] sm:$0xff] %vm404, %v4624
  %4689 = vst.msk [vmem:[#allocation4 + $0x150] sm:$0xff] %vm404, %v4625
  %4690 = vst.msk [vmem:[#allocation4 + $0x158] sm:$0xff] %vm404, %v4626
  %4691 = vst.msk [vmem:[#allocation4 + $0x160] sm:$0xff] %vm404, %v4627
  %4692 = vst.msk [vmem:[#allocation4 + $0x168] sm:$0xff] %vm404, %v4628
  %4693 = vst.msk [vmem:[#allocation4 + $0x170] sm:$0xff] %vm404, %v4629
  %4694 = vst.msk [vmem:[#allocation4 + $0x178] sm:$0xff] %vm404, %v4630
  %4695 = vst.msk [vmem:[#allocation4 + $0x180] sm:$0xff] %vm404, %v4631
  %4696 = vst.msk [vmem:[#allocation4 + $0x188] sm:$0xff] %vm404, %v4632
  %4697 = vst.msk [vmem:[#allocation4 + $0x190] sm:$0xff] %vm404, %v4633
  %4698 = vst.msk [vmem:[#allocation4 + $0x198] sm:$0xff] %vm404, %v4634
  %4699 = vst.msk [vmem:[#allocation4 + $0x1a0] sm:$0xff] %vm404, %v4635
  %4700 = vst.msk [vmem:[#allocation4 + $0x1a8] sm:$0xff] %vm404, %v4636
  %4701 = vst.msk [vmem:[#allocation4 + $0x1b0] sm:$0xff] %vm404, %v4637
  %4702 = vst.msk [vmem:[#allocation4 + $0x1b8] sm:$0xff] %vm404, %v4638
  %4703 = vst.msk [vmem:[#allocation4 + $0x1c0] sm:$0xff] %vm404, %v4639
  %4704 = vst.msk [vmem:[#allocation4 + $0x1c8] sm:$0xff] %vm404, %v4640
  %4705 = vst.msk [vmem:[#allocation4 + $0x1d0] sm:$0xff] %vm404, %v4641
  %4706 = vst.msk [vmem:[#allocation4 + $0x1d8] sm:$0xff] %vm404, %v4642
  %4707 = vst.msk [vmem:[#allocation4 + $0x1e0] sm:$0xff] %vm404, %v4643
  %4708 = vst.msk [vmem:[#allocation4 + $0x1e8] sm:$0xff] %vm404, %v4644
  %4709 = vst.msk [vmem:[#allocation4 + $0x1f0] sm:$0xff] %vm404, %v4645
  %4710 = vst.msk [vmem:[#allocation4 + $0x1f8] sm:$0xff] %vm404, %v4646
  %4711 = vst.msk [vmem:[#allocation2] sm:$0xff] %vm3038, %v1886
  %4712 = vst.msk [vmem:[#allocation2 + $0x8] sm:$0xff] %vm3038, %v1887
  %4713 = vst.msk [vmem:[#allocation2 + $0x10] sm:$0xff] %vm3038, %v1888
  %4714 = vst.msk [vmem:[#allocation2 + $0x18] sm:$0xff] %vm3038, %v1889
  %4715 = vst.msk [vmem:[#allocation2 + $0x20] sm:$0xff] %vm3038, %v1890
  %4716 = vst.msk [vmem:[#allocation2 + $0x28] sm:$0xff] %vm3038, %v1891
  %4717 = vst.msk [vmem:[#allocation2 + $0x30] sm:$0xff] %vm3038, %v1892
  %4718 = vst.msk [vmem:[#allocation2 + $0x38] sm:$0xff] %vm3038, %v1893
  %4719 = vst.msk [vmem:[#allocation2 + $0x40] sm:$0xff] %vm3038, %v1894
  %4720 = vst.msk [vmem:[#allocation2 + $0x48] sm:$0xff] %vm3038, %v1895
  %4721 = vst.msk [vmem:[#allocation2 + $0x50] sm:$0xff] %vm3038, %v1896
  %4722 = vst.msk [vmem:[#allocation2 + $0x58] sm:$0xff] %vm3038, %v1897
  %4723 = vst.msk [vmem:[#allocation2 + $0x60] sm:$0xff] %vm3038, %v1898
  %4724 = vst.msk [vmem:[#allocation2 + $0x68] sm:$0xff] %vm3038, %v1899
  %4725 = vst.msk [vmem:[#allocation2 + $0x70] sm:$0xff] %vm3038, %v1900
  %4726 = vst.msk [vmem:[#allocation2 + $0x78] sm:$0xff] %vm3038, %v1901
  %4727 = vst.msk [vmem:[#allocation2 + $0x80] sm:$0xff] %vm3038, %v1902
  %4728 = vst.msk [vmem:[#allocation2 + $0x88] sm:$0xff] %vm3038, %v1903
  %4729 = vst.msk [vmem:[#allocation2 + $0x90] sm:$0xff] %vm3038, %v1904
  %4730 = vst.msk [vmem:[#allocation2 + $0x98] sm:$0xff] %vm3038, %v1905
  %4731 = vst.msk [vmem:[#allocation2 + $0xa0] sm:$0xff] %vm3038, %v1906
  %4732 = vst.msk [vmem:[#allocation2 + $0xa8] sm:$0xff] %vm3038, %v1907
  %4733 = vst.msk [vmem:[#allocation2 + $0xb0] sm:$0xff] %vm3038, %v1908
  %4734 = vst.msk [vmem:[#allocation2 + $0xb8] sm:$0xff] %vm3038, %v1909
  %4735 = vst.msk [vmem:[#allocation2 + $0xc0] sm:$0xff] %vm3038, %v1910
  %4736 = vst.msk [vmem:[#allocation2 + $0xc8] sm:$0xff] %vm3038, %v1911
  %4737 = vst.msk [vmem:[#allocation2 + $0xd0] sm:$0xff] %vm3038, %v1912
  %4738 = vst.msk [vmem:[#allocation2 + $0xd8] sm:$0xff] %vm3038, %v1913
  %4739 = vst.msk [vmem:[#allocation2 + $0xe0] sm:$0xff] %vm3038, %v1914
  %4740 = vst.msk [vmem:[#allocation2 + $0xe8] sm:$0xff] %vm3038, %v1915
  %4741 = vst.msk [vmem:[#allocation2 + $0xf0] sm:$0xff] %vm3038, %v1916
  %4742 = vst.msk [vmem:[#allocation2 + $0xf8] sm:$0xff] %vm3038, %v1917
  %4743 = vst.msk [vmem:[#allocation2 + $0x100] sm:$0xff] %vm3038, %v1918
  %4744 = vst.msk [vmem:[#allocation2 + $0x108] sm:$0xff] %vm3038, %v1919
  %4745 = vst.msk [vmem:[#allocation2 + $0x110] sm:$0xff] %vm3038, %v1920
  %4746 = vst.msk [vmem:[#allocation2 + $0x118] sm:$0xff] %vm3038, %v1921
  %4747 = vst.msk [vmem:[#allocation2 + $0x120] sm:$0xff] %vm3038, %v1922
  %4748 = vst.msk [vmem:[#allocation2 + $0x128] sm:$0xff] %vm3038, %v1923
  %4749 = vst.msk [vmem:[#allocation2 + $0x130] sm:$0xff] %vm3038, %v1924
  %4750 = vst.msk [vmem:[#allocation2 + $0x138] sm:$0xff] %vm3038, %v1925
  %4751 = vst.msk [vmem:[#allocation2 + $0x140] sm:$0xff] %vm3038, %v1926
  %4752 = vst.msk [vmem:[#allocation2 + $0x148] sm:$0xff] %vm3038, %v1927
  %4753 = vst.msk [vmem:[#allocation2 + $0x150] sm:$0xff] %vm3038, %v1928
  %4754 = vst.msk [vmem:[#allocation2 + $0x158] sm:$0xff] %vm3038, %v1929
  %4755 = vst.msk [vmem:[#allocation2 + $0x160] sm:$0xff] %vm3038, %v1930
  %4756 = vst.msk [vmem:[#allocation2 + $0x168] sm:$0xff] %vm3038, %v1931
  %4757 = vst.msk [vmem:[#allocation2 + $0x170] sm:$0xff] %vm3038, %v1932
  %4758 = vst.msk [vmem:[#allocation2 + $0x178] sm:$0xff] %vm3038, %v1933
  %4759 = vst.msk [vmem:[#allocation2 + $0x180] sm:$0xff] %vm3038, %v1934
  %4760 = vst.msk [vmem:[#allocation2 + $0x188] sm:$0xff] %vm3038, %v1935
  %4761 = vst.msk [vmem:[#allocation2 + $0x190] sm:$0xff] %vm3038, %v1936
  %4762 = vst.msk [vmem:[#allocation2 + $0x198] sm:$0xff] %vm3038, %v1937
  %4763 = vst.msk [vmem:[#allocation2 + $0x1a0] sm:$0xff] %vm3038, %v1938
  %4764 = vst.msk [vmem:[#allocation2 + $0x1a8] sm:$0xff] %vm3038, %v1939
  %4765 = vst.msk [vmem:[#allocation2 + $0x1b0] sm:$0xff] %vm3038, %v1940
  %4766 = vst.msk [vmem:[#allocation2 + $0x1b8] sm:$0xff] %vm3038, %v1941
  %4767 = vst.msk [vmem:[#allocation2 + $0x1c0] sm:$0xff] %vm3038, %v1942
  %4768 = vst.msk [vmem:[#allocation2 + $0x1c8] sm:$0xff] %vm3038, %v1943
  %4769 = vst.msk [vmem:[#allocation2 + $0x1d0] sm:$0xff] %vm3038, %v1944
  %4770 = vst.msk [vmem:[#allocation2 + $0x1d8] sm:$0xff] %vm3038, %v1945
  %4771 = vst.msk [vmem:[#allocation2 + $0x1e0] sm:$0xff] %vm3038, %v1946
  %4772 = vst.msk [vmem:[#allocation2 + $0x1e8] sm:$0xff] %vm3038, %v1947
  %4773 = vst.msk [vmem:[#allocation2 + $0x1f0] sm:$0xff] %vm3038, %v1948
  %4774 = vst.msk [vmem:[#allocation2 + $0x1f8] sm:$0xff] %vm3038, %v1949
  // Predicated region
  $region18: #{hpb_forward.10} parent=0 // pred_check
    %p4775 = pneg %p14
  $region19: #{hpb_forward.10} parent=0 // pred_check_branch
    %4777 = sbr.rel (%p4775) target = $region21
  $region20: #{hpb_forward.10} parent=0 // pred_region
    %v4778 = vld [vmem:[#allocation4] sm:$0xff]
    %v4779 = vld [vmem:[#allocation4 + $0x8] sm:$0xff]
    %v4780 = vld [vmem:[#allocation4 + $0x10] sm:$0xff]
    %v4781 = vld [vmem:[#allocation4 + $0x18] sm:$0xff]
    %v4782 = vld [vmem:[#allocation4 + $0x20] sm:$0xff]
    %v4783 = vld [vmem:[#allocation4 + $0x28] sm:$0xff]
    %v4784 = vld [vmem:[#allocation4 + $0x30] sm:$0xff]
    %v4785 = vld [vmem:[#allocation4 + $0x38] sm:$0xff]
    %v4786 = vld [vmem:[#allocation4 + $0x40] sm:$0xff]
    %v4787 = vld [vmem:[#allocation4 + $0x48] sm:$0xff]
    %v4788 = vld [vmem:[#allocation4 + $0x50] sm:$0xff]
    %v4789 = vld [vmem:[#allocation4 + $0x58] sm:$0xff]
    %v4790 = vld [vmem:[#allocation4 + $0x60] sm:$0xff]
    %v4791 = vld [vmem:[#allocation4 + $0x68] sm:$0xff]
    %v4792 = vld [vmem:[#allocation4 + $0x70] sm:$0xff]
    %v4793 = vld [vmem:[#allocation4 + $0x78] sm:$0xff]
    %v4794 = vld [vmem:[#allocation4 + $0x80] sm:$0xff]
    %v4795 = vld [vmem:[#allocation4 + $0x88] sm:$0xff]
    %v4796 = vld [vmem:[#allocation4 + $0x90] sm:$0xff]
    %v4797 = vld [vmem:[#allocation4 + $0x98] sm:$0xff]
    %v4798 = vld [vmem:[#allocation4 + $0xa0] sm:$0xff]
    %v4799 = vld [vmem:[#allocation4 + $0xa8] sm:$0xff]
    %v4800 = vld [vmem:[#allocation4 + $0xb0] sm:$0xff]
    %v4801 = vld [vmem:[#allocation4 + $0xb8] sm:$0xff]
    %v4802 = vld [vmem:[#allocation4 + $0xc0] sm:$0xff]
    %v4803 = vld [vmem:[#allocation4 + $0xc8] sm:$0xff]
    %v4804 = vld [vmem:[#allocation4 + $0xd0] sm:$0xff]
    %v4805 = vld [vmem:[#allocation4 + $0xd8] sm:$0xff]
    %v4806 = vld [vmem:[#allocation4 + $0xe0] sm:$0xff]
    %v4807 = vld [vmem:[#allocation4 + $0xe8] sm:$0xff]
    %v4808 = vld [vmem:[#allocation4 + $0xf0] sm:$0xff]
    %v4809 = vld [vmem:[#allocation4 + $0xf8] sm:$0xff]
    %v4810 = vld [vmem:[#allocation4 + $0x100] sm:$0xff]
    %v4811 = vld [vmem:[#allocation4 + $0x108] sm:$0xff]
    %v4812 = vld [vmem:[#allocation4 + $0x110] sm:$0xff]
    %v4813 = vld [vmem:[#allocation4 + $0x118] sm:$0xff]
    %v4814 = vld [vmem:[#allocation4 + $0x120] sm:$0xff]
    %v4815 = vld [vmem:[#allocation4 + $0x128] sm:$0xff]
    %v4816 = vld [vmem:[#allocation4 + $0x130] sm:$0xff]
    %v4817 = vld [vmem:[#allocation4 + $0x138] sm:$0xff]
    %v4818 = vld [vmem:[#allocation4 + $0x140] sm:$0xff]
    %v4819 = vld [vmem:[#allocation4 + $0x148] sm:$0xff]
    %v4820 = vld [vmem:[#allocation4 + $0x150] sm:$0xff]
    %v4821 = vld [vmem:[#allocation4 + $0x158] sm:$0xff]
    %v4822 = vld [vmem:[#allocation4 + $0x160] sm:$0xff]
    %v4823 = vld [vmem:[#allocation4 + $0x168] sm:$0xff]
    %v4824 = vld [vmem:[#allocation4 + $0x170] sm:$0xff]
    %v4825 = vld [vmem:[#allocation4 + $0x178] sm:$0xff]
    %v4826 = vld [vmem:[#allocation4 + $0x180] sm:$0xff]
    %v4827 = vld [vmem:[#allocation4 + $0x188] sm:$0xff]
    %v4828 = vld [vmem:[#allocation4 + $0x190] sm:$0xff]
    %v4829 = vld [vmem:[#allocation4 + $0x198] sm:$0xff]
    %v4830 = vld [vmem:[#allocation4 + $0x1a0] sm:$0xff]
    %v4831 = vld [vmem:[#allocation4 + $0x1a8] sm:$0xff]
    %v4832 = vld [vmem:[#allocation4 + $0x1b0] sm:$0xff]
    %v4833 = vld [vmem:[#allocation4 + $0x1b8] sm:$0xff]
    %v4834 = vld [vmem:[#allocation4 + $0x1c0] sm:$0xff]
    %v4835 = vld [vmem:[#allocation4 + $0x1c8] sm:$0xff]
    %v4836 = vld [vmem:[#allocation4 + $0x1d0] sm:$0xff]
    %v4837 = vld [vmem:[#allocation4 + $0x1d8] sm:$0xff]
    %v4838 = vld [vmem:[#allocation4 + $0x1e0] sm:$0xff]
    %v4839 = vld [vmem:[#allocation4 + $0x1e8] sm:$0xff]
    %v4840 = vld [vmem:[#allocation4 + $0x1f0] sm:$0xff]
    %v4841 = vld [vmem:[#allocation4 + $0x1f8] sm:$0xff]
    %v4842 = vld [vmem:[#allocation3] sm:$0xff]
    %v4843 = vld [vmem:[#allocation3 + $0x8] sm:$0xff]
    %v4844 = vld [vmem:[#allocation3 + $0x10] sm:$0xff]
    %v4845 = vld [vmem:[#allocation3 + $0x18] sm:$0xff]
    %v4846 = vld [vmem:[#allocation3 + $0x20] sm:$0xff]
    %v4847 = vld [vmem:[#allocation3 + $0x28] sm:$0xff]
    %v4848 = vld [vmem:[#allocation3 + $0x30] sm:$0xff]
    %v4849 = vld [vmem:[#allocation3 + $0x38] sm:$0xff]
    %v4850 = vld [vmem:[#allocation3 + $0x40] sm:$0xff]
    %v4851 = vld [vmem:[#allocation3 + $0x48] sm:$0xff]
    %v4852 = vld [vmem:[#allocation3 + $0x50] sm:$0xff]
    %v4853 = vld [vmem:[#allocation3 + $0x58] sm:$0xff]
    %v4854 = vld [vmem:[#allocation3 + $0x60] sm:$0xff]
    %v4855 = vld [vmem:[#allocation3 + $0x68] sm:$0xff]
    %v4856 = vld [vmem:[#allocation3 + $0x70] sm:$0xff]
    %v4857 = vld [vmem:[#allocation3 + $0x78] sm:$0xff]
    %v4858 = vld [vmem:[#allocation3 + $0x80] sm:$0xff]
    %v4859 = vld [vmem:[#allocation3 + $0x88] sm:$0xff]
    %v4860 = vld [vmem:[#allocation3 + $0x90] sm:$0xff]
    %v4861 = vld [vmem:[#allocation3 + $0x98] sm:$0xff]
    %v4862 = vld [vmem:[#allocation3 + $0xa0] sm:$0xff]
    %v4863 = vld [vmem:[#allocation3 + $0xa8] sm:$0xff]
    %v4864 = vld [vmem:[#allocation3 + $0xb0] sm:$0xff]
    %v4865 = vld [vmem:[#allocation3 + $0xb8] sm:$0xff]
    %v4866 = vld [vmem:[#allocation3 + $0xc0] sm:$0xff]
    %v4867 = vld [vmem:[#allocation3 + $0xc8] sm:$0xff]
    %v4868 = vld [vmem:[#allocation3 + $0xd0] sm:$0xff]
    %v4869 = vld [vmem:[#allocation3 + $0xd8] sm:$0xff]
    %v4870 = vld [vmem:[#allocation3 + $0xe0] sm:$0xff]
    %v4871 = vld [vmem:[#allocation3 + $0xe8] sm:$0xff]
    %v4872 = vld [vmem:[#allocation3 + $0xf0] sm:$0xff]
    %v4873 = vld [vmem:[#allocation3 + $0xf8] sm:$0xff]
    %v4874 = vld [vmem:[#allocation3 + $0x100] sm:$0xff]
    %v4875 = vld [vmem:[#allocation3 + $0x108] sm:$0xff]
    %v4876 = vld [vmem:[#allocation3 + $0x110] sm:$0xff]
    %v4877 = vld [vmem:[#allocation3 + $0x118] sm:$0xff]
    %v4878 = vld [vmem:[#allocation3 + $0x120] sm:$0xff]
    %v4879 = vld [vmem:[#allocation3 + $0x128] sm:$0xff]
    %v4880 = vld [vmem:[#allocation3 + $0x130] sm:$0xff]
    %v4881 = vld [vmem:[#allocation3 + $0x138] sm:$0xff]
    %v4882 = vld [vmem:[#allocation3 + $0x140] sm:$0xff]
    %v4883 = vld [vmem:[#allocation3 + $0x148] sm:$0xff]
    %v4884 = vld [vmem:[#allocation3 + $0x150] sm:$0xff]
    %v4885 = vld [vmem:[#allocation3 + $0x158] sm:$0xff]
    %v4886 = vld [vmem:[#allocation3 + $0x160] sm:$0xff]
    %v4887 = vld [vmem:[#allocation3 + $0x168] sm:$0xff]
    %v4888 = vld [vmem:[#allocation3 + $0x170] sm:$0xff]
    %v4889 = vld [vmem:[#allocation3 + $0x178] sm:$0xff]
    %v4890 = vld [vmem:[#allocation3 + $0x180] sm:$0xff]
    %v4891 = vld [vmem:[#allocation3 + $0x188] sm:$0xff]
    %v4892 = vld [vmem:[#allocation3 + $0x190] sm:$0xff]
    %v4893 = vld [vmem:[#allocation3 + $0x198] sm:$0xff]
    %v4894 = vld [vmem:[#allocation3 + $0x1a0] sm:$0xff]
    %v4895 = vld [vmem:[#allocation3 + $0x1a8] sm:$0xff]
    %v4896 = vld [vmem:[#allocation3 + $0x1b0] sm:$0xff]
    %v4897 = vld [vmem:[#allocation3 + $0x1b8] sm:$0xff]
    %v4898 = vld [vmem:[#allocation3 + $0x1c0] sm:$0xff]
    %v4899 = vld [vmem:[#allocation3 + $0x1c8] sm:$0xff]
    %v4900 = vld [vmem:[#allocation3 + $0x1d0] sm:$0xff]
    %v4901 = vld [vmem:[#allocation3 + $0x1d8] sm:$0xff]
    %v4902 = vld [vmem:[#allocation3 + $0x1e0] sm:$0xff]
    %v4903 = vld [vmem:[#allocation3 + $0x1e8] sm:$0xff]
    %v4904 = vld [vmem:[#allocation3 + $0x1f0] sm:$0xff]
    %v4905 = vld [vmem:[#allocation3 + $0x1f8] sm:$0xff]
    %v4906 = vrcp.pop %v4842
    %v4907 = vrcp.pop %v4843
    %v4908 = vrcp.pop %v4844
    %v4909 = vrcp.pop %v4845
    %v4910 = vrcp.pop %v4846
    %v4911 = vrcp.pop %v4847
    %v4912 = vrcp.pop %v4848
    %v4913 = vrcp.pop %v4849
    %v4914 = vrcp.pop %v4850
    %v4915 = vrcp.pop %v4851
    %v4916 = vrcp.pop %v4852
    %v4917 = vrcp.pop %v4853
    %v4918 = vrcp.pop %v4854
    %v4919 = vrcp.pop %v4855
    %v4920 = vrcp.pop %v4856
    %v4921 = vrcp.pop %v4857
    %v4922 = vrcp.pop %v4858
    %v4923 = vrcp.pop %v4859
    %v4924 = vrcp.pop %v4860
    %v4925 = vrcp.pop %v4861
    %v4926 = vrcp.pop %v4862
    %v4927 = vrcp.pop %v4863
    %v4928 = vrcp.pop %v4864
    %v4929 = vrcp.pop %v4865
    %v4930 = vrcp.pop %v4866
    %v4931 = vrcp.pop %v4867
    %v4932 = vrcp.pop %v4868
    %v4933 = vrcp.pop %v4869
    %v4934 = vrcp.pop %v4870
    %v4935 = vrcp.pop %v4871
    %v4936 = vrcp.pop %v4872
    %v4937 = vrcp.pop %v4873
    %v4938 = vrcp.pop %v4874
    %v4939 = vrcp.pop %v4875
    %v4940 = vrcp.pop %v4876
    %v4941 = vrcp.pop %v4877
    %v4942 = vrcp.pop %v4878
    %v4943 = vrcp.pop %v4879
    %v4944 = vrcp.pop %v4880
    %v4945 = vrcp.pop %v4881
    %v4946 = vrcp.pop %v4882
    %v4947 = vrcp.pop %v4883
    %v4948 = vrcp.pop %v4884
    %v4949 = vrcp.pop %v4885
    %v4950 = vrcp.pop %v4886
    %v4951 = vrcp.pop %v4887
    %v4952 = vrcp.pop %v4888
    %v4953 = vrcp.pop %v4889
    %v4954 = vrcp.pop %v4890
    %v4955 = vrcp.pop %v4891
    %v4956 = vrcp.pop %v4892
    %v4957 = vrcp.pop %v4893
    %v4958 = vrcp.pop %v4894
    %v4959 = vrcp.pop %v4895
    %v4960 = vrcp.pop %v4896
    %v4961 = vrcp.pop %v4897
    %v4962 = vrcp.pop %v4898
    %v4963 = vrcp.pop %v4899
    %v4964 = vrcp.pop %v4900
    %v4965 = vrcp.pop %v4901
    %v4966 = vrcp.pop %v4902
    %v4967 = vrcp.pop %v4903
    %v4968 = vrcp.pop %v4904
    %v4969 = vrcp.pop %v4905
    %4971 = vset.pattern.permute.xlu0 0
    %4972 = vperm.xlu0 %4971, %v4906
    %v4973 = vpop.permute.xlu0 %4972
    %4976 = vset.pattern.permute.xlu0 0
    %4977 = vperm.xlu0 %4976, %v4907
    %v4978 = vpop.permute.xlu0 %4977
    %4981 = vset.pattern.permute.xlu0 0
    %4982 = vperm.xlu0 %4981, %v4908
    %v4983 = vpop.permute.xlu0 %4982
    %4986 = vset.pattern.permute.xlu0 0
    %4987 = vperm.xlu0 %4986, %v4909
    %v4988 = vpop.permute.xlu0 %4987
    %4991 = vset.pattern.permute.xlu0 0
    %4992 = vperm.xlu0 %4991, %v4910
    %v4993 = vpop.permute.xlu0 %4992
    %4996 = vset.pattern.permute.xlu0 0
    %4997 = vperm.xlu0 %4996, %v4911
    %v4998 = vpop.permute.xlu0 %4997
    %5001 = vset.pattern.permute.xlu0 0
    %5002 = vperm.xlu0 %5001, %v4912
    %v5003 = vpop.permute.xlu0 %5002
    %5006 = vset.pattern.permute.xlu0 0
    %5007 = vperm.xlu0 %5006, %v4913
    %v5008 = vpop.permute.xlu0 %5007
    %5011 = vset.pattern.permute.xlu0 0
    %5012 = vperm.xlu0 %5011, %v4914
    %v5013 = vpop.permute.xlu0 %5012
    %5016 = vset.pattern.permute.xlu0 0
    %5017 = vperm.xlu0 %5016, %v4915
    %v5018 = vpop.permute.xlu0 %5017
    %5021 = vset.pattern.permute.xlu0 0
    %5022 = vperm.xlu0 %5021, %v4916
    %v5023 = vpop.permute.xlu0 %5022
    %5026 = vset.pattern.permute.xlu0 0
    %5027 = vperm.xlu0 %5026, %v4917
    %v5028 = vpop.permute.xlu0 %5027
    %5031 = vset.pattern.permute.xlu0 0
    %5032 = vperm.xlu0 %5031, %v4918
    %v5033 = vpop.permute.xlu0 %5032
    %5036 = vset.pattern.permute.xlu0 0
    %5037 = vperm.xlu0 %5036, %v4919
    %v5038 = vpop.permute.xlu0 %5037
    %5041 = vset.pattern.permute.xlu0 0
    %5042 = vperm.xlu0 %5041, %v4920
    %v5043 = vpop.permute.xlu0 %5042
    %5046 = vset.pattern.permute.xlu0 0
    %5047 = vperm.xlu0 %5046, %v4921
    %v5048 = vpop.permute.xlu0 %5047
    %5051 = vset.pattern.permute.xlu0 0
    %5052 = vperm.xlu0 %5051, %v4922
    %v5053 = vpop.permute.xlu0 %5052
    %5056 = vset.pattern.permute.xlu0 0
    %5057 = vperm.xlu0 %5056, %v4923
    %v5058 = vpop.permute.xlu0 %5057
    %5061 = vset.pattern.permute.xlu0 0
    %5062 = vperm.xlu0 %5061, %v4924
    %v5063 = vpop.permute.xlu0 %5062
    %5066 = vset.pattern.permute.xlu0 0
    %5067 = vperm.xlu0 %5066, %v4925
    %v5068 = vpop.permute.xlu0 %5067
    %5071 = vset.pattern.permute.xlu0 0
    %5072 = vperm.xlu0 %5071, %v4926
    %v5073 = vpop.permute.xlu0 %5072
    %5076 = vset.pattern.permute.xlu0 0
    %5077 = vperm.xlu0 %5076, %v4927
    %v5078 = vpop.permute.xlu0 %5077
    %5081 = vset.pattern.permute.xlu0 0
    %5082 = vperm.xlu0 %5081, %v4928
    %v5083 = vpop.permute.xlu0 %5082
    %5086 = vset.pattern.permute.xlu0 0
    %5087 = vperm.xlu0 %5086, %v4929
    %v5088 = vpop.permute.xlu0 %5087
    %5091 = vset.pattern.permute.xlu0 0
    %5092 = vperm.xlu0 %5091, %v4930
    %v5093 = vpop.permute.xlu0 %5092
    %5096 = vset.pattern.permute.xlu0 0
    %5097 = vperm.xlu0 %5096, %v4931
    %v5098 = vpop.permute.xlu0 %5097
    %5101 = vset.pattern.permute.xlu0 0
    %5102 = vperm.xlu0 %5101, %v4932
    %v5103 = vpop.permute.xlu0 %5102
    %5106 = vset.pattern.permute.xlu0 0
    %5107 = vperm.xlu0 %5106, %v4933
    %v5108 = vpop.permute.xlu0 %5107
    %5111 = vset.pattern.permute.xlu0 0
    %5112 = vperm.xlu0 %5111, %v4934
    %v5113 = vpop.permute.xlu0 %5112
    %5116 = vset.pattern.permute.xlu0 0
    %5117 = vperm.xlu0 %5116, %v4935
    %v5118 = vpop.permute.xlu0 %5117
    %5121 = vset.pattern.permute.xlu0 0
    %5122 = vperm.xlu0 %5121, %v4936
    %v5123 = vpop.permute.xlu0 %5122
    %5126 = vset.pattern.permute.xlu0 0
    %5127 = vperm.xlu0 %5126, %v4937
    %v5128 = vpop.permute.xlu0 %5127
    %5131 = vset.pattern.permute.xlu0 0
    %5132 = vperm.xlu0 %5131, %v4938
    %v5133 = vpop.permute.xlu0 %5132
    %5136 = vset.pattern.permute.xlu0 0
    %5137 = vperm.xlu0 %5136, %v4939
    %v5138 = vpop.permute.xlu0 %5137
    %5141 = vset.pattern.permute.xlu0 0
    %5142 = vperm.xlu0 %5141, %v4940
    %v5143 = vpop.permute.xlu0 %5142
    %5146 = vset.pattern.permute.xlu0 0
    %5147 = vperm.xlu0 %5146, %v4941
    %v5148 = vpop.permute.xlu0 %5147
    %5151 = vset.pattern.permute.xlu0 0
    %5152 = vperm.xlu0 %5151, %v4942
    %v5153 = vpop.permute.xlu0 %5152
    %5156 = vset.pattern.permute.xlu0 0
    %5157 = vperm.xlu0 %5156, %v4943
    %v5158 = vpop.permute.xlu0 %5157
    %5161 = vset.pattern.permute.xlu0 0
    %5162 = vperm.xlu0 %5161, %v4944
    %v5163 = vpop.permute.xlu0 %5162
    %5166 = vset.pattern.permute.xlu0 0
    %5167 = vperm.xlu0 %5166, %v4945
    %v5168 = vpop.permute.xlu0 %5167
    %5171 = vset.pattern.permute.xlu0 0
    %5172 = vperm.xlu0 %5171, %v4946
    %v5173 = vpop.permute.xlu0 %5172
    %5176 = vset.pattern.permute.xlu0 0
    %5177 = vperm.xlu0 %5176, %v4947
    %v5178 = vpop.permute.xlu0 %5177
    %5181 = vset.pattern.permute.xlu0 0
    %5182 = vperm.xlu0 %5181, %v4948
    %v5183 = vpop.permute.xlu0 %5182
    %5186 = vset.pattern.permute.xlu0 0
    %5187 = vperm.xlu0 %5186, %v4949
    %v5188 = vpop.permute.xlu0 %5187
    %5191 = vset.pattern.permute.xlu0 0
    %5192 = vperm.xlu0 %5191, %v4950
    %v5193 = vpop.permute.xlu0 %5192
    %5196 = vset.pattern.permute.xlu0 0
    %5197 = vperm.xlu0 %5196, %v4951
    %v5198 = vpop.permute.xlu0 %5197
    %5201 = vset.pattern.permute.xlu0 0
    %5202 = vperm.xlu0 %5201, %v4952
    %v5203 = vpop.permute.xlu0 %5202
    %5206 = vset.pattern.permute.xlu0 0
    %5207 = vperm.xlu0 %5206, %v4953
    %v5208 = vpop.permute.xlu0 %5207
    %5211 = vset.pattern.permute.xlu0 0
    %5212 = vperm.xlu0 %5211, %v4954
    %v5213 = vpop.permute.xlu0 %5212
    %5216 = vset.pattern.permute.xlu0 0
    %5217 = vperm.xlu0 %5216, %v4955
    %v5218 = vpop.permute.xlu0 %5217
    %5221 = vset.pattern.permute.xlu0 0
    %5222 = vperm.xlu0 %5221, %v4956
    %v5223 = vpop.permute.xlu0 %5222
    %5226 = vset.pattern.permute.xlu0 0
    %5227 = vperm.xlu0 %5226, %v4957
    %v5228 = vpop.permute.xlu0 %5227
    %5231 = vset.pattern.permute.xlu0 0
    %5232 = vperm.xlu0 %5231, %v4958
    %v5233 = vpop.permute.xlu0 %5232
    %5236 = vset.pattern.permute.xlu0 0
    %5237 = vperm.xlu0 %5236, %v4959
    %v5238 = vpop.permute.xlu0 %5237
    %5241 = vset.pattern.permute.xlu0 0
    %5242 = vperm.xlu0 %5241, %v4960
    %v5243 = vpop.permute.xlu0 %5242
    %5246 = vset.pattern.permute.xlu0 0
    %5247 = vperm.xlu0 %5246, %v4961
    %v5248 = vpop.permute.xlu0 %5247
    %5251 = vset.pattern.permute.xlu0 0
    %5252 = vperm.xlu0 %5251, %v4962
    %v5253 = vpop.permute.xlu0 %5252
    %5256 = vset.pattern.permute.xlu0 0
    %5257 = vperm.xlu0 %5256, %v4963
    %v5258 = vpop.permute.xlu0 %5257
    %5261 = vset.pattern.permute.xlu0 0
    %5262 = vperm.xlu0 %5261, %v4964
    %v5263 = vpop.permute.xlu0 %5262
    %5266 = vset.pattern.permute.xlu0 0
    %5267 = vperm.xlu0 %5266, %v4965
    %v5268 = vpop.permute.xlu0 %5267
    %5271 = vset.pattern.permute.xlu0 0
    %5272 = vperm.xlu0 %5271, %v4966
    %v5273 = vpop.permute.xlu0 %5272
    %5276 = vset.pattern.permute.xlu0 0
    %5277 = vperm.xlu0 %5276, %v4967
    %v5278 = vpop.permute.xlu0 %5277
    %5281 = vset.pattern.permute.xlu0 0
    %5282 = vperm.xlu0 %5281, %v4968
    %v5283 = vpop.permute.xlu0 %5282
    %5286 = vset.pattern.permute.xlu0 0
    %5287 = vperm.xlu0 %5286, %v4969
    %v5288 = vpop.permute.xlu0 %5287
    %v5290 = vmul.f32 %v4778, %v4973
    %v5291 = vmul.f32 %v4779, %v4978
    %v5292 = vmul.f32 %v4780, %v4983
    %v5293 = vmul.f32 %v4781, %v4988
    %v5294 = vmul.f32 %v4782, %v4993
    %v5295 = vmul.f32 %v4783, %v4998
    %v5296 = vmul.f32 %v4784, %v5003
    %v5297 = vmul.f32 %v4785, %v5008
    %v5298 = vmul.f32 %v4786, %v5013
    %v5299 = vmul.f32 %v4787, %v5018
    %v5300 = vmul.f32 %v4788, %v5023
    %v5301 = vmul.f32 %v4789, %v5028
    %v5302 = vmul.f32 %v4790, %v5033
    %v5303 = vmul.f32 %v4791, %v5038
    %v5304 = vmul.f32 %v4792, %v5043
    %v5305 = vmul.f32 %v4793, %v5048
    %v5306 = vmul.f32 %v4794, %v5053
    %v5307 = vmul.f32 %v4795, %v5058
    %v5308 = vmul.f32 %v4796, %v5063
    %v5309 = vmul.f32 %v4797, %v5068
    %v5310 = vmul.f32 %v4798, %v5073
    %v5311 = vmul.f32 %v4799, %v5078
    %v5312 = vmul.f32 %v4800, %v5083
    %v5313 = vmul.f32 %v4801, %v5088
    %v5314 = vmul.f32 %v4802, %v5093
    %v5315 = vmul.f32 %v4803, %v5098
    %v5316 = vmul.f32 %v4804, %v5103
    %v5317 = vmul.f32 %v4805, %v5108
    %v5318 = vmul.f32 %v4806, %v5113
    %v5319 = vmul.f32 %v4807, %v5118
    %v5320 = vmul.f32 %v4808, %v5123
    %v5321 = vmul.f32 %v4809, %v5128
    %v5322 = vmul.f32 %v4810, %v5133
    %v5323 = vmul.f32 %v4811, %v5138
    %v5324 = vmul.f32 %v4812, %v5143
    %v5325 = vmul.f32 %v4813, %v5148
    %v5326 = vmul.f32 %v4814, %v5153
    %v5327 = vmul.f32 %v4815, %v5158
    %v5328 = vmul.f32 %v4816, %v5163
    %v5329 = vmul.f32 %v4817, %v5168
    %v5330 = vmul.f32 %v4818, %v5173
    %v5331 = vmul.f32 %v4819, %v5178
    %v5332 = vmul.f32 %v4820, %v5183
    %v5333 = vmul.f32 %v4821, %v5188
    %v5334 = vmul.f32 %v4822, %v5193
    %v5335 = vmul.f32 %v4823, %v5198
    %v5336 = vmul.f32 %v4824, %v5203
    %v5337 = vmul.f32 %v4825, %v5208
    %v5338 = vmul.f32 %v4826, %v5213
    %v5339 = vmul.f32 %v4827, %v5218
    %v5340 = vmul.f32 %v4828, %v5223
    %v5341 = vmul.f32 %v4829, %v5228
    %v5342 = vmul.f32 %v4830, %v5233
    %v5343 = vmul.f32 %v4831, %v5238
    %v5344 = vmul.f32 %v4832, %v5243
    %v5345 = vmul.f32 %v4833, %v5248
    %v5346 = vmul.f32 %v4834, %v5253
    %v5347 = vmul.f32 %v4835, %v5258
    %v5348 = vmul.f32 %v4836, %v5263
    %v5349 = vmul.f32 %v4837, %v5268
    %v5350 = vmul.f32 %v4838, %v5273
    %v5351 = vmul.f32 %v4839, %v5278
    %v5352 = vmul.f32 %v4840, %v5283
    %v5353 = vmul.f32 %v4841, %v5288
    %5354 = vst.msk [vmem:[%s3] sm:$0xff] %vm404, %v5290
    %5355 = vst.msk [vmem:[%s3 + $0x8] sm:$0xff] %vm404, %v5291
    %5356 = vst.msk [vmem:[%s3 + $0x10] sm:$0xff] %vm404, %v5292
    %5357 = vst.msk [vmem:[%s3 + $0x18] sm:$0xff] %vm404, %v5293
    %5358 = vst.msk [vmem:[%s3 + $0x20] sm:$0xff] %vm404, %v5294
    %5359 = vst.msk [vmem:[%s3 + $0x28] sm:$0xff] %vm404, %v5295
    %5360 = vst.msk [vmem:[%s3 + $0x30] sm:$0xff] %vm404, %v5296
    %5361 = vst.msk [vmem:[%s3 + $0x38] sm:$0xff] %vm404, %v5297
    %5362 = vst.msk [vmem:[%s3 + $0x40] sm:$0xff] %vm404, %v5298
    %5363 = vst.msk [vmem:[%s3 + $0x48] sm:$0xff] %vm404, %v5299
    %5364 = vst.msk [vmem:[%s3 + $0x50] sm:$0xff] %vm404, %v5300
    %5365 = vst.msk [vmem:[%s3 + $0x58] sm:$0xff] %vm404, %v5301
    %5366 = vst.msk [vmem:[%s3 + $0x60] sm:$0xff] %vm404, %v5302
    %5367 = vst.msk [vmem:[%s3 + $0x68] sm:$0xff] %vm404, %v5303
    %5368 = vst.msk [vmem:[%s3 + $0x70] sm:$0xff] %vm404, %v5304
    %5369 = vst.msk [vmem:[%s3 + $0x78] sm:$0xff] %vm404, %v5305
    %5370 = vst.msk [vmem:[%s3 + $0x80] sm:$0xff] %vm404, %v5306
    %5371 = vst.msk [vmem:[%s3 + $0x88] sm:$0xff] %vm404, %v5307
    %5372 = vst.msk [vmem:[%s3 + $0x90] sm:$0xff] %vm404, %v5308
    %5373 = vst.msk [vmem:[%s3 + $0x98] sm:$0xff] %vm404, %v5309
    %5374 = vst.msk [vmem:[%s3 + $0xa0] sm:$0xff] %vm404, %v5310
    %5375 = vst.msk [vmem:[%s3 + $0xa8] sm:$0xff] %vm404, %v5311
    %5376 = vst.msk [vmem:[%s3 + $0xb0] sm:$0xff] %vm404, %v5312
    %5377 = vst.msk [vmem:[%s3 + $0xb8] sm:$0xff] %vm404, %v5313
    %5378 = vst.msk [vmem:[%s3 + $0xc0] sm:$0xff] %vm404, %v5314
    %5379 = vst.msk [vmem:[%s3 + $0xc8] sm:$0xff] %vm404, %v5315
    %5380 = vst.msk [vmem:[%s3 + $0xd0] sm:$0xff] %vm404, %v5316
    %5381 = vst.msk [vmem:[%s3 + $0xd8] sm:$0xff] %vm404, %v5317
    %5382 = vst.msk [vmem:[%s3 + $0xe0] sm:$0xff] %vm404, %v5318
    %5383 = vst.msk [vmem:[%s3 + $0xe8] sm:$0xff] %vm404, %v5319
    %5384 = vst.msk [vmem:[%s3 + $0xf0] sm:$0xff] %vm404, %v5320
    %5385 = vst.msk [vmem:[%s3 + $0xf8] sm:$0xff] %vm404, %v5321
    %5386 = vst.msk [vmem:[%s3 + $0x100] sm:$0xff] %vm404, %v5322
    %5387 = vst.msk [vmem:[%s3 + $0x108] sm:$0xff] %vm404, %v5323
    %5388 = vst.msk [vmem:[%s3 + $0x110] sm:$0xff] %vm404, %v5324
    %5389 = vst.msk [vmem:[%s3 + $0x118] sm:$0xff] %vm404, %v5325
    %5390 = vst.msk [vmem:[%s3 + $0x120] sm:$0xff] %vm404, %v5326
    %5391 = vst.msk [vmem:[%s3 + $0x128] sm:$0xff] %vm404, %v5327
    %5392 = vst.msk [vmem:[%s3 + $0x130] sm:$0xff] %vm404, %v5328
    %5393 = vst.msk [vmem:[%s3 + $0x138] sm:$0xff] %vm404, %v5329
    %5394 = vst.msk [vmem:[%s3 + $0x140] sm:$0xff] %vm404, %v5330
    %5395 = vst.msk [vmem:[%s3 + $0x148] sm:$0xff] %vm404, %v5331
    %5396 = vst.msk [vmem:[%s3 + $0x150] sm:$0xff] %vm404, %v5332
    %5397 = vst.msk [vmem:[%s3 + $0x158] sm:$0xff] %vm404, %v5333
    %5398 = vst.msk [vmem:[%s3 + $0x160] sm:$0xff] %vm404, %v5334
    %5399 = vst.msk [vmem:[%s3 + $0x168] sm:$0xff] %vm404, %v5335
    %5400 = vst.msk [vmem:[%s3 + $0x170] sm:$0xff] %vm404, %v5336
    %5401 = vst.msk [vmem:[%s3 + $0x178] sm:$0xff] %vm404, %v5337
    %5402 = vst.msk [vmem:[%s3 + $0x180] sm:$0xff] %vm404, %v5338
    %5403 = vst.msk [vmem:[%s3 + $0x188] sm:$0xff] %vm404, %v5339
    %5404 = vst.msk [vmem:[%s3 + $0x190] sm:$0xff] %vm404, %v5340
    %5405 = vst.msk [vmem:[%s3 + $0x198] sm:$0xff] %vm404, %v5341
    %5406 = vst.msk [vmem:[%s3 + $0x1a0] sm:$0xff] %vm404, %v5342
    %5407 = vst.msk [vmem:[%s3 + $0x1a8] sm:$0xff] %vm404, %v5343
    %5408 = vst.msk [vmem:[%s3 + $0x1b0] sm:$0xff] %vm404, %v5344
    %5409 = vst.msk [vmem:[%s3 + $0x1b8] sm:$0xff] %vm404, %v5345
    %5410 = vst.msk [vmem:[%s3 + $0x1c0] sm:$0xff] %vm404, %v5346
    %5411 = vst.msk [vmem:[%s3 + $0x1c8] sm:$0xff] %vm404, %v5347
    %5412 = vst.msk [vmem:[%s3 + $0x1d0] sm:$0xff] %vm404, %v5348
    %5413 = vst.msk [vmem:[%s3 + $0x1d8] sm:$0xff] %vm404, %v5349
    %5414 = vst.msk [vmem:[%s3 + $0x1e0] sm:$0xff] %vm404, %v5350
    %5415 = vst.msk [vmem:[%s3 + $0x1e8] sm:$0xff] %vm404, %v5351
    %5416 = vst.msk [vmem:[%s3 + $0x1f0] sm:$0xff] %vm404, %v5352
    %5417 = vst.msk [vmem:[%s3 + $0x1f8] sm:$0xff] %vm404, %v5353
  $region21: #{hpb_forward.10} parent=0 // pred_fallthru
    _
  // Predicated region
  $region22: #{hpb_forward.10} parent=0 // pred_check
    _
  $region23: #{hpb_forward.10} parent=0 // pred_check_branch
    %5419 = sbr.rel (0) target = $region25
  $region24: #{hpb_forward.10} parent=0 // pred_region
    _
  $region25: #{hpb_forward.10} parent=0 // pred_fallthru
    _
  // Predicated region
  $region26: #{hpb_forward.10} parent=0 // pred_check
    _
  $region27: #{hpb_forward.10} parent=0 // pred_check_branch
    %5421 = sbr.rel (0) target = $region29
  $region28: #{hpb_forward.10} parent=0 // pred_region
    _
  $region29: #{hpb_forward.10} parent=0 // pred_fallthru
    _

// kernel: hpb_forward.14
$region0: #{hpb_forward.14}
  #allocation0 [shape = 'u32[]', space=smem, size = 0x4, offset = 0x4, fixed_abs, tag = 'smem constant byte address 0x4 - core index']
  #allocation1 [shape = 'u32[144,128]{1,0:T(1,128)}', space=vmem, size = 0x12000, scoped, tag = 'internal scratch']
  %s0 = inlined_call_operand.vmem [shape: f32[2,10,10,16], index: 0, kind: input, shape index: {}]
  %s1 = inlined_call_operand.vmem [shape: f32[2,8,8,16], index: 1, kind: input, shape index: {}]
  %s2 = inlined_call_operand.vmem [shape: f32[9,16], index: 2, kind: input, shape index: {}]
  %s3 = inlined_call_operand.vmem [shape: f32[1,16], index: 3, kind: input, shape index: {}]
  %s4 = inlined_call_operand.vmem [shape: f32[2,8,8,16], index: 4, kind: output, shape index: {}]
  %s5 = sld [smem:[#allocation0]]
  $region49: #{hpb_forward.14} parent=0
    _
  %s7 = ssub.s32 1, %s5
  %s8 = scalar_select 0, %s7, %s5
  loop: start=0, step=1, limit=4
  $region2: #{hpb_forward.14} parent=0 // loop_pre_header
    _
  $region3: #{hpb_forward.14} parent=0 // loop_header
    %s10 = sphi 0, %s14
    %p11 = scmp.ge.s32.totalorder %s10, 4
    %s20 = sphi 0, %s22
    %s23 = sphi 0, %s20
    %s24 = sphi 0, %s23
    %s40 = sphi 0, %s24
    %s46 = sphi 0, %s48
    %s49 = sphi 0, %s46
    %s50 = sphi 0, %s49
    %s66 = sphi 0, %s50
    %s70 = sphi 0, %s70
    %s72 = sphi 0, %s70
    %s73 = sphi 0, %s72
    %s87 = sphi 0, %s73
    %s91 = sphi 0, %s91
    %s93 = sphi 0, %s91
    %s94 = sphi 0, %s93
    %s108 = sphi 0, %s94
    %s114 = sphi 0, %s116
    %s117 = sphi 0, %s114
    %s118 = sphi 0, %s117
    %s134 = sphi 0, %s118
  $region4: #{hpb_forward.14} parent=0 // loop_header_branch
    %13 = sbr.rel (%p11) target = $region8
  $region5: #{hpb_forward.14} parent=0 // loop_body
    %s15 = ssub.s32 %s10, 1
    %s16 = ssub.s32 %s10, 2
    %s17 = sadd.s32 %s10, 1
    %s18 = ssub.s32 %s10, %s17
    %p19 = scmp.eq.s32.totalorder %s18, 0
    %s21 = sadd.s32 %s20, 1
    %s22 = scalar_select %p19, %s20, %s21
    %p25 = pneg %p19
    %p26 = scmp.eq.s32.totalorder %s10, 1
    %p27 = por %p25, %p26
    %p28 = scmp.ne.s32.totalorder %s20, %s23
    %p29 = scmp.eq.s32.totalorder %s10, 0
    %p30 = por %p28, %p29
    %p31 = scmp.ne.s32.totalorder %s20, %s23
    %p32 = scmp.eq.s32.totalorder %s15, 1
    %p33 = por %p31, %p32
    %p34 = scmp.ne.s32.totalorder %s23, %s24
    %p35 = scmp.eq.s32.totalorder %s15, 0
    %p36 = por %p34, %p35
    %p37 = scmp.ne.s32.totalorder %s23, %s24
    %p38 = scmp.eq.s32.totalorder %s16, 1
    %p39 = por %p37, %p38
    %p41 = scmp.ne.s32.totalorder %s24, %s40
    %p42 = scmp.eq.s32.totalorder %s16, 0
    %p43 = por %p41, %p42
    %s44 = ssub.s32 %s10, %s17
    %p45 = scmp.eq.s32.totalorder %s44, 0
    %s47 = sadd.s32 %s46, 1
    %s48 = scalar_select %p45, %s46, %s47
    %p51 = pneg %p45
    %p52 = scmp.eq.s32.totalorder %s10, 1
    %p53 = por %p51, %p52
    %p54 = scmp.ne.s32.totalorder %s46, %s49
    %p55 = scmp.eq.s32.totalorder %s10, 0
    %p56 = por %p54, %p55
    %p57 = scmp.ne.s32.totalorder %s46, %s49
    %p58 = scmp.eq.s32.totalorder %s15, 1
    %p59 = por %p57, %p58
    %p60 = scmp.ne.s32.totalorder %s49, %s50
    %p61 = scmp.eq.s32.totalorder %s15, 0
    %p62 = por %p60, %p61
    %p63 = scmp.ne.s32.totalorder %s49, %s50
    %p64 = scmp.eq.s32.totalorder %s16, 1
    %p65 = por %p63, %p64
    %p67 = scmp.ne.s32.totalorder %s50, %s66
    %p68 = scmp.eq.s32.totalorder %s16, 0
    %p69 = por %p67, %p68
    %s71 = sadd.s32 %s70, 1
    %p74 = scmp.eq.s32.totalorder %s10, 1
    %p75 = scmp.ne.s32.totalorder %s70, %s72
    %p76 = scmp.eq.s32.totalorder %s10, 0
    %p77 = por %p75, %p76
    %p78 = scmp.ne.s32.totalorder %s70, %s72
    %p79 = scmp.eq.s32.totalorder %s15, 1
    %p80 = por %p78, %p79
    %p81 = scmp.ne.s32.totalorder %s72, %s73
    %p82 = scmp.eq.s32.totalorder %s15, 0
    %p83 = por %p81, %p82
    %p84 = scmp.ne.s32.totalorder %s72, %s73
    %p85 = scmp.eq.s32.totalorder %s16, 1
    %p86 = por %p84, %p85
    %p88 = scmp.ne.s32.totalorder %s73, %s87
    %p89 = scmp.eq.s32.totalorder %s16, 0
    %p90 = por %p88, %p89
    %s92 = sadd.s32 %s91, 1
    %p95 = scmp.eq.s32.totalorder %s10, 1
    %p96 = scmp.ne.s32.totalorder %s91, %s93
    %p97 = scmp.eq.s32.totalorder %s10, 0
    %p98 = por %p96, %p97
    %p99 = scmp.ne.s32.totalorder %s91, %s93
    %p100 = scmp.eq.s32.totalorder %s15, 1
    %p101 = por %p99, %p100
    %p102 = scmp.ne.s32.totalorder %s93, %s94
    %p103 = scmp.eq.s32.totalorder %s15, 0
    %p104 = por %p102, %p103
    %p105 = scmp.ne.s32.totalorder %s93, %s94
    %p106 = scmp.eq.s32.totalorder %s16, 1
    %p107 = por %p105, %p106
    %p109 = scmp.ne.s32.totalorder %s94, %s108
    %p110 = scmp.eq.s32.totalorder %s16, 0
    %p111 = por %p109, %p110
    %s112 = ssub.s32 %s10, %s17
    %p113 = scmp.eq.s32.totalorder %s112, 0
    %s115 = sadd.s32 %s114, 1
    %s116 = scalar_select %p113, %s114, %s115
    %p119 = pneg %p113
    %p120 = scmp.eq.s32.totalorder %s10, 1
    %p121 = por %p119, %p120
    %p122 = scmp.ne.s32.totalorder %s114, %s117
    %p123 = scmp.eq.s32.totalorder %s10, 0
    %p124 = por %p122, %p123
    %p125 = scmp.ne.s32.totalorder %s114, %s117
    %p126 = scmp.eq.s32.totalorder %s15, 1
    %p127 = por %p125, %p126
    %p128 = scmp.ne.s32.totalorder %s117, %s118
    %p129 = scmp.eq.s32.totalorder %s15, 0
    %p130 = por %p128, %p129
    %p131 = scmp.ne.s32.totalorder %s117, %s118
    %p132 = scmp.eq.s32.totalorder %s16, 1
    %p133 = por %p131, %p132
    %p135 = scmp.ne.s32.totalorder %s118, %s134
    %p136 = scmp.eq.s32.totalorder %s16, 0
    %p137 = por %p135, %p136
    %p138 = scmp.le.s32.totalorder 1, %s10
    %p139 = scmp.lt.s32.totalorder %s10, 3
    %p140 = pnand %p138, %p139
    %p141 = pneg %p140
    // Predicated region
    $region9: #{hpb_forward.14} parent=5 // pred_check
      _
    $region10: #{hpb_forward.14} parent=5 // pred_check_branch
      %143 = sbr.rel (%p140) target = $region12
    $region11: #{hpb_forward.14} parent=5 // pred_region
      %s144 = ssub.s32 %s10, 1
      // Predicated region
      $region13: #{hpb_forward.14} parent=11 // pred_check
        %p145 = pneg %p83
      $region14: #{hpb_forward.14} parent=11 // pred_check_branch
        %147 = sbr.rel (%p145) target = $region16
      $region15: #{hpb_forward.14} parent=11 // pred_region
        _
      $region16: #{hpb_forward.14} parent=11 // pred_fallthru
        _
      // Predicated region
      $region17: #{hpb_forward.14} parent=11 // pred_check
        %p148 = pneg %p104
      $region18: #{hpb_forward.14} parent=11 // pred_check_branch
        %150 = sbr.rel (%p148) target = $region20
      $region19: #{hpb_forward.14} parent=11 // pred_region
        _
      $region20: #{hpb_forward.14} parent=11 // pred_fallthru
        _
    $region12: #{hpb_forward.14} parent=5 // pred_fallthru
      _
    %p151 = scmp.lt.s32.totalorder %s10, 2
    // Predicated region
    $region21: #{hpb_forward.14} parent=5 // pred_check
      %p152 = pneg %p151
    $region22: #{hpb_forward.14} parent=5 // pred_check_branch
      %154 = sbr.rel (%p152) target = $region24
    $region23: #{hpb_forward.14} parent=5 // pred_region
      // Predicated region
      $region25: #{hpb_forward.14} parent=23 // pred_check
        %p155 = pneg %p30
      $region26: #{hpb_forward.14} parent=23 // pred_check_branch
        %157 = sbr.rel (%p155) target = $region28
      $region27: #{hpb_forward.14} parent=23 // pred_region
        %p158 = scmp.lt.s32.totalorder %s10, 1
        %s159 = scalar_select %p158, %s10, 1
        %s160 = smul.addr %s159, 20
        %s161 = smul.addr %s160, 8
        %s162 = scalar_lea.vmem %s0, %s161
      $region28: #{hpb_forward.14} parent=23 // pred_fallthru
        _
      // Predicated region
      $region29: #{hpb_forward.14} parent=23 // pred_check
        %p163 = pneg %p56
      $region30: #{hpb_forward.14} parent=23 // pred_check_branch
        %165 = sbr.rel (%p163) target = $region32
      $region31: #{hpb_forward.14} parent=23 // pred_region
        %p166 = scmp.lt.s32.totalorder %s10, 1
        %s167 = scalar_select %p166, %s10, 1
        %s168 = smul.addr %s167, 8
        %s169 = smul.addr %s168, 8
        %s170 = scalar_lea.vmem %s1, %s169
      $region32: #{hpb_forward.14} parent=23 // pred_fallthru
        _
    $region24: #{hpb_forward.14} parent=5 // pred_fallthru
      _
    %p171 = scmp.le.s32.totalorder 1, %s10
    %p172 = scmp.lt.s32.totalorder %s10, 3
    %p173 = pnand %p171, %p172
    %p174 = pneg %p173
    // Predicated region
    $region33: #{hpb_forward.14} parent=5 // pred_check
      _
    $region34: #{hpb_forward.14} parent=5 // pred_check_branch
      %176 = sbr.rel (%p173) target = $region36
    $region35: #{hpb_forward.14} parent=5 // pred_region
      %s177 = ssub.s32 %s10, 1
      %p178 = scmp.lt.s32.totalorder %s15, 1
      %s179 = scalar_select %p178, %s15, 1
      %s180 = smul.addr %s179, 20
      %s181 = smul.addr %s180, 8
      %s182 = scalar_lea.vmem %s0, %s181
      %p183 = pneg %p36
      %p184 = pneg %p33
      %p185 = scmp.lt.s32.totalorder %s15, 1
      %s186 = scalar_select %p185, %s15, 1
      %s187 = smul.addr %s186, 8
      %s188 = smul.addr %s187, 8
      %s189 = scalar_lea.vmem %s1, %s188
      %p190 = pneg %p62
      %p191 = pneg %p59
      %p192 = pneg %p83
      %p193 = pneg %p80
      %p194 = pneg %p104
      %p195 = pneg %p101
      %p196 = pneg %p130
      %p197 = pneg %p127
      %p198 = scmp.lt.s32.totalorder %s15, 1
      %s199 = scalar_select %p198, %s15, 1
      %s200 = smul.addr %s199, 8
      %s201 = smul.addr %s200, 8
      %s202 = scalar_lea.vmem %s4, %s201
      %p203 = scmp.lt.s32.totalorder %s15, 1
      %s204 = scalar_select %p203, %s15, 1
      %s205 = smul.addr %s204, 20
      %s206 = smul.addr %s205, 8
      %s207 = scalar_lea.vmem %s0, %s206
      %p208 = scmp.lt.s32.totalorder %s15, 1
      %s209 = scalar_select %p208, %s15, 1
      %s210 = smul.addr %s209, 8
      %s211 = smul.addr %s210, 8
      %s212 = scalar_lea.vmem %s1, %s211
      %p213 = scmp.lt.s32.totalorder %s15, 1
      %s214 = scalar_select %p213, %s15, 1
      %s215 = smul.addr %s214, 8
      %s216 = smul.addr %s215, 8
      %s217 = scalar_lea.vmem %s4, %s216
      %v218 = vld [vmem:[%s2] sm:$0xff]
      %v219 = vld [vmem:[%s2 + $0x8] sm:$0x1]
      %v220 = vld [vmem:[%s207] sm:$0xff]
      %v221 = vld [vmem:[%s207 + $0x10] sm:$0xff]
      %v222 = vld [vmem:[%s207 + $0x20] sm:$0xff]
      %v223 = vld [vmem:[%s207 + $0x30] sm:$0xff]
      %v224 = vld [vmem:[%s207 + $0x40] sm:$0xff]
      %v225 = vld [vmem:[%s207 + $0x50] sm:$0xff]
      %v226 = vld [vmem:[%s207 + $0x60] sm:$0xff]
      %v227 = vld [vmem:[%s207 + $0x70] sm:$0xff]
      %v228 = vlaneseq
      %v229 = vshrl.u32 %v228, 7
      %v230 = vsub.s32 0, %v229
      %v231 = vrot.slane %v218, %v230
      %v232 = vmul.f32 %v220, %v231
      %v233 = vmul.f32 %v221, %v231
      %v234 = vmul.f32 %v222, %v231
      %v235 = vmul.f32 %v223, %v231
      %v236 = vmul.f32 %v224, %v231
      %v237 = vmul.f32 %v225, %v231
      %v238 = vmul.f32 %v226, %v231
      %v239 = vmul.f32 %v227, %v231
      %v240 = vadd.f32 %v232, 0.0
      %v241 = vadd.f32 %v233, 0.0
      %v242 = vadd.f32 %v234, 0.0
      %v243 = vadd.f32 %v235, 0.0
      %v244 = vadd.f32 %v236, 0.0
      %v245 = vadd.f32 %v237, 0.0
      %v246 = vadd.f32 %v238, 0.0
      %v247 = vadd.f32 %v239, 0.0
      %v248 = vld [vmem:[%s207 + $0x1] sm:$0xff]
      %v249 = vld [vmem:[%s207 + $0x11] sm:$0xff]
      %v250 = vld [vmem:[%s207 + $0x21] sm:$0xff]
      %v251 = vld [vmem:[%s207 + $0x31] sm:$0xff]
      %v252 = vld [vmem:[%s207 + $0x41] sm:$0xff]
      %v253 = vld [vmem:[%s207 + $0x51] sm:$0xff]
      %v254 = vld [vmem:[%s207 + $0x61] sm:$0xff]
      %v255 = vld [vmem:[%s207 + $0x71] sm:$0xff]
      %v256 = vlaneseq
      %v257 = vshrl.u32 %v256, 7
      %v258 = vsub.s32 1, %v257
      %v259 = vrot.slane %v218, %v258
      %v260 = vmul.f32 %v248, %v259
      %v261 = vmul.f32 %v249, %v259
      %v262 = vmul.f32 %v250, %v259
      %v263 = vmul.f32 %v251, %v259
      %v264 = vmul.f32 %v252, %v259
      %v265 = vmul.f32 %v253, %v259
      %v266 = vmul.f32 %v254, %v259
      %v267 = vmul.f32 %v255, %v259
      %v268 = vadd.f32 %v240, %v260
      %v269 = vadd.f32 %v241, %v261
      %v270 = vadd.f32 %v242, %v262
      %v271 = vadd.f32 %v243, %v263
      %v272 = vadd.f32 %v244, %v264
      %v273 = vadd.f32 %v245, %v265
      %v274 = vadd.f32 %v246, %v266
      %v275 = vadd.f32 %v247, %v267
      %v276 = vld [vmem:[%s207 + $0x2] sm:$0xff]
      %v277 = vld [vmem:[%s207 + $0x12] sm:$0xff]
      %v278 = vld [vmem:[%s207 + $0x22] sm:$0xff]
      %v279 = vld [vmem:[%s207 + $0x32] sm:$0xff]
      %v280 = vld [vmem:[%s207 + $0x42] sm:$0xff]
      %v281 = vld [vmem:[%s207 + $0x52] sm:$0xff]
      %v282 = vld [vmem:[%s207 + $0x62] sm:$0xff]
      %v283 = vld [vmem:[%s207 + $0x72] sm:$0xff]
      %v284 = vlaneseq
      %v285 = vshrl.u32 %v284, 7
      %v286 = vsub.s32 2, %v285
      %v287 = vrot.slane %v218, %v286
      %v288 = vmul.f32 %v276, %v287
      %v289 = vmul.f32 %v277, %v287
      %v290 = vmul.f32 %v278, %v287
      %v291 = vmul.f32 %v279, %v287
      %v292 = vmul.f32 %v280, %v287
      %v293 = vmul.f32 %v281, %v287
      %v294 = vmul.f32 %v282, %v287
      %v295 = vmul.f32 %v283, %v287
      %v296 = vadd.f32 %v268, %v288
      %v297 = vadd.f32 %v269, %v289
      %v298 = vadd.f32 %v270, %v290
      %v299 = vadd.f32 %v271, %v291
      %v300 = vadd.f32 %v272, %v292
      %v301 = vadd.f32 %v273, %v293
      %v302 = vadd.f32 %v274, %v294
      %v303 = vadd.f32 %v275, %v295
      %s304 = scalar_lea.vmem %s207, 16
      %v305 = vld [vmem:[%s304] sm:$0xff]
      %v306 = vld [vmem:[%s304 + $0x10] sm:$0xff]
      %v307 = vld [vmem:[%s304 + $0x20] sm:$0xff]
      %v308 = vld [vmem:[%s304 + $0x30] sm:$0xff]
      %v309 = vld [vmem:[%s304 + $0x40] sm:$0xff]
      %v310 = vld [vmem:[%s304 + $0x50] sm:$0xff]
      %v311 = vld [vmem:[%s304 + $0x60] sm:$0xff]
      %v312 = vld [vmem:[%s304 + $0x70] sm:$0xff]
      %v313 = vlaneseq
      %v314 = vshrl.u32 %v313, 7
      %v315 = vsub.s32 3, %v314
      %v316 = vrot.slane %v218, %v315
      %v317 = vmul.f32 %v305, %v316
      %v318 = vmul.f32 %v306, %v316
      %v319 = vmul.f32 %v307, %v316
      %v320 = vmul.f32 %v308, %v316
      %v321 = vmul.f32 %v309, %v316
      %v322 = vmul.f32 %v310, %v316
      %v323 = vmul.f32 %v311, %v316
      %v324 = vmul.f32 %v312, %v316
      %v325 = vadd.f32 %v296, %v317
      %v326 = vadd.f32 %v297, %v318
      %v327 = vadd.f32 %v298, %v319
      %v328 = vadd.f32 %v299, %v320
      %v329 = vadd.f32 %v300, %v321
      %v330 = vadd.f32 %v301, %v322
      %v331 = vadd.f32 %v302, %v323
      %v332 = vadd.f32 %v303, %v324
      %v333 = vld [vmem:[%s304 + $0x1] sm:$0xff]
      %v334 = vld [vmem:[%s304 + $0x11] sm:$0xff]
      %v335 = vld [vmem:[%s304 + $0x21] sm:$0xff]
      %v336 = vld [vmem:[%s304 + $0x31] sm:$0xff]
      %v337 = vld [vmem:[%s304 + $0x41] sm:$0xff]
      %v338 = vld [vmem:[%s304 + $0x51] sm:$0xff]
      %v339 = vld [vmem:[%s304 + $0x61] sm:$0xff]
      %v340 = vld [vmem:[%s304 + $0x71] sm:$0xff]
      %v341 = vlaneseq
      %v342 = vshrl.u32 %v341, 7
      %v343 = vsub.s32 4, %v342
      %v344 = vrot.slane %v218, %v343
      %v345 = vmul.f32 %v333, %v344
      %v346 = vmul.f32 %v334, %v344
      %v347 = vmul.f32 %v335, %v344
      %v348 = vmul.f32 %v336, %v344
      %v349 = vmul.f32 %v337, %v344
      %v350 = vmul.f32 %v338, %v344
      %v351 = vmul.f32 %v339, %v344
      %v352 = vmul.f32 %v340, %v344
      %v353 = vadd.f32 %v325, %v345
      %v354 = vadd.f32 %v326, %v346
      %v355 = vadd.f32 %v327, %v347
      %v356 = vadd.f32 %v328, %v348
      %v357 = vadd.f32 %v329, %v349
      %v358 = vadd.f32 %v330, %v350
      %v359 = vadd.f32 %v331, %v351
      %v360 = vadd.f32 %v332, %v352
      %v361 = vld [vmem:[%s304 + $0x2] sm:$0xff]
      %v362 = vld [vmem:[%s304 + $0x12] sm:$0xff]
      %v363 = vld [vmem:[%s304 + $0x22] sm:$0xff]
      %v364 = vld [vmem:[%s304 + $0x32] sm:$0xff]
      %v365 = vld [vmem:[%s304 + $0x42] sm:$0xff]
      %v366 = vld [vmem:[%s304 + $0x52] sm:$0xff]
      %v367 = vld [vmem:[%s304 + $0x62] sm:$0xff]
      %v368 = vld [vmem:[%s304 + $0x72] sm:$0xff]
      %v369 = vlaneseq
      %v370 = vshrl.u32 %v369, 7
      %v371 = vsub.s32 5, %v370
      %v372 = vrot.slane %v218, %v371
      %v373 = vmul.f32 %v361, %v372
      %v374 = vmul.f32 %v362, %v372
      %v375 = vmul.f32 %v363, %v372
      %v376 = vmul.f32 %v364, %v372
      %v377 = vmul.f32 %v365, %v372
      %v378 = vmul.f32 %v366, %v372
      %v379 = vmul.f32 %v367, %v372
      %v380 = vmul.f32 %v368, %v372
      %v381 = vadd.f32 %v353, %v373
      %v382 = vadd.f32 %v354, %v374
      %v383 = vadd.f32 %v355, %v375
      %v384 = vadd.f32 %v356, %v376
      %v385 = vadd.f32 %v357, %v377
      %v386 = vadd.f32 %v358, %v378
      %v387 = vadd.f32 %v359, %v379
      %v388 = vadd.f32 %v360, %v380
      %s389 = scalar_lea.vmem %s207, 32
      %v390 = vld [vmem:[%s389] sm:$0xff]
      %v391 = vld [vmem:[%s389 + $0x10] sm:$0xff]
      %v392 = vld [vmem:[%s389 + $0x20] sm:$0xff]
      %v393 = vld [vmem:[%s389 + $0x30] sm:$0xff]
      %v394 = vld [vmem:[%s389 + $0x40] sm:$0xff]
      %v395 = vld [vmem:[%s389 + $0x50] sm:$0xff]
      %v396 = vld [vmem:[%s389 + $0x60] sm:$0xff]
      %v397 = vld [vmem:[%s389 + $0x70] sm:$0xff]
      %v398 = vlaneseq
      %v399 = vshrl.u32 %v398, 7
      %v400 = vsub.s32 6, %v399
      %v401 = vrot.slane %v218, %v400
      %v402 = vmul.f32 %v390, %v401
      %v403 = vmul.f32 %v391, %v401
      %v404 = vmul.f32 %v392, %v401
      %v405 = vmul.f32 %v393, %v401
      %v406 = vmul.f32 %v394, %v401
      %v407 = vmul.f32 %v395, %v401
      %v408 = vmul.f32 %v396, %v401
      %v409 = vmul.f32 %v397, %v401
      %v410 = vadd.f32 %v381, %v402
      %v411 = vadd.f32 %v382, %v403
      %v412 = vadd.f32 %v383, %v404
      %v413 = vadd.f32 %v384, %v405
      %v414 = vadd.f32 %v385, %v406
      %v415 = vadd.f32 %v386, %v407
      %v416 = vadd.f32 %v387, %v408
      %v417 = vadd.f32 %v388, %v409
      %v418 = vld [vmem:[%s389 + $0x1] sm:$0xff]
      %v419 = vld [vmem:[%s389 + $0x11] sm:$0xff]
      %v420 = vld [vmem:[%s389 + $0x21] sm:$0xff]
      %v421 = vld [vmem:[%s389 + $0x31] sm:$0xff]
      %v422 = vld [vmem:[%s389 + $0x41] sm:$0xff]
      %v423 = vld [vmem:[%s389 + $0x51] sm:$0xff]
      %v424 = vld [vmem:[%s389 + $0x61] sm:$0xff]
      %v425 = vld [vmem:[%s389 + $0x71] sm:$0xff]
      %v426 = vlaneseq
      %v427 = vshrl.u32 %v426, 7
      %v428 = vsub.s32 7, %v427
      %v429 = vrot.slane %v218, %v428
      %v430 = vmul.f32 %v418, %v429
      %v431 = vmul.f32 %v419, %v429
      %v432 = vmul.f32 %v420, %v429
      %v433 = vmul.f32 %v421, %v429
      %v434 = vmul.f32 %v422, %v429
      %v435 = vmul.f32 %v423, %v429
      %v436 = vmul.f32 %v424, %v429
      %v437 = vmul.f32 %v425, %v429
      %v438 = vadd.f32 %v410, %v430
      %v439 = vadd.f32 %v411, %v431
      %v440 = vadd.f32 %v412, %v432
      %v441 = vadd.f32 %v413, %v433
      %v442 = vadd.f32 %v414, %v434
      %v443 = vadd.f32 %v415, %v435
      %v444 = vadd.f32 %v416, %v436
      %v445 = vadd.f32 %v417, %v437
      %v446 = vld [vmem:[%s389 + $0x2] sm:$0xff]
      %v447 = vld [vmem:[%s389 + $0x12] sm:$0xff]
      %v448 = vld [vmem:[%s389 + $0x22] sm:$0xff]
      %v449 = vld [vmem:[%s389 + $0x32] sm:$0xff]
      %v450 = vld [vmem:[%s389 + $0x42] sm:$0xff]
      %v451 = vld [vmem:[%s389 + $0x52] sm:$0xff]
      %v452 = vld [vmem:[%s389 + $0x62] sm:$0xff]
      %v453 = vld [vmem:[%s389 + $0x72] sm:$0xff]
      %v454 = vlaneseq
      %v455 = vshrl.u32 %v454, 7
      %v456 = vsub.s32 0, %v455
      %v457 = vrot.slane %v219, %v456
      %v458 = vmul.f32 %v446, %v457
      %v459 = vmul.f32 %v447, %v457
      %v460 = vmul.f32 %v448, %v457
      %v461 = vmul.f32 %v449, %v457
      %v462 = vmul.f32 %v450, %v457
      %v463 = vmul.f32 %v451, %v457
      %v464 = vmul.f32 %v452, %v457
      %v465 = vmul.f32 %v453, %v457
      %v466 = vadd.f32 %v438, %v458
      %v467 = vadd.f32 %v439, %v459
      %v468 = vadd.f32 %v440, %v460
      %v469 = vadd.f32 %v441, %v461
      %v470 = vadd.f32 %v442, %v462
      %v471 = vadd.f32 %v443, %v463
      %v472 = vadd.f32 %v444, %v464
      %v473 = vadd.f32 %v445, %v465
      %v474 = vld [vmem:[%s3] sm:$0x1]
      %v476 = vlaneseq
      %v477 = vshrl.u32 %v476, 7
      %v478 = vsub.s32 0, %v477
      %v479 = vrot.slane %v474, %v478
      %v481 = vadd.f32 %v466, %v479
      %v482 = vadd.f32 %v467, %v479
      %v483 = vadd.f32 %v468, %v479
      %v484 = vadd.f32 %v469, %v479
      %v485 = vadd.f32 %v470, %v479
      %v486 = vadd.f32 %v471, %v479
      %v487 = vadd.f32 %v472, %v479
      %v488 = vadd.f32 %v473, %v479
      %vm489 = vcmask 130048
      %v490 = vsel %vm489, %v481, 0.0
      %v491 = vrot.slane %v490, 4
      %v492 = vadd.f32 %v490, %v491
      %v493 = vrot.slane %v492, 2
      %v494 = vadd.f32 %v492, %v493
      %v495 = vrot.slane %v494, 1
      %v496 = vadd.f32 %v494, %v495
      %v497 = vsel %vm489, %v482, 0.0
      %v498 = vrot.slane %v497, 4
      %v499 = vadd.f32 %v497, %v498
      %v500 = vrot.slane %v499, 2
      %v501 = vadd.f32 %v499, %v500
      %v502 = vrot.slane %v501, 1
      %v503 = vadd.f32 %v501, %v502
      %v504 = vsel %vm489, %v483, 0.0
      %v505 = vrot.slane %v504, 4
      %v506 = vadd.f32 %v504, %v505
      %v507 = vrot.slane %v506, 2
      %v508 = vadd.f32 %v506, %v507
      %v509 = vrot.slane %v508, 1
      %v510 = vadd.f32 %v508, %v509
      %v511 = vsel %vm489, %v484, 0.0
      %v512 = vrot.slane %v511, 4
      %v513 = vadd.f32 %v511, %v512
      %v514 = vrot.slane %v513, 2
      %v515 = vadd.f32 %v513, %v514
      %v516 = vrot.slane %v515, 1
      %v517 = vadd.f32 %v515, %v516
      %v518 = vsel %vm489, %v485, 0.0
      %v519 = vrot.slane %v518, 4
      %v520 = vadd.f32 %v518, %v519
      %v521 = vrot.slane %v520, 2
      %v522 = vadd.f32 %v520, %v521
      %v523 = vrot.slane %v522, 1
      %v524 = vadd.f32 %v522, %v523
      %v525 = vsel %vm489, %v486, 0.0
      %v526 = vrot.slane %v525, 4
      %v527 = vadd.f32 %v525, %v526
      %v528 = vrot.slane %v527, 2
      %v529 = vadd.f32 %v527, %v528
      %v530 = vrot.slane %v529, 1
      %v531 = vadd.f32 %v529, %v530
      %v532 = vsel %vm489, %v487, 0.0
      %v533 = vrot.slane %v532, 4
      %v534 = vadd.f32 %v532, %v533
      %v535 = vrot.slane %v534, 2
      %v536 = vadd.f32 %v534, %v535
      %v537 = vrot.slane %v536, 1
      %v538 = vadd.f32 %v536, %v537
      %v539 = vsel %vm489, %v488, 0.0
      %v540 = vrot.slane %v539, 4
      %v541 = vadd.f32 %v539, %v540
      %v542 = vrot.slane %v541, 2
      %v543 = vadd.f32 %v541, %v542
      %v544 = vrot.slane %v543, 1
      %v545 = vadd.f32 %v543, %v544
      %v546 = vrcp.pop 8.0
      %v547 = vmul.f32 %v496, %v546
      %v548 = vmul.f32 %v503, %v546
      %v549 = vmul.f32 %v510, %v546
      %v550 = vmul.f32 %v517, %v546
      %v551 = vmul.f32 %v524, %v546
      %v552 = vmul.f32 %v531, %v546
      %v553 = vmul.f32 %v538, %v546
      %v554 = vmul.f32 %v545, %v546
      %v555 = vsel %vm489, %v547, 0.0
      %v556 = vsel %vm489, %v548, 0.0
      %v557 = vadd.f32 %v555, %v556
      %v558 = vsel %vm489, %v549, 0.0
      %v559 = vadd.f32 %v557, %v558
      %v560 = vsel %vm489, %v550, 0.0
      %v561 = vadd.f32 %v559, %v560
      %v562 = vsel %vm489, %v551, 0.0
      %v563 = vadd.f32 %v561, %v562
      %v564 = vsel %vm489, %v552, 0.0
      %v565 = vadd.f32 %v563, %v564
      %v566 = vsel %vm489, %v553, 0.0
      %v567 = vadd.f32 %v565, %v566
      %v568 = vsel %vm489, %v554, 0.0
      %v569 = vadd.f32 %v567, %v568
      %v570 = vmul.f32 %v569, %v546
      %v571 = vsub.f32 %v481, %v570
      %v572 = vsub.f32 %v482, %v570
      %v573 = vsub.f32 %v483, %v570
      %v574 = vsub.f32 %v484, %v570
      %v575 = vsub.f32 %v485, %v570
      %v576 = vsub.f32 %v486, %v570
      %v577 = vsub.f32 %v487, %v570
      %v578 = vsub.f32 %v488, %v570
      %v579 = vmul.f32 %v571, %v571
      %v580 = vmul.f32 %v572, %v572
      %v581 = vmul.f32 %v573, %v573
      %v582 = vmul.f32 %v574, %v574
      %v583 = vmul.f32 %v575, %v575
      %v584 = vmul.f32 %v576, %v576
      %v585 = vmul.f32 %v577, %v577
      %v586 = vmul.f32 %v578, %v578
      %v587 = vsel %vm489, %v579, 0.0
      %v588 = vrot.slane %v587, 4
      %v589 = vadd.f32 %v587, %v588
      %v590 = vrot.slane %v589, 2
      %v591 = vadd.f32 %v589, %v590
      %v592 = vrot.slane %v591, 1
      %v593 = vadd.f32 %v591, %v592
      %v594 = vsel %vm489, %v580, 0.0
      %v595 = vrot.slane %v594, 4
      %v596 = vadd.f32 %v594, %v595
      %v597 = vrot.slane %v596, 2
      %v598 = vadd.f32 %v596, %v597
      %v599 = vrot.slane %v598, 1
      %v600 = vadd.f32 %v598, %v599
      %v601 = vsel %vm489, %v581, 0.0
      %v602 = vrot.slane %v601, 4
      %v603 = vadd.f32 %v601, %v602
      %v604 = vrot.slane %v603, 2
      %v605 = vadd.f32 %v603, %v604
      %v606 = vrot.slane %v605, 1
      %v607 = vadd.f32 %v605, %v606
      %v608 = vsel %vm489, %v582, 0.0
      %v609 = vrot.slane %v608, 4
      %v610 = vadd.f32 %v608, %v609
      %v611 = vrot.slane %v610, 2
      %v612 = vadd.f32 %v610, %v611
      %v613 = vrot.slane %v612, 1
      %v614 = vadd.f32 %v612, %v613
      %v615 = vsel %vm489, %v583, 0.0
      %v616 = vrot.slane %v615, 4
      %v617 = vadd.f32 %v615, %v616
      %v618 = vrot.slane %v617, 2
      %v619 = vadd.f32 %v617, %v618
      %v620 = vrot.slane %v619, 1
      %v621 = vadd.f32 %v619, %v620
      %v622 = vsel %vm489, %v584, 0.0
      %v623 = vrot.slane %v622, 4
      %v624 = vadd.f32 %v622, %v623
      %v625 = vrot.slane %v624, 2
      %v626 = vadd.f32 %v624, %v625
      %v627 = vrot.slane %v626, 1
      %v628 = vadd.f32 %v626, %v627
      %v629 = vsel %vm489, %v585, 0.0
      %v630 = vrot.slane %v629, 4
      %v631 = vadd.f32 %v629, %v630
      %v632 = vrot.slane %v631, 2
      %v633 = vadd.f32 %v631, %v632
      %v634 = vrot.slane %v633, 1
      %v635 = vadd.f32 %v633, %v634
      %v636 = vsel %vm489, %v586, 0.0
      %v637 = vrot.slane %v636, 4
      %v638 = vadd.f32 %v636, %v637
      %v639 = vrot.slane %v638, 2
      %v640 = vadd.f32 %v638, %v639
      %v641 = vrot.slane %v640, 1
      %v642 = vadd.f32 %v640, %v641
      %v643 = vmul.f32 %v593, %v546
      %v644 = vmul.f32 %v600, %v546
      %v645 = vmul.f32 %v607, %v546
      %v646 = vmul.f32 %v614, %v546
      %v647 = vmul.f32 %v621, %v546
      %v648 = vmul.f32 %v628, %v546
      %v649 = vmul.f32 %v635, %v546
      %v650 = vmul.f32 %v642, %v546
      %v651 = vsel %vm489, %v643, 0.0
      %v652 = vsel %vm489, %v644, 0.0
      %v653 = vadd.f32 %v651, %v652
      %v654 = vsel %vm489, %v645, 0.0
      %v655 = vadd.f32 %v653, %v654
      %v656 = vsel %vm489, %v646, 0.0
      %v657 = vadd.f32 %v655, %v656
      %v658 = vsel %vm489, %v647, 0.0
      %v659 = vadd.f32 %v657, %v658
      %v660 = vsel %vm489, %v648, 0.0
      %v661 = vadd.f32 %v659, %v660
      %v662 = vsel %vm489, %v649, 0.0
      %v663 = vadd.f32 %v661, %v662
      %v664 = vsel %vm489, %v650, 0.0
      %v665 = vadd.f32 %v663, %v664
      %v666 = vmul.f32 %v665, %v546
      %v667 = vadd.f32 %v666, 1e-05
      %v668 = vrsqrt.pop %v667
      %v669 = vmul.f32 %v571, %v668
      %v670 = vmul.f32 %v572, %v668
      %v671 = vmul.f32 %v573, %v668
      %v672 = vmul.f32 %v574, %v668
      %v673 = vmul.f32 %v575, %v668
      %v674 = vmul.f32 %v576, %v668
      %v675 = vmul.f32 %v577, %v668
      %v676 = vmul.f32 %v578, %v668
      %v677 = vmul.f32 %v669, 0.5
      %v678 = vmul.f32 %v670, 0.5
      %v679 = vmul.f32 %v671, 0.5
      %v680 = vmul.f32 %v672, 0.5
      %v681 = vmul.f32 %v673, 0.5
      %v682 = vmul.f32 %v674, 0.5
      %v683 = vmul.f32 %v675, 0.5
      %v684 = vmul.f32 %v676, 0.5
      %v685 = vmul.f32 %v669, 0.70710677
      %v686 = vmul.f32 %v670, 0.70710677
      %v687 = vmul.f32 %v671, 0.70710677
      %v688 = vmul.f32 %v672, 0.70710677
      %v689 = vmul.f32 %v673, 0.70710677
      %v690 = vmul.f32 %v674, 0.70710677
      %v691 = vmul.f32 %v675, 0.70710677
      %v692 = vmul.f32 %v676, 0.70710677
      %vm693 = vcmp.lt.f32.partialorder %v685, 0.0
      %vm694 = vcmp.lt.f32.partialorder %v686, 0.0
      %vm695 = vcmp.lt.f32.partialorder %v687, 0.0
      %vm696 = vcmp.lt.f32.partialorder %v688, 0.0
      %vm697 = vcmp.lt.f32.partialorder %v689, 0.0
      %vm698 = vcmp.lt.f32.partialorder %v690, 0.0
      %vm699 = vcmp.lt.f32.partialorder %v691, 0.0
      %vm700 = vcmp.lt.f32.partialorder %v692, 0.0
      %v701 = vsel %vm693, -1.0, 1.0
      %v702 = vsel %vm694, -1.0, 1.0
      %v703 = vsel %vm695, -1.0, 1.0
      %v704 = vsel %vm696, -1.0, 1.0
      %v705 = vsel %vm697, -1.0, 1.0
      %v706 = vsel %vm698, -1.0, 1.0
      %v707 = vsel %vm699, -1.0, 1.0
      %v708 = vsel %vm700, -1.0, 1.0
      %v709 = vand.u32 2147483647, %v685
      %v710 = vand.u32 2147483647, %v686
      %v711 = vand.u32 2147483647, %v687
      %v712 = vand.u32 2147483647, %v688
      %v713 = vand.u32 2147483647, %v689
      %v714 = vand.u32 2147483647, %v690
      %v715 = vand.u32 2147483647, %v691
      %v716 = vand.u32 2147483647, %v692
      %v717 = vmul.f32 %v709, 0.3275911
      %v718 = vmul.f32 %v710, 0.3275911
      %v719 = vmul.f32 %v711, 0.3275911
      %v720 = vmul.f32 %v712, 0.3275911
      %v721 = vmul.f32 %v713, 0.3275911
      %v722 = vmul.f32 %v714, 0.3275911
      %v723 = vmul.f32 %v715, 0.3275911
      %v724 = vmul.f32 %v716, 0.3275911
      %v725 = vadd.f32 %v717, 1.0
      %v726 = vadd.f32 %v718, 1.0
      %v727 = vadd.f32 %v719, 1.0
      %v728 = vadd.f32 %v720, 1.0
      %v729 = vadd.f32 %v721, 1.0
      %v730 = vadd.f32 %v722, 1.0
      %v731 = vadd.f32 %v723, 1.0
      %v732 = vadd.f32 %v724, 1.0
      %v733 = vrcp.pop %v725
      %v734 = vmul.f32 1.0, %v733
      %v735 = vrcp.pop %v726
      %v736 = vmul.f32 1.0, %v735
      %v737 = vrcp.pop %v727
      %v738 = vmul.f32 1.0, %v737
      %v739 = vrcp.pop %v728
      %v740 = vmul.f32 1.0, %v739
      %v741 = vrcp.pop %v729
      %v742 = vmul.f32 1.0, %v741
      %v743 = vrcp.pop %v730
      %v744 = vmul.f32 1.0, %v743
      %v745 = vrcp.pop %v731
      %v746 = vmul.f32 1.0, %v745
      %v747 = vrcp.pop %v732
      %v748 = vmul.f32 1.0, %v747
      %v749 = vmul.f32 %v734, 1.0614054
      %v750 = vmul.f32 %v736, 1.0614054
      %v751 = vmul.f32 %v738, 1.0614054
      %v752 = vmul.f32 %v740, 1.0614054
      %v753 = vmul.f32 %v742, 1.0614054
      %v754 = vmul.f32 %v744, 1.0614054
      %v755 = vmul.f32 %v746, 1.0614054
      %v756 = vmul.f32 %v748, 1.0614054
      %v757 = vadd.f32 %v749, -1.4531521
      %v758 = vadd.f32 %v750, -1.4531521
      %v759 = vadd.f32 %v751, -1.4531521
      %v760 = vadd.f32 %v752, -1.4531521
      %v761 = vadd.f32 %v753, -1.4531521
      %v762 = vadd.f32 %v754, -1.4531521
      %v763 = vadd.f32 %v755, -1.4531521
      %v764 = vadd.f32 %v756, -1.4531521
      %v765 = vmul.f32 %v757, %v734
      %v766 = vmul.f32 %v758, %v736
      %v767 = vmul.f32 %v759, %v738
      %v768 = vmul.f32 %v760, %v740
      %v769 = vmul.f32 %v761, %v742
      %v770 = vmul.f32 %v762, %v744
      %v771 = vmul.f32 %v763, %v746
      %v772 = vmul.f32 %v764, %v748
      %v773 = vadd.f32 %v765, 1.4214138
      %v774 = vadd.f32 %v766, 1.4214138
      %v775 = vadd.f32 %v767, 1.4214138
      %v776 = vadd.f32 %v768, 1.4214138
      %v777 = vadd.f32 %v769, 1.4214138
      %v778 = vadd.f32 %v770, 1.4214138
      %v779 = vadd.f32 %v771, 1.4214138
      %v780 = vadd.f32 %v772, 1.4214138
      %v781 = vmul.f32 %v773, %v734
      %v782 = vmul.f32 %v774, %v736
      %v783 = vmul.f32 %v775, %v738
      %v784 = vmul.f32 %v776, %v740
      %v785 = vmul.f32 %v777, %v742
      %v786 = vmul.f32 %v778, %v744
      %v787 = vmul.f32 %v779, %v746
      %v788 = vmul.f32 %v780, %v748
      %v789 = vadd.f32 %v781, -0.28449672
      %v790 = vadd.f32 %v782, -0.28449672
      %v791 = vadd.f32 %v783, -0.28449672
      %v792 = vadd.f32 %v784, -0.28449672
      %v793 = vadd.f32 %v785, -0.28449672
      %v794 = vadd.f32 %v786, -0.28449672
      %v795 = vadd.f32 %v787, -0.28449672
      %v796 = vadd.f32 %v788, -0.28449672
      %v797 = vmul.f32 %v789, %v734
      %v798 = vmul.f32 %v790, %v736
      %v799 = vmul.f32 %v791, %v738
      %v800 = vmul.f32 %v792, %v740
      %v801 = vmul.f32 %v793, %v742
      %v802 = vmul.f32 %v794, %v744
      %v803 = vmul.f32 %v795, %v746
      %v804 = vmul.f32 %v796, %v748
      %v805 = vadd.f32 %v797, 0.2548296
      %v806 = vadd.f32 %v798, 0.2548296
      %v807 = vadd.f32 %v799, 0.2548296
      %v808 = vadd.f32 %v800, 0.2548296
      %v809 = vadd.f32 %v801, 0.2548296
      %v810 = vadd.f32 %v802, 0.2548296
      %v811 = vadd.f32 %v803, 0.2548296
      %v812 = vadd.f32 %v804, 0.2548296
      %v813 = vmul.f32 %v805, %v734
      %v814 = vmul.f32 %v806, %v736
      %v815 = vmul.f32 %v807, %v738
      %v816 = vmul.f32 %v808, %v740
      %v817 = vmul.f32 %v809, %v742
      %v818 = vmul.f32 %v810, %v744
      %v819 = vmul.f32 %v811, %v746
      %v820 = vmul.f32 %v812, %v748
      %v821 = vsub.f32 0.0, %v709
      %v822 = vsub.f32 0.0, %v710
      %v823 = vsub.f32 0.0, %v711
      %v824 = vsub.f32 0.0, %v712
      %v825 = vsub.f32 0.0, %v713
      %v826 = vsub.f32 0.0, %v714
      %v827 = vsub.f32 0.0, %v715
      %v828 = vsub.f32 0.0, %v716
      %v829 = vmul.f32 %v821, %v709
      %v830 = vmul.f32 %v822, %v710
      %v831 = vmul.f32 %v823, %v711
      %v832 = vmul.f32 %v824, %v712
      %v833 = vmul.f32 %v825, %v713
      %v834 = vmul.f32 %v826, %v714
      %v835 = vmul.f32 %v827, %v715
      %v836 = vmul.f32 %v828, %v716
      %v837 = vmul.f32 %v829, 1.442695
      %v838 = vpow.pop %v837
      %v839 = vmul.f32 %v830, 1.442695
      %v840 = vpow.pop %v839
      %v841 = vmul.f32 %v831, 1.442695
      %v842 = vpow.pop %v841
      %v843 = vmul.f32 %v832, 1.442695
      %v844 = vpow.pop %v843
      %v845 = vmul.f32 %v833, 1.442695
      %v846 = vpow.pop %v845
      %v847 = vmul.f32 %v834, 1.442695
      %v848 = vpow.pop %v847
      %v849 = vmul.f32 %v835, 1.442695
      %v850 = vpow.pop %v849
      %v851 = vmul.f32 %v836, 1.442695
      %v852 = vpow.pop %v851
      %v853 = vmul.f32 %v813, %v838
      %v854 = vmul.f32 %v814, %v840
      %v855 = vmul.f32 %v815, %v842
      %v856 = vmul.f32 %v816, %v844
      %v857 = vmul.f32 %v817, %v846
      %v858 = vmul.f32 %v818, %v848
      %v859 = vmul.f32 %v819, %v850
      %v860 = vmul.f32 %v820, %v852
      %v861 = vsub.f32 1.0, %v853
      %v862 = vsub.f32 1.0, %v854
      %v863 = vsub.f32 1.0, %v855
      %v864 = vsub.f32 1.0, %v856
      %v865 = vsub.f32 1.0, %v857
      %v866 = vsub.f32 1.0, %v858
      %v867 = vsub.f32 1.0, %v859
      %v868 = vsub.f32 1.0, %v860
      %v869 = vmul.f32 %v701, %v861
      %v870 = vmul.f32 %v702, %v862
      %v871 = vmul.f32 %v703, %v863
      %v872 = vmul.f32 %v704, %v864
      %v873 = vmul.f32 %v705, %v865
      %v874 = vmul.f32 %v706, %v866
      %v875 = vmul.f32 %v707, %v867
      %v876 = vmul.f32 %v708, %v868
      %v877 = vadd.f32 %v869, 1.0
      %v878 = vadd.f32 %v870, 1.0
      %v879 = vadd.f32 %v871, 1.0
      %v880 = vadd.f32 %v872, 1.0
      %v881 = vadd.f32 %v873, 1.0
      %v882 = vadd.f32 %v874, 1.0
      %v883 = vadd.f32 %v875, 1.0
      %v884 = vadd.f32 %v876, 1.0
      %v885 = vmul.f32 %v677, %v877
      %v886 = vmul.f32 %v678, %v878
      %v887 = vmul.f32 %v679, %v879
      %v888 = vmul.f32 %v680, %v880
      %v889 = vmul.f32 %v681, %v881
      %v890 = vmul.f32 %v682, %v882
      %v891 = vmul.f32 %v683, %v883
      %v892 = vmul.f32 %v684, %v884
      %v893 = vld [vmem:[%s212] sm:$0xff]
      %v894 = vld [vmem:[%s212 + $0x8] sm:$0xff]
      %v895 = vld [vmem:[%s212 + $0x10] sm:$0xff]
      %v896 = vld [vmem:[%s212 + $0x18] sm:$0xff]
      %v897 = vld [vmem:[%s212 + $0x20] sm:$0xff]
      %v898 = vld [vmem:[%s212 + $0x28] sm:$0xff]
      %v899 = vld [vmem:[%s212 + $0x30] sm:$0xff]
      %v900 = vld [vmem:[%s212 + $0x38] sm:$0xff]
      %v901 = vadd.f32 %v885, %v893
      %v902 = vadd.f32 %v886, %v894
      %v903 = vadd.f32 %v887, %v895
      %v904 = vadd.f32 %v888, %v896
      %v905 = vadd.f32 %v889, %v897
      %v906 = vadd.f32 %v890, %v898
      %v907 = vadd.f32 %v891, %v899
      %v908 = vadd.f32 %v892, %v900
      %909 = vst.msk [vmem:[%s217] sm:$0xff] %vm489, %v901
      %910 = vst.msk [vmem:[%s217 + $0x8] sm:$0xff] %vm489, %v902
      %911 = vst.msk [vmem:[%s217 + $0x10] sm:$0xff] %vm489, %v903
      %912 = vst.msk [vmem:[%s217 + $0x18] sm:$0xff] %vm489, %v904
      %913 = vst.msk [vmem:[%s217 + $0x20] sm:$0xff] %vm489, %v905
      %914 = vst.msk [vmem:[%s217 + $0x28] sm:$0xff] %vm489, %v906
      %915 = vst.msk [vmem:[%s217 + $0x30] sm:$0xff] %vm489, %v907
      %916 = vst.msk [vmem:[%s217 + $0x38] sm:$0xff] %vm489, %v908
      %p917 = scmp.lt.s32.totalorder %s15, 1
      %s918 = scalar_select %p917, %s15, 1
      %s919 = smul.addr %s918, 8
      %s920 = smul.addr %s919, 8
      %s921 = scalar_lea.vmem %s4, %s920
      // Predicated region
      $region37: #{hpb_forward.14} parent=35 // pred_check
        %p922 = pneg %p127
      $region38: #{hpb_forward.14} parent=35 // pred_check_branch
        %924 = sbr.rel (%p922) target = $region40
      $region39: #{hpb_forward.14} parent=35 // pred_region
        _
      $region40: #{hpb_forward.14} parent=35 // pred_fallthru
        _
    $region36: #{hpb_forward.14} parent=5 // pred_fallthru
      _
    %p925 = scmp.le.s32.totalorder 2, %s10
    // Predicated region
    $region41: #{hpb_forward.14} parent=5 // pred_check
      %p926 = pneg %p925
    $region42: #{hpb_forward.14} parent=5 // pred_check_branch
      %928 = sbr.rel (%p926) target = $region44
    $region43: #{hpb_forward.14} parent=5 // pred_region
      %s929 = ssub.s32 %s10, 2
      // Predicated region
      $region45: #{hpb_forward.14} parent=43 // pred_check
        %p930 = pneg %p133
      $region46: #{hpb_forward.14} parent=43 // pred_check_branch
        %932 = sbr.rel (%p930) target = $region48
      $region47: #{hpb_forward.14} parent=43 // pred_region
        %p933 = scmp.lt.s32.totalorder %s16, 1
        %s934 = scalar_select %p933, %s16, 1
        %s935 = smul.addr %s934, 8
        %s936 = smul.addr %s935, 8
        %s937 = scalar_lea.vmem %s4, %s936
      $region48: #{hpb_forward.14} parent=43 // pred_fallthru
        _
    $region44: #{hpb_forward.14} parent=5 // pred_fallthru
      _
  $region6: #{hpb_forward.14} parent=0 // loop_footer
    %s14 = sadd.s32 1, %s10
  $region7: #{hpb_forward.14} parent=0 // loop_footer_branch
    %9 = sbr.rel target = $region3
  $region8: #{hpb_forward.14} parent=0 // loop_exit
    _

</llo_original>
